<compile_context>
chip_gen: v5e
topology: v5e:2x2
jax: 0.10.0
libtpu: 0.0.40
codegen_flags: <defaults>
</compile_context>

<pallas_src>
import functools

import jax
import jax.numpy as jnp
import numpy as np
from jax.experimental import pallas as pl
from jax.experimental.pallas import tpu as pltpu

EPS = 1e-5      # torch GroupNorm default eps
LANE = 128      # TPU lane width


def _round_up(x, m):
    return (x + m - 1) // m * m


# ------------------------------ in-kernel helpers ------------------------------

def _groupnorm(acc, gamma, beta, hw):
    """GroupNorm(groups == channels) over rows of an (HW, C) f32 tile.

    Centered (two-pass) variance for numerical robustness; biased variance matches
    torch.  gamma/beta are (1, C); zero-padded channels come out exactly zero.
    """
    inv = 1.0 / hw
    mean = jnp.sum(acc, axis=0, keepdims=True) * inv
    cen = acc - mean
    var = jnp.sum(cen * cen, axis=0, keepdims=True) * inv
    scale = jax.lax.rsqrt(var + EPS) * gamma            # rsqrt -> EUP slot
    return cen * scale + beta


def _conv3x3_grouped(src_ref, w_ref, Ho, Wo, w_off):
    """stride-1 3x3 conv as 3 K-grouped MXU matmuls (one per kh).

    src_ref : (>= Ho+2, >= w_off+Wo+2, C) halo-padded bf16 ref; output column w, tap
              kw reads src[:, w_off + w + kw, :].
    w_ref   : (3, 3*C, Ppad) bf16 ref; rows [kw*C:(kw+1)*C] of w_ref[kh] hold the
              (C, Ppad) matrix of tap (kh, kw).
    """
    C = src_ref.shape[-1]
    HW = Ho * Wo
    acc = None
    for kh in range(3):
        slab = src_ref[pl.ds(kh, Ho), :, :]             # aligned slab load (H offset only)
        lhs = jnp.concatenate(
            [slab[:, w_off + kw: w_off + kw + Wo, :] for kw in range(3)],
            axis=-1).reshape(HW, 3 * C).astype(w_ref.dtype)
        part = jnp.dot(lhs, w_ref[kh], preferred_element_type=jnp.float32)
        acc = part if acc is None else acc + part
    return acc


def _conv3x3_strided(src_ref, w_ref, Ho, Wo, stride):
    """Per-tap fallback for stride > 1.
    TODO(synk): strided sublane windows are functional but unoptimized; this path is
    not exercised by the demo below."""
    C = src_ref.shape[-1]
    HW = Ho * Wo
    acc = None
    for kh in range(3):
        for kw in range(3):
            sl = src_ref[pl.ds(kh, Ho, stride), pl.ds(kw, Wo, stride), :]
            lhs = sl.reshape(HW, C).astype(w_ref.dtype)
            part = jnp.dot(lhs, w_ref[kh, pl.ds(kw * C, C), :],
                           preferred_element_type=jnp.float32)
            acc = part if acc is None else acc + part
    return acc


# --------------------------------- the kernel -----------------------------------

def _basic_block_kernel(*refs, stride, Ho, Wo, has_proj):
    if has_proj:
        (x_ref, w1_ref, g1_ref, b1_ref, w2_ref, g2_ref, b2_ref,
         wsc_ref, gsc_ref, bsc_ref, o_ref, y1_ref) = refs
    else:
        (x_ref, w1_ref, g1_ref, b1_ref, w2_ref, g2_ref, b2_ref,
         o_ref, y1_ref) = refs

    HW = Ho * Wo
    Ppad = w1_ref.shape[-1]
    Cpad = x_ref.shape[-1]
    Wsc = y1_ref.shape[1]                 # Wo + 4 (word-aligned bf16 halo scratch)

    # ---- shortcut first (keeps fewer big f32 temporaries alive at once) ----
    if stride == 1:
        xs = x_ref[pl.ds(1, Ho), :, :][:, 1:1 + Wo, :]   # aligned slab + in-reg slice
    else:
        xs = x_ref[pl.ds(1, Ho, stride), pl.ds(1, Wo, stride), :]
    xs = xs.reshape(HW, Cpad)
    if has_proj:
        accs = jnp.dot(xs.astype(wsc_ref.dtype), wsc_ref[...],
                       preferred_element_type=jnp.float32)
        shortcut = _groupnorm(accs, gsc_ref[...], bsc_ref[...], HW)
    else:
        # Identity shortcut adds the bf16-rounded input (wrapper casts x to bf16 for
        # the MXU / half the DMA bytes): ~1e-2-level extra error vs. the f32 ref.
        shortcut = xs.astype(jnp.float32)

    # ---- stage 1: conv1 -> GroupNorm -> ReLU, kept in a bf16 VMEM halo scratch ----
    if stride == 1:
        acc1 = _conv3x3_grouped(x_ref, w1_ref, Ho, Wo, w_off=0)
    else:
        acc1 = _conv3x3_strided(x_ref, w1_ref, Ho, Wo, stride)
    y1 = jnp.maximum(_groupnorm(acc1, g1_ref[...], b1_ref[...], HW), 0.0)
    y1 = y1.reshape(Ho, Wo, Ppad).astype(y1_ref.dtype)

    # Zero only the 1-px halo border (interior is overwritten every step).  Column
    # strips are width-2 at even offsets and the interior sits at column offset 2,
    # so every bf16 store stays aligned to the 32-bit sublane packing.
    zrow = jnp.zeros((1, Wsc, Ppad), y1_ref.dtype)
    zcol = jnp.zeros((Ho + 2, 2, Ppad), y1_ref.dtype)
    y1_ref[pl.ds(0, 1), :, :] = zrow
    y1_ref[pl.ds(Ho + 1, 1), :, :] = zrow
    y1_ref[:, pl.ds(0, 2), :] = zcol
    y1_ref[:, pl.ds(Wo + 2, 2), :] = zcol
    y1_ref[pl.ds(1, Ho), pl.ds(2, Wo), :] = y1

    # ---- stage 2: conv2 -> GroupNorm ----
    acc2 = _conv3x3_grouped(y1_ref, w2_ref, Ho, Wo, w_off=1)
    main = _groupnorm(acc2, g2_ref[...], b2_ref[...], HW)

    # ---- residual add + final ReLU, lane-dense bf16 store ----
    o_ref[...] = jnp.maximum(main + shortcut,
                             0.0).reshape(Ho, Wo, Ppad).astype(o_ref.dtype)


# ------------------------------- host-side wrapper -------------------------------

def _vmem_limit_bytes():
    """Generation-aware scoped-VMEM limit (~75% of physical, capped at 100 MiB):
    v5e/v6e (128 MiB phys) -> ~96 MiB, v7x (64 MiB phys) -> 48 MiB."""
    cap = 128 * 1024 * 1024
    try:
        cap = int(getattr(pltpu.get_tpu_info(), "vmem_capacity_bytes", cap))
    except Exception:
        pass
    return int(min(cap * 3 // 4, 100 * 1024 * 1024))


def pack_params(params):
    """One-time repack of torch-layout params into the kernel layout.
    Cache the result and reuse it across calls (do not rebuild per forward)."""
    P, Cin = params["w1"].shape[0], params["w1"].shape[1]
    Cpad, Ppad = _round_up(Cin, LANE), _round_up(P, LANE)

    def conv_w(w, cin, cpad):
        # (P, cin, 3, 3) -> (3, 3*cpad, Ppad); rows [kw*cpad:(kw+1)*cpad] = tap (kh,kw)
        m = jnp.transpose(w, (2, 3, 1, 0))                        # (3, 3, cin, P)
        m = jnp.pad(m, ((0, 0), (0, 0), (0, cpad - cin), (0, Ppad - w.shape[0])))
        return m.reshape(3, 3 * cpad, Ppad).astype(jnp.bfloat16)

    def vec(v):                                                   # (P,) -> (1, Ppad)
        return jnp.pad(v, (0, Ppad - P)).reshape(1, Ppad).astype(jnp.float32)

    packed = {
        "w1": conv_w(params["w1"], Cin, Cpad),
        "g1": vec(params["g1"]), "b1": vec(params["b1"]),
        "w2": conv_w(params["w2"], P, Ppad),
        "g2": vec(params["g2"]), "b2": vec(params["b2"]),
    }
    if "wsc" in params:
        packed["wsc"] = jnp.pad(params["wsc"][:, :, 0, 0].T,
                                ((0, Cpad - Cin), (0, Ppad - P))).astype(jnp.bfloat16)
        packed["gsc"] = vec(params["gsc"])
        packed["bsc"] = vec(params["bsc"])
    return packed


@functools.partial(jax.jit, static_argnames=("stride", "planes"))
def basic_block_forward(x_nchw, packed, *, stride, planes):
    """Fused BasicBlock forward.  x_nchw: (N, Cin, H, W) f32; returns NCHW f32.

    For a chain of blocks, keep the kernel's padded-NHWC bf16 output layout and skip
    the tail slice / cast / transpose done here only for the reference comparison.
    """
    N, Cin, H, W = x_nchw.shape
    Cpad = _round_up(Cin, LANE)
    Ppad = packed["w1"].shape[-1]
    Ho = (H - 1) // stride + 1
    Wo = (W - 1) // stride + 1
    has_proj = "wsc" in packed

    # Single fused (under jit) preprocessing pass: NCHW -> halo+channel padded NHWC bf16.
    # NOTE: 128-lane channel padding is right for real ResNet widths but is mostly
    # wasted work at the tiny demo C/P (accepted; see perf review).
    x = jnp.transpose(x_nchw, (0, 2, 3, 1))
    xpad = jnp.pad(x, ((0, 0), (1, 1), (1, 1), (0, Cpad - Cin))).astype(jnp.bfloat16)

    def full(shape):
        nd = len(shape)
        return pl.BlockSpec(shape, lambda n, _nd=nd: (0,) * _nd)

    def per_image(shape):
        nd = len(shape)
        return pl.BlockSpec((pl.Squeezed(),) + tuple(shape),
                            lambda n, _nd=nd: (n,) + (0,) * _nd)

    in_specs = [per_image((H + 2, W + 2, Cpad)),
                full(packed["w1"].shape), full((1, Ppad)), full((1, Ppad)),
                full(packed["w2"].shape), full((1, Ppad)), full((1, Ppad))]
    inputs = [xpad, packed["w1"], packed["g1"], packed["b1"],
              packed["w2"], packed["g2"], packed["b2"]]
    if has_proj:
        in_specs += [full(packed["wsc"].shape), full((1, Ppad)), full((1, Ppad))]
        inputs += [packed["wsc"], packed["gsc"], packed["bsc"]]

    kernel = functools.partial(_basic_block_kernel, stride=stride,
                               Ho=Ho, Wo=Wo, has_proj=has_proj)

    out = pl.pallas_call(
        kernel,
        out_shape=jax.ShapeDtypeStruct((N, Ho, Wo, Ppad), jnp.bfloat16),
        grid=(N,),
        in_specs=in_specs,
        out_specs=per_image((Ho, Wo, Ppad)),
        scratch_shapes=[pltpu.VMEM((Ho + 2, Wo + 4, Ppad), jnp.bfloat16)],
        compiler_params=pltpu.CompilerParams(
            dimension_semantics=("parallel",),     # N>=2 feeds both TCs on v7x
            vmem_limit_bytes=_vmem_limit_bytes()),
    )(*inputs)

    out = out[..., :planes].astype(jnp.float32)      # drop lane padding
    return jnp.transpose(out, (0, 3, 1, 2))          # NHWC -> NCHW (test convenience)


def init_params(key, in_planes, planes, stride):
    ks = jax.random.split(key, 9)
    params = {
        "w1": 0.1 * jax.random.normal(ks[0], (planes, in_planes, 3, 3), jnp.float32),
        "g1": 1.0 + 0.05 * jax.random.normal(ks[1], (planes,), jnp.float32),
        "b1": 0.05 * jax.random.normal(ks[2], (planes,), jnp.float32),
        "w2": 0.1 * jax.random.normal(ks[3], (planes, planes, 3, 3), jnp.float32),
        "g2": 1.0 + 0.05 * jax.random.normal(ks[4], (planes,), jnp.float32),
        "b2": 0.05 * jax.random.normal(ks[5], (planes,), jnp.float32),
    }
    if stride != 1 or in_planes != planes:
        params["wsc"] = 0.1 * jax.random.normal(ks[6], (planes, in_planes, 1, 1), jnp.float32)
        params["gsc"] = 1.0 + 0.05 * jax.random.normal(ks[7], (planes,), jnp.float32)
        params["bsc"] = 0.05 * jax.random.normal(ks[8], (planes,), jnp.float32)
    return params


# ----------------------------- pure-JAX reference check ---------------------------

def _gn_ref(x, g, b):
    m = x.mean(axis=(2, 3), keepdims=True)
    v = ((x - m) ** 2).mean(axis=(2, 3), keepdims=True)
    return (x - m) / jnp.sqrt(v + EPS) * g[None, :, None, None] + b[None, :, None, None]


def ref_forward(x, params, stride):
    dn = ("NCHW", "OIHW", "NCHW")
    conv = lambda a, w, s, pad: jax.lax.conv_general_dilated(
        a, w, (s, s), pad, dimension_numbers=dn)
    out = jax.nn.relu(_gn_ref(conv(x, params["w1"], stride, ((1, 1), (1, 1))),
                              params["g1"], params["b1"]))
    out = _gn_ref(conv(out, params["w2"], 1, ((1, 1), (1, 1))),
                  params["g2"], params["b2"])
    if "wsc" in params:
        sc = _gn_ref(conv(x, params["wsc"], stride, ((0, 0), (0, 0))),
                     params["gsc"], params["bsc"])
    else:
        sc = x
    return jax.nn.relu(out + sc)


if __name__ == "__main__":
    in_planes, planes, stride = 4, 8, 1    # in_planes != planes -> projection shortcut
    N, H, W = 2, 16, 16

    key = jax.random.PRNGKey(0)
    kx, kp = jax.random.split(key)
    x = jax.random.normal(kx, (N, in_planes, H, W), jnp.float32)
    params = init_params(kp, in_planes, planes, stride)
    packed = pack_params(params)           # one-time weight repack (cached)

    out = jax.block_until_ready(
        basic_block_forward(x, packed, stride=stride, planes=planes))

    ref = ref_forward(x, params, stride)
    assert out.shape == ref.shape, (out.shape, ref.shape)
    # bf16 matmul operands + bf16 output writeback (f32 accumulation / GN math).
    np.testing.assert_allclose(np.asarray(out), np.asarray(ref), rtol=4e-2, atol=4e-2)

    print("KERNEL_OK")
</pallas_src>

<mosaic_0001>
module attributes {stable_mosaic.version = 11 : i64} {
  func.func @_basic_block_kernel(%arg0: i32, %arg1: memref<1x18x18x128xbf16, #tpu.memory_space<vmem>>, %arg2: memref<3x384x128xbf16, #tpu.memory_space<vmem>>, %arg3: memref<1x128xf32, #tpu.memory_space<vmem>>, %arg4: memref<1x128xf32, #tpu.memory_space<vmem>>, %arg5: memref<3x384x128xbf16, #tpu.memory_space<vmem>>, %arg6: memref<1x128xf32, #tpu.memory_space<vmem>>, %arg7: memref<1x128xf32, #tpu.memory_space<vmem>>, %arg8: memref<128x128xbf16, #tpu.memory_space<vmem>>, %arg9: memref<1x128xf32, #tpu.memory_space<vmem>>, %arg10: memref<1x128xf32, #tpu.memory_space<vmem>>, %arg11: memref<1x16x16x128xbf16, #tpu.memory_space<vmem>>, %arg12: memref<18x20x128xbf16, #tpu.memory_space<vmem>>) attributes {dimension_semantics = [#tpu.dimension_semantics<parallel>], iteration_bounds = array<i64: 2>, scalar_prefetch = 0 : i64, scratch_operands = 1 : i64, tpu.core_type = #tpu.core_type<tc>, window_params = [{transform_indices = @transform_0, window_bounds = array<i64: 1, 18, 18, 128>}, {pipeline_mode = #tpu.pipeline_mode<synchronous>, transform_indices = @transform_1, window_bounds = array<i64: 3, 384, 128>}, {pipeline_mode = #tpu.pipeline_mode<synchronous>, transform_indices = @transform_2, window_bounds = array<i64: 1, 128>}, {pipeline_mode = #tpu.pipeline_mode<synchronous>, transform_indices = @transform_3, window_bounds = array<i64: 1, 128>}, {pipeline_mode = #tpu.pipeline_mode<synchronous>, transform_indices = @transform_4, window_bounds = array<i64: 3, 384, 128>}, {pipeline_mode = #tpu.pipeline_mode<synchronous>, transform_indices = @transform_5, window_bounds = array<i64: 1, 128>}, {pipeline_mode = #tpu.pipeline_mode<synchronous>, transform_indices = @transform_6, window_bounds = array<i64: 1, 128>}, {pipeline_mode = #tpu.pipeline_mode<synchronous>, transform_indices = @transform_7, window_bounds = array<i64: 128, 128>}, {pipeline_mode = #tpu.pipeline_mode<synchronous>, transform_indices = @transform_8, window_bounds = array<i64: 1, 128>}, {pipeline_mode = #tpu.pipeline_mode<synchronous>, transform_indices = @transform_9, window_bounds = array<i64: 1, 128>}, {transform_indices = @transform_10, window_bounds = array<i64: 1, 16, 16, 128>}]} {
    %c0 = arith.constant 0 : index
    %c1 = arith.constant 1 : index
    %c0_0 = arith.constant 0 : index
    %c0_1 = arith.constant 0 : index
    %0 = vector.load %arg1[%c0, %c1, %c0_0, %c0_1] : memref<1x18x18x128xbf16, #tpu.memory_space<vmem>>, vector<1x16x18x128xbf16>
    %1 = vector.shape_cast %0 : vector<1x16x18x128xbf16> to vector<16x18x128xbf16>
    %2 = vector.extract_strided_slice %1 {offsets = [0, 1, 0], sizes = [16, 16, 128], strides = [1, 1, 1]} : vector<16x18x128xbf16> to vector<16x16x128xbf16>
    %3 = vector.shape_cast %2 : vector<16x16x128xbf16> to vector<256x128xbf16>
    %c0_2 = arith.constant 0 : index
    %c0_3 = arith.constant 0 : index
    %4 = vector.load %arg8[%c0_2, %c0_3] : memref<128x128xbf16, #tpu.memory_space<vmem>>, vector<128x128xbf16>
    %cst = arith.constant dense<0.000000e+00> : vector<256x128xf32>
    %5 = tpu.matmul %3, %4, %cst {dimension_numbers = #tpu.dot_dimension_numbers<[1], [0], [0], [1], [0, 0, 1, 1], [], []>} : vector<256x128xbf16>, vector<128x128xbf16>, vector<256x128xf32> -> vector<256x128xf32>
    %c0_4 = arith.constant 0 : index
    %c0_5 = arith.constant 0 : index
    %6 = vector.load %arg9[%c0_4, %c0_5] : memref<1x128xf32, #tpu.memory_space<vmem>>, vector<1x128xf32>
    %c0_6 = arith.constant 0 : index
    %c0_7 = arith.constant 0 : index
    %7 = vector.load %arg10[%c0_6, %c0_7] : memref<1x128xf32, #tpu.memory_space<vmem>>, vector<1x128xf32>
    %cst_8 = arith.constant dense<0.000000e+00> : vector<128xf32>
    %8 = vector.multi_reduction <add>, %5, %cst_8 [0] : vector<256x128xf32> to vector<128xf32>
    %9 = vector.shape_cast %8 : vector<128xf32> to vector<1x128xf32>
    %cst_9 = arith.constant 3.906250e-03 : f32
    %10 = vector.broadcast %cst_9 : f32 to vector<1x128xf32>
    %11 = arith.mulf %9, %10 : vector<1x128xf32>
    %12 = vector.broadcast %11 : vector<1x128xf32> to vector<256x128xf32>
    %13 = arith.subf %5, %12 : vector<256x128xf32>
    %14 = arith.mulf %13, %13 : vector<256x128xf32>
    %cst_10 = arith.constant dense<0.000000e+00> : vector<128xf32>
    %15 = vector.multi_reduction <add>, %14, %cst_10 [0] : vector<256x128xf32> to vector<128xf32>
    %16 = vector.shape_cast %15 : vector<128xf32> to vector<1x128xf32>
    %cst_11 = arith.constant 3.906250e-03 : f32
    %17 = vector.broadcast %cst_11 : f32 to vector<1x128xf32>
    %18 = arith.mulf %16, %17 : vector<1x128xf32>
    %cst_12 = arith.constant 9.99999974E-6 : f32
    %19 = vector.broadcast %cst_12 : f32 to vector<1x128xf32>
    %20 = arith.addf %18, %19 : vector<1x128xf32>
    %21 = math.rsqrt %20 : vector<1x128xf32>
    %22 = arith.mulf %21, %6 : vector<1x128xf32>
    %23 = vector.broadcast %22 : vector<1x128xf32> to vector<256x128xf32>
    %24 = arith.mulf %13, %23 : vector<256x128xf32>
    %25 = vector.broadcast %7 : vector<1x128xf32> to vector<256x128xf32>
    %26 = arith.addf %24, %25 : vector<256x128xf32>
    %c0_13 = arith.constant 0 : index
    %c0_14 = arith.constant 0 : index
    %c0_15 = arith.constant 0 : index
    %c0_16 = arith.constant 0 : index
    %27 = vector.load %arg1[%c0_13, %c0_14, %c0_15, %c0_16] : memref<1x18x18x128xbf16, #tpu.memory_space<vmem>>, vector<1x16x18x128xbf16>
    %28 = vector.shape_cast %27 : vector<1x16x18x128xbf16> to vector<16x18x128xbf16>
    %29 = vector.extract_strided_slice %28 {offsets = [0, 0, 0], sizes = [16, 16, 128], strides = [1, 1, 1]} : vector<16x18x128xbf16> to vector<16x16x128xbf16>
    %30 = vector.extract_strided_slice %28 {offsets = [0, 1, 0], sizes = [16, 16, 128], strides = [1, 1, 1]} : vector<16x18x128xbf16> to vector<16x16x128xbf16>
    %31 = vector.extract_strided_slice %28 {offsets = [0, 2, 0], sizes = [16, 16, 128], strides = [1, 1, 1]} : vector<16x18x128xbf16> to vector<16x16x128xbf16>
    %32 = tpu.concatenate %29, %30, %31 in 2 : vector<16x16x128xbf16>, vector<16x16x128xbf16>, vector<16x16x128xbf16> -> vector<16x16x384xbf16>
    %33 = vector.shape_cast %32 : vector<16x16x384xbf16> to vector<256x384xbf16>
    %c0_17 = arith.constant 0 : index
    %c0_18 = arith.constant 0 : index
    %c0_19 = arith.constant 0 : index
    %34 = vector.load %arg2[%c0_17, %c0_18, %c0_19] : memref<3x384x128xbf16, #tpu.memory_space<vmem>>, vector<1x384x128xbf16>
    %35 = vector.shape_cast %34 : vector<1x384x128xbf16> to vector<384x128xbf16>
    %cst_20 = arith.constant dense<0.000000e+00> : vector<256x128xf32>
    %36 = tpu.matmul %33, %35, %cst_20 {dimension_numbers = #tpu.dot_dimension_numbers<[1], [0], [0], [1], [0, 0, 1, 1], [], []>} : vector<256x384xbf16>, vector<384x128xbf16>, vector<256x128xf32> -> vector<256x128xf32>
    %c0_21 = arith.constant 0 : index
    %c1_22 = arith.constant 1 : index
    %c0_23 = arith.constant 0 : index
    %c0_24 = arith.constant 0 : index
    %37 = vector.load %arg1[%c0_21, %c1_22, %c0_23, %c0_24] : memref<1x18x18x128xbf16, #tpu.memory_space<vmem>>, vector<1x16x18x128xbf16>
    %38 = vector.shape_cast %37 : vector<1x16x18x128xbf16> to vector<16x18x128xbf16>
    %39 = vector.extract_strided_slice %38 {offsets = [0, 0, 0], sizes = [16, 16, 128], strides = [1, 1, 1]} : vector<16x18x128xbf16> to vector<16x16x128xbf16>
    %40 = vector.extract_strided_slice %38 {offsets = [0, 1, 0], sizes = [16, 16, 128], strides = [1, 1, 1]} : vector<16x18x128xbf16> to vector<16x16x128xbf16>
    %41 = vector.extract_strided_slice %38 {offsets = [0, 2, 0], sizes = [16, 16, 128], strides = [1, 1, 1]} : vector<16x18x128xbf16> to vector<16x16x128xbf16>
    %42 = tpu.concatenate %39, %40, %41 in 2 : vector<16x16x128xbf16>, vector<16x16x128xbf16>, vector<16x16x128xbf16> -> vector<16x16x384xbf16>
    %43 = vector.shape_cast %42 : vector<16x16x384xbf16> to vector<256x384xbf16>
    %c1_25 = arith.constant 1 : index
    %c0_26 = arith.constant 0 : index
    %c0_27 = arith.constant 0 : index
    %44 = vector.load %arg2[%c1_25, %c0_26, %c0_27] : memref<3x384x128xbf16, #tpu.memory_space<vmem>>, vector<1x384x128xbf16>
    %45 = vector.shape_cast %44 : vector<1x384x128xbf16> to vector<384x128xbf16>
    %cst_28 = arith.constant dense<0.000000e+00> : vector<256x128xf32>
    %46 = tpu.matmul %43, %45, %cst_28 {dimension_numbers = #tpu.dot_dimension_numbers<[1], [0], [0], [1], [0, 0, 1, 1], [], []>} : vector<256x384xbf16>, vector<384x128xbf16>, vector<256x128xf32> -> vector<256x128xf32>
    %47 = arith.addf %36, %46 : vector<256x128xf32>
    %c0_29 = arith.constant 0 : index
    %c2 = arith.constant 2 : index
    %c0_30 = arith.constant 0 : index
    %c0_31 = arith.constant 0 : index
    %48 = vector.load %arg1[%c0_29, %c2, %c0_30, %c0_31] : memref<1x18x18x128xbf16, #tpu.memory_space<vmem>>, vector<1x16x18x128xbf16>
    %49 = vector.shape_cast %48 : vector<1x16x18x128xbf16> to vector<16x18x128xbf16>
    %50 = vector.extract_strided_slice %49 {offsets = [0, 0, 0], sizes = [16, 16, 128], strides = [1, 1, 1]} : vector<16x18x128xbf16> to vector<16x16x128xbf16>
    %51 = vector.extract_strided_slice %49 {offsets = [0, 1, 0], sizes = [16, 16, 128], strides = [1, 1, 1]} : vector<16x18x128xbf16> to vector<16x16x128xbf16>
    %52 = vector.extract_strided_slice %49 {offsets = [0, 2, 0], sizes = [16, 16, 128], strides = [1, 1, 1]} : vector<16x18x128xbf16> to vector<16x16x128xbf16>
    %53 = tpu.concatenate %50, %51, %52 in 2 : vector<16x16x128xbf16>, vector<16x16x128xbf16>, vector<16x16x128xbf16> -> vector<16x16x384xbf16>
    %54 = vector.shape_cast %53 : vector<16x16x384xbf16> to vector<256x384xbf16>
    %c2_32 = arith.constant 2 : index
    %c0_33 = arith.constant 0 : index
    %c0_34 = arith.constant 0 : index
    %55 = vector.load %arg2[%c2_32, %c0_33, %c0_34] : memref<3x384x128xbf16, #tpu.memory_space<vmem>>, vector<1x384x128xbf16>
    %56 = vector.shape_cast %55 : vector<1x384x128xbf16> to vector<384x128xbf16>
    %cst_35 = arith.constant dense<0.000000e+00> : vector<256x128xf32>
    %57 = tpu.matmul %54, %56, %cst_35 {dimension_numbers = #tpu.dot_dimension_numbers<[1], [0], [0], [1], [0, 0, 1, 1], [], []>} : vector<256x384xbf16>, vector<384x128xbf16>, vector<256x128xf32> -> vector<256x128xf32>
    %58 = arith.addf %47, %57 : vector<256x128xf32>
    %c0_36 = arith.constant 0 : index
    %c0_37 = arith.constant 0 : index
    %59 = vector.load %arg3[%c0_36, %c0_37] : memref<1x128xf32, #tpu.memory_space<vmem>>, vector<1x128xf32>
    %c0_38 = arith.constant 0 : index
    %c0_39 = arith.constant 0 : index
    %60 = vector.load %arg4[%c0_38, %c0_39] : memref<1x128xf32, #tpu.memory_space<vmem>>, vector<1x128xf32>
    %cst_40 = arith.constant dense<0.000000e+00> : vector<128xf32>
    %61 = vector.multi_reduction <add>, %58, %cst_40 [0] : vector<256x128xf32> to vector<128xf32>
    %62 = vector.shape_cast %61 : vector<128xf32> to vector<1x128xf32>
    %cst_41 = arith.constant 3.906250e-03 : f32
    %63 = vector.broadcast %cst_41 : f32 to vector<1x128xf32>
    %64 = arith.mulf %62, %63 : vector<1x128xf32>
    %65 = vector.broadcast %64 : vector<1x128xf32> to vector<256x128xf32>
    %66 = arith.subf %58, %65 : vector<256x128xf32>
    %67 = arith.mulf %66, %66 : vector<256x128xf32>
    %cst_42 = arith.constant dense<0.000000e+00> : vector<128xf32>
    %68 = vector.multi_reduction <add>, %67, %cst_42 [0] : vector<256x128xf32> to vector<128xf32>
    %69 = vector.shape_cast %68 : vector<128xf32> to vector<1x128xf32>
    %cst_43 = arith.constant 3.906250e-03 : f32
    %70 = vector.broadcast %cst_43 : f32 to vector<1x128xf32>
    %71 = arith.mulf %69, %70 : vector<1x128xf32>
    %cst_44 = arith.constant 9.99999974E-6 : f32
    %72 = vector.broadcast %cst_44 : f32 to vector<1x128xf32>
    %73 = arith.addf %71, %72 : vector<1x128xf32>
    %74 = math.rsqrt %73 : vector<1x128xf32>
    %75 = arith.mulf %74, %59 : vector<1x128xf32>
    %76 = vector.broadcast %75 : vector<1x128xf32> to vector<256x128xf32>
    %77 = arith.mulf %66, %76 : vector<256x128xf32>
    %78 = vector.broadcast %60 : vector<1x128xf32> to vector<256x128xf32>
    %79 = arith.addf %77, %78 : vector<256x128xf32>
    %cst_45 = arith.constant 0.000000e+00 : f32
    %80 = vector.broadcast %cst_45 : f32 to vector<256x128xf32>
    %81 = arith.maximumf %79, %80 : vector<256x128xf32>
    %82 = vector.shape_cast %81 : vector<256x128xf32> to vector<16x16x128xf32>
    %83 = arith.truncf %82 : vector<16x16x128xf32> to vector<16x16x128xbf16>
    %cst_46 = arith.constant 0.000000e+00 : bf16
    %84 = vector.broadcast %cst_46 : bf16 to vector<1x20x128xbf16>
    %cst_47 = arith.constant 0.000000e+00 : bf16
    %85 = vector.broadcast %cst_47 : bf16 to vector<18x2x128xbf16>
    %c0_48 = arith.constant 0 : index
    %c0_49 = arith.constant 0 : index
    %c0_50 = arith.constant 0 : index
    %86 = vector.load %arg12[%c0_48, %c0_49, %c0_50] : memref<18x20x128xbf16, #tpu.memory_space<vmem>>, vector<1x20x128xbf16>
    tpu.vector_store %arg12[%c0_48, %c0_49, %c0_50], %84 {strides = array<i32>} : memref<18x20x128xbf16, #tpu.memory_space<vmem>>, vector<1x20x128xbf16>,
    %c17 = arith.constant 17 : index
    %c0_51 = arith.constant 0 : index
    %c0_52 = arith.constant 0 : index
    %87 = vector.load %arg12[%c17, %c0_51, %c0_52] : memref<18x20x128xbf16, #tpu.memory_space<vmem>>, vector<1x20x128xbf16>
    tpu.vector_store %arg12[%c17, %c0_51, %c0_52], %84 {strides = array<i32>} : memref<18x20x128xbf16, #tpu.memory_space<vmem>>, vector<1x20x128xbf16>,
    %c0_53 = arith.constant 0 : index
    %c0_54 = arith.constant 0 : index
    %c0_55 = arith.constant 0 : index
    %88 = vector.load %arg12[%c0_53, %c0_54, %c0_55] : memref<18x20x128xbf16, #tpu.memory_space<vmem>>, vector<18x2x128xbf16>
    tpu.vector_store %arg12[%c0_53, %c0_54, %c0_55], %85 {strides = array<i32>} : memref<18x20x128xbf16, #tpu.memory_space<vmem>>, vector<18x2x128xbf16>,
    %c0_56 = arith.constant 0 : index
    %c18 = arith.constant 18 : index
    %c0_57 = arith.constant 0 : index
    %89 = vector.load %arg12[%c0_56, %c18, %c0_57] : memref<18x20x128xbf16, #tpu.memory_space<vmem>>, vector<18x2x128xbf16>
    tpu.vector_store %arg12[%c0_56, %c18, %c0_57], %85 {strides = array<i32>} : memref<18x20x128xbf16, #tpu.memory_space<vmem>>, vector<18x2x128xbf16>,
    %c1_58 = arith.constant 1 : index
    %c2_59 = arith.constant 2 : index
    %c0_60 = arith.constant 0 : index
    %90 = vector.load %arg12[%c1_58, %c2_59, %c0_60] : memref<18x20x128xbf16, #tpu.memory_space<vmem>>, vector<16x16x128xbf16>
    tpu.vector_store %arg12[%c1_58, %c2_59, %c0_60], %83 {strides = array<i32>} : memref<18x20x128xbf16, #tpu.memory_space<vmem>>, vector<16x16x128xbf16>,
    %c0_61 = arith.constant 0 : index
    %c0_62 = arith.constant 0 : index
    %c0_63 = arith.constant 0 : index
    %91 = vector.load %arg12[%c0_61, %c0_62, %c0_63] : memref<18x20x128xbf16, #tpu.memory_space<vmem>>, vector<16x20x128xbf16>
    %92 = vector.extract_strided_slice %91 {offsets = [0, 1, 0], sizes = [16, 16, 128], strides = [1, 1, 1]} : vector<16x20x128xbf16> to vector<16x16x128xbf16>
    %93 = vector.extract_strided_slice %91 {offsets = [0, 2, 0], sizes = [16, 16, 128], strides = [1, 1, 1]} : vector<16x20x128xbf16> to vector<16x16x128xbf16>
    %94 = vector.extract_strided_slice %91 {offsets = [0, 3, 0], sizes = [16, 16, 128], strides = [1, 1, 1]} : vector<16x20x128xbf16> to vector<16x16x128xbf16>
    %95 = tpu.concatenate %92, %93, %94 in 2 : vector<16x16x128xbf16>, vector<16x16x128xbf16>, vector<16x16x128xbf16> -> vector<16x16x384xbf16>
    %96 = vector.shape_cast %95 : vector<16x16x384xbf16> to vector<256x384xbf16>
    %c0_64 = arith.constant 0 : index
    %c0_65 = arith.constant 0 : index
    %c0_66 = arith.constant 0 : index
    %97 = vector.load %arg5[%c0_64, %c0_65, %c0_66] : memref<3x384x128xbf16, #tpu.memory_space<vmem>>, vector<1x384x128xbf16>
    %98 = vector.shape_cast %97 : vector<1x384x128xbf16> to vector<384x128xbf16>
    %cst_67 = arith.constant dense<0.000000e+00> : vector<256x128xf32>
    %99 = tpu.matmul %96, %98, %cst_67 {dimension_numbers = #tpu.dot_dimension_numbers<[1], [0], [0], [1], [0, 0, 1, 1], [], []>} : vector<256x384xbf16>, vector<384x128xbf16>, vector<256x128xf32> -> vector<256x128xf32>
    %c1_68 = arith.constant 1 : index
    %c0_69 = arith.constant 0 : index
    %c0_70 = arith.constant 0 : index
    %100 = vector.load %arg12[%c1_68, %c0_69, %c0_70] : memref<18x20x128xbf16, #tpu.memory_space<vmem>>, vector<16x20x128xbf16>
    %101 = vector.extract_strided_slice %100 {offsets = [0, 1, 0], sizes = [16, 16, 128], strides = [1, 1, 1]} : vector<16x20x128xbf16> to vector<16x16x128xbf16>
    %102 = vector.extract_strided_slice %100 {offsets = [0, 2, 0], sizes = [16, 16, 128], strides = [1, 1, 1]} : vector<16x20x128xbf16> to vector<16x16x128xbf16>
    %103 = vector.extract_strided_slice %100 {offsets = [0, 3, 0], sizes = [16, 16, 128], strides = [1, 1, 1]} : vector<16x20x128xbf16> to vector<16x16x128xbf16>
    %104 = tpu.concatenate %101, %102, %103 in 2 : vector<16x16x128xbf16>, vector<16x16x128xbf16>, vector<16x16x128xbf16> -> vector<16x16x384xbf16>
    %105 = vector.shape_cast %104 : vector<16x16x384xbf16> to vector<256x384xbf16>
    %c1_71 = arith.constant 1 : index
    %c0_72 = arith.constant 0 : index
    %c0_73 = arith.constant 0 : index
    %106 = vector.load %arg5[%c1_71, %c0_72, %c0_73] : memref<3x384x128xbf16, #tpu.memory_space<vmem>>, vector<1x384x128xbf16>
    %107 = vector.shape_cast %106 : vector<1x384x128xbf16> to vector<384x128xbf16>
    %cst_74 = arith.constant dense<0.000000e+00> : vector<256x128xf32>
    %108 = tpu.matmul %105, %107, %cst_74 {dimension_numbers = #tpu.dot_dimension_numbers<[1], [0], [0], [1], [0, 0, 1, 1], [], []>} : vector<256x384xbf16>, vector<384x128xbf16>, vector<256x128xf32> -> vector<256x128xf32>
    %109 = arith.addf %99, %108 : vector<256x128xf32>
    %c2_75 = arith.constant 2 : index
    %c0_76 = arith.constant 0 : index
    %c0_77 = arith.constant 0 : index
    %110 = vector.load %arg12[%c2_75, %c0_76, %c0_77] : memref<18x20x128xbf16, #tpu.memory_space<vmem>>, vector<16x20x128xbf16>
    %111 = vector.extract_strided_slice %110 {offsets = [0, 1, 0], sizes = [16, 16, 128], strides = [1, 1, 1]} : vector<16x20x128xbf16> to vector<16x16x128xbf16>
    %112 = vector.extract_strided_slice %110 {offsets = [0, 2, 0], sizes = [16, 16, 128], strides = [1, 1, 1]} : vector<16x20x128xbf16> to vector<16x16x128xbf16>
    %113 = vector.extract_strided_slice %110 {offsets = [0, 3, 0], sizes = [16, 16, 128], strides = [1, 1, 1]} : vector<16x20x128xbf16> to vector<16x16x128xbf16>
    %114 = tpu.concatenate %111, %112, %113 in 2 : vector<16x16x128xbf16>, vector<16x16x128xbf16>, vector<16x16x128xbf16> -> vector<16x16x384xbf16>
    %115 = vector.shape_cast %114 : vector<16x16x384xbf16> to vector<256x384xbf16>
    %c2_78 = arith.constant 2 : index
    %c0_79 = arith.constant 0 : index
    %c0_80 = arith.constant 0 : index
    %116 = vector.load %arg5[%c2_78, %c0_79, %c0_80] : memref<3x384x128xbf16, #tpu.memory_space<vmem>>, vector<1x384x128xbf16>
    %117 = vector.shape_cast %116 : vector<1x384x128xbf16> to vector<384x128xbf16>
    %cst_81 = arith.constant dense<0.000000e+00> : vector<256x128xf32>
    %118 = tpu.matmul %115, %117, %cst_81 {dimension_numbers = #tpu.dot_dimension_numbers<[1], [0], [0], [1], [0, 0, 1, 1], [], []>} : vector<256x384xbf16>, vector<384x128xbf16>, vector<256x128xf32> -> vector<256x128xf32>
    %119 = arith.addf %109, %118 : vector<256x128xf32>
    %c0_82 = arith.constant 0 : index
    %c0_83 = arith.constant 0 : index
    %120 = vector.load %arg6[%c0_82, %c0_83] : memref<1x128xf32, #tpu.memory_space<vmem>>, vector<1x128xf32>
    %c0_84 = arith.constant 0 : index
    %c0_85 = arith.constant 0 : index
    %121 = vector.load %arg7[%c0_84, %c0_85] : memref<1x128xf32, #tpu.memory_space<vmem>>, vector<1x128xf32>
    %cst_86 = arith.constant dense<0.000000e+00> : vector<128xf32>
    %122 = vector.multi_reduction <add>, %119, %cst_86 [0] : vector<256x128xf32> to vector<128xf32>
    %123 = vector.shape_cast %122 : vector<128xf32> to vector<1x128xf32>
    %cst_87 = arith.constant 3.906250e-03 : f32
    %124 = vector.broadcast %cst_87 : f32 to vector<1x128xf32>
    %125 = arith.mulf %123, %124 : vector<1x128xf32>
    %126 = vector.broadcast %125 : vector<1x128xf32> to vector<256x128xf32>
    %127 = arith.subf %119, %126 : vector<256x128xf32>
    %128 = arith.mulf %127, %127 : vector<256x128xf32>
    %cst_88 = arith.constant dense<0.000000e+00> : vector<128xf32>
    %129 = vector.multi_reduction <add>, %128, %cst_88 [0] : vector<256x128xf32> to vector<128xf32>
    %130 = vector.shape_cast %129 : vector<128xf32> to vector<1x128xf32>
    %cst_89 = arith.constant 3.906250e-03 : f32
    %131 = vector.broadcast %cst_89 : f32 to vector<1x128xf32>
    %132 = arith.mulf %130, %131 : vector<1x128xf32>
    %cst_90 = arith.constant 9.99999974E-6 : f32
    %133 = vector.broadcast %cst_90 : f32 to vector<1x128xf32>
    %134 = arith.addf %132, %133 : vector<1x128xf32>
    %135 = math.rsqrt %134 : vector<1x128xf32>
    %136 = arith.mulf %135, %120 : vector<1x128xf32>
    %137 = vector.broadcast %136 : vector<1x128xf32> to vector<256x128xf32>
    %138 = arith.mulf %127, %137 : vector<256x128xf32>
    %139 = vector.broadcast %121 : vector<1x128xf32> to vector<256x128xf32>
    %140 = arith.addf %138, %139 : vector<256x128xf32>
    %141 = arith.addf %140, %26 : vector<256x128xf32>
    %cst_91 = arith.constant 0.000000e+00 : f32
    %142 = vector.broadcast %cst_91 : f32 to vector<256x128xf32>
    %143 = arith.maximumf %141, %142 : vector<256x128xf32>
    %144 = vector.shape_cast %143 : vector<256x128xf32> to vector<16x16x128xf32>
    %145 = arith.truncf %144 : vector<16x16x128xf32> to vector<16x16x128xbf16>
    %c0_92 = arith.constant 0 : index
    %c0_93 = arith.constant 0 : index
    %c0_94 = arith.constant 0 : index
    %c0_95 = arith.constant 0 : index
    %146 = vector.load %arg11[%c0_92, %c0_93, %c0_94, %c0_95] : memref<1x16x16x128xbf16, #tpu.memory_space<vmem>>, vector<1x16x16x128xbf16>
    %147 = vector.shape_cast %146 : vector<1x16x16x128xbf16> to vector<16x16x128xbf16>
    %148 = vector.shape_cast %145 : vector<16x16x128xbf16> to vector<1x16x16x128xbf16>
    tpu.vector_store %arg11[%c0_92, %c0_93, %c0_94, %c0_95], %148 {strides = array<i32>} : memref<1x16x16x128xbf16, #tpu.memory_space<vmem>>, vector<1x16x16x128xbf16>,
    return
  }
  func.func @transform_0(%arg0: i32) -> (i32, i32, i32, i32) {
    %c0_i32 = arith.constant 0 : i32
    %c0_i32_0 = arith.constant 0 : i32
    %c0_i32_1 = arith.constant 0 : i32
    %c0_i32_2 = arith.constant 0 : i32
    return %arg0, %c0_i32, %c0_i32_0, %c0_i32_1 : i32, i32, i32, i32
  }
  func.func @transform_1(%arg0: i32) -> (i32, i32, i32) {
    %c0_i32 = arith.constant 0 : i32
    %c0_i32_0 = arith.constant 0 : i32
    %c0_i32_1 = arith.constant 0 : i32
    %c0_i32_2 = arith.constant 0 : i32
    return %c0_i32, %c0_i32_0, %c0_i32_1 : i32, i32, i32
  }
  func.func @transform_2(%arg0: i32) -> (i32, i32) {
    %c0_i32 = arith.constant 0 : i32
    %c0_i32_0 = arith.constant 0 : i32
    %c0_i32_1 = arith.constant 0 : i32
    return %c0_i32, %c0_i32_0 : i32, i32
  }
  func.func @transform_3(%arg0: i32) -> (i32, i32) {
    %c0_i32 = arith.constant 0 : i32
    %c0_i32_0 = arith.constant 0 : i32
    %c0_i32_1 = arith.constant 0 : i32
    return %c0_i32, %c0_i32_0 : i32, i32
  }
  func.func @transform_4(%arg0: i32) -> (i32, i32, i32) {
    %c0_i32 = arith.constant 0 : i32
    %c0_i32_0 = arith.constant 0 : i32
    %c0_i32_1 = arith.constant 0 : i32
    %c0_i32_2 = arith.constant 0 : i32
    return %c0_i32, %c0_i32_0, %c0_i32_1 : i32, i32, i32
  }
  func.func @transform_5(%arg0: i32) -> (i32, i32) {
    %c0_i32 = arith.constant 0 : i32
    %c0_i32_0 = arith.constant 0 : i32
    %c0_i32_1 = arith.constant 0 : i32
    return %c0_i32, %c0_i32_0 : i32, i32
  }
  func.func @transform_6(%arg0: i32) -> (i32, i32) {
    %c0_i32 = arith.constant 0 : i32
    %c0_i32_0 = arith.constant 0 : i32
    %c0_i32_1 = arith.constant 0 : i32
    return %c0_i32, %c0_i32_0 : i32, i32
  }
  func.func @transform_7(%arg0: i32) -> (i32, i32) {
    %c0_i32 = arith.constant 0 : i32
    %c0_i32_0 = arith.constant 0 : i32
    %c0_i32_1 = arith.constant 0 : i32
    return %c0_i32, %c0_i32_0 : i32, i32
  }
  func.func @transform_8(%arg0: i32) -> (i32, i32) {
    %c0_i32 = arith.constant 0 : i32
    %c0_i32_0 = arith.constant 0 : i32
    %c0_i32_1 = arith.constant 0 : i32
    return %c0_i32, %c0_i32_0 : i32, i32
  }
  func.func @transform_9(%arg0: i32) -> (i32, i32) {
    %c0_i32 = arith.constant 0 : i32
    %c0_i32_0 = arith.constant 0 : i32
    %c0_i32_1 = arith.constant 0 : i32
    return %c0_i32, %c0_i32_0 : i32, i32
  }
  func.func @transform_10(%arg0: i32) -> (i32, i32, i32, i32) {
    %c0_i32 = arith.constant 0 : i32
    %c0_i32_0 = arith.constant 0 : i32
    %c0_i32_1 = arith.constant 0 : i32
    %c0_i32_2 = arith.constant 0 : i32
    return %arg0, %c0_i32, %c0_i32_0, %c0_i32_1 : i32, i32, i32, i32
  }
}

</mosaic_0001>

<llo_original>
// kernel: basic_block_forward.1
$region0: #{basic_block_forward.1}
  #allocation0 [shape = 'u32[]', space=smem, size = 0x4, offset = 0x4, fixed_abs, tag = 'smem constant byte address 0x4 - core index']
  #allocation1 [shape = 'u32[72,128]{1,0:T(1,128)}', space=vmem, size = 0x9000, scoped, tag = 'internal scratch']
  #allocation2 [shape = 'bf16[18,20,128]{2,1,0:T(8,128)(2,1)}', space=vmem, size = 0x1b000, scoped, tag = 'scratch operand']
  %s0 = inlined_call_operand.vmem [shape: bf16[2,18,18,128], index: 0, kind: input, shape index: {}]
  %s1 = inlined_call_operand.vmem [shape: bf16[3,384,128], index: 1, kind: input, shape index: {}]
  %s2 = inlined_call_operand.vmem [shape: f32[1,128], index: 2, kind: input, shape index: {}]
  %s3 = inlined_call_operand.vmem [shape: f32[1,128], index: 3, kind: input, shape index: {}]
  %s4 = inlined_call_operand.vmem [shape: bf16[3,384,128], index: 4, kind: input, shape index: {}]
  %s5 = inlined_call_operand.vmem [shape: f32[1,128], index: 5, kind: input, shape index: {}]
  %s6 = inlined_call_operand.vmem [shape: f32[1,128], index: 6, kind: input, shape index: {}]
  %s7 = inlined_call_operand.hbm [shape: bf16[128,128], index: 7, kind: input, shape index: {}]
  %s8 = inlined_call_operand.vmem [shape: f32[1,128], index: 8, kind: input, shape index: {}]
  %s9 = inlined_call_operand.vmem [shape: f32[1,128], index: 9, kind: input, shape index: {}]
  %s10 = inlined_call_operand.vmem [shape: bf16[2,16,16,128], index: 10, kind: output, shape index: {}]
  %s11 = sld [smem:[#allocation0]]
  $region77: #{basic_block_forward.1} parent=0
    _
  %s13 = ssub.s32 1, %s11
  %s14 = scalar_select 0, %s13, %s11
  $region1: #{basic_block_forward.1} parent=0
    #allocation3 [shape = 'u8[32768]{0}', space=vmem, size = 0x8000, scoped, tag = 'input window, operand 7, single buffered']
    #allocation4 [shape = 's32[2]{0}', space=sflag, size = 0x8, scoped, tag = 'scoped memory for basic_block_forward.1']
    %15 = vsyncpa [#allocation4], 0
    loop: start=0, step=1, limit=4
    $region2: #{basic_block_forward.1} parent=1 // loop_pre_header
      _
    $region3: #{basic_block_forward.1} parent=1 // loop_header
      %s17 = sphi 0, %s21
      %p18 = scmp.ge.s32.totalorder %s17, 4
      %s27 = sphi 0, %s29
      %s30 = sphi 0, %s27
      %s31 = sphi 0, %s30
      %s47 = sphi 0, %s31
      %s51 = sphi 0, %s51
      %s53 = sphi 0, %s51
      %s54 = sphi 0, %s53
      %s68 = sphi 0, %s54
      %s72 = sphi 0, %s72
      %s74 = sphi 0, %s72
      %s75 = sphi 0, %s74
      %s89 = sphi 0, %s75
      %s93 = sphi 0, %s93
      %s95 = sphi 0, %s93
      %s96 = sphi 0, %s95
      %s110 = sphi 0, %s96
      %s114 = sphi 0, %s114
      %s116 = sphi 0, %s114
      %s117 = sphi 0, %s116
      %s131 = sphi 0, %s117
      %s135 = sphi 0, %s135
      %s137 = sphi 0, %s135
      %s138 = sphi 0, %s137
      %s152 = sphi 0, %s138
      %s156 = sphi 0, %s156
      %s158 = sphi 0, %s156
      %s159 = sphi 0, %s158
      %s173 = sphi 0, %s159
      %s177 = sphi 0, %s177
      %s179 = sphi 0, %s177
      %s180 = sphi 0, %s179
      %s194 = sphi 0, %s180
      %s198 = sphi 0, %s198
      %s200 = sphi 0, %s198
      %s201 = sphi 0, %s200
      %s215 = sphi 0, %s201
      %s219 = sphi 0, %s219
      %s221 = sphi 0, %s219
      %s222 = sphi 0, %s221
      %s236 = sphi 0, %s222
      %s242 = sphi 0, %s244
      %s245 = sphi 0, %s242
      %s246 = sphi 0, %s245
      %s262 = sphi 0, %s246
    $region4: #{basic_block_forward.1} parent=1 // loop_header_branch
      %20 = sbr.rel (%p18) target = $region8
    $region5: #{basic_block_forward.1} parent=1 // loop_body
      %s22 = ssub.s32 %s17, 1
      %s23 = ssub.s32 %s17, 2
      %s24 = sadd.s32 %s17, 1
      %s25 = ssub.s32 %s17, %s24
      %p26 = scmp.eq.s32.totalorder %s25, 0
      %s28 = sadd.s32 %s27, 1
      %s29 = scalar_select %p26, %s27, %s28
      %p32 = pneg %p26
      %p33 = scmp.eq.s32.totalorder %s17, 1
      %p34 = por %p32, %p33
      %p35 = scmp.ne.s32.totalorder %s27, %s30
      %p36 = scmp.eq.s32.totalorder %s17, 0
      %p37 = por %p35, %p36
      %p38 = scmp.ne.s32.totalorder %s27, %s30
      %p39 = scmp.eq.s32.totalorder %s22, 1
      %p40 = por %p38, %p39
      %p41 = scmp.ne.s32.totalorder %s30, %s31
      %p42 = scmp.eq.s32.totalorder %s22, 0
      %p43 = por %p41, %p42
      %p44 = scmp.ne.s32.totalorder %s30, %s31
      %p45 = scmp.eq.s32.totalorder %s23, 1
      %p46 = por %p44, %p45
      %p48 = scmp.ne.s32.totalorder %s31, %s47
      %p49 = scmp.eq.s32.totalorder %s23, 0
      %p50 = por %p48, %p49
      %s52 = sadd.s32 %s51, 1
      %p55 = scmp.eq.s32.totalorder %s17, 1
      %p56 = scmp.ne.s32.totalorder %s51, %s53
      %p57 = scmp.eq.s32.totalorder %s17, 0
      %p58 = por %p56, %p57
      %p59 = scmp.ne.s32.totalorder %s51, %s53
      %p60 = scmp.eq.s32.totalorder %s22, 1
      %p61 = por %p59, %p60
      %p62 = scmp.ne.s32.totalorder %s53, %s54
      %p63 = scmp.eq.s32.totalorder %s22, 0
      %p64 = por %p62, %p63
      %p65 = scmp.ne.s32.totalorder %s53, %s54
      %p66 = scmp.eq.s32.totalorder %s23, 1
      %p67 = por %p65, %p66
      %p69 = scmp.ne.s32.totalorder %s54, %s68
      %p70 = scmp.eq.s32.totalorder %s23, 0
      %p71 = por %p69, %p70
      %s73 = sadd.s32 %s72, 1
      %p76 = scmp.eq.s32.totalorder %s17, 1
      %p77 = scmp.ne.s32.totalorder %s72, %s74
      %p78 = scmp.eq.s32.totalorder %s17, 0
      %p79 = por %p77, %p78
      %p80 = scmp.ne.s32.totalorder %s72, %s74
      %p81 = scmp.eq.s32.totalorder %s22, 1
      %p82 = por %p80, %p81
      %p83 = scmp.ne.s32.totalorder %s74, %s75
      %p84 = scmp.eq.s32.totalorder %s22, 0
      %p85 = por %p83, %p84
      %p86 = scmp.ne.s32.totalorder %s74, %s75
      %p87 = scmp.eq.s32.totalorder %s23, 1
      %p88 = por %p86, %p87
      %p90 = scmp.ne.s32.totalorder %s75, %s89
      %p91 = scmp.eq.s32.totalorder %s23, 0
      %p92 = por %p90, %p91
      %s94 = sadd.s32 %s93, 1
      %p97 = scmp.eq.s32.totalorder %s17, 1
      %p98 = scmp.ne.s32.totalorder %s93, %s95
      %p99 = scmp.eq.s32.totalorder %s17, 0
      %p100 = por %p98, %p99
      %p101 = scmp.ne.s32.totalorder %s93, %s95
      %p102 = scmp.eq.s32.totalorder %s22, 1
      %p103 = por %p101, %p102
      %p104 = scmp.ne.s32.totalorder %s95, %s96
      %p105 = scmp.eq.s32.totalorder %s22, 0
      %p106 = por %p104, %p105
      %p107 = scmp.ne.s32.totalorder %s95, %s96
      %p108 = scmp.eq.s32.totalorder %s23, 1
      %p109 = por %p107, %p108
      %p111 = scmp.ne.s32.totalorder %s96, %s110
      %p112 = scmp.eq.s32.totalorder %s23, 0
      %p113 = por %p111, %p112
      %s115 = sadd.s32 %s114, 1
      %p118 = scmp.eq.s32.totalorder %s17, 1
      %p119 = scmp.ne.s32.totalorder %s114, %s116
      %p120 = scmp.eq.s32.totalorder %s17, 0
      %p121 = por %p119, %p120
      %p122 = scmp.ne.s32.totalorder %s114, %s116
      %p123 = scmp.eq.s32.totalorder %s22, 1
      %p124 = por %p122, %p123
      %p125 = scmp.ne.s32.totalorder %s116, %s117
      %p126 = scmp.eq.s32.totalorder %s22, 0
      %p127 = por %p125, %p126
      %p128 = scmp.ne.s32.totalorder %s116, %s117
      %p129 = scmp.eq.s32.totalorder %s23, 1
      %p130 = por %p128, %p129
      %p132 = scmp.ne.s32.totalorder %s117, %s131
      %p133 = scmp.eq.s32.totalorder %s23, 0
      %p134 = por %p132, %p133
      %s136 = sadd.s32 %s135, 1
      %p139 = scmp.eq.s32.totalorder %s17, 1
      %p140 = scmp.ne.s32.totalorder %s135, %s137
      %p141 = scmp.eq.s32.totalorder %s17, 0
      %p142 = por %p140, %p141
      %p143 = scmp.ne.s32.totalorder %s135, %s137
      %p144 = scmp.eq.s32.totalorder %s22, 1
      %p145 = por %p143, %p144
      %p146 = scmp.ne.s32.totalorder %s137, %s138
      %p147 = scmp.eq.s32.totalorder %s22, 0
      %p148 = por %p146, %p147
      %p149 = scmp.ne.s32.totalorder %s137, %s138
      %p150 = scmp.eq.s32.totalorder %s23, 1
      %p151 = por %p149, %p150
      %p153 = scmp.ne.s32.totalorder %s138, %s152
      %p154 = scmp.eq.s32.totalorder %s23, 0
      %p155 = por %p153, %p154
      %s157 = sadd.s32 %s156, 1
      %p160 = scmp.eq.s32.totalorder %s17, 1
      %p161 = scmp.ne.s32.totalorder %s156, %s158
      %p162 = scmp.eq.s32.totalorder %s17, 0
      %p163 = por %p161, %p162
      %p164 = scmp.ne.s32.totalorder %s156, %s158
      %p165 = scmp.eq.s32.totalorder %s22, 1
      %p166 = por %p164, %p165
      %p167 = scmp.ne.s32.totalorder %s158, %s159
      %p168 = scmp.eq.s32.totalorder %s22, 0
      %p169 = por %p167, %p168
      %p170 = scmp.ne.s32.totalorder %s158, %s159
      %p171 = scmp.eq.s32.totalorder %s23, 1
      %p172 = por %p170, %p171
      %p174 = scmp.ne.s32.totalorder %s159, %s173
      %p175 = scmp.eq.s32.totalorder %s23, 0
      %p176 = por %p174, %p175
      %s178 = sadd.s32 %s177, 1
      %p181 = scmp.eq.s32.totalorder %s17, 1
      %p182 = scmp.ne.s32.totalorder %s177, %s179
      %p183 = scmp.eq.s32.totalorder %s17, 0
      %p184 = por %p182, %p183
      %p185 = scmp.ne.s32.totalorder %s177, %s179
      %p186 = scmp.eq.s32.totalorder %s22, 1
      %p187 = por %p185, %p186
      %p188 = scmp.ne.s32.totalorder %s179, %s180
      %p189 = scmp.eq.s32.totalorder %s22, 0
      %p190 = por %p188, %p189
      %p191 = scmp.ne.s32.totalorder %s179, %s180
      %p192 = scmp.eq.s32.totalorder %s23, 1
      %p193 = por %p191, %p192
      %p195 = scmp.ne.s32.totalorder %s180, %s194
      %p196 = scmp.eq.s32.totalorder %s23, 0
      %p197 = por %p195, %p196
      %s199 = sadd.s32 %s198, 1
      %p202 = scmp.eq.s32.totalorder %s17, 1
      %p203 = scmp.ne.s32.totalorder %s198, %s200
      %p204 = scmp.eq.s32.totalorder %s17, 0
      %p205 = por %p203, %p204
      %p206 = scmp.ne.s32.totalorder %s198, %s200
      %p207 = scmp.eq.s32.totalorder %s22, 1
      %p208 = por %p206, %p207
      %p209 = scmp.ne.s32.totalorder %s200, %s201
      %p210 = scmp.eq.s32.totalorder %s22, 0
      %p211 = por %p209, %p210
      %p212 = scmp.ne.s32.totalorder %s200, %s201
      %p213 = scmp.eq.s32.totalorder %s23, 1
      %p214 = por %p212, %p213
      %p216 = scmp.ne.s32.totalorder %s201, %s215
      %p217 = scmp.eq.s32.totalorder %s23, 0
      %p218 = por %p216, %p217
      %s220 = sadd.s32 %s219, 1
      %p223 = scmp.eq.s32.totalorder %s17, 1
      %p224 = scmp.ne.s32.totalorder %s219, %s221
      %p225 = scmp.eq.s32.totalorder %s17, 0
      %p226 = por %p224, %p225
      %p227 = scmp.ne.s32.totalorder %s219, %s221
      %p228 = scmp.eq.s32.totalorder %s22, 1
      %p229 = por %p227, %p228
      %p230 = scmp.ne.s32.totalorder %s221, %s222
      %p231 = scmp.eq.s32.totalorder %s22, 0
      %p232 = por %p230, %p231
      %p233 = scmp.ne.s32.totalorder %s221, %s222
      %p234 = scmp.eq.s32.totalorder %s23, 1
      %p235 = por %p233, %p234
      %p237 = scmp.ne.s32.totalorder %s222, %s236
      %p238 = scmp.eq.s32.totalorder %s23, 0
      %p239 = por %p237, %p238
      %s240 = ssub.s32 %s17, %s24
      %p241 = scmp.eq.s32.totalorder %s240, 0
      %s243 = sadd.s32 %s242, 1
      %s244 = scalar_select %p241, %s242, %s243
      %p247 = pneg %p241
      %p248 = scmp.eq.s32.totalorder %s17, 1
      %p249 = por %p247, %p248
      %p250 = scmp.ne.s32.totalorder %s242, %s245
      %p251 = scmp.eq.s32.totalorder %s17, 0
      %p252 = por %p250, %p251
      %p253 = scmp.ne.s32.totalorder %s242, %s245
      %p254 = scmp.eq.s32.totalorder %s22, 1
      %p255 = por %p253, %p254
      %p256 = scmp.ne.s32.totalorder %s245, %s246
      %p257 = scmp.eq.s32.totalorder %s22, 0
      %p258 = por %p256, %p257
      %p259 = scmp.ne.s32.totalorder %s245, %s246
      %p260 = scmp.eq.s32.totalorder %s23, 1
      %p261 = por %p259, %p260
      %p263 = scmp.ne.s32.totalorder %s246, %s262
      %p264 = scmp.eq.s32.totalorder %s23, 0
      %p265 = por %p263, %p264
      %p266 = scmp.le.s32.totalorder 1, %s17
      %p267 = scmp.lt.s32.totalorder %s17, 3
      %p268 = pnand %p266, %p267
      %p269 = pneg %p268
      // Predicated region
      $region9: #{basic_block_forward.1} parent=5 // pred_check
        _
      $region10: #{basic_block_forward.1} parent=5 // pred_check_branch
        %271 = sbr.rel (%p268) target = $region12
      $region11: #{basic_block_forward.1} parent=5 // pred_region
        %s272 = ssub.s32 %s17, 1
        // Predicated region
        $region13: #{basic_block_forward.1} parent=11 // pred_check
          %p273 = pneg %p64
        $region14: #{basic_block_forward.1} parent=11 // pred_check_branch
          %275 = sbr.rel (%p273) target = $region16
        $region15: #{basic_block_forward.1} parent=11 // pred_region
          _
        $region16: #{basic_block_forward.1} parent=11 // pred_fallthru
          _
        // Predicated region
        $region17: #{basic_block_forward.1} parent=11 // pred_check
          %p276 = pneg %p85
        $region18: #{basic_block_forward.1} parent=11 // pred_check_branch
          %278 = sbr.rel (%p276) target = $region20
        $region19: #{basic_block_forward.1} parent=11 // pred_region
          _
        $region20: #{basic_block_forward.1} parent=11 // pred_fallthru
          _
        // Predicated region
        $region21: #{basic_block_forward.1} parent=11 // pred_check
          %p279 = pneg %p106
        $region22: #{basic_block_forward.1} parent=11 // pred_check_branch
          %281 = sbr.rel (%p279) target = $region24
        $region23: #{basic_block_forward.1} parent=11 // pred_region
          _
        $region24: #{basic_block_forward.1} parent=11 // pred_fallthru
          _
        // Predicated region
        $region25: #{basic_block_forward.1} parent=11 // pred_check
          %p282 = pneg %p127
        $region26: #{basic_block_forward.1} parent=11 // pred_check_branch
          %284 = sbr.rel (%p282) target = $region28
        $region27: #{basic_block_forward.1} parent=11 // pred_region
          _
        $region28: #{basic_block_forward.1} parent=11 // pred_fallthru
          _
        // Predicated region
        $region29: #{basic_block_forward.1} parent=11 // pred_check
          %p285 = pneg %p148
        $region30: #{basic_block_forward.1} parent=11 // pred_check_branch
          %287 = sbr.rel (%p285) target = $region32
        $region31: #{basic_block_forward.1} parent=11 // pred_region
          _
        $region32: #{basic_block_forward.1} parent=11 // pred_fallthru
          _
        // Predicated region
        $region33: #{basic_block_forward.1} parent=11 // pred_check
          %p288 = pneg %p169
        $region34: #{basic_block_forward.1} parent=11 // pred_check_branch
          %290 = sbr.rel (%p288) target = $region36
        $region35: #{basic_block_forward.1} parent=11 // pred_region
          _
        $region36: #{basic_block_forward.1} parent=11 // pred_fallthru
          _
        // Predicated region
        $region37: #{basic_block_forward.1} parent=11 // pred_check
          %p291 = pneg %p190
        $region38: #{basic_block_forward.1} parent=11 // pred_check_branch
          %293 = sbr.rel (%p291) target = $region40
        $region39: #{basic_block_forward.1} parent=11 // pred_region
          %295 = vsyncadd [#allocation4], 0
          %s296 = sshll.u32 %s7, 4
          %s297 = int_to_ptr.hbm [resolvable:$true] %s296
          %s298 = sshll.u32 [#allocation3], 4
          %s299 = int_to_ptr.vmem [resolvable:$true] %s298
          %304 = dma.hbm_to_vmem [thread:$0]  %s297, 1024, %s299, [#allocation4], 64, 64, 4
        $region40: #{basic_block_forward.1} parent=11 // pred_fallthru
          _
        // Predicated region
        $region41: #{basic_block_forward.1} parent=11 // pred_check
          %p305 = pneg %p211
        $region42: #{basic_block_forward.1} parent=11 // pred_check_branch
          %307 = sbr.rel (%p305) target = $region44
        $region43: #{basic_block_forward.1} parent=11 // pred_region
          _
        $region44: #{basic_block_forward.1} parent=11 // pred_fallthru
          _
        // Predicated region
        $region45: #{basic_block_forward.1} parent=11 // pred_check
          %p308 = pneg %p232
        $region46: #{basic_block_forward.1} parent=11 // pred_check_branch
          %310 = sbr.rel (%p308) target = $region48
        $region47: #{basic_block_forward.1} parent=11 // pred_region
          _
        $region48: #{basic_block_forward.1} parent=11 // pred_fallthru
          _
      $region12: #{basic_block_forward.1} parent=5 // pred_fallthru
        _
      %p311 = scmp.lt.s32.totalorder %s17, 2
      // Predicated region
      $region49: #{basic_block_forward.1} parent=5 // pred_check
        %p312 = pneg %p311
      $region50: #{basic_block_forward.1} parent=5 // pred_check_branch
        %314 = sbr.rel (%p312) target = $region52
      $region51: #{basic_block_forward.1} parent=5 // pred_region
        // Predicated region
        $region53: #{basic_block_forward.1} parent=51 // pred_check
          %p315 = pneg %p37
        $region54: #{basic_block_forward.1} parent=51 // pred_check_branch
          %317 = sbr.rel (%p315) target = $region56
        $region55: #{basic_block_forward.1} parent=51 // pred_region
          %p318 = scmp.lt.s32.totalorder %s17, 1
          %s319 = scalar_select %p318, %s17, 1
          %s320 = smul.addr %s319, 54
          %s321 = smul.addr %s320, 4
          %s322 = scalar_lea.vmem %s0, %s321
        $region56: #{basic_block_forward.1} parent=51 // pred_fallthru
          _
      $region52: #{basic_block_forward.1} parent=5 // pred_fallthru
        _
      %p323 = scmp.le.s32.totalorder 1, %s17
      %p324 = scmp.lt.s32.totalorder %s17, 3
      %p325 = pnand %p323, %p324
      %p326 = pneg %p325
      // Predicated region
      $region57: #{basic_block_forward.1} parent=5 // pred_check
        _
      $region58: #{basic_block_forward.1} parent=5 // pred_check_branch
        %328 = sbr.rel (%p325) target = $region60
      $region59: #{basic_block_forward.1} parent=5 // pred_region
        %s329 = ssub.s32 %s17, 1
        // Predicated region
        $region61: #{basic_block_forward.1} parent=59 // pred_check
          %p330 = pneg %p190
        $region62: #{basic_block_forward.1} parent=59 // pred_check_branch
          %332 = sbr.rel (%p330) target = $region64
        $region63: #{basic_block_forward.1} parent=59 // pred_region
          %334 = dma.done [#allocation4], 1024
        $region64: #{basic_block_forward.1} parent=59 // pred_fallthru
          _
        %p335 = scmp.lt.s32.totalorder %s22, 1
        %s336 = scalar_select %p335, %s22, 1
        %s337 = smul.addr %s336, 54
        %s338 = smul.addr %s337, 4
        %s339 = scalar_lea.vmem %s0, %s338
        %p340 = pneg %p43
        %p341 = pneg %p40
        %p342 = pneg %p64
        %p343 = pneg %p61
        %p344 = pneg %p85
        %p345 = pneg %p82
        %p346 = pneg %p106
        %p347 = pneg %p103
        %p348 = pneg %p127
        %p349 = pneg %p124
        %p350 = pneg %p148
        %p351 = pneg %p145
        %p352 = pneg %p169
        %p353 = pneg %p166
        %p354 = pneg %p190
        %p355 = pneg %p187
        %p356 = pneg %p211
        %p357 = pneg %p208
        %p358 = pneg %p232
        %p359 = pneg %p229
        %p360 = pneg %p258
        %p361 = pneg %p255
        %p362 = scmp.lt.s32.totalorder %s22, 1
        %s363 = scalar_select %p362, %s22, 1
        %s364 = smul.addr %s363, 32
        %s365 = smul.addr %s364, 4
        %s366 = scalar_lea.vmem %s10, %s365
        %p367 = scmp.lt.s32.totalorder %s22, 1
        %s368 = scalar_select %p367, %s22, 1
        %s369 = smul.addr %s368, 54
        %s370 = smul.addr %s369, 4
        %s371 = scalar_lea.vmem %s0, %s370
        %p372 = scmp.lt.s32.totalorder %s22, 1
        %s373 = scalar_select %p372, %s22, 1
        %s374 = smul.addr %s373, 32
        %s375 = smul.addr %s374, 4
        %s376 = scalar_lea.vmem %s10, %s375
        %s378 = scalar_lea.vmem %s371, 12
        %v379 = vld [vmem:[%s378] sm:$0xf]
        %v380 = vld [vmem:[%s378 + $0x4] sm:$0xf]
        %v381 = vld [vmem:[%s378 + $0x8] sm:$0x1]
        %v382 = vld [vmem:[%s378 + $0xc] sm:$0xf]
        %v383 = vld [vmem:[%s378 + $0x10] sm:$0xf]
        %v384 = vld [vmem:[%s378 + $0x14] sm:$0x1]
        %v385 = vld [vmem:[%s378 + $0x18] sm:$0xf]
        %v386 = vld [vmem:[%s378 + $0x1c] sm:$0xf]
        %v387 = vld [vmem:[%s378 + $0x20] sm:$0x1]
        %v388 = vld [vmem:[%s378 + $0x24] sm:$0xf]
        %v389 = vld [vmem:[%s378 + $0x28] sm:$0xf]
        %v390 = vld [vmem:[%s378 + $0x2c] sm:$0x1]
        %v391 = vld [vmem:[%s378 + $0x30] sm:$0xf]
        %v392 = vld [vmem:[%s378 + $0x34] sm:$0xf]
        %v393 = vld [vmem:[%s378 + $0x38] sm:$0x1]
        %v394 = vld [vmem:[%s378 + $0x3c] sm:$0xf]
        %v395 = vld [vmem:[%s378 + $0x40] sm:$0xf]
        %v396 = vld [vmem:[%s378 + $0x44] sm:$0x1]
        %v397 = vld [vmem:[%s378 + $0x48] sm:$0xf]
        %v398 = vld [vmem:[%s378 + $0x4c] sm:$0xf]
        %v399 = vld [vmem:[%s378 + $0x50] sm:$0x1]
        %v400 = vld [vmem:[%s378 + $0x54] sm:$0xf]
        %v401 = vld [vmem:[%s378 + $0x58] sm:$0xf]
        %v402 = vld [vmem:[%s378 + $0x5c] sm:$0x1]
        %v403 = vld [vmem:[%s378 + $0x60] sm:$0xf]
        %v404 = vld [vmem:[%s378 + $0x64] sm:$0xf]
        %v405 = vld [vmem:[%s378 + $0x68] sm:$0x1]
        %v406 = vld [vmem:[%s378 + $0x6c] sm:$0xf]
        %v407 = vld [vmem:[%s378 + $0x70] sm:$0xf]
        %v408 = vld [vmem:[%s378 + $0x74] sm:$0x1]
        %v409 = vld [vmem:[%s378 + $0x78] sm:$0xf]
        %v410 = vld [vmem:[%s378 + $0x7c] sm:$0xf]
        %v411 = vld [vmem:[%s378 + $0x80] sm:$0x1]
        %v412 = vld [vmem:[%s378 + $0x84] sm:$0xf]
        %v413 = vld [vmem:[%s378 + $0x88] sm:$0xf]
        %v414 = vld [vmem:[%s378 + $0x8c] sm:$0x1]
        %v415 = vld [vmem:[%s378 + $0x90] sm:$0xf]
        %v416 = vld [vmem:[%s378 + $0x94] sm:$0xf]
        %v417 = vld [vmem:[%s378 + $0x98] sm:$0x1]
        %v418 = vld [vmem:[%s378 + $0x9c] sm:$0xf]
        %v419 = vld [vmem:[%s378 + $0xa0] sm:$0xf]
        %v420 = vld [vmem:[%s378 + $0xa4] sm:$0x1]
        %v421 = vld [vmem:[%s378 + $0xa8] sm:$0xf]
        %v422 = vld [vmem:[%s378 + $0xac] sm:$0xf]
        %v423 = vld [vmem:[%s378 + $0xb0] sm:$0x1]
        %v424 = vld [vmem:[%s378 + $0xb4] sm:$0xf]
        %v425 = vld [vmem:[%s378 + $0xb8] sm:$0xf]
        %v426 = vld [vmem:[%s378 + $0xbc] sm:$0x1]
        %vm427 = vsmask.f32 3328
        %vm428 = vsmask.f32 7440
        %vm429 = vmor %vm427, %vm428
        %v431 = vshrl.u32 %v379, 16
        %v433 = vrot.slane %v431, 4
        %v434 = vshll.u32 %v379, 16
        %v436 = vrot.slane %v434, 5
        %v437 = vor.u32 %v433, %v436
        %v438 = vrot.slane %v437, 4
        %v440 = vshll.u32 %v380, 16
        %v442 = vrot.slane %v440, 5
        %v443 = vsel %vm429, %v438, %v442
        %v444 = vshrl.u32 %v380, 16
        %v446 = vrot.slane %v444, 4
        %v447 = vor.u32 %v446, %v442
        %v448 = vrot.slane %v447, 4
        %v450 = vshll.u32 %v381, 16
        %v452 = vrot.slane %v450, 5
        %v453 = vsel %vm429, %v448, %v452
        %v455 = vshrl.u32 %v382, 16
        %v457 = vrot.slane %v455, 4
        %v458 = vshll.u32 %v382, 16
        %v460 = vrot.slane %v458, 5
        %v461 = vor.u32 %v457, %v460
        %v462 = vrot.slane %v461, 4
        %v464 = vshll.u32 %v383, 16
        %v466 = vrot.slane %v464, 5
        %v467 = vsel %vm429, %v462, %v466
        %v468 = vshrl.u32 %v383, 16
        %v470 = vrot.slane %v468, 4
        %v471 = vor.u32 %v470, %v466
        %v472 = vrot.slane %v471, 4
        %v474 = vshll.u32 %v384, 16
        %v476 = vrot.slane %v474, 5
        %v477 = vsel %vm429, %v472, %v476
        %v479 = vshrl.u32 %v385, 16
        %v481 = vrot.slane %v479, 4
        %v482 = vshll.u32 %v385, 16
        %v484 = vrot.slane %v482, 5
        %v485 = vor.u32 %v481, %v484
        %v486 = vrot.slane %v485, 4
        %v488 = vshll.u32 %v386, 16
        %v490 = vrot.slane %v488, 5
        %v491 = vsel %vm429, %v486, %v490
        %v492 = vshrl.u32 %v386, 16
        %v494 = vrot.slane %v492, 4
        %v495 = vor.u32 %v494, %v490
        %v496 = vrot.slane %v495, 4
        %v498 = vshll.u32 %v387, 16
        %v500 = vrot.slane %v498, 5
        %v501 = vsel %vm429, %v496, %v500
        %v503 = vshrl.u32 %v388, 16
        %v505 = vrot.slane %v503, 4
        %v506 = vshll.u32 %v388, 16
        %v508 = vrot.slane %v506, 5
        %v509 = vor.u32 %v505, %v508
        %v510 = vrot.slane %v509, 4
        %v512 = vshll.u32 %v389, 16
        %v514 = vrot.slane %v512, 5
        %v515 = vsel %vm429, %v510, %v514
        %v516 = vshrl.u32 %v389, 16
        %v518 = vrot.slane %v516, 4
        %v519 = vor.u32 %v518, %v514
        %v520 = vrot.slane %v519, 4
        %v522 = vshll.u32 %v390, 16
        %v524 = vrot.slane %v522, 5
        %v525 = vsel %vm429, %v520, %v524
        %v527 = vshrl.u32 %v391, 16
        %v529 = vrot.slane %v527, 4
        %v530 = vshll.u32 %v391, 16
        %v532 = vrot.slane %v530, 5
        %v533 = vor.u32 %v529, %v532
        %v534 = vrot.slane %v533, 4
        %v536 = vshll.u32 %v392, 16
        %v538 = vrot.slane %v536, 5
        %v539 = vsel %vm429, %v534, %v538
        %v540 = vshrl.u32 %v392, 16
        %v542 = vrot.slane %v540, 4
        %v543 = vor.u32 %v542, %v538
        %v544 = vrot.slane %v543, 4
        %v546 = vshll.u32 %v393, 16
        %v548 = vrot.slane %v546, 5
        %v549 = vsel %vm429, %v544, %v548
        %v551 = vshrl.u32 %v394, 16
        %v553 = vrot.slane %v551, 4
        %v554 = vshll.u32 %v394, 16
        %v556 = vrot.slane %v554, 5
        %v557 = vor.u32 %v553, %v556
        %v558 = vrot.slane %v557, 4
        %v560 = vshll.u32 %v395, 16
        %v562 = vrot.slane %v560, 5
        %v563 = vsel %vm429, %v558, %v562
        %v564 = vshrl.u32 %v395, 16
        %v566 = vrot.slane %v564, 4
        %v567 = vor.u32 %v566, %v562
        %v568 = vrot.slane %v567, 4
        %v570 = vshll.u32 %v396, 16
        %v572 = vrot.slane %v570, 5
        %v573 = vsel %vm429, %v568, %v572
        %v575 = vshrl.u32 %v397, 16
        %v577 = vrot.slane %v575, 4
        %v578 = vshll.u32 %v397, 16
        %v580 = vrot.slane %v578, 5
        %v581 = vor.u32 %v577, %v580
        %v582 = vrot.slane %v581, 4
        %v584 = vshll.u32 %v398, 16
        %v586 = vrot.slane %v584, 5
        %v587 = vsel %vm429, %v582, %v586
        %v588 = vshrl.u32 %v398, 16
        %v590 = vrot.slane %v588, 4
        %v591 = vor.u32 %v590, %v586
        %v592 = vrot.slane %v591, 4
        %v594 = vshll.u32 %v399, 16
        %v596 = vrot.slane %v594, 5
        %v597 = vsel %vm429, %v592, %v596
        %v599 = vshrl.u32 %v400, 16
        %v601 = vrot.slane %v599, 4
        %v602 = vshll.u32 %v400, 16
        %v604 = vrot.slane %v602, 5
        %v605 = vor.u32 %v601, %v604
        %v606 = vrot.slane %v605, 4
        %v608 = vshll.u32 %v401, 16
        %v610 = vrot.slane %v608, 5
        %v611 = vsel %vm429, %v606, %v610
        %v612 = vshrl.u32 %v401, 16
        %v614 = vrot.slane %v612, 4
        %v615 = vor.u32 %v614, %v610
        %v616 = vrot.slane %v615, 4
        %v618 = vshll.u32 %v402, 16
        %v620 = vrot.slane %v618, 5
        %v621 = vsel %vm429, %v616, %v620
        %v623 = vshrl.u32 %v403, 16
        %v625 = vrot.slane %v623, 4
        %v626 = vshll.u32 %v403, 16
        %v628 = vrot.slane %v626, 5
        %v629 = vor.u32 %v625, %v628
        %v630 = vrot.slane %v629, 4
        %v632 = vshll.u32 %v404, 16
        %v634 = vrot.slane %v632, 5
        %v635 = vsel %vm429, %v630, %v634
        %v636 = vshrl.u32 %v404, 16
        %v638 = vrot.slane %v636, 4
        %v639 = vor.u32 %v638, %v634
        %v640 = vrot.slane %v639, 4
        %v642 = vshll.u32 %v405, 16
        %v644 = vrot.slane %v642, 5
        %v645 = vsel %vm429, %v640, %v644
        %v647 = vshrl.u32 %v406, 16
        %v649 = vrot.slane %v647, 4
        %v650 = vshll.u32 %v406, 16
        %v652 = vrot.slane %v650, 5
        %v653 = vor.u32 %v649, %v652
        %v654 = vrot.slane %v653, 4
        %v656 = vshll.u32 %v407, 16
        %v658 = vrot.slane %v656, 5
        %v659 = vsel %vm429, %v654, %v658
        %v660 = vshrl.u32 %v407, 16
        %v662 = vrot.slane %v660, 4
        %v663 = vor.u32 %v662, %v658
        %v664 = vrot.slane %v663, 4
        %v666 = vshll.u32 %v408, 16
        %v668 = vrot.slane %v666, 5
        %v669 = vsel %vm429, %v664, %v668
        %v671 = vshrl.u32 %v409, 16
        %v673 = vrot.slane %v671, 4
        %v674 = vshll.u32 %v409, 16
        %v676 = vrot.slane %v674, 5
        %v677 = vor.u32 %v673, %v676
        %v678 = vrot.slane %v677, 4
        %v680 = vshll.u32 %v410, 16
        %v682 = vrot.slane %v680, 5
        %v683 = vsel %vm429, %v678, %v682
        %v684 = vshrl.u32 %v410, 16
        %v686 = vrot.slane %v684, 4
        %v687 = vor.u32 %v686, %v682
        %v688 = vrot.slane %v687, 4
        %v690 = vshll.u32 %v411, 16
        %v692 = vrot.slane %v690, 5
        %v693 = vsel %vm429, %v688, %v692
        %v695 = vshrl.u32 %v412, 16
        %v697 = vrot.slane %v695, 4
        %v698 = vshll.u32 %v412, 16
        %v700 = vrot.slane %v698, 5
        %v701 = vor.u32 %v697, %v700
        %v702 = vrot.slane %v701, 4
        %v704 = vshll.u32 %v413, 16
        %v706 = vrot.slane %v704, 5
        %v707 = vsel %vm429, %v702, %v706
        %v708 = vshrl.u32 %v413, 16
        %v710 = vrot.slane %v708, 4
        %v711 = vor.u32 %v710, %v706
        %v712 = vrot.slane %v711, 4
        %v714 = vshll.u32 %v414, 16
        %v716 = vrot.slane %v714, 5
        %v717 = vsel %vm429, %v712, %v716
        %v719 = vshrl.u32 %v415, 16
        %v721 = vrot.slane %v719, 4
        %v722 = vshll.u32 %v415, 16
        %v724 = vrot.slane %v722, 5
        %v725 = vor.u32 %v721, %v724
        %v726 = vrot.slane %v725, 4
        %v728 = vshll.u32 %v416, 16
        %v730 = vrot.slane %v728, 5
        %v731 = vsel %vm429, %v726, %v730
        %v732 = vshrl.u32 %v416, 16
        %v734 = vrot.slane %v732, 4
        %v735 = vor.u32 %v734, %v730
        %v736 = vrot.slane %v735, 4
        %v738 = vshll.u32 %v417, 16
        %v740 = vrot.slane %v738, 5
        %v741 = vsel %vm429, %v736, %v740
        %v743 = vshrl.u32 %v418, 16
        %v745 = vrot.slane %v743, 4
        %v746 = vshll.u32 %v418, 16
        %v748 = vrot.slane %v746, 5
        %v749 = vor.u32 %v745, %v748
        %v750 = vrot.slane %v749, 4
        %v752 = vshll.u32 %v419, 16
        %v754 = vrot.slane %v752, 5
        %v755 = vsel %vm429, %v750, %v754
        %v756 = vshrl.u32 %v419, 16
        %v758 = vrot.slane %v756, 4
        %v759 = vor.u32 %v758, %v754
        %v760 = vrot.slane %v759, 4
        %v762 = vshll.u32 %v420, 16
        %v764 = vrot.slane %v762, 5
        %v765 = vsel %vm429, %v760, %v764
        %v767 = vshrl.u32 %v421, 16
        %v769 = vrot.slane %v767, 4
        %v770 = vshll.u32 %v421, 16
        %v772 = vrot.slane %v770, 5
        %v773 = vor.u32 %v769, %v772
        %v774 = vrot.slane %v773, 4
        %v776 = vshll.u32 %v422, 16
        %v778 = vrot.slane %v776, 5
        %v779 = vsel %vm429, %v774, %v778
        %v780 = vshrl.u32 %v422, 16
        %v782 = vrot.slane %v780, 4
        %v783 = vor.u32 %v782, %v778
        %v784 = vrot.slane %v783, 4
        %v786 = vshll.u32 %v423, 16
        %v788 = vrot.slane %v786, 5
        %v789 = vsel %vm429, %v784, %v788
        %v791 = vshrl.u32 %v424, 16
        %v793 = vrot.slane %v791, 4
        %v794 = vshll.u32 %v424, 16
        %v796 = vrot.slane %v794, 5
        %v797 = vor.u32 %v793, %v796
        %v798 = vrot.slane %v797, 4
        %v800 = vshll.u32 %v425, 16
        %v802 = vrot.slane %v800, 5
        %v803 = vsel %vm429, %v798, %v802
        %v804 = vshrl.u32 %v425, 16
        %v806 = vrot.slane %v804, 4
        %v807 = vor.u32 %v806, %v802
        %v808 = vrot.slane %v807, 4
        %v810 = vshll.u32 %v426, 16
        %v812 = vrot.slane %v810, 5
        %v813 = vsel %vm429, %v808, %v812
        %v814 = vld [vmem:[#allocation3] sm:$0xf]
        %v815 = vld [vmem:[#allocation3 + $0x4] sm:$0xf]
        %v816 = vld [vmem:[#allocation3 + $0x8] sm:$0xf]
        %v817 = vld [vmem:[#allocation3 + $0xc] sm:$0xf]
        %v818 = vld [vmem:[#allocation3 + $0x10] sm:$0xf]
        %v819 = vld [vmem:[#allocation3 + $0x14] sm:$0xf]
        %v820 = vld [vmem:[#allocation3 + $0x18] sm:$0xf]
        %v821 = vld [vmem:[#allocation3 + $0x1c] sm:$0xf]
        %v822 = vld [vmem:[#allocation3 + $0x20] sm:$0xf]
        %v823 = vld [vmem:[#allocation3 + $0x24] sm:$0xf]
        %v824 = vld [vmem:[#allocation3 + $0x28] sm:$0xf]
        %v825 = vld [vmem:[#allocation3 + $0x2c] sm:$0xf]
        %v826 = vld [vmem:[#allocation3 + $0x30] sm:$0xf]
        %v827 = vld [vmem:[#allocation3 + $0x34] sm:$0xf]
        %v828 = vld [vmem:[#allocation3 + $0x38] sm:$0xf]
        %v829 = vld [vmem:[#allocation3 + $0x3c] sm:$0xf]
        %v830 = vunpack.c.l.b16 %v443
        %v831 = vunpack.c.l.b16 %v453
        %v832 = vunpack.c.l.b16 %v467
        %v833 = vunpack.c.l.b16 %v477
        %v834 = vunpack.c.l.b16 %v491
        %v835 = vunpack.c.l.b16 %v501
        %v836 = vunpack.c.l.b16 %v515
        %v837 = vunpack.c.l.b16 %v525
        %v838 = vunpack.c.l.b16 %v539
        %v839 = vunpack.c.l.b16 %v549
        %v840 = vunpack.c.l.b16 %v563
        %v841 = vunpack.c.l.b16 %v573
        %v842 = vunpack.c.l.b16 %v587
        %v843 = vunpack.c.l.b16 %v597
        %v844 = vunpack.c.l.b16 %v611
        %v845 = vunpack.c.l.b16 %v621
        %v846 = vunpack.c.l.b16 %v635
        %v847 = vunpack.c.l.b16 %v645
        %v848 = vunpack.c.l.b16 %v659
        %v849 = vunpack.c.l.b16 %v669
        %v850 = vunpack.c.l.b16 %v683
        %v851 = vunpack.c.l.b16 %v693
        %v852 = vunpack.c.l.b16 %v707
        %v853 = vunpack.c.l.b16 %v717
        %v854 = vunpack.c.l.b16 %v731
        %v855 = vunpack.c.l.b16 %v741
        %v856 = vunpack.c.l.b16 %v755
        %v857 = vunpack.c.l.b16 %v765
        %v858 = vunpack.c.l.b16 %v779
        %v859 = vunpack.c.l.b16 %v789
        %v860 = vunpack.c.l.b16 %v803
        %v861 = vunpack.c.l.b16 %v813
        %v862 = vpack.c.b16 %v831, %v830
        %v863 = vpack.c.b16 %v833, %v832
        %v864 = vpack.c.b16 %v835, %v834
        %v865 = vpack.c.b16 %v837, %v836
        %v866 = vpack.c.b16 %v839, %v838
        %v867 = vpack.c.b16 %v841, %v840
        %v868 = vpack.c.b16 %v843, %v842
        %v869 = vpack.c.b16 %v845, %v844
        %v870 = vpack.c.b16 %v847, %v846
        %v871 = vpack.c.b16 %v849, %v848
        %v872 = vpack.c.b16 %v851, %v850
        %v873 = vpack.c.b16 %v853, %v852
        %v874 = vpack.c.b16 %v855, %v854
        %v875 = vpack.c.b16 %v857, %v856
        %v876 = vpack.c.b16 %v859, %v858
        %v877 = vpack.c.b16 %v861, %v860
        %v910 = vunpack.c.l.b16 %v814
        %v911 = vunpack.c.l.b16 %v815
        %v912 = vunpack.c.l.b16 %v816
        %v913 = vunpack.c.l.b16 %v817
        %v914 = vunpack.c.l.b16 %v818
        %v915 = vunpack.c.l.b16 %v819
        %v916 = vunpack.c.l.b16 %v820
        %v917 = vunpack.c.l.b16 %v821
        %v918 = vunpack.c.l.b16 %v822
        %v919 = vunpack.c.l.b16 %v823
        %v920 = vunpack.c.l.b16 %v824
        %v921 = vunpack.c.l.b16 %v825
        %v922 = vunpack.c.l.b16 %v826
        %v923 = vunpack.c.l.b16 %v827
        %v924 = vunpack.c.l.b16 %v828
        %v925 = vunpack.c.l.b16 %v829
        %v926 = vpack.c.b16 %v911, %v910
        %v927 = vpack.c.b16 %v913, %v912
        %v928 = vpack.c.b16 %v915, %v914
        %v929 = vpack.c.b16 %v917, %v916
        %v930 = vpack.c.b16 %v919, %v918
        %v931 = vpack.c.b16 %v921, %v920
        %v932 = vpack.c.b16 %v923, %v922
        %v933 = vpack.c.b16 %v925, %v924
        %942 = vmatpush.bf16.msra.mxu0 %v933
        %943 = vmatpush.bf16.msra.mxu0 %v932
        %944 = vmatpush.bf16.msra.mxu0 %v931
        %945 = vmatpush.bf16.msra.mxu0 %v930
        %946 = vmatpush.bf16.msra.mxu0 %v929
        %947 = vmatpush.bf16.msra.mxu0 %v928
        %948 = vmatpush.bf16.msra.mxu0 %v927
        %949 = vmatpush.bf16.msra.mxu0 %v926
        %950 = vmatmul.bf16.gmra.mxu0 %v862
        %v951 = vpop.f32.mrf.mxu0
        %v952 = vadd.f32 0.0, %v951
        %v953 = vpop.f32.mrf.mxu0
        %v954 = vadd.f32 0.0, %v953
        %955 = vmatmul.bf16.gmra.mxu0 %v863
        %v956 = vpop.f32.mrf.mxu0
        %v957 = vadd.f32 0.0, %v956
        %v958 = vpop.f32.mrf.mxu0
        %v959 = vadd.f32 0.0, %v958
        %960 = vmatmul.bf16.gmra.mxu0 %v864
        %v961 = vpop.f32.mrf.mxu0
        %v962 = vadd.f32 0.0, %v961
        %v963 = vpop.f32.mrf.mxu0
        %v964 = vadd.f32 0.0, %v963
        %965 = vmatmul.bf16.gmra.mxu0 %v865
        %v966 = vpop.f32.mrf.mxu0
        %v967 = vadd.f32 0.0, %v966
        %v968 = vpop.f32.mrf.mxu0
        %v969 = vadd.f32 0.0, %v968
        %970 = vmatmul.bf16.gmra.mxu0 %v866
        %v971 = vpop.f32.mrf.mxu0
        %v972 = vadd.f32 0.0, %v971
        %v973 = vpop.f32.mrf.mxu0
        %v974 = vadd.f32 0.0, %v973
        %975 = vmatmul.bf16.gmra.mxu0 %v867
        %v976 = vpop.f32.mrf.mxu0
        %v977 = vadd.f32 0.0, %v976
        %v978 = vpop.f32.mrf.mxu0
        %v979 = vadd.f32 0.0, %v978
        %980 = vmatmul.bf16.gmra.mxu0 %v868
        %v981 = vpop.f32.mrf.mxu0
        %v982 = vadd.f32 0.0, %v981
        %v983 = vpop.f32.mrf.mxu0
        %v984 = vadd.f32 0.0, %v983
        %985 = vmatmul.bf16.gmra.mxu0 %v869
        %v986 = vpop.f32.mrf.mxu0
        %v987 = vadd.f32 0.0, %v986
        %v988 = vpop.f32.mrf.mxu0
        %v989 = vadd.f32 0.0, %v988
        %990 = vmatmul.bf16.gmra.mxu0 %v870
        %v991 = vpop.f32.mrf.mxu0
        %v992 = vadd.f32 0.0, %v991
        %v993 = vpop.f32.mrf.mxu0
        %v994 = vadd.f32 0.0, %v993
        %995 = vmatmul.bf16.gmra.mxu0 %v871
        %v996 = vpop.f32.mrf.mxu0
        %v997 = vadd.f32 0.0, %v996
        %v998 = vpop.f32.mrf.mxu0
        %v999 = vadd.f32 0.0, %v998
        %1000 = vmatmul.bf16.gmra.mxu0 %v872
        %v1001 = vpop.f32.mrf.mxu0
        %v1002 = vadd.f32 0.0, %v1001
        %v1003 = vpop.f32.mrf.mxu0
        %v1004 = vadd.f32 0.0, %v1003
        %1005 = vmatmul.bf16.gmra.mxu0 %v873
        %v1006 = vpop.f32.mrf.mxu0
        %v1007 = vadd.f32 0.0, %v1006
        %v1008 = vpop.f32.mrf.mxu0
        %v1009 = vadd.f32 0.0, %v1008
        %1010 = vmatmul.bf16.gmra.mxu0 %v874
        %v1011 = vpop.f32.mrf.mxu0
        %v1012 = vadd.f32 0.0, %v1011
        %v1013 = vpop.f32.mrf.mxu0
        %v1014 = vadd.f32 0.0, %v1013
        %1015 = vmatmul.bf16.gmra.mxu0 %v875
        %v1016 = vpop.f32.mrf.mxu0
        %v1017 = vadd.f32 0.0, %v1016
        %v1018 = vpop.f32.mrf.mxu0
        %v1019 = vadd.f32 0.0, %v1018
        %1020 = vmatmul.bf16.gmra.mxu0 %v876
        %v1021 = vpop.f32.mrf.mxu0
        %v1022 = vadd.f32 0.0, %v1021
        %v1023 = vpop.f32.mrf.mxu0
        %v1024 = vadd.f32 0.0, %v1023
        %1025 = vmatmul.bf16.gmra.mxu0 %v877
        %v1026 = vpop.f32.mrf.mxu0
        %v1027 = vadd.f32 0.0, %v1026
        %v1028 = vpop.f32.mrf.mxu0
        %v1029 = vadd.f32 0.0, %v1028
        %1030 = vdwg.mxu0
        %v1031 = vld [vmem:[%s8] sm:$0x1]
        %v1032 = vld [vmem:[%s9] sm:$0x1]
        %v1033 = vadd.f32 %v952, %v954
        %v1034 = vadd.f32 %v1033, %v957
        %v1035 = vadd.f32 %v1034, %v959
        %v1036 = vadd.f32 %v1035, %v962
        %v1037 = vadd.f32 %v1036, %v964
        %v1038 = vadd.f32 %v1037, %v967
        %v1039 = vadd.f32 %v1038, %v969
        %v1040 = vadd.f32 %v1039, %v972
        %v1041 = vadd.f32 %v1040, %v974
        %v1042 = vadd.f32 %v1041, %v977
        %v1043 = vadd.f32 %v1042, %v979
        %v1044 = vadd.f32 %v1043, %v982
        %v1045 = vadd.f32 %v1044, %v984
        %v1046 = vadd.f32 %v1045, %v987
        %v1047 = vadd.f32 %v1046, %v989
        %v1048 = vadd.f32 %v1047, %v992
        %v1049 = vadd.f32 %v1048, %v994
        %v1050 = vadd.f32 %v1049, %v997
        %v1051 = vadd.f32 %v1050, %v999
        %v1052 = vadd.f32 %v1051, %v1002
        %v1053 = vadd.f32 %v1052, %v1004
        %v1054 = vadd.f32 %v1053, %v1007
        %v1055 = vadd.f32 %v1054, %v1009
        %v1056 = vadd.f32 %v1055, %v1012
        %v1057 = vadd.f32 %v1056, %v1014
        %v1058 = vadd.f32 %v1057, %v1017
        %v1059 = vadd.f32 %v1058, %v1019
        %v1060 = vadd.f32 %v1059, %v1022
        %v1061 = vadd.f32 %v1060, %v1024
        %v1062 = vadd.f32 %v1061, %v1027
        %v1063 = vadd.f32 %v1062, %v1029
        %v1064 = vrot.slane %v1063, 4
        %v1065 = vadd.f32 %v1063, %v1064
        %v1066 = vrot.slane %v1065, 2
        %v1067 = vadd.f32 %v1065, %v1066
        %v1068 = vrot.slane %v1067, 1
        %v1069 = vadd.f32 %v1067, %v1068
        %v1070 = vmul.f32 %v1069, 0.00390625
        %v1071 = vsub.f32 %v952, %v1070
        %v1072 = vsub.f32 %v954, %v1070
        %v1073 = vsub.f32 %v957, %v1070
        %v1074 = vsub.f32 %v959, %v1070
        %v1075 = vsub.f32 %v962, %v1070
        %v1076 = vsub.f32 %v964, %v1070
        %v1077 = vsub.f32 %v967, %v1070
        %v1078 = vsub.f32 %v969, %v1070
        %v1079 = vsub.f32 %v972, %v1070
        %v1080 = vsub.f32 %v974, %v1070
        %v1081 = vsub.f32 %v977, %v1070
        %v1082 = vsub.f32 %v979, %v1070
        %v1083 = vsub.f32 %v982, %v1070
        %v1084 = vsub.f32 %v984, %v1070
        %v1085 = vsub.f32 %v987, %v1070
        %v1086 = vsub.f32 %v989, %v1070
        %v1087 = vsub.f32 %v992, %v1070
        %v1088 = vsub.f32 %v994, %v1070
        %v1089 = vsub.f32 %v997, %v1070
        %v1090 = vsub.f32 %v999, %v1070
        %v1091 = vsub.f32 %v1002, %v1070
        %v1092 = vsub.f32 %v1004, %v1070
        %v1093 = vsub.f32 %v1007, %v1070
        %v1094 = vsub.f32 %v1009, %v1070
        %v1095 = vsub.f32 %v1012, %v1070
        %v1096 = vsub.f32 %v1014, %v1070
        %v1097 = vsub.f32 %v1017, %v1070
        %v1098 = vsub.f32 %v1019, %v1070
        %v1099 = vsub.f32 %v1022, %v1070
        %v1100 = vsub.f32 %v1024, %v1070
        %v1101 = vsub.f32 %v1027, %v1070
        %v1102 = vsub.f32 %v1029, %v1070
        %v1103 = vmul.f32 %v1071, %v1071
        %v1104 = vmul.f32 %v1072, %v1072
        %v1105 = vmul.f32 %v1073, %v1073
        %v1106 = vmul.f32 %v1074, %v1074
        %v1107 = vmul.f32 %v1075, %v1075
        %v1108 = vmul.f32 %v1076, %v1076
        %v1109 = vmul.f32 %v1077, %v1077
        %v1110 = vmul.f32 %v1078, %v1078
        %v1111 = vmul.f32 %v1079, %v1079
        %v1112 = vmul.f32 %v1080, %v1080
        %v1113 = vmul.f32 %v1081, %v1081
        %v1114 = vmul.f32 %v1082, %v1082
        %v1115 = vmul.f32 %v1083, %v1083
        %v1116 = vmul.f32 %v1084, %v1084
        %v1117 = vmul.f32 %v1085, %v1085
        %v1118 = vmul.f32 %v1086, %v1086
        %v1119 = vmul.f32 %v1087, %v1087
        %v1120 = vmul.f32 %v1088, %v1088
        %v1121 = vmul.f32 %v1089, %v1089
        %v1122 = vmul.f32 %v1090, %v1090
        %v1123 = vmul.f32 %v1091, %v1091
        %v1124 = vmul.f32 %v1092, %v1092
        %v1125 = vmul.f32 %v1093, %v1093
        %v1126 = vmul.f32 %v1094, %v1094
        %v1127 = vmul.f32 %v1095, %v1095
        %v1128 = vmul.f32 %v1096, %v1096
        %v1129 = vmul.f32 %v1097, %v1097
        %v1130 = vmul.f32 %v1098, %v1098
        %v1131 = vmul.f32 %v1099, %v1099
        %v1132 = vmul.f32 %v1100, %v1100
        %v1133 = vmul.f32 %v1101, %v1101
        %v1134 = vmul.f32 %v1102, %v1102
        %v1135 = vadd.f32 %v1103, %v1104
        %v1136 = vadd.f32 %v1135, %v1105
        %v1137 = vadd.f32 %v1136, %v1106
        %v1138 = vadd.f32 %v1137, %v1107
        %v1139 = vadd.f32 %v1138, %v1108
        %v1140 = vadd.f32 %v1139, %v1109
        %v1141 = vadd.f32 %v1140, %v1110
        %v1142 = vadd.f32 %v1141, %v1111
        %v1143 = vadd.f32 %v1142, %v1112
        %v1144 = vadd.f32 %v1143, %v1113
        %v1145 = vadd.f32 %v1144, %v1114
        %v1146 = vadd.f32 %v1145, %v1115
        %v1147 = vadd.f32 %v1146, %v1116
        %v1148 = vadd.f32 %v1147, %v1117
        %v1149 = vadd.f32 %v1148, %v1118
        %v1150 = vadd.f32 %v1149, %v1119
        %v1151 = vadd.f32 %v1150, %v1120
        %v1152 = vadd.f32 %v1151, %v1121
        %v1153 = vadd.f32 %v1152, %v1122
        %v1154 = vadd.f32 %v1153, %v1123
        %v1155 = vadd.f32 %v1154, %v1124
        %v1156 = vadd.f32 %v1155, %v1125
        %v1157 = vadd.f32 %v1156, %v1126
        %v1158 = vadd.f32 %v1157, %v1127
        %v1159 = vadd.f32 %v1158, %v1128
        %v1160 = vadd.f32 %v1159, %v1129
        %v1161 = vadd.f32 %v1160, %v1130
        %v1162 = vadd.f32 %v1161, %v1131
        %v1163 = vadd.f32 %v1162, %v1132
        %v1164 = vadd.f32 %v1163, %v1133
        %v1165 = vadd.f32 %v1164, %v1134
        %v1166 = vrot.slane %v1165, 4
        %v1167 = vadd.f32 %v1165, %v1166
        %v1168 = vrot.slane %v1167, 2
        %v1169 = vadd.f32 %v1167, %v1168
        %v1170 = vrot.slane %v1169, 1
        %v1171 = vadd.f32 %v1169, %v1170
        %v1172 = vmul.f32 %v1171, 0.00390625
        %v1173 = vadd.f32 %v1172, 1e-05
        %v1174 = vrsqrt.pop %v1173
        %v1175 = vmul.f32 %v1174, %v1173
        %v1176 = vmul.f32 %v1175, %v1174
        %v1177 = vmul.f32 0.5, %v1176
        %v1178 = vsub.f32 1.5, %v1177
        %v1179 = vmul.f32 %v1174, %v1178
        %vm1180 = vweird.f32 %v1173
        %vm1181 = vweird.f32 %v1174
        %vm1182 = vmor %vm1180, %vm1181
        %v1183 = vsel %vm1182, %v1174, %v1179
        %v1184 = vmul.f32 %v1183, %v1031
        %v1185 = vperm.slane %v1184, 0
        %v1186 = vmul.f32 %v1071, %v1185
        %v1187 = vmul.f32 %v1072, %v1185
        %v1188 = vmul.f32 %v1073, %v1185
        %v1189 = vmul.f32 %v1074, %v1185
        %v1190 = vmul.f32 %v1075, %v1185
        %v1191 = vmul.f32 %v1076, %v1185
        %v1192 = vmul.f32 %v1077, %v1185
        %v1193 = vmul.f32 %v1078, %v1185
        %v1194 = vmul.f32 %v1079, %v1185
        %v1195 = vmul.f32 %v1080, %v1185
        %v1196 = vmul.f32 %v1081, %v1185
        %v1197 = vmul.f32 %v1082, %v1185
        %v1198 = vmul.f32 %v1083, %v1185
        %v1199 = vmul.f32 %v1084, %v1185
        %v1200 = vmul.f32 %v1085, %v1185
        %v1201 = vmul.f32 %v1086, %v1185
        %v1202 = vmul.f32 %v1087, %v1185
        %v1203 = vmul.f32 %v1088, %v1185
        %v1204 = vmul.f32 %v1089, %v1185
        %v1205 = vmul.f32 %v1090, %v1185
        %v1206 = vmul.f32 %v1091, %v1185
        %v1207 = vmul.f32 %v1092, %v1185
        %v1208 = vmul.f32 %v1093, %v1185
        %v1209 = vmul.f32 %v1094, %v1185
        %v1210 = vmul.f32 %v1095, %v1185
        %v1211 = vmul.f32 %v1096, %v1185
        %v1212 = vmul.f32 %v1097, %v1185
        %v1213 = vmul.f32 %v1098, %v1185
        %v1214 = vmul.f32 %v1099, %v1185
        %v1215 = vmul.f32 %v1100, %v1185
        %v1216 = vmul.f32 %v1101, %v1185
        %v1217 = vmul.f32 %v1102, %v1185
        %v1219 = vperm.slane %v1032, 0
        %v1221 = vadd.f32 %v1186, %v1219
        %v1222 = vadd.f32 %v1187, %v1219
        %v1223 = vadd.f32 %v1188, %v1219
        %v1224 = vadd.f32 %v1189, %v1219
        %v1225 = vadd.f32 %v1190, %v1219
        %v1226 = vadd.f32 %v1191, %v1219
        %v1227 = vadd.f32 %v1192, %v1219
        %v1228 = vadd.f32 %v1193, %v1219
        %v1229 = vadd.f32 %v1194, %v1219
        %v1230 = vadd.f32 %v1195, %v1219
        %v1231 = vadd.f32 %v1196, %v1219
        %v1232 = vadd.f32 %v1197, %v1219
        %v1233 = vadd.f32 %v1198, %v1219
        %v1234 = vadd.f32 %v1199, %v1219
        %v1235 = vadd.f32 %v1200, %v1219
        %v1236 = vadd.f32 %v1201, %v1219
        %v1237 = vadd.f32 %v1202, %v1219
        %v1238 = vadd.f32 %v1203, %v1219
        %v1239 = vadd.f32 %v1204, %v1219
        %v1240 = vadd.f32 %v1205, %v1219
        %v1241 = vadd.f32 %v1206, %v1219
        %v1242 = vadd.f32 %v1207, %v1219
        %v1243 = vadd.f32 %v1208, %v1219
        %v1244 = vadd.f32 %v1209, %v1219
        %v1245 = vadd.f32 %v1210, %v1219
        %v1246 = vadd.f32 %v1211, %v1219
        %v1247 = vadd.f32 %v1212, %v1219
        %v1248 = vadd.f32 %v1213, %v1219
        %v1249 = vadd.f32 %v1214, %v1219
        %v1250 = vadd.f32 %v1215, %v1219
        %v1251 = vadd.f32 %v1216, %v1219
        %v1252 = vadd.f32 %v1217, %v1219
        %v1253 = vld [vmem:[%s371] sm:$0xf]
        %v1254 = vld [vmem:[%s371 + $0x4] sm:$0xf]
        %v1255 = vld [vmem:[%s371 + $0x8] sm:$0x1]
        %v1256 = vld [vmem:[%s371 + $0xc] sm:$0xf]
        %v1257 = vld [vmem:[%s371 + $0x10] sm:$0xf]
        %v1258 = vld [vmem:[%s371 + $0x14] sm:$0x1]
        %v1259 = vld [vmem:[%s371 + $0x18] sm:$0xf]
        %v1260 = vld [vmem:[%s371 + $0x1c] sm:$0xf]
        %v1261 = vld [vmem:[%s371 + $0x20] sm:$0x1]
        %v1262 = vld [vmem:[%s371 + $0x24] sm:$0xf]
        %v1263 = vld [vmem:[%s371 + $0x28] sm:$0xf]
        %v1264 = vld [vmem:[%s371 + $0x2c] sm:$0x1]
        %v1265 = vld [vmem:[%s371 + $0x30] sm:$0xf]
        %v1266 = vld [vmem:[%s371 + $0x34] sm:$0xf]
        %v1267 = vld [vmem:[%s371 + $0x38] sm:$0x1]
        %v1268 = vld [vmem:[%s371 + $0x3c] sm:$0xf]
        %v1269 = vld [vmem:[%s371 + $0x40] sm:$0xf]
        %v1270 = vld [vmem:[%s371 + $0x44] sm:$0x1]
        %v1271 = vld [vmem:[%s371 + $0x48] sm:$0xf]
        %v1272 = vld [vmem:[%s371 + $0x4c] sm:$0xf]
        %v1273 = vld [vmem:[%s371 + $0x50] sm:$0x1]
        %v1274 = vld [vmem:[%s371 + $0x54] sm:$0xf]
        %v1275 = vld [vmem:[%s371 + $0x58] sm:$0xf]
        %v1276 = vld [vmem:[%s371 + $0x5c] sm:$0x1]
        %v1277 = vld [vmem:[%s371 + $0x60] sm:$0xf]
        %v1278 = vld [vmem:[%s371 + $0x64] sm:$0xf]
        %v1279 = vld [vmem:[%s371 + $0x68] sm:$0x1]
        %v1280 = vld [vmem:[%s371 + $0x6c] sm:$0xf]
        %v1281 = vld [vmem:[%s371 + $0x70] sm:$0xf]
        %v1282 = vld [vmem:[%s371 + $0x74] sm:$0x1]
        %v1283 = vld [vmem:[%s371 + $0x78] sm:$0xf]
        %v1284 = vld [vmem:[%s371 + $0x7c] sm:$0xf]
        %v1285 = vld [vmem:[%s371 + $0x80] sm:$0x1]
        %v1286 = vld [vmem:[%s371 + $0x84] sm:$0xf]
        %v1287 = vld [vmem:[%s371 + $0x88] sm:$0xf]
        %v1288 = vld [vmem:[%s371 + $0x8c] sm:$0x1]
        %v1289 = vld [vmem:[%s371 + $0x90] sm:$0xf]
        %v1290 = vld [vmem:[%s371 + $0x94] sm:$0xf]
        %v1291 = vld [vmem:[%s371 + $0x98] sm:$0x1]
        %v1292 = vld [vmem:[%s371 + $0x9c] sm:$0xf]
        %v1293 = vld [vmem:[%s371 + $0xa0] sm:$0xf]
        %v1294 = vld [vmem:[%s371 + $0xa4] sm:$0x1]
        %v1295 = vld [vmem:[%s371 + $0xa8] sm:$0xf]
        %v1296 = vld [vmem:[%s371 + $0xac] sm:$0xf]
        %v1297 = vld [vmem:[%s371 + $0xb0] sm:$0x1]
        %v1298 = vld [vmem:[%s371 + $0xb4] sm:$0xf]
        %v1299 = vld [vmem:[%s371 + $0xb8] sm:$0xf]
        %v1300 = vld [vmem:[%s371 + $0xbc] sm:$0x1]
        %v1333 = vunpack.c.l.b16 %v1253
        %v1334 = vunpack.c.l.b16 %v1254
        %v1335 = vunpack.c.l.b16 %v1256
        %v1336 = vunpack.c.l.b16 %v1257
        %v1337 = vunpack.c.l.b16 %v1259
        %v1338 = vunpack.c.l.b16 %v1260
        %v1339 = vunpack.c.l.b16 %v1262
        %v1340 = vunpack.c.l.b16 %v1263
        %v1341 = vunpack.c.l.b16 %v1265
        %v1342 = vunpack.c.l.b16 %v1266
        %v1343 = vunpack.c.l.b16 %v1268
        %v1344 = vunpack.c.l.b16 %v1269
        %v1345 = vunpack.c.l.b16 %v1271
        %v1346 = vunpack.c.l.b16 %v1272
        %v1347 = vunpack.c.l.b16 %v1274
        %v1348 = vunpack.c.l.b16 %v1275
        %v1349 = vunpack.c.l.b16 %v1277
        %v1350 = vunpack.c.l.b16 %v1278
        %v1351 = vunpack.c.l.b16 %v1280
        %v1352 = vunpack.c.l.b16 %v1281
        %v1353 = vunpack.c.l.b16 %v1283
        %v1354 = vunpack.c.l.b16 %v1284
        %v1355 = vunpack.c.l.b16 %v1286
        %v1356 = vunpack.c.l.b16 %v1287
        %v1357 = vunpack.c.l.b16 %v1289
        %v1358 = vunpack.c.l.b16 %v1290
        %v1359 = vunpack.c.l.b16 %v1292
        %v1360 = vunpack.c.l.b16 %v1293
        %v1361 = vunpack.c.l.b16 %v1295
        %v1362 = vunpack.c.l.b16 %v1296
        %v1363 = vunpack.c.l.b16 %v1298
        %v1364 = vunpack.c.l.b16 %v1299
        %v1365 = vpack.c.b16 %v1334, %v1333
        %v1366 = vpack.c.b16 %v1336, %v1335
        %v1367 = vpack.c.b16 %v1338, %v1337
        %v1368 = vpack.c.b16 %v1340, %v1339
        %v1369 = vpack.c.b16 %v1342, %v1341
        %v1370 = vpack.c.b16 %v1344, %v1343
        %v1371 = vpack.c.b16 %v1346, %v1345
        %v1372 = vpack.c.b16 %v1348, %v1347
        %v1373 = vpack.c.b16 %v1350, %v1349
        %v1374 = vpack.c.b16 %v1352, %v1351
        %v1375 = vpack.c.b16 %v1354, %v1353
        %v1376 = vpack.c.b16 %v1356, %v1355
        %v1377 = vpack.c.b16 %v1358, %v1357
        %v1378 = vpack.c.b16 %v1360, %v1359
        %v1379 = vpack.c.b16 %v1362, %v1361
        %v1380 = vpack.c.b16 %v1364, %v1363
        %v1413 = vunpack.c.l.b16 %v1255
        %v1414 = vunpack.c.l.b16 %v1258
        %v1415 = vunpack.c.l.b16 %v1261
        %v1416 = vunpack.c.l.b16 %v1264
        %v1417 = vunpack.c.l.b16 %v1267
        %v1418 = vunpack.c.l.b16 %v1270
        %v1419 = vunpack.c.l.b16 %v1273
        %v1420 = vunpack.c.l.b16 %v1276
        %v1421 = vunpack.c.l.b16 %v1279
        %v1422 = vunpack.c.l.b16 %v1282
        %v1423 = vunpack.c.l.b16 %v1285
        %v1424 = vunpack.c.l.b16 %v1288
        %v1425 = vunpack.c.l.b16 %v1291
        %v1426 = vunpack.c.l.b16 %v1294
        %v1427 = vunpack.c.l.b16 %v1297
        %v1428 = vunpack.c.l.b16 %v1300
        %v1429 = vpack.c.b16 %v1413, %v1413
        %v1430 = vpack.c.b16 %v1414, %v1414
        %v1431 = vpack.c.b16 %v1415, %v1415
        %v1432 = vpack.c.b16 %v1416, %v1416
        %v1433 = vpack.c.b16 %v1417, %v1417
        %v1434 = vpack.c.b16 %v1418, %v1418
        %v1435 = vpack.c.b16 %v1419, %v1419
        %v1436 = vpack.c.b16 %v1420, %v1420
        %v1437 = vpack.c.b16 %v1421, %v1421
        %v1438 = vpack.c.b16 %v1422, %v1422
        %v1439 = vpack.c.b16 %v1423, %v1423
        %v1440 = vpack.c.b16 %v1424, %v1424
        %v1441 = vpack.c.b16 %v1425, %v1425
        %v1442 = vpack.c.b16 %v1426, %v1426
        %v1443 = vpack.c.b16 %v1427, %v1427
        %v1444 = vpack.c.b16 %v1428, %v1428
        %vm1445 = vsmask.f32 7424
        %v1447 = vshrl.u32 %v1365, 16
        %v1449 = vshll.u32 %v1365, 16
        %v1451 = vrot.slane %v1449, 1
        %v1452 = vor.u32 %v1447, %v1451
        %v1454 = vshll.u32 %v1429, 16
        %v1456 = vrot.slane %v1454, 1
        %v1457 = vsel %vm1445, %v1452, %v1456
        %v1459 = vshrl.u32 %v1366, 16
        %v1461 = vshll.u32 %v1366, 16
        %v1463 = vrot.slane %v1461, 1
        %v1464 = vor.u32 %v1459, %v1463
        %v1466 = vshll.u32 %v1430, 16
        %v1468 = vrot.slane %v1466, 1
        %v1469 = vsel %vm1445, %v1464, %v1468
        %v1471 = vshrl.u32 %v1367, 16
        %v1473 = vshll.u32 %v1367, 16
        %v1475 = vrot.slane %v1473, 1
        %v1476 = vor.u32 %v1471, %v1475
        %v1478 = vshll.u32 %v1431, 16
        %v1480 = vrot.slane %v1478, 1
        %v1481 = vsel %vm1445, %v1476, %v1480
        %v1483 = vshrl.u32 %v1368, 16
        %v1485 = vshll.u32 %v1368, 16
        %v1487 = vrot.slane %v1485, 1
        %v1488 = vor.u32 %v1483, %v1487
        %v1490 = vshll.u32 %v1432, 16
        %v1492 = vrot.slane %v1490, 1
        %v1493 = vsel %vm1445, %v1488, %v1492
        %v1495 = vshrl.u32 %v1369, 16
        %v1497 = vshll.u32 %v1369, 16
        %v1499 = vrot.slane %v1497, 1
        %v1500 = vor.u32 %v1495, %v1499
        %v1502 = vshll.u32 %v1433, 16
        %v1504 = vrot.slane %v1502, 1
        %v1505 = vsel %vm1445, %v1500, %v1504
        %v1507 = vshrl.u32 %v1370, 16
        %v1509 = vshll.u32 %v1370, 16
        %v1511 = vrot.slane %v1509, 1
        %v1512 = vor.u32 %v1507, %v1511
        %v1514 = vshll.u32 %v1434, 16
        %v1516 = vrot.slane %v1514, 1
        %v1517 = vsel %vm1445, %v1512, %v1516
        %v1519 = vshrl.u32 %v1371, 16
        %v1521 = vshll.u32 %v1371, 16
        %v1523 = vrot.slane %v1521, 1
        %v1524 = vor.u32 %v1519, %v1523
        %v1526 = vshll.u32 %v1435, 16
        %v1528 = vrot.slane %v1526, 1
        %v1529 = vsel %vm1445, %v1524, %v1528
        %v1531 = vshrl.u32 %v1372, 16
        %v1533 = vshll.u32 %v1372, 16
        %v1535 = vrot.slane %v1533, 1
        %v1536 = vor.u32 %v1531, %v1535
        %v1538 = vshll.u32 %v1436, 16
        %v1540 = vrot.slane %v1538, 1
        %v1541 = vsel %vm1445, %v1536, %v1540
        %v1543 = vshrl.u32 %v1373, 16
        %v1545 = vshll.u32 %v1373, 16
        %v1547 = vrot.slane %v1545, 1
        %v1548 = vor.u32 %v1543, %v1547
        %v1550 = vshll.u32 %v1437, 16
        %v1552 = vrot.slane %v1550, 1
        %v1553 = vsel %vm1445, %v1548, %v1552
        %v1555 = vshrl.u32 %v1374, 16
        %v1557 = vshll.u32 %v1374, 16
        %v1559 = vrot.slane %v1557, 1
        %v1560 = vor.u32 %v1555, %v1559
        %v1562 = vshll.u32 %v1438, 16
        %v1564 = vrot.slane %v1562, 1
        %v1565 = vsel %vm1445, %v1560, %v1564
        %v1567 = vshrl.u32 %v1375, 16
        %v1569 = vshll.u32 %v1375, 16
        %v1571 = vrot.slane %v1569, 1
        %v1572 = vor.u32 %v1567, %v1571
        %v1574 = vshll.u32 %v1439, 16
        %v1576 = vrot.slane %v1574, 1
        %v1577 = vsel %vm1445, %v1572, %v1576
        %v1579 = vshrl.u32 %v1376, 16
        %v1581 = vshll.u32 %v1376, 16
        %v1583 = vrot.slane %v1581, 1
        %v1584 = vor.u32 %v1579, %v1583
        %v1586 = vshll.u32 %v1440, 16
        %v1588 = vrot.slane %v1586, 1
        %v1589 = vsel %vm1445, %v1584, %v1588
        %v1591 = vshrl.u32 %v1377, 16
        %v1593 = vshll.u32 %v1377, 16
        %v1595 = vrot.slane %v1593, 1
        %v1596 = vor.u32 %v1591, %v1595
        %v1598 = vshll.u32 %v1441, 16
        %v1600 = vrot.slane %v1598, 1
        %v1601 = vsel %vm1445, %v1596, %v1600
        %v1603 = vshrl.u32 %v1378, 16
        %v1605 = vshll.u32 %v1378, 16
        %v1607 = vrot.slane %v1605, 1
        %v1608 = vor.u32 %v1603, %v1607
        %v1610 = vshll.u32 %v1442, 16
        %v1612 = vrot.slane %v1610, 1
        %v1613 = vsel %vm1445, %v1608, %v1612
        %v1615 = vshrl.u32 %v1379, 16
        %v1617 = vshll.u32 %v1379, 16
        %v1619 = vrot.slane %v1617, 1
        %v1620 = vor.u32 %v1615, %v1619
        %v1622 = vshll.u32 %v1443, 16
        %v1624 = vrot.slane %v1622, 1
        %v1625 = vsel %vm1445, %v1620, %v1624
        %v1627 = vshrl.u32 %v1380, 16
        %v1629 = vshll.u32 %v1380, 16
        %v1631 = vrot.slane %v1629, 1
        %v1632 = vor.u32 %v1627, %v1631
        %v1634 = vshll.u32 %v1444, 16
        %v1636 = vrot.slane %v1634, 1
        %v1637 = vsel %vm1445, %v1632, %v1636
        %vm1654 = vcmask 1046528
        %v1655 = vrot.slane %v1365, 1
        %v1656 = vrot.slane %v1429, 1
        %v1657 = vsel %vm1654, %v1655, %v1656
        %v1658 = vrot.slane %v1366, 1
        %v1659 = vrot.slane %v1430, 1
        %v1660 = vsel %vm1654, %v1658, %v1659
        %v1661 = vrot.slane %v1367, 1
        %v1662 = vrot.slane %v1431, 1
        %v1663 = vsel %vm1654, %v1661, %v1662
        %v1664 = vrot.slane %v1368, 1
        %v1665 = vrot.slane %v1432, 1
        %v1666 = vsel %vm1654, %v1664, %v1665
        %v1667 = vrot.slane %v1369, 1
        %v1668 = vrot.slane %v1433, 1
        %v1669 = vsel %vm1654, %v1667, %v1668
        %v1670 = vrot.slane %v1370, 1
        %v1671 = vrot.slane %v1434, 1
        %v1672 = vsel %vm1654, %v1670, %v1671
        %v1673 = vrot.slane %v1371, 1
        %v1674 = vrot.slane %v1435, 1
        %v1675 = vsel %vm1654, %v1673, %v1674
        %v1676 = vrot.slane %v1372, 1
        %v1677 = vrot.slane %v1436, 1
        %v1678 = vsel %vm1654, %v1676, %v1677
        %v1679 = vrot.slane %v1373, 1
        %v1680 = vrot.slane %v1437, 1
        %v1681 = vsel %vm1654, %v1679, %v1680
        %v1682 = vrot.slane %v1374, 1
        %v1683 = vrot.slane %v1438, 1
        %v1684 = vsel %vm1654, %v1682, %v1683
        %v1685 = vrot.slane %v1375, 1
        %v1686 = vrot.slane %v1439, 1
        %v1687 = vsel %vm1654, %v1685, %v1686
        %v1688 = vrot.slane %v1376, 1
        %v1689 = vrot.slane %v1440, 1
        %v1690 = vsel %vm1654, %v1688, %v1689
        %v1691 = vrot.slane %v1377, 1
        %v1692 = vrot.slane %v1441, 1
        %v1693 = vsel %vm1654, %v1691, %v1692
        %v1694 = vrot.slane %v1378, 1
        %v1695 = vrot.slane %v1442, 1
        %v1696 = vsel %vm1654, %v1694, %v1695
        %v1697 = vrot.slane %v1379, 1
        %v1698 = vrot.slane %v1443, 1
        %v1699 = vsel %vm1654, %v1697, %v1698
        %v1700 = vrot.slane %v1380, 1
        %v1701 = vrot.slane %v1444, 1
        %v1702 = vsel %vm1654, %v1700, %v1701
        %v1719 = vld [vmem:[%s1] sm:$0xf]
        %v1720 = vld [vmem:[%s1 + $0x4] sm:$0xf]
        %v1721 = vld [vmem:[%s1 + $0x8] sm:$0xf]
        %v1722 = vld [vmem:[%s1 + $0xc] sm:$0xf]
        %v1723 = vld [vmem:[%s1 + $0x10] sm:$0xf]
        %v1724 = vld [vmem:[%s1 + $0x14] sm:$0xf]
        %v1725 = vld [vmem:[%s1 + $0x18] sm:$0xf]
        %v1726 = vld [vmem:[%s1 + $0x1c] sm:$0xf]
        %v1727 = vld [vmem:[%s1 + $0x20] sm:$0xf]
        %v1728 = vld [vmem:[%s1 + $0x24] sm:$0xf]
        %v1729 = vld [vmem:[%s1 + $0x28] sm:$0xf]
        %v1730 = vld [vmem:[%s1 + $0x2c] sm:$0xf]
        %v1731 = vld [vmem:[%s1 + $0x30] sm:$0xf]
        %v1732 = vld [vmem:[%s1 + $0x34] sm:$0xf]
        %v1733 = vld [vmem:[%s1 + $0x38] sm:$0xf]
        %v1734 = vld [vmem:[%s1 + $0x3c] sm:$0xf]
        %v1735 = vld [vmem:[%s1 + $0x40] sm:$0xf]
        %v1736 = vld [vmem:[%s1 + $0x44] sm:$0xf]
        %v1737 = vld [vmem:[%s1 + $0x48] sm:$0xf]
        %v1738 = vld [vmem:[%s1 + $0x4c] sm:$0xf]
        %v1739 = vld [vmem:[%s1 + $0x50] sm:$0xf]
        %v1740 = vld [vmem:[%s1 + $0x54] sm:$0xf]
        %v1741 = vld [vmem:[%s1 + $0x58] sm:$0xf]
        %v1742 = vld [vmem:[%s1 + $0x5c] sm:$0xf]
        %v1743 = vld [vmem:[%s1 + $0x60] sm:$0xf]
        %v1744 = vld [vmem:[%s1 + $0x64] sm:$0xf]
        %v1745 = vld [vmem:[%s1 + $0x68] sm:$0xf]
        %v1746 = vld [vmem:[%s1 + $0x6c] sm:$0xf]
        %v1747 = vld [vmem:[%s1 + $0x70] sm:$0xf]
        %v1748 = vld [vmem:[%s1 + $0x74] sm:$0xf]
        %v1749 = vld [vmem:[%s1 + $0x78] sm:$0xf]
        %v1750 = vld [vmem:[%s1 + $0x7c] sm:$0xf]
        %v1751 = vld [vmem:[%s1 + $0x80] sm:$0xf]
        %v1752 = vld [vmem:[%s1 + $0x84] sm:$0xf]
        %v1753 = vld [vmem:[%s1 + $0x88] sm:$0xf]
        %v1754 = vld [vmem:[%s1 + $0x8c] sm:$0xf]
        %v1755 = vld [vmem:[%s1 + $0x90] sm:$0xf]
        %v1756 = vld [vmem:[%s1 + $0x94] sm:$0xf]
        %v1757 = vld [vmem:[%s1 + $0x98] sm:$0xf]
        %v1758 = vld [vmem:[%s1 + $0x9c] sm:$0xf]
        %v1759 = vld [vmem:[%s1 + $0xa0] sm:$0xf]
        %v1760 = vld [vmem:[%s1 + $0xa4] sm:$0xf]
        %v1761 = vld [vmem:[%s1 + $0xa8] sm:$0xf]
        %v1762 = vld [vmem:[%s1 + $0xac] sm:$0xf]
        %v1763 = vld [vmem:[%s1 + $0xb0] sm:$0xf]
        %v1764 = vld [vmem:[%s1 + $0xb4] sm:$0xf]
        %v1765 = vld [vmem:[%s1 + $0xb8] sm:$0xf]
        %v1766 = vld [vmem:[%s1 + $0xbc] sm:$0xf]
        %v1799 = vunpack.c.l.b16 %v379
        %v1800 = vunpack.c.l.b16 %v380
        %v1801 = vunpack.c.l.b16 %v382
        %v1802 = vunpack.c.l.b16 %v383
        %v1803 = vunpack.c.l.b16 %v385
        %v1804 = vunpack.c.l.b16 %v386
        %v1805 = vunpack.c.l.b16 %v388
        %v1806 = vunpack.c.l.b16 %v389
        %v1807 = vunpack.c.l.b16 %v391
        %v1808 = vunpack.c.l.b16 %v392
        %v1809 = vunpack.c.l.b16 %v394
        %v1810 = vunpack.c.l.b16 %v395
        %v1811 = vunpack.c.l.b16 %v397
        %v1812 = vunpack.c.l.b16 %v398
        %v1813 = vunpack.c.l.b16 %v400
        %v1814 = vunpack.c.l.b16 %v401
        %v1815 = vunpack.c.l.b16 %v403
        %v1816 = vunpack.c.l.b16 %v404
        %v1817 = vunpack.c.l.b16 %v406
        %v1818 = vunpack.c.l.b16 %v407
        %v1819 = vunpack.c.l.b16 %v409
        %v1820 = vunpack.c.l.b16 %v410
        %v1821 = vunpack.c.l.b16 %v412
        %v1822 = vunpack.c.l.b16 %v413
        %v1823 = vunpack.c.l.b16 %v415
        %v1824 = vunpack.c.l.b16 %v416
        %v1825 = vunpack.c.l.b16 %v418
        %v1826 = vunpack.c.l.b16 %v419
        %v1827 = vunpack.c.l.b16 %v421
        %v1828 = vunpack.c.l.b16 %v422
        %v1829 = vunpack.c.l.b16 %v424
        %v1830 = vunpack.c.l.b16 %v425
        %v1831 = vpack.c.b16 %v1800, %v1799
        %v1832 = vpack.c.b16 %v1802, %v1801
        %v1833 = vpack.c.b16 %v1804, %v1803
        %v1834 = vpack.c.b16 %v1806, %v1805
        %v1835 = vpack.c.b16 %v1808, %v1807
        %v1836 = vpack.c.b16 %v1810, %v1809
        %v1837 = vpack.c.b16 %v1812, %v1811
        %v1838 = vpack.c.b16 %v1814, %v1813
        %v1839 = vpack.c.b16 %v1816, %v1815
        %v1840 = vpack.c.b16 %v1818, %v1817
        %v1841 = vpack.c.b16 %v1820, %v1819
        %v1842 = vpack.c.b16 %v1822, %v1821
        %v1843 = vpack.c.b16 %v1824, %v1823
        %v1844 = vpack.c.b16 %v1826, %v1825
        %v1845 = vpack.c.b16 %v1828, %v1827
        %v1846 = vpack.c.b16 %v1830, %v1829
        %v1879 = vunpack.c.l.b16 %v381
        %v1880 = vunpack.c.l.b16 %v384
        %v1881 = vunpack.c.l.b16 %v387
        %v1882 = vunpack.c.l.b16 %v390
        %v1883 = vunpack.c.l.b16 %v393
        %v1884 = vunpack.c.l.b16 %v396
        %v1885 = vunpack.c.l.b16 %v399
        %v1886 = vunpack.c.l.b16 %v402
        %v1887 = vunpack.c.l.b16 %v405
        %v1888 = vunpack.c.l.b16 %v408
        %v1889 = vunpack.c.l.b16 %v411
        %v1890 = vunpack.c.l.b16 %v414
        %v1891 = vunpack.c.l.b16 %v417
        %v1892 = vunpack.c.l.b16 %v420
        %v1893 = vunpack.c.l.b16 %v423
        %v1894 = vunpack.c.l.b16 %v426
        %v1895 = vpack.c.b16 %v1879, %v1879
        %v1896 = vpack.c.b16 %v1880, %v1880
        %v1897 = vpack.c.b16 %v1881, %v1881
        %v1898 = vpack.c.b16 %v1882, %v1882
        %v1899 = vpack.c.b16 %v1883, %v1883
        %v1900 = vpack.c.b16 %v1884, %v1884
        %v1901 = vpack.c.b16 %v1885, %v1885
        %v1902 = vpack.c.b16 %v1886, %v1886
        %v1903 = vpack.c.b16 %v1887, %v1887
        %v1904 = vpack.c.b16 %v1888, %v1888
        %v1905 = vpack.c.b16 %v1889, %v1889
        %v1906 = vpack.c.b16 %v1890, %v1890
        %v1907 = vpack.c.b16 %v1891, %v1891
        %v1908 = vpack.c.b16 %v1892, %v1892
        %v1909 = vpack.c.b16 %v1893, %v1893
        %v1910 = vpack.c.b16 %v1894, %v1894
        %v1912 = vshrl.u32 %v1831, 16
        %v1914 = vshll.u32 %v1831, 16
        %v1916 = vrot.slane %v1914, 1
        %v1917 = vor.u32 %v1912, %v1916
        %v1919 = vshll.u32 %v1895, 16
        %v1921 = vrot.slane %v1919, 1
        %v1922 = vsel %vm1445, %v1917, %v1921
        %v1924 = vshrl.u32 %v1832, 16
        %v1926 = vshll.u32 %v1832, 16
        %v1928 = vrot.slane %v1926, 1
        %v1929 = vor.u32 %v1924, %v1928
        %v1931 = vshll.u32 %v1896, 16
        %v1933 = vrot.slane %v1931, 1
        %v1934 = vsel %vm1445, %v1929, %v1933
        %v1936 = vshrl.u32 %v1833, 16
        %v1938 = vshll.u32 %v1833, 16
        %v1940 = vrot.slane %v1938, 1
        %v1941 = vor.u32 %v1936, %v1940
        %v1943 = vshll.u32 %v1897, 16
        %v1945 = vrot.slane %v1943, 1
        %v1946 = vsel %vm1445, %v1941, %v1945
        %v1948 = vshrl.u32 %v1834, 16
        %v1950 = vshll.u32 %v1834, 16
        %v1952 = vrot.slane %v1950, 1
        %v1953 = vor.u32 %v1948, %v1952
        %v1955 = vshll.u32 %v1898, 16
        %v1957 = vrot.slane %v1955, 1
        %v1958 = vsel %vm1445, %v1953, %v1957
        %v1960 = vshrl.u32 %v1835, 16
        %v1962 = vshll.u32 %v1835, 16
        %v1964 = vrot.slane %v1962, 1
        %v1965 = vor.u32 %v1960, %v1964
        %v1967 = vshll.u32 %v1899, 16
        %v1969 = vrot.slane %v1967, 1
        %v1970 = vsel %vm1445, %v1965, %v1969
        %v1972 = vshrl.u32 %v1836, 16
        %v1974 = vshll.u32 %v1836, 16
        %v1976 = vrot.slane %v1974, 1
        %v1977 = vor.u32 %v1972, %v1976
        %v1979 = vshll.u32 %v1900, 16
        %v1981 = vrot.slane %v1979, 1
        %v1982 = vsel %vm1445, %v1977, %v1981
        %v1984 = vshrl.u32 %v1837, 16
        %v1986 = vshll.u32 %v1837, 16
        %v1988 = vrot.slane %v1986, 1
        %v1989 = vor.u32 %v1984, %v1988
        %v1991 = vshll.u32 %v1901, 16
        %v1993 = vrot.slane %v1991, 1
        %v1994 = vsel %vm1445, %v1989, %v1993
        %v1996 = vshrl.u32 %v1838, 16
        %v1998 = vshll.u32 %v1838, 16
        %v2000 = vrot.slane %v1998, 1
        %v2001 = vor.u32 %v1996, %v2000
        %v2003 = vshll.u32 %v1902, 16
        %v2005 = vrot.slane %v2003, 1
        %v2006 = vsel %vm1445, %v2001, %v2005
        %v2008 = vshrl.u32 %v1839, 16
        %v2010 = vshll.u32 %v1839, 16
        %v2012 = vrot.slane %v2010, 1
        %v2013 = vor.u32 %v2008, %v2012
        %v2015 = vshll.u32 %v1903, 16
        %v2017 = vrot.slane %v2015, 1
        %v2018 = vsel %vm1445, %v2013, %v2017
        %v2020 = vshrl.u32 %v1840, 16
        %v2022 = vshll.u32 %v1840, 16
        %v2024 = vrot.slane %v2022, 1
        %v2025 = vor.u32 %v2020, %v2024
        %v2027 = vshll.u32 %v1904, 16
        %v2029 = vrot.slane %v2027, 1
        %v2030 = vsel %vm1445, %v2025, %v2029
        %v2032 = vshrl.u32 %v1841, 16
        %v2034 = vshll.u32 %v1841, 16
        %v2036 = vrot.slane %v2034, 1
        %v2037 = vor.u32 %v2032, %v2036
        %v2039 = vshll.u32 %v1905, 16
        %v2041 = vrot.slane %v2039, 1
        %v2042 = vsel %vm1445, %v2037, %v2041
        %v2044 = vshrl.u32 %v1842, 16
        %v2046 = vshll.u32 %v1842, 16
        %v2048 = vrot.slane %v2046, 1
        %v2049 = vor.u32 %v2044, %v2048
        %v2051 = vshll.u32 %v1906, 16
        %v2053 = vrot.slane %v2051, 1
        %v2054 = vsel %vm1445, %v2049, %v2053
        %v2056 = vshrl.u32 %v1843, 16
        %v2058 = vshll.u32 %v1843, 16
        %v2060 = vrot.slane %v2058, 1
        %v2061 = vor.u32 %v2056, %v2060
        %v2063 = vshll.u32 %v1907, 16
        %v2065 = vrot.slane %v2063, 1
        %v2066 = vsel %vm1445, %v2061, %v2065
        %v2068 = vshrl.u32 %v1844, 16
        %v2070 = vshll.u32 %v1844, 16
        %v2072 = vrot.slane %v2070, 1
        %v2073 = vor.u32 %v2068, %v2072
        %v2075 = vshll.u32 %v1908, 16
        %v2077 = vrot.slane %v2075, 1
        %v2078 = vsel %vm1445, %v2073, %v2077
        %v2080 = vshrl.u32 %v1845, 16
        %v2082 = vshll.u32 %v1845, 16
        %v2084 = vrot.slane %v2082, 1
        %v2085 = vor.u32 %v2080, %v2084
        %v2087 = vshll.u32 %v1909, 16
        %v2089 = vrot.slane %v2087, 1
        %v2090 = vsel %vm1445, %v2085, %v2089
        %v2092 = vshrl.u32 %v1846, 16
        %v2094 = vshll.u32 %v1846, 16
        %v2096 = vrot.slane %v2094, 1
        %v2097 = vor.u32 %v2092, %v2096
        %v2099 = vshll.u32 %v1910, 16
        %v2101 = vrot.slane %v2099, 1
        %v2102 = vsel %vm1445, %v2097, %v2101
        %v2119 = vrot.slane %v1831, 1
        %v2120 = vrot.slane %v1895, 1
        %v2121 = vsel %vm1654, %v2119, %v2120
        %v2122 = vrot.slane %v1832, 1
        %v2123 = vrot.slane %v1896, 1
        %v2124 = vsel %vm1654, %v2122, %v2123
        %v2125 = vrot.slane %v1833, 1
        %v2126 = vrot.slane %v1897, 1
        %v2127 = vsel %vm1654, %v2125, %v2126
        %v2128 = vrot.slane %v1834, 1
        %v2129 = vrot.slane %v1898, 1
        %v2130 = vsel %vm1654, %v2128, %v2129
        %v2131 = vrot.slane %v1835, 1
        %v2132 = vrot.slane %v1899, 1
        %v2133 = vsel %vm1654, %v2131, %v2132
        %v2134 = vrot.slane %v1836, 1
        %v2135 = vrot.slane %v1900, 1
        %v2136 = vsel %vm1654, %v2134, %v2135
        %v2137 = vrot.slane %v1837, 1
        %v2138 = vrot.slane %v1901, 1
        %v2139 = vsel %vm1654, %v2137, %v2138
        %v2140 = vrot.slane %v1838, 1
        %v2141 = vrot.slane %v1902, 1
        %v2142 = vsel %vm1654, %v2140, %v2141
        %v2143 = vrot.slane %v1839, 1
        %v2144 = vrot.slane %v1903, 1
        %v2145 = vsel %vm1654, %v2143, %v2144
        %v2146 = vrot.slane %v1840, 1
        %v2147 = vrot.slane %v1904, 1
        %v2148 = vsel %vm1654, %v2146, %v2147
        %v2149 = vrot.slane %v1841, 1
        %v2150 = vrot.slane %v1905, 1
        %v2151 = vsel %vm1654, %v2149, %v2150
        %v2152 = vrot.slane %v1842, 1
        %v2153 = vrot.slane %v1906, 1
        %v2154 = vsel %vm1654, %v2152, %v2153
        %v2155 = vrot.slane %v1843, 1
        %v2156 = vrot.slane %v1907, 1
        %v2157 = vsel %vm1654, %v2155, %v2156
        %v2158 = vrot.slane %v1844, 1
        %v2159 = vrot.slane %v1908, 1
        %v2160 = vsel %vm1654, %v2158, %v2159
        %v2161 = vrot.slane %v1845, 1
        %v2162 = vrot.slane %v1909, 1
        %v2163 = vsel %vm1654, %v2161, %v2162
        %v2164 = vrot.slane %v1846, 1
        %v2165 = vrot.slane %v1910, 1
        %v2166 = vsel %vm1654, %v2164, %v2165
        %s2183 = scalar_lea.vmem %s1, 192
        %v2184 = vld [vmem:[%s2183] sm:$0xf]
        %v2185 = vld [vmem:[%s2183 + $0x4] sm:$0xf]
        %v2186 = vld [vmem:[%s2183 + $0x8] sm:$0xf]
        %v2187 = vld [vmem:[%s2183 + $0xc] sm:$0xf]
        %v2188 = vld [vmem:[%s2183 + $0x10] sm:$0xf]
        %v2189 = vld [vmem:[%s2183 + $0x14] sm:$0xf]
        %v2190 = vld [vmem:[%s2183 + $0x18] sm:$0xf]
        %v2191 = vld [vmem:[%s2183 + $0x1c] sm:$0xf]
        %v2192 = vld [vmem:[%s2183 + $0x20] sm:$0xf]
        %v2193 = vld [vmem:[%s2183 + $0x24] sm:$0xf]
        %v2194 = vld [vmem:[%s2183 + $0x28] sm:$0xf]
        %v2195 = vld [vmem:[%s2183 + $0x2c] sm:$0xf]
        %v2196 = vld [vmem:[%s2183 + $0x30] sm:$0xf]
        %v2197 = vld [vmem:[%s2183 + $0x34] sm:$0xf]
        %v2198 = vld [vmem:[%s2183 + $0x38] sm:$0xf]
        %v2199 = vld [vmem:[%s2183 + $0x3c] sm:$0xf]
        %v2200 = vld [vmem:[%s2183 + $0x40] sm:$0xf]
        %v2201 = vld [vmem:[%s2183 + $0x44] sm:$0xf]
        %v2202 = vld [vmem:[%s2183 + $0x48] sm:$0xf]
        %v2203 = vld [vmem:[%s2183 + $0x4c] sm:$0xf]
        %v2204 = vld [vmem:[%s2183 + $0x50] sm:$0xf]
        %v2205 = vld [vmem:[%s2183 + $0x54] sm:$0xf]
        %v2206 = vld [vmem:[%s2183 + $0x58] sm:$0xf]
        %v2207 = vld [vmem:[%s2183 + $0x5c] sm:$0xf]
        %v2208 = vld [vmem:[%s2183 + $0x60] sm:$0xf]
        %v2209 = vld [vmem:[%s2183 + $0x64] sm:$0xf]
        %v2210 = vld [vmem:[%s2183 + $0x68] sm:$0xf]
        %v2211 = vld [vmem:[%s2183 + $0x6c] sm:$0xf]
        %v2212 = vld [vmem:[%s2183 + $0x70] sm:$0xf]
        %v2213 = vld [vmem:[%s2183 + $0x74] sm:$0xf]
        %v2214 = vld [vmem:[%s2183 + $0x78] sm:$0xf]
        %v2215 = vld [vmem:[%s2183 + $0x7c] sm:$0xf]
        %v2216 = vld [vmem:[%s2183 + $0x80] sm:$0xf]
        %v2217 = vld [vmem:[%s2183 + $0x84] sm:$0xf]
        %v2218 = vld [vmem:[%s2183 + $0x88] sm:$0xf]
        %v2219 = vld [vmem:[%s2183 + $0x8c] sm:$0xf]
        %v2220 = vld [vmem:[%s2183 + $0x90] sm:$0xf]
        %v2221 = vld [vmem:[%s2183 + $0x94] sm:$0xf]
        %v2222 = vld [vmem:[%s2183 + $0x98] sm:$0xf]
        %v2223 = vld [vmem:[%s2183 + $0x9c] sm:$0xf]
        %v2224 = vld [vmem:[%s2183 + $0xa0] sm:$0xf]
        %v2225 = vld [vmem:[%s2183 + $0xa4] sm:$0xf]
        %v2226 = vld [vmem:[%s2183 + $0xa8] sm:$0xf]
        %v2227 = vld [vmem:[%s2183 + $0xac] sm:$0xf]
        %v2228 = vld [vmem:[%s2183 + $0xb0] sm:$0xf]
        %v2229 = vld [vmem:[%s2183 + $0xb4] sm:$0xf]
        %v2230 = vld [vmem:[%s2183 + $0xb8] sm:$0xf]
        %v2231 = vld [vmem:[%s2183 + $0xbc] sm:$0xf]
        %v2280 = vunpack.c.l.b16 %v2184
        %v2281 = vunpack.c.l.b16 %v2185
        %v2282 = vunpack.c.l.b16 %v2186
        %v2283 = vunpack.c.l.b16 %v2187
        %v2284 = vunpack.c.l.b16 %v2188
        %v2285 = vunpack.c.l.b16 %v2189
        %v2286 = vunpack.c.l.b16 %v2190
        %v2287 = vunpack.c.l.b16 %v2191
        %v2288 = vunpack.c.l.b16 %v2192
        %v2289 = vunpack.c.l.b16 %v2193
        %v2290 = vunpack.c.l.b16 %v2194
        %v2291 = vunpack.c.l.b16 %v2195
        %v2292 = vunpack.c.l.b16 %v2196
        %v2293 = vunpack.c.l.b16 %v2197
        %v2294 = vunpack.c.l.b16 %v2198
        %v2295 = vunpack.c.l.b16 %v2199
        %v2296 = vunpack.c.l.b16 %v2200
        %v2297 = vunpack.c.l.b16 %v2201
        %v2298 = vunpack.c.l.b16 %v2202
        %v2299 = vunpack.c.l.b16 %v2203
        %v2300 = vunpack.c.l.b16 %v2204
        %v2301 = vunpack.c.l.b16 %v2205
        %v2302 = vunpack.c.l.b16 %v2206
        %v2303 = vunpack.c.l.b16 %v2207
        %v2304 = vunpack.c.l.b16 %v2208
        %v2305 = vunpack.c.l.b16 %v2209
        %v2306 = vunpack.c.l.b16 %v2210
        %v2307 = vunpack.c.l.b16 %v2211
        %v2308 = vunpack.c.l.b16 %v2212
        %v2309 = vunpack.c.l.b16 %v2213
        %v2310 = vunpack.c.l.b16 %v2214
        %v2311 = vunpack.c.l.b16 %v2215
        %v2312 = vunpack.c.l.b16 %v2216
        %v2313 = vunpack.c.l.b16 %v2217
        %v2314 = vunpack.c.l.b16 %v2218
        %v2315 = vunpack.c.l.b16 %v2219
        %v2316 = vunpack.c.l.b16 %v2220
        %v2317 = vunpack.c.l.b16 %v2221
        %v2318 = vunpack.c.l.b16 %v2222
        %v2319 = vunpack.c.l.b16 %v2223
        %v2320 = vunpack.c.l.b16 %v2224
        %v2321 = vunpack.c.l.b16 %v2225
        %v2322 = vunpack.c.l.b16 %v2226
        %v2323 = vunpack.c.l.b16 %v2227
        %v2324 = vunpack.c.l.b16 %v2228
        %v2325 = vunpack.c.l.b16 %v2229
        %v2326 = vunpack.c.l.b16 %v2230
        %v2327 = vunpack.c.l.b16 %v2231
        %v2328 = vpack.c.b16 %v2281, %v2280
        %v2329 = vpack.c.b16 %v2283, %v2282
        %v2330 = vpack.c.b16 %v2285, %v2284
        %v2331 = vpack.c.b16 %v2287, %v2286
        %v2332 = vpack.c.b16 %v2289, %v2288
        %v2333 = vpack.c.b16 %v2291, %v2290
        %v2334 = vpack.c.b16 %v2293, %v2292
        %v2335 = vpack.c.b16 %v2295, %v2294
        %v2336 = vpack.c.b16 %v2297, %v2296
        %v2337 = vpack.c.b16 %v2299, %v2298
        %v2338 = vpack.c.b16 %v2301, %v2300
        %v2339 = vpack.c.b16 %v2303, %v2302
        %v2340 = vpack.c.b16 %v2305, %v2304
        %v2341 = vpack.c.b16 %v2307, %v2306
        %v2342 = vpack.c.b16 %v2309, %v2308
        %v2343 = vpack.c.b16 %v2311, %v2310
        %v2344 = vpack.c.b16 %v2313, %v2312
        %v2345 = vpack.c.b16 %v2315, %v2314
        %v2346 = vpack.c.b16 %v2317, %v2316
        %v2347 = vpack.c.b16 %v2319, %v2318
        %v2348 = vpack.c.b16 %v2321, %v2320
        %v2349 = vpack.c.b16 %v2323, %v2322
        %v2350 = vpack.c.b16 %v2325, %v2324
        %v2351 = vpack.c.b16 %v2327, %v2326
        %2376 = vmatpush.bf16.msra.mxu0 %v2335
        %2377 = vmatpush.bf16.msra.mxu0 %v2334
        %2378 = vmatpush.bf16.msra.mxu0 %v2333
        %2379 = vmatpush.bf16.msra.mxu0 %v2332
        %2380 = vmatpush.bf16.msra.mxu0 %v2331
        %2381 = vmatpush.bf16.msra.mxu0 %v2330
        %2382 = vmatpush.bf16.msra.mxu0 %v2329
        %2383 = vmatpush.bf16.msra.mxu0 %v2328
        %2384 = vmatmul.bf16.gmra.mxu0 %v1831
        %v2385 = vpop.f32.mrf.mxu0
        %v2386 = vadd.f32 0.0, %v2385
        %v2387 = vpop.f32.mrf.mxu0
        %v2388 = vadd.f32 0.0, %v2387
        %2389 = vmatmul.bf16.gmra.mxu0 %v1832
        %v2390 = vpop.f32.mrf.mxu0
        %v2391 = vadd.f32 0.0, %v2390
        %v2392 = vpop.f32.mrf.mxu0
        %v2393 = vadd.f32 0.0, %v2392
        %2394 = vmatmul.bf16.gmra.mxu0 %v1833
        %v2395 = vpop.f32.mrf.mxu0
        %v2396 = vadd.f32 0.0, %v2395
        %v2397 = vpop.f32.mrf.mxu0
        %v2398 = vadd.f32 0.0, %v2397
        %2399 = vmatmul.bf16.gmra.mxu0 %v1834
        %v2400 = vpop.f32.mrf.mxu0
        %v2401 = vadd.f32 0.0, %v2400
        %v2402 = vpop.f32.mrf.mxu0
        %v2403 = vadd.f32 0.0, %v2402
        %2404 = vmatmul.bf16.gmra.mxu0 %v1835
        %v2405 = vpop.f32.mrf.mxu0
        %v2406 = vadd.f32 0.0, %v2405
        %v2407 = vpop.f32.mrf.mxu0
        %v2408 = vadd.f32 0.0, %v2407
        %2409 = vmatmul.bf16.gmra.mxu0 %v1836
        %v2410 = vpop.f32.mrf.mxu0
        %v2411 = vadd.f32 0.0, %v2410
        %v2412 = vpop.f32.mrf.mxu0
        %v2413 = vadd.f32 0.0, %v2412
        %2414 = vmatmul.bf16.gmra.mxu0 %v1837
        %v2415 = vpop.f32.mrf.mxu0
        %v2416 = vadd.f32 0.0, %v2415
        %v2417 = vpop.f32.mrf.mxu0
        %v2418 = vadd.f32 0.0, %v2417
        %2419 = vmatmul.bf16.gmra.mxu0 %v1838
        %v2420 = vpop.f32.mrf.mxu0
        %v2421 = vadd.f32 0.0, %v2420
        %v2422 = vpop.f32.mrf.mxu0
        %v2423 = vadd.f32 0.0, %v2422
        %2424 = vmatmul.bf16.gmra.mxu0 %v1839
        %v2425 = vpop.f32.mrf.mxu0
        %v2426 = vadd.f32 0.0, %v2425
        %v2427 = vpop.f32.mrf.mxu0
        %v2428 = vadd.f32 0.0, %v2427
        %2429 = vmatmul.bf16.gmra.mxu0 %v1840
        %v2430 = vpop.f32.mrf.mxu0
        %v2431 = vadd.f32 0.0, %v2430
        %v2432 = vpop.f32.mrf.mxu0
        %v2433 = vadd.f32 0.0, %v2432
        %2434 = vmatmul.bf16.gmra.mxu0 %v1841
        %v2435 = vpop.f32.mrf.mxu0
        %v2436 = vadd.f32 0.0, %v2435
        %v2437 = vpop.f32.mrf.mxu0
        %v2438 = vadd.f32 0.0, %v2437
        %2439 = vmatmul.bf16.gmra.mxu0 %v1842
        %v2440 = vpop.f32.mrf.mxu0
        %v2441 = vadd.f32 0.0, %v2440
        %v2442 = vpop.f32.mrf.mxu0
        %v2443 = vadd.f32 0.0, %v2442
        %2444 = vmatmul.bf16.gmra.mxu0 %v1843
        %v2445 = vpop.f32.mrf.mxu0
        %v2446 = vadd.f32 0.0, %v2445
        %v2447 = vpop.f32.mrf.mxu0
        %v2448 = vadd.f32 0.0, %v2447
        %2449 = vmatmul.bf16.gmra.mxu0 %v1844
        %v2450 = vpop.f32.mrf.mxu0
        %v2451 = vadd.f32 0.0, %v2450
        %v2452 = vpop.f32.mrf.mxu0
        %v2453 = vadd.f32 0.0, %v2452
        %2454 = vmatmul.bf16.gmra.mxu0 %v1845
        %v2455 = vpop.f32.mrf.mxu0
        %v2456 = vadd.f32 0.0, %v2455
        %v2457 = vpop.f32.mrf.mxu0
        %v2458 = vadd.f32 0.0, %v2457
        %2459 = vmatmul.bf16.gmra.mxu0 %v1846
        %v2460 = vpop.f32.mrf.mxu0
        %v2461 = vadd.f32 0.0, %v2460
        %v2462 = vpop.f32.mrf.mxu0
        %v2463 = vadd.f32 0.0, %v2462
        %2464 = vdwg.mxu0
        %2465 = vmatpush.bf16.msra.mxu0 %v2343
        %2466 = vmatpush.bf16.msra.mxu0 %v2342
        %2467 = vmatpush.bf16.msra.mxu0 %v2341
        %2468 = vmatpush.bf16.msra.mxu0 %v2340
        %2469 = vmatpush.bf16.msra.mxu0 %v2339
        %2470 = vmatpush.bf16.msra.mxu0 %v2338
        %2471 = vmatpush.bf16.msra.mxu0 %v2337
        %2472 = vmatpush.bf16.msra.mxu0 %v2336
        %2473 = vmatmul.bf16.gmra.mxu0 %v1922
        %v2474 = vpop.f32.mrf.mxu0
        %v2475 = vadd.f32 %v2386, %v2474
        %v2476 = vpop.f32.mrf.mxu0
        %v2477 = vadd.f32 %v2388, %v2476
        %2478 = vmatmul.bf16.gmra.mxu0 %v1934
        %v2479 = vpop.f32.mrf.mxu0
        %v2480 = vadd.f32 %v2391, %v2479
        %v2481 = vpop.f32.mrf.mxu0
        %v2482 = vadd.f32 %v2393, %v2481
        %2483 = vmatmul.bf16.gmra.mxu0 %v1946
        %v2484 = vpop.f32.mrf.mxu0
        %v2485 = vadd.f32 %v2396, %v2484
        %v2486 = vpop.f32.mrf.mxu0
        %v2487 = vadd.f32 %v2398, %v2486
        %2488 = vmatmul.bf16.gmra.mxu0 %v1958
        %v2489 = vpop.f32.mrf.mxu0
        %v2490 = vadd.f32 %v2401, %v2489
        %v2491 = vpop.f32.mrf.mxu0
        %v2492 = vadd.f32 %v2403, %v2491
        %2493 = vmatmul.bf16.gmra.mxu0 %v1970
        %v2494 = vpop.f32.mrf.mxu0
        %v2495 = vadd.f32 %v2406, %v2494
        %v2496 = vpop.f32.mrf.mxu0
        %v2497 = vadd.f32 %v2408, %v2496
        %2498 = vmatmul.bf16.gmra.mxu0 %v1982
        %v2499 = vpop.f32.mrf.mxu0
        %v2500 = vadd.f32 %v2411, %v2499
        %v2501 = vpop.f32.mrf.mxu0
        %v2502 = vadd.f32 %v2413, %v2501
        %2503 = vmatmul.bf16.gmra.mxu0 %v1994
        %v2504 = vpop.f32.mrf.mxu0
        %v2505 = vadd.f32 %v2416, %v2504
        %v2506 = vpop.f32.mrf.mxu0
        %v2507 = vadd.f32 %v2418, %v2506
        %2508 = vmatmul.bf16.gmra.mxu0 %v2006
        %v2509 = vpop.f32.mrf.mxu0
        %v2510 = vadd.f32 %v2421, %v2509
        %v2511 = vpop.f32.mrf.mxu0
        %v2512 = vadd.f32 %v2423, %v2511
        %2513 = vmatmul.bf16.gmra.mxu0 %v2018
        %v2514 = vpop.f32.mrf.mxu0
        %v2515 = vadd.f32 %v2426, %v2514
        %v2516 = vpop.f32.mrf.mxu0
        %v2517 = vadd.f32 %v2428, %v2516
        %2518 = vmatmul.bf16.gmra.mxu0 %v2030
        %v2519 = vpop.f32.mrf.mxu0
        %v2520 = vadd.f32 %v2431, %v2519
        %v2521 = vpop.f32.mrf.mxu0
        %v2522 = vadd.f32 %v2433, %v2521
        %2523 = vmatmul.bf16.gmra.mxu0 %v2042
        %v2524 = vpop.f32.mrf.mxu0
        %v2525 = vadd.f32 %v2436, %v2524
        %v2526 = vpop.f32.mrf.mxu0
        %v2527 = vadd.f32 %v2438, %v2526
        %2528 = vmatmul.bf16.gmra.mxu0 %v2054
        %v2529 = vpop.f32.mrf.mxu0
        %v2530 = vadd.f32 %v2441, %v2529
        %v2531 = vpop.f32.mrf.mxu0
        %v2532 = vadd.f32 %v2443, %v2531
        %2533 = vmatmul.bf16.gmra.mxu0 %v2066
        %v2534 = vpop.f32.mrf.mxu0
        %v2535 = vadd.f32 %v2446, %v2534
        %v2536 = vpop.f32.mrf.mxu0
        %v2537 = vadd.f32 %v2448, %v2536
        %2538 = vmatmul.bf16.gmra.mxu0 %v2078
        %v2539 = vpop.f32.mrf.mxu0
        %v2540 = vadd.f32 %v2451, %v2539
        %v2541 = vpop.f32.mrf.mxu0
        %v2542 = vadd.f32 %v2453, %v2541
        %2543 = vmatmul.bf16.gmra.mxu0 %v2090
        %v2544 = vpop.f32.mrf.mxu0
        %v2545 = vadd.f32 %v2456, %v2544
        %v2546 = vpop.f32.mrf.mxu0
        %v2547 = vadd.f32 %v2458, %v2546
        %2548 = vmatmul.bf16.gmra.mxu0 %v2102
        %v2549 = vpop.f32.mrf.mxu0
        %v2550 = vadd.f32 %v2461, %v2549
        %v2551 = vpop.f32.mrf.mxu0
        %v2552 = vadd.f32 %v2463, %v2551
        %2553 = vdwg.mxu0
        %2554 = vmatpush.bf16.msra.mxu0 %v2351
        %2555 = vmatpush.bf16.msra.mxu0 %v2350
        %2556 = vmatpush.bf16.msra.mxu0 %v2349
        %2557 = vmatpush.bf16.msra.mxu0 %v2348
        %2558 = vmatpush.bf16.msra.mxu0 %v2347
        %2559 = vmatpush.bf16.msra.mxu0 %v2346
        %2560 = vmatpush.bf16.msra.mxu0 %v2345
        %2561 = vmatpush.bf16.msra.mxu0 %v2344
        %2562 = vmatmul.bf16.gmra.mxu0 %v2121
        %v2563 = vpop.f32.mrf.mxu0
        %v2564 = vadd.f32 %v2475, %v2563
        %v2565 = vpop.f32.mrf.mxu0
        %v2566 = vadd.f32 %v2477, %v2565
        %2567 = vmatmul.bf16.gmra.mxu0 %v2124
        %v2568 = vpop.f32.mrf.mxu0
        %v2569 = vadd.f32 %v2480, %v2568
        %v2570 = vpop.f32.mrf.mxu0
        %v2571 = vadd.f32 %v2482, %v2570
        %2572 = vmatmul.bf16.gmra.mxu0 %v2127
        %v2573 = vpop.f32.mrf.mxu0
        %v2574 = vadd.f32 %v2485, %v2573
        %v2575 = vpop.f32.mrf.mxu0
        %v2576 = vadd.f32 %v2487, %v2575
        %2577 = vmatmul.bf16.gmra.mxu0 %v2130
        %v2578 = vpop.f32.mrf.mxu0
        %v2579 = vadd.f32 %v2490, %v2578
        %v2580 = vpop.f32.mrf.mxu0
        %v2581 = vadd.f32 %v2492, %v2580
        %2582 = vmatmul.bf16.gmra.mxu0 %v2133
        %v2583 = vpop.f32.mrf.mxu0
        %v2584 = vadd.f32 %v2495, %v2583
        %v2585 = vpop.f32.mrf.mxu0
        %v2586 = vadd.f32 %v2497, %v2585
        %2587 = vmatmul.bf16.gmra.mxu0 %v2136
        %v2588 = vpop.f32.mrf.mxu0
        %v2589 = vadd.f32 %v2500, %v2588
        %v2590 = vpop.f32.mrf.mxu0
        %v2591 = vadd.f32 %v2502, %v2590
        %2592 = vmatmul.bf16.gmra.mxu0 %v2139
        %v2593 = vpop.f32.mrf.mxu0
        %v2594 = vadd.f32 %v2505, %v2593
        %v2595 = vpop.f32.mrf.mxu0
        %v2596 = vadd.f32 %v2507, %v2595
        %2597 = vmatmul.bf16.gmra.mxu0 %v2142
        %v2598 = vpop.f32.mrf.mxu0
        %v2599 = vadd.f32 %v2510, %v2598
        %v2600 = vpop.f32.mrf.mxu0
        %v2601 = vadd.f32 %v2512, %v2600
        %2602 = vmatmul.bf16.gmra.mxu0 %v2145
        %v2603 = vpop.f32.mrf.mxu0
        %v2604 = vadd.f32 %v2515, %v2603
        %v2605 = vpop.f32.mrf.mxu0
        %v2606 = vadd.f32 %v2517, %v2605
        %2607 = vmatmul.bf16.gmra.mxu0 %v2148
        %v2608 = vpop.f32.mrf.mxu0
        %v2609 = vadd.f32 %v2520, %v2608
        %v2610 = vpop.f32.mrf.mxu0
        %v2611 = vadd.f32 %v2522, %v2610
        %2612 = vmatmul.bf16.gmra.mxu0 %v2151
        %v2613 = vpop.f32.mrf.mxu0
        %v2614 = vadd.f32 %v2525, %v2613
        %v2615 = vpop.f32.mrf.mxu0
        %v2616 = vadd.f32 %v2527, %v2615
        %2617 = vmatmul.bf16.gmra.mxu0 %v2154
        %v2618 = vpop.f32.mrf.mxu0
        %v2619 = vadd.f32 %v2530, %v2618
        %v2620 = vpop.f32.mrf.mxu0
        %v2621 = vadd.f32 %v2532, %v2620
        %2622 = vmatmul.bf16.gmra.mxu0 %v2157
        %v2623 = vpop.f32.mrf.mxu0
        %v2624 = vadd.f32 %v2535, %v2623
        %v2625 = vpop.f32.mrf.mxu0
        %v2626 = vadd.f32 %v2537, %v2625
        %2627 = vmatmul.bf16.gmra.mxu0 %v2160
        %v2628 = vpop.f32.mrf.mxu0
        %v2629 = vadd.f32 %v2540, %v2628
        %v2630 = vpop.f32.mrf.mxu0
        %v2631 = vadd.f32 %v2542, %v2630
        %2632 = vmatmul.bf16.gmra.mxu0 %v2163
        %v2633 = vpop.f32.mrf.mxu0
        %v2634 = vadd.f32 %v2545, %v2633
        %v2635 = vpop.f32.mrf.mxu0
        %v2636 = vadd.f32 %v2547, %v2635
        %2637 = vmatmul.bf16.gmra.mxu0 %v2166
        %v2638 = vpop.f32.mrf.mxu0
        %v2639 = vadd.f32 %v2550, %v2638
        %v2640 = vpop.f32.mrf.mxu0
        %v2641 = vadd.f32 %v2552, %v2640
        %2642 = vdwg.mxu0
        %v2691 = vunpack.c.l.b16 %v1719
        %v2692 = vunpack.c.l.b16 %v1720
        %v2693 = vunpack.c.l.b16 %v1721
        %v2694 = vunpack.c.l.b16 %v1722
        %v2695 = vunpack.c.l.b16 %v1723
        %v2696 = vunpack.c.l.b16 %v1724
        %v2697 = vunpack.c.l.b16 %v1725
        %v2698 = vunpack.c.l.b16 %v1726
        %v2699 = vunpack.c.l.b16 %v1727
        %v2700 = vunpack.c.l.b16 %v1728
        %v2701 = vunpack.c.l.b16 %v1729
        %v2702 = vunpack.c.l.b16 %v1730
        %v2703 = vunpack.c.l.b16 %v1731
        %v2704 = vunpack.c.l.b16 %v1732
        %v2705 = vunpack.c.l.b16 %v1733
        %v2706 = vunpack.c.l.b16 %v1734
        %v2707 = vunpack.c.l.b16 %v1735
        %v2708 = vunpack.c.l.b16 %v1736
        %v2709 = vunpack.c.l.b16 %v1737
        %v2710 = vunpack.c.l.b16 %v1738
        %v2711 = vunpack.c.l.b16 %v1739
        %v2712 = vunpack.c.l.b16 %v1740
        %v2713 = vunpack.c.l.b16 %v1741
        %v2714 = vunpack.c.l.b16 %v1742
        %v2715 = vunpack.c.l.b16 %v1743
        %v2716 = vunpack.c.l.b16 %v1744
        %v2717 = vunpack.c.l.b16 %v1745
        %v2718 = vunpack.c.l.b16 %v1746
        %v2719 = vunpack.c.l.b16 %v1747
        %v2720 = vunpack.c.l.b16 %v1748
        %v2721 = vunpack.c.l.b16 %v1749
        %v2722 = vunpack.c.l.b16 %v1750
        %v2723 = vunpack.c.l.b16 %v1751
        %v2724 = vunpack.c.l.b16 %v1752
        %v2725 = vunpack.c.l.b16 %v1753
        %v2726 = vunpack.c.l.b16 %v1754
        %v2727 = vunpack.c.l.b16 %v1755
        %v2728 = vunpack.c.l.b16 %v1756
        %v2729 = vunpack.c.l.b16 %v1757
        %v2730 = vunpack.c.l.b16 %v1758
        %v2731 = vunpack.c.l.b16 %v1759
        %v2732 = vunpack.c.l.b16 %v1760
        %v2733 = vunpack.c.l.b16 %v1761
        %v2734 = vunpack.c.l.b16 %v1762
        %v2735 = vunpack.c.l.b16 %v1763
        %v2736 = vunpack.c.l.b16 %v1764
        %v2737 = vunpack.c.l.b16 %v1765
        %v2738 = vunpack.c.l.b16 %v1766
        %v2739 = vpack.c.b16 %v2692, %v2691
        %v2740 = vpack.c.b16 %v2694, %v2693
        %v2741 = vpack.c.b16 %v2696, %v2695
        %v2742 = vpack.c.b16 %v2698, %v2697
        %v2743 = vpack.c.b16 %v2700, %v2699
        %v2744 = vpack.c.b16 %v2702, %v2701
        %v2745 = vpack.c.b16 %v2704, %v2703
        %v2746 = vpack.c.b16 %v2706, %v2705
        %v2747 = vpack.c.b16 %v2708, %v2707
        %v2748 = vpack.c.b16 %v2710, %v2709
        %v2749 = vpack.c.b16 %v2712, %v2711
        %v2750 = vpack.c.b16 %v2714, %v2713
        %v2751 = vpack.c.b16 %v2716, %v2715
        %v2752 = vpack.c.b16 %v2718, %v2717
        %v2753 = vpack.c.b16 %v2720, %v2719
        %v2754 = vpack.c.b16 %v2722, %v2721
        %v2755 = vpack.c.b16 %v2724, %v2723
        %v2756 = vpack.c.b16 %v2726, %v2725
        %v2757 = vpack.c.b16 %v2728, %v2727
        %v2758 = vpack.c.b16 %v2730, %v2729
        %v2759 = vpack.c.b16 %v2732, %v2731
        %v2760 = vpack.c.b16 %v2734, %v2733
        %v2761 = vpack.c.b16 %v2736, %v2735
        %v2762 = vpack.c.b16 %v2738, %v2737
        %2787 = vmatpush.bf16.msra.mxu0 %v2746
        %2788 = vmatpush.bf16.msra.mxu0 %v2745
        %2789 = vmatpush.bf16.msra.mxu0 %v2744
        %2790 = vmatpush.bf16.msra.mxu0 %v2743
        %2791 = vmatpush.bf16.msra.mxu0 %v2742
        %2792 = vmatpush.bf16.msra.mxu0 %v2741
        %2793 = vmatpush.bf16.msra.mxu0 %v2740
        %2794 = vmatpush.bf16.msra.mxu0 %v2739
        %2795 = vmatmul.bf16.gmra.mxu0 %v1365
        %v2796 = vpop.f32.mrf.mxu0
        %v2797 = vadd.f32 %v2564, %v2796
        %v2798 = vpop.f32.mrf.mxu0
        %v2799 = vadd.f32 %v2566, %v2798
        %2800 = vmatmul.bf16.gmra.mxu0 %v1366
        %v2801 = vpop.f32.mrf.mxu0
        %v2802 = vadd.f32 %v2569, %v2801
        %v2803 = vpop.f32.mrf.mxu0
        %v2804 = vadd.f32 %v2571, %v2803
        %2805 = vmatmul.bf16.gmra.mxu0 %v1367
        %v2806 = vpop.f32.mrf.mxu0
        %v2807 = vadd.f32 %v2574, %v2806
        %v2808 = vpop.f32.mrf.mxu0
        %v2809 = vadd.f32 %v2576, %v2808
        %2810 = vmatmul.bf16.gmra.mxu0 %v1368
        %v2811 = vpop.f32.mrf.mxu0
        %v2812 = vadd.f32 %v2579, %v2811
        %v2813 = vpop.f32.mrf.mxu0
        %v2814 = vadd.f32 %v2581, %v2813
        %2815 = vmatmul.bf16.gmra.mxu0 %v1369
        %v2816 = vpop.f32.mrf.mxu0
        %v2817 = vadd.f32 %v2584, %v2816
        %v2818 = vpop.f32.mrf.mxu0
        %v2819 = vadd.f32 %v2586, %v2818
        %2820 = vmatmul.bf16.gmra.mxu0 %v1370
        %v2821 = vpop.f32.mrf.mxu0
        %v2822 = vadd.f32 %v2589, %v2821
        %v2823 = vpop.f32.mrf.mxu0
        %v2824 = vadd.f32 %v2591, %v2823
        %2825 = vmatmul.bf16.gmra.mxu0 %v1371
        %v2826 = vpop.f32.mrf.mxu0
        %v2827 = vadd.f32 %v2594, %v2826
        %v2828 = vpop.f32.mrf.mxu0
        %v2829 = vadd.f32 %v2596, %v2828
        %2830 = vmatmul.bf16.gmra.mxu0 %v1372
        %v2831 = vpop.f32.mrf.mxu0
        %v2832 = vadd.f32 %v2599, %v2831
        %v2833 = vpop.f32.mrf.mxu0
        %v2834 = vadd.f32 %v2601, %v2833
        %2835 = vmatmul.bf16.gmra.mxu0 %v1373
        %v2836 = vpop.f32.mrf.mxu0
        %v2837 = vadd.f32 %v2604, %v2836
        %v2838 = vpop.f32.mrf.mxu0
        %v2839 = vadd.f32 %v2606, %v2838
        %2840 = vmatmul.bf16.gmra.mxu0 %v1374
        %v2841 = vpop.f32.mrf.mxu0
        %v2842 = vadd.f32 %v2609, %v2841
        %v2843 = vpop.f32.mrf.mxu0
        %v2844 = vadd.f32 %v2611, %v2843
        %2845 = vmatmul.bf16.gmra.mxu0 %v1375
        %v2846 = vpop.f32.mrf.mxu0
        %v2847 = vadd.f32 %v2614, %v2846
        %v2848 = vpop.f32.mrf.mxu0
        %v2849 = vadd.f32 %v2616, %v2848
        %2850 = vmatmul.bf16.gmra.mxu0 %v1376
        %v2851 = vpop.f32.mrf.mxu0
        %v2852 = vadd.f32 %v2619, %v2851
        %v2853 = vpop.f32.mrf.mxu0
        %v2854 = vadd.f32 %v2621, %v2853
        %2855 = vmatmul.bf16.gmra.mxu0 %v1377
        %v2856 = vpop.f32.mrf.mxu0
        %v2857 = vadd.f32 %v2624, %v2856
        %v2858 = vpop.f32.mrf.mxu0
        %v2859 = vadd.f32 %v2626, %v2858
        %2860 = vmatmul.bf16.gmra.mxu0 %v1378
        %v2861 = vpop.f32.mrf.mxu0
        %v2862 = vadd.f32 %v2629, %v2861
        %v2863 = vpop.f32.mrf.mxu0
        %v2864 = vadd.f32 %v2631, %v2863
        %2865 = vmatmul.bf16.gmra.mxu0 %v1379
        %v2866 = vpop.f32.mrf.mxu0
        %v2867 = vadd.f32 %v2634, %v2866
        %v2868 = vpop.f32.mrf.mxu0
        %v2869 = vadd.f32 %v2636, %v2868
        %2870 = vmatmul.bf16.gmra.mxu0 %v1380
        %v2871 = vpop.f32.mrf.mxu0
        %v2872 = vadd.f32 %v2639, %v2871
        %v2873 = vpop.f32.mrf.mxu0
        %v2874 = vadd.f32 %v2641, %v2873
        %2875 = vdwg.mxu0
        %2876 = vmatpush.bf16.msra.mxu0 %v2754
        %2877 = vmatpush.bf16.msra.mxu0 %v2753
        %2878 = vmatpush.bf16.msra.mxu0 %v2752
        %2879 = vmatpush.bf16.msra.mxu0 %v2751
        %2880 = vmatpush.bf16.msra.mxu0 %v2750
        %2881 = vmatpush.bf16.msra.mxu0 %v2749
        %2882 = vmatpush.bf16.msra.mxu0 %v2748
        %2883 = vmatpush.bf16.msra.mxu0 %v2747
        %2884 = vmatmul.bf16.gmra.mxu0 %v1457
        %v2885 = vpop.f32.mrf.mxu0
        %v2886 = vadd.f32 %v2797, %v2885
        %v2887 = vpop.f32.mrf.mxu0
        %v2888 = vadd.f32 %v2799, %v2887
        %2889 = vmatmul.bf16.gmra.mxu0 %v1469
        %v2890 = vpop.f32.mrf.mxu0
        %v2891 = vadd.f32 %v2802, %v2890
        %v2892 = vpop.f32.mrf.mxu0
        %v2893 = vadd.f32 %v2804, %v2892
        %2894 = vmatmul.bf16.gmra.mxu0 %v1481
        %v2895 = vpop.f32.mrf.mxu0
        %v2896 = vadd.f32 %v2807, %v2895
        %v2897 = vpop.f32.mrf.mxu0
        %v2898 = vadd.f32 %v2809, %v2897
        %2899 = vmatmul.bf16.gmra.mxu0 %v1493
        %v2900 = vpop.f32.mrf.mxu0
        %v2901 = vadd.f32 %v2812, %v2900
        %v2902 = vpop.f32.mrf.mxu0
        %v2903 = vadd.f32 %v2814, %v2902
        %2904 = vmatmul.bf16.gmra.mxu0 %v1505
        %v2905 = vpop.f32.mrf.mxu0
        %v2906 = vadd.f32 %v2817, %v2905
        %v2907 = vpop.f32.mrf.mxu0
        %v2908 = vadd.f32 %v2819, %v2907
        %2909 = vmatmul.bf16.gmra.mxu0 %v1517
        %v2910 = vpop.f32.mrf.mxu0
        %v2911 = vadd.f32 %v2822, %v2910
        %v2912 = vpop.f32.mrf.mxu0
        %v2913 = vadd.f32 %v2824, %v2912
        %2914 = vmatmul.bf16.gmra.mxu0 %v1529
        %v2915 = vpop.f32.mrf.mxu0
        %v2916 = vadd.f32 %v2827, %v2915
        %v2917 = vpop.f32.mrf.mxu0
        %v2918 = vadd.f32 %v2829, %v2917
        %2919 = vmatmul.bf16.gmra.mxu0 %v1541
        %v2920 = vpop.f32.mrf.mxu0
        %v2921 = vadd.f32 %v2832, %v2920
        %v2922 = vpop.f32.mrf.mxu0
        %v2923 = vadd.f32 %v2834, %v2922
        %2924 = vmatmul.bf16.gmra.mxu0 %v1553
        %v2925 = vpop.f32.mrf.mxu0
        %v2926 = vadd.f32 %v2837, %v2925
        %v2927 = vpop.f32.mrf.mxu0
        %v2928 = vadd.f32 %v2839, %v2927
        %2929 = vmatmul.bf16.gmra.mxu0 %v1565
        %v2930 = vpop.f32.mrf.mxu0
        %v2931 = vadd.f32 %v2842, %v2930
        %v2932 = vpop.f32.mrf.mxu0
        %v2933 = vadd.f32 %v2844, %v2932
        %2934 = vmatmul.bf16.gmra.mxu0 %v1577
        %v2935 = vpop.f32.mrf.mxu0
        %v2936 = vadd.f32 %v2847, %v2935
        %v2937 = vpop.f32.mrf.mxu0
        %v2938 = vadd.f32 %v2849, %v2937
        %2939 = vmatmul.bf16.gmra.mxu0 %v1589
        %v2940 = vpop.f32.mrf.mxu0
        %v2941 = vadd.f32 %v2852, %v2940
        %v2942 = vpop.f32.mrf.mxu0
        %v2943 = vadd.f32 %v2854, %v2942
        %2944 = vmatmul.bf16.gmra.mxu0 %v1601
        %v2945 = vpop.f32.mrf.mxu0
        %v2946 = vadd.f32 %v2857, %v2945
        %v2947 = vpop.f32.mrf.mxu0
        %v2948 = vadd.f32 %v2859, %v2947
        %2949 = vmatmul.bf16.gmra.mxu0 %v1613
        %v2950 = vpop.f32.mrf.mxu0
        %v2951 = vadd.f32 %v2862, %v2950
        %v2952 = vpop.f32.mrf.mxu0
        %v2953 = vadd.f32 %v2864, %v2952
        %2954 = vmatmul.bf16.gmra.mxu0 %v1625
        %v2955 = vpop.f32.mrf.mxu0
        %v2956 = vadd.f32 %v2867, %v2955
        %v2957 = vpop.f32.mrf.mxu0
        %v2958 = vadd.f32 %v2869, %v2957
        %2959 = vmatmul.bf16.gmra.mxu0 %v1637
        %v2960 = vpop.f32.mrf.mxu0
        %v2961 = vadd.f32 %v2872, %v2960
        %v2962 = vpop.f32.mrf.mxu0
        %v2963 = vadd.f32 %v2874, %v2962
        %2964 = vdwg.mxu0
        %2965 = vmatpush.bf16.msra.mxu0 %v2762
        %2966 = vmatpush.bf16.msra.mxu0 %v2761
        %2967 = vmatpush.bf16.msra.mxu0 %v2760
        %2968 = vmatpush.bf16.msra.mxu0 %v2759
        %2969 = vmatpush.bf16.msra.mxu0 %v2758
        %2970 = vmatpush.bf16.msra.mxu0 %v2757
        %2971 = vmatpush.bf16.msra.mxu0 %v2756
        %2972 = vmatpush.bf16.msra.mxu0 %v2755
        %2973 = vmatmul.bf16.gmra.mxu0 %v1657
        %v2974 = vpop.f32.mrf.mxu0
        %v2975 = vadd.f32 %v2886, %v2974
        %v2976 = vpop.f32.mrf.mxu0
        %v2977 = vadd.f32 %v2888, %v2976
        %2978 = vmatmul.bf16.gmra.mxu0 %v1660
        %v2979 = vpop.f32.mrf.mxu0
        %v2980 = vadd.f32 %v2891, %v2979
        %v2981 = vpop.f32.mrf.mxu0
        %v2982 = vadd.f32 %v2893, %v2981
        %2983 = vmatmul.bf16.gmra.mxu0 %v1663
        %v2984 = vpop.f32.mrf.mxu0
        %v2985 = vadd.f32 %v2896, %v2984
        %v2986 = vpop.f32.mrf.mxu0
        %v2987 = vadd.f32 %v2898, %v2986
        %2988 = vmatmul.bf16.gmra.mxu0 %v1666
        %v2989 = vpop.f32.mrf.mxu0
        %v2990 = vadd.f32 %v2901, %v2989
        %v2991 = vpop.f32.mrf.mxu0
        %v2992 = vadd.f32 %v2903, %v2991
        %2993 = vmatmul.bf16.gmra.mxu0 %v1669
        %v2994 = vpop.f32.mrf.mxu0
        %v2995 = vadd.f32 %v2906, %v2994
        %v2996 = vpop.f32.mrf.mxu0
        %v2997 = vadd.f32 %v2908, %v2996
        %2998 = vmatmul.bf16.gmra.mxu0 %v1672
        %v2999 = vpop.f32.mrf.mxu0
        %v3000 = vadd.f32 %v2911, %v2999
        %v3001 = vpop.f32.mrf.mxu0
        %v3002 = vadd.f32 %v2913, %v3001
        %3003 = vmatmul.bf16.gmra.mxu0 %v1675
        %v3004 = vpop.f32.mrf.mxu0
        %v3005 = vadd.f32 %v2916, %v3004
        %v3006 = vpop.f32.mrf.mxu0
        %v3007 = vadd.f32 %v2918, %v3006
        %3008 = vmatmul.bf16.gmra.mxu0 %v1678
        %v3009 = vpop.f32.mrf.mxu0
        %v3010 = vadd.f32 %v2921, %v3009
        %v3011 = vpop.f32.mrf.mxu0
        %v3012 = vadd.f32 %v2923, %v3011
        %3013 = vmatmul.bf16.gmra.mxu0 %v1681
        %v3014 = vpop.f32.mrf.mxu0
        %v3015 = vadd.f32 %v2926, %v3014
        %v3016 = vpop.f32.mrf.mxu0
        %v3017 = vadd.f32 %v2928, %v3016
        %3018 = vmatmul.bf16.gmra.mxu0 %v1684
        %v3019 = vpop.f32.mrf.mxu0
        %v3020 = vadd.f32 %v2931, %v3019
        %v3021 = vpop.f32.mrf.mxu0
        %v3022 = vadd.f32 %v2933, %v3021
        %3023 = vmatmul.bf16.gmra.mxu0 %v1687
        %v3024 = vpop.f32.mrf.mxu0
        %v3025 = vadd.f32 %v2936, %v3024
        %v3026 = vpop.f32.mrf.mxu0
        %v3027 = vadd.f32 %v2938, %v3026
        %3028 = vmatmul.bf16.gmra.mxu0 %v1690
        %v3029 = vpop.f32.mrf.mxu0
        %v3030 = vadd.f32 %v2941, %v3029
        %v3031 = vpop.f32.mrf.mxu0
        %v3032 = vadd.f32 %v2943, %v3031
        %3033 = vmatmul.bf16.gmra.mxu0 %v1693
        %v3034 = vpop.f32.mrf.mxu0
        %v3035 = vadd.f32 %v2946, %v3034
        %v3036 = vpop.f32.mrf.mxu0
        %v3037 = vadd.f32 %v2948, %v3036
        %3038 = vmatmul.bf16.gmra.mxu0 %v1696
        %v3039 = vpop.f32.mrf.mxu0
        %v3040 = vadd.f32 %v2951, %v3039
        %v3041 = vpop.f32.mrf.mxu0
        %v3042 = vadd.f32 %v2953, %v3041
        %3043 = vmatmul.bf16.gmra.mxu0 %v1699
        %v3044 = vpop.f32.mrf.mxu0
        %v3045 = vadd.f32 %v2956, %v3044
        %v3046 = vpop.f32.mrf.mxu0
        %v3047 = vadd.f32 %v2958, %v3046
        %3048 = vmatmul.bf16.gmra.mxu0 %v1702
        %v3049 = vpop.f32.mrf.mxu0
        %v3050 = vadd.f32 %v2961, %v3049
        %v3051 = vpop.f32.mrf.mxu0
        %v3052 = vadd.f32 %v2963, %v3051
        %3053 = vdwg.mxu0
        %s3054 = scalar_lea.vmem %s371, 24
        %v3055 = vld [vmem:[%s3054] sm:$0xf]
        %v3056 = vld [vmem:[%s3054 + $0x4] sm:$0xf]
        %v3057 = vld [vmem:[%s3054 + $0x8] sm:$0x1]
        %v3058 = vld [vmem:[%s3054 + $0xc] sm:$0xf]
        %v3059 = vld [vmem:[%s3054 + $0x10] sm:$0xf]
        %v3060 = vld [vmem:[%s3054 + $0x14] sm:$0x1]
        %v3061 = vld [vmem:[%s3054 + $0x18] sm:$0xf]
        %v3062 = vld [vmem:[%s3054 + $0x1c] sm:$0xf]
        %v3063 = vld [vmem:[%s3054 + $0x20] sm:$0x1]
        %v3064 = vld [vmem:[%s3054 + $0x24] sm:$0xf]
        %v3065 = vld [vmem:[%s3054 + $0x28] sm:$0xf]
        %v3066 = vld [vmem:[%s3054 + $0x2c] sm:$0x1]
        %v3067 = vld [vmem:[%s3054 + $0x30] sm:$0xf]
        %v3068 = vld [vmem:[%s3054 + $0x34] sm:$0xf]
        %v3069 = vld [vmem:[%s3054 + $0x38] sm:$0x1]
        %v3070 = vld [vmem:[%s3054 + $0x3c] sm:$0xf]
        %v3071 = vld [vmem:[%s3054 + $0x40] sm:$0xf]
        %v3072 = vld [vmem:[%s3054 + $0x44] sm:$0x1]
        %v3073 = vld [vmem:[%s3054 + $0x48] sm:$0xf]
        %v3074 = vld [vmem:[%s3054 + $0x4c] sm:$0xf]
        %v3075 = vld [vmem:[%s3054 + $0x50] sm:$0x1]
        %v3076 = vld [vmem:[%s3054 + $0x54] sm:$0xf]
        %v3077 = vld [vmem:[%s3054 + $0x58] sm:$0xf]
        %v3078 = vld [vmem:[%s3054 + $0x5c] sm:$0x1]
        %v3079 = vld [vmem:[%s3054 + $0x60] sm:$0xf]
        %v3080 = vld [vmem:[%s3054 + $0x64] sm:$0xf]
        %v3081 = vld [vmem:[%s3054 + $0x68] sm:$0x1]
        %v3082 = vld [vmem:[%s3054 + $0x6c] sm:$0xf]
        %v3083 = vld [vmem:[%s3054 + $0x70] sm:$0xf]
        %v3084 = vld [vmem:[%s3054 + $0x74] sm:$0x1]
        %v3085 = vld [vmem:[%s3054 + $0x78] sm:$0xf]
        %v3086 = vld [vmem:[%s3054 + $0x7c] sm:$0xf]
        %v3087 = vld [vmem:[%s3054 + $0x80] sm:$0x1]
        %v3088 = vld [vmem:[%s3054 + $0x84] sm:$0xf]
        %v3089 = vld [vmem:[%s3054 + $0x88] sm:$0xf]
        %v3090 = vld [vmem:[%s3054 + $0x8c] sm:$0x1]
        %v3091 = vld [vmem:[%s3054 + $0x90] sm:$0xf]
        %v3092 = vld [vmem:[%s3054 + $0x94] sm:$0xf]
        %v3093 = vld [vmem:[%s3054 + $0x98] sm:$0x1]
        %v3094 = vld [vmem:[%s3054 + $0x9c] sm:$0xf]
        %v3095 = vld [vmem:[%s3054 + $0xa0] sm:$0xf]
        %v3096 = vld [vmem:[%s3054 + $0xa4] sm:$0x1]
        %v3097 = vld [vmem:[%s3054 + $0xa8] sm:$0xf]
        %v3098 = vld [vmem:[%s3054 + $0xac] sm:$0xf]
        %v3099 = vld [vmem:[%s3054 + $0xb0] sm:$0x1]
        %v3100 = vld [vmem:[%s3054 + $0xb4] sm:$0xf]
        %v3101 = vld [vmem:[%s3054 + $0xb8] sm:$0xf]
        %v3102 = vld [vmem:[%s3054 + $0xbc] sm:$0x1]
        %v3135 = vunpack.c.l.b16 %v3055
        %v3136 = vunpack.c.l.b16 %v3056
        %v3137 = vunpack.c.l.b16 %v3058
        %v3138 = vunpack.c.l.b16 %v3059
        %v3139 = vunpack.c.l.b16 %v3061
        %v3140 = vunpack.c.l.b16 %v3062
        %v3141 = vunpack.c.l.b16 %v3064
        %v3142 = vunpack.c.l.b16 %v3065
        %v3143 = vunpack.c.l.b16 %v3067
        %v3144 = vunpack.c.l.b16 %v3068
        %v3145 = vunpack.c.l.b16 %v3070
        %v3146 = vunpack.c.l.b16 %v3071
        %v3147 = vunpack.c.l.b16 %v3073
        %v3148 = vunpack.c.l.b16 %v3074
        %v3149 = vunpack.c.l.b16 %v3076
        %v3150 = vunpack.c.l.b16 %v3077
        %v3151 = vunpack.c.l.b16 %v3079
        %v3152 = vunpack.c.l.b16 %v3080
        %v3153 = vunpack.c.l.b16 %v3082
        %v3154 = vunpack.c.l.b16 %v3083
        %v3155 = vunpack.c.l.b16 %v3085
        %v3156 = vunpack.c.l.b16 %v3086
        %v3157 = vunpack.c.l.b16 %v3088
        %v3158 = vunpack.c.l.b16 %v3089
        %v3159 = vunpack.c.l.b16 %v3091
        %v3160 = vunpack.c.l.b16 %v3092
        %v3161 = vunpack.c.l.b16 %v3094
        %v3162 = vunpack.c.l.b16 %v3095
        %v3163 = vunpack.c.l.b16 %v3097
        %v3164 = vunpack.c.l.b16 %v3098
        %v3165 = vunpack.c.l.b16 %v3100
        %v3166 = vunpack.c.l.b16 %v3101
        %v3167 = vpack.c.b16 %v3136, %v3135
        %v3168 = vpack.c.b16 %v3138, %v3137
        %v3169 = vpack.c.b16 %v3140, %v3139
        %v3170 = vpack.c.b16 %v3142, %v3141
        %v3171 = vpack.c.b16 %v3144, %v3143
        %v3172 = vpack.c.b16 %v3146, %v3145
        %v3173 = vpack.c.b16 %v3148, %v3147
        %v3174 = vpack.c.b16 %v3150, %v3149
        %v3175 = vpack.c.b16 %v3152, %v3151
        %v3176 = vpack.c.b16 %v3154, %v3153
        %v3177 = vpack.c.b16 %v3156, %v3155
        %v3178 = vpack.c.b16 %v3158, %v3157
        %v3179 = vpack.c.b16 %v3160, %v3159
        %v3180 = vpack.c.b16 %v3162, %v3161
        %v3181 = vpack.c.b16 %v3164, %v3163
        %v3182 = vpack.c.b16 %v3166, %v3165
        %v3215 = vunpack.c.l.b16 %v3057
        %v3216 = vunpack.c.l.b16 %v3060
        %v3217 = vunpack.c.l.b16 %v3063
        %v3218 = vunpack.c.l.b16 %v3066
        %v3219 = vunpack.c.l.b16 %v3069
        %v3220 = vunpack.c.l.b16 %v3072
        %v3221 = vunpack.c.l.b16 %v3075
        %v3222 = vunpack.c.l.b16 %v3078
        %v3223 = vunpack.c.l.b16 %v3081
        %v3224 = vunpack.c.l.b16 %v3084
        %v3225 = vunpack.c.l.b16 %v3087
        %v3226 = vunpack.c.l.b16 %v3090
        %v3227 = vunpack.c.l.b16 %v3093
        %v3228 = vunpack.c.l.b16 %v3096
        %v3229 = vunpack.c.l.b16 %v3099
        %v3230 = vunpack.c.l.b16 %v3102
        %v3231 = vpack.c.b16 %v3215, %v3215
        %v3232 = vpack.c.b16 %v3216, %v3216
        %v3233 = vpack.c.b16 %v3217, %v3217
        %v3234 = vpack.c.b16 %v3218, %v3218
        %v3235 = vpack.c.b16 %v3219, %v3219
        %v3236 = vpack.c.b16 %v3220, %v3220
        %v3237 = vpack.c.b16 %v3221, %v3221
        %v3238 = vpack.c.b16 %v3222, %v3222
        %v3239 = vpack.c.b16 %v3223, %v3223
        %v3240 = vpack.c.b16 %v3224, %v3224
        %v3241 = vpack.c.b16 %v3225, %v3225
        %v3242 = vpack.c.b16 %v3226, %v3226
        %v3243 = vpack.c.b16 %v3227, %v3227
        %v3244 = vpack.c.b16 %v3228, %v3228
        %v3245 = vpack.c.b16 %v3229, %v3229
        %v3246 = vpack.c.b16 %v3230, %v3230
        %v3248 = vshrl.u32 %v3167, 16
        %v3250 = vshll.u32 %v3167, 16
        %v3252 = vrot.slane %v3250, 1
        %v3253 = vor.u32 %v3248, %v3252
        %v3255 = vshll.u32 %v3231, 16
        %v3257 = vrot.slane %v3255, 1
        %v3258 = vsel %vm1445, %v3253, %v3257
        %v3260 = vshrl.u32 %v3168, 16
        %v3262 = vshll.u32 %v3168, 16
        %v3264 = vrot.slane %v3262, 1
        %v3265 = vor.u32 %v3260, %v3264
        %v3267 = vshll.u32 %v3232, 16
        %v3269 = vrot.slane %v3267, 1
        %v3270 = vsel %vm1445, %v3265, %v3269
        %v3272 = vshrl.u32 %v3169, 16
        %v3274 = vshll.u32 %v3169, 16
        %v3276 = vrot.slane %v3274, 1
        %v3277 = vor.u32 %v3272, %v3276
        %v3279 = vshll.u32 %v3233, 16
        %v3281 = vrot.slane %v3279, 1
        %v3282 = vsel %vm1445, %v3277, %v3281
        %v3284 = vshrl.u32 %v3170, 16
        %v3286 = vshll.u32 %v3170, 16
        %v3288 = vrot.slane %v3286, 1
        %v3289 = vor.u32 %v3284, %v3288
        %v3291 = vshll.u32 %v3234, 16
        %v3293 = vrot.slane %v3291, 1
        %v3294 = vsel %vm1445, %v3289, %v3293
        %v3296 = vshrl.u32 %v3171, 16
        %v3298 = vshll.u32 %v3171, 16
        %v3300 = vrot.slane %v3298, 1
        %v3301 = vor.u32 %v3296, %v3300
        %v3303 = vshll.u32 %v3235, 16
        %v3305 = vrot.slane %v3303, 1
        %v3306 = vsel %vm1445, %v3301, %v3305
        %v3308 = vshrl.u32 %v3172, 16
        %v3310 = vshll.u32 %v3172, 16
        %v3312 = vrot.slane %v3310, 1
        %v3313 = vor.u32 %v3308, %v3312
        %v3315 = vshll.u32 %v3236, 16
        %v3317 = vrot.slane %v3315, 1
        %v3318 = vsel %vm1445, %v3313, %v3317
        %v3320 = vshrl.u32 %v3173, 16
        %v3322 = vshll.u32 %v3173, 16
        %v3324 = vrot.slane %v3322, 1
        %v3325 = vor.u32 %v3320, %v3324
        %v3327 = vshll.u32 %v3237, 16
        %v3329 = vrot.slane %v3327, 1
        %v3330 = vsel %vm1445, %v3325, %v3329
        %v3332 = vshrl.u32 %v3174, 16
        %v3334 = vshll.u32 %v3174, 16
        %v3336 = vrot.slane %v3334, 1
        %v3337 = vor.u32 %v3332, %v3336
        %v3339 = vshll.u32 %v3238, 16
        %v3341 = vrot.slane %v3339, 1
        %v3342 = vsel %vm1445, %v3337, %v3341
        %v3344 = vshrl.u32 %v3175, 16
        %v3346 = vshll.u32 %v3175, 16
        %v3348 = vrot.slane %v3346, 1
        %v3349 = vor.u32 %v3344, %v3348
        %v3351 = vshll.u32 %v3239, 16
        %v3353 = vrot.slane %v3351, 1
        %v3354 = vsel %vm1445, %v3349, %v3353
        %v3356 = vshrl.u32 %v3176, 16
        %v3358 = vshll.u32 %v3176, 16
        %v3360 = vrot.slane %v3358, 1
        %v3361 = vor.u32 %v3356, %v3360
        %v3363 = vshll.u32 %v3240, 16
        %v3365 = vrot.slane %v3363, 1
        %v3366 = vsel %vm1445, %v3361, %v3365
        %v3368 = vshrl.u32 %v3177, 16
        %v3370 = vshll.u32 %v3177, 16
        %v3372 = vrot.slane %v3370, 1
        %v3373 = vor.u32 %v3368, %v3372
        %v3375 = vshll.u32 %v3241, 16
        %v3377 = vrot.slane %v3375, 1
        %v3378 = vsel %vm1445, %v3373, %v3377
        %v3380 = vshrl.u32 %v3178, 16
        %v3382 = vshll.u32 %v3178, 16
        %v3384 = vrot.slane %v3382, 1
        %v3385 = vor.u32 %v3380, %v3384
        %v3387 = vshll.u32 %v3242, 16
        %v3389 = vrot.slane %v3387, 1
        %v3390 = vsel %vm1445, %v3385, %v3389
        %v3392 = vshrl.u32 %v3179, 16
        %v3394 = vshll.u32 %v3179, 16
        %v3396 = vrot.slane %v3394, 1
        %v3397 = vor.u32 %v3392, %v3396
        %v3399 = vshll.u32 %v3243, 16
        %v3401 = vrot.slane %v3399, 1
        %v3402 = vsel %vm1445, %v3397, %v3401
        %v3404 = vshrl.u32 %v3180, 16
        %v3406 = vshll.u32 %v3180, 16
        %v3408 = vrot.slane %v3406, 1
        %v3409 = vor.u32 %v3404, %v3408
        %v3411 = vshll.u32 %v3244, 16
        %v3413 = vrot.slane %v3411, 1
        %v3414 = vsel %vm1445, %v3409, %v3413
        %v3416 = vshrl.u32 %v3181, 16
        %v3418 = vshll.u32 %v3181, 16
        %v3420 = vrot.slane %v3418, 1
        %v3421 = vor.u32 %v3416, %v3420
        %v3423 = vshll.u32 %v3245, 16
        %v3425 = vrot.slane %v3423, 1
        %v3426 = vsel %vm1445, %v3421, %v3425
        %v3428 = vshrl.u32 %v3182, 16
        %v3430 = vshll.u32 %v3182, 16
        %v3432 = vrot.slane %v3430, 1
        %v3433 = vor.u32 %v3428, %v3432
        %v3435 = vshll.u32 %v3246, 16
        %v3437 = vrot.slane %v3435, 1
        %v3438 = vsel %vm1445, %v3433, %v3437
        %v3455 = vrot.slane %v3167, 1
        %v3456 = vrot.slane %v3231, 1
        %v3457 = vsel %vm1654, %v3455, %v3456
        %v3458 = vrot.slane %v3168, 1
        %v3459 = vrot.slane %v3232, 1
        %v3460 = vsel %vm1654, %v3458, %v3459
        %v3461 = vrot.slane %v3169, 1
        %v3462 = vrot.slane %v3233, 1
        %v3463 = vsel %vm1654, %v3461, %v3462
        %v3464 = vrot.slane %v3170, 1
        %v3465 = vrot.slane %v3234, 1
        %v3466 = vsel %vm1654, %v3464, %v3465
        %v3467 = vrot.slane %v3171, 1
        %v3468 = vrot.slane %v3235, 1
        %v3469 = vsel %vm1654, %v3467, %v3468
        %v3470 = vrot.slane %v3172, 1
        %v3471 = vrot.slane %v3236, 1
        %v3472 = vsel %vm1654, %v3470, %v3471
        %v3473 = vrot.slane %v3173, 1
        %v3474 = vrot.slane %v3237, 1
        %v3475 = vsel %vm1654, %v3473, %v3474
        %v3476 = vrot.slane %v3174, 1
        %v3477 = vrot.slane %v3238, 1
        %v3478 = vsel %vm1654, %v3476, %v3477
        %v3479 = vrot.slane %v3175, 1
        %v3480 = vrot.slane %v3239, 1
        %v3481 = vsel %vm1654, %v3479, %v3480
        %v3482 = vrot.slane %v3176, 1
        %v3483 = vrot.slane %v3240, 1
        %v3484 = vsel %vm1654, %v3482, %v3483
        %v3485 = vrot.slane %v3177, 1
        %v3486 = vrot.slane %v3241, 1
        %v3487 = vsel %vm1654, %v3485, %v3486
        %v3488 = vrot.slane %v3178, 1
        %v3489 = vrot.slane %v3242, 1
        %v3490 = vsel %vm1654, %v3488, %v3489
        %v3491 = vrot.slane %v3179, 1
        %v3492 = vrot.slane %v3243, 1
        %v3493 = vsel %vm1654, %v3491, %v3492
        %v3494 = vrot.slane %v3180, 1
        %v3495 = vrot.slane %v3244, 1
        %v3496 = vsel %vm1654, %v3494, %v3495
        %v3497 = vrot.slane %v3181, 1
        %v3498 = vrot.slane %v3245, 1
        %v3499 = vsel %vm1654, %v3497, %v3498
        %v3500 = vrot.slane %v3182, 1
        %v3501 = vrot.slane %v3246, 1
        %v3502 = vsel %vm1654, %v3500, %v3501
        %s3519 = scalar_lea.vmem %s1, 384
        %v3520 = vld [vmem:[%s3519] sm:$0xf]
        %v3521 = vld [vmem:[%s3519 + $0x4] sm:$0xf]
        %v3522 = vld [vmem:[%s3519 + $0x8] sm:$0xf]
        %v3523 = vld [vmem:[%s3519 + $0xc] sm:$0xf]
        %v3524 = vld [vmem:[%s3519 + $0x10] sm:$0xf]
        %v3525 = vld [vmem:[%s3519 + $0x14] sm:$0xf]
        %v3526 = vld [vmem:[%s3519 + $0x18] sm:$0xf]
        %v3527 = vld [vmem:[%s3519 + $0x1c] sm:$0xf]
        %v3528 = vld [vmem:[%s3519 + $0x20] sm:$0xf]
        %v3529 = vld [vmem:[%s3519 + $0x24] sm:$0xf]
        %v3530 = vld [vmem:[%s3519 + $0x28] sm:$0xf]
        %v3531 = vld [vmem:[%s3519 + $0x2c] sm:$0xf]
        %v3532 = vld [vmem:[%s3519 + $0x30] sm:$0xf]
        %v3533 = vld [vmem:[%s3519 + $0x34] sm:$0xf]
        %v3534 = vld [vmem:[%s3519 + $0x38] sm:$0xf]
        %v3535 = vld [vmem:[%s3519 + $0x3c] sm:$0xf]
        %v3536 = vld [vmem:[%s3519 + $0x40] sm:$0xf]
        %v3537 = vld [vmem:[%s3519 + $0x44] sm:$0xf]
        %v3538 = vld [vmem:[%s3519 + $0x48] sm:$0xf]
        %v3539 = vld [vmem:[%s3519 + $0x4c] sm:$0xf]
        %v3540 = vld [vmem:[%s3519 + $0x50] sm:$0xf]
        %v3541 = vld [vmem:[%s3519 + $0x54] sm:$0xf]
        %v3542 = vld [vmem:[%s3519 + $0x58] sm:$0xf]
        %v3543 = vld [vmem:[%s3519 + $0x5c] sm:$0xf]
        %v3544 = vld [vmem:[%s3519 + $0x60] sm:$0xf]
        %v3545 = vld [vmem:[%s3519 + $0x64] sm:$0xf]
        %v3546 = vld [vmem:[%s3519 + $0x68] sm:$0xf]
        %v3547 = vld [vmem:[%s3519 + $0x6c] sm:$0xf]
        %v3548 = vld [vmem:[%s3519 + $0x70] sm:$0xf]
        %v3549 = vld [vmem:[%s3519 + $0x74] sm:$0xf]
        %v3550 = vld [vmem:[%s3519 + $0x78] sm:$0xf]
        %v3551 = vld [vmem:[%s3519 + $0x7c] sm:$0xf]
        %v3552 = vld [vmem:[%s3519 + $0x80] sm:$0xf]
        %v3553 = vld [vmem:[%s3519 + $0x84] sm:$0xf]
        %v3554 = vld [vmem:[%s3519 + $0x88] sm:$0xf]
        %v3555 = vld [vmem:[%s3519 + $0x8c] sm:$0xf]
        %v3556 = vld [vmem:[%s3519 + $0x90] sm:$0xf]
        %v3557 = vld [vmem:[%s3519 + $0x94] sm:$0xf]
        %v3558 = vld [vmem:[%s3519 + $0x98] sm:$0xf]
        %v3559 = vld [vmem:[%s3519 + $0x9c] sm:$0xf]
        %v3560 = vld [vmem:[%s3519 + $0xa0] sm:$0xf]
        %v3561 = vld [vmem:[%s3519 + $0xa4] sm:$0xf]
        %v3562 = vld [vmem:[%s3519 + $0xa8] sm:$0xf]
        %v3563 = vld [vmem:[%s3519 + $0xac] sm:$0xf]
        %v3564 = vld [vmem:[%s3519 + $0xb0] sm:$0xf]
        %v3565 = vld [vmem:[%s3519 + $0xb4] sm:$0xf]
        %v3566 = vld [vmem:[%s3519 + $0xb8] sm:$0xf]
        %v3567 = vld [vmem:[%s3519 + $0xbc] sm:$0xf]
        %v3616 = vunpack.c.l.b16 %v3520
        %v3617 = vunpack.c.l.b16 %v3521
        %v3618 = vunpack.c.l.b16 %v3522
        %v3619 = vunpack.c.l.b16 %v3523
        %v3620 = vunpack.c.l.b16 %v3524
        %v3621 = vunpack.c.l.b16 %v3525
        %v3622 = vunpack.c.l.b16 %v3526
        %v3623 = vunpack.c.l.b16 %v3527
        %v3624 = vunpack.c.l.b16 %v3528
        %v3625 = vunpack.c.l.b16 %v3529
        %v3626 = vunpack.c.l.b16 %v3530
        %v3627 = vunpack.c.l.b16 %v3531
        %v3628 = vunpack.c.l.b16 %v3532
        %v3629 = vunpack.c.l.b16 %v3533
        %v3630 = vunpack.c.l.b16 %v3534
        %v3631 = vunpack.c.l.b16 %v3535
        %v3632 = vunpack.c.l.b16 %v3536
        %v3633 = vunpack.c.l.b16 %v3537
        %v3634 = vunpack.c.l.b16 %v3538
        %v3635 = vunpack.c.l.b16 %v3539
        %v3636 = vunpack.c.l.b16 %v3540
        %v3637 = vunpack.c.l.b16 %v3541
        %v3638 = vunpack.c.l.b16 %v3542
        %v3639 = vunpack.c.l.b16 %v3543
        %v3640 = vunpack.c.l.b16 %v3544
        %v3641 = vunpack.c.l.b16 %v3545
        %v3642 = vunpack.c.l.b16 %v3546
        %v3643 = vunpack.c.l.b16 %v3547
        %v3644 = vunpack.c.l.b16 %v3548
        %v3645 = vunpack.c.l.b16 %v3549
        %v3646 = vunpack.c.l.b16 %v3550
        %v3647 = vunpack.c.l.b16 %v3551
        %v3648 = vunpack.c.l.b16 %v3552
        %v3649 = vunpack.c.l.b16 %v3553
        %v3650 = vunpack.c.l.b16 %v3554
        %v3651 = vunpack.c.l.b16 %v3555
        %v3652 = vunpack.c.l.b16 %v3556
        %v3653 = vunpack.c.l.b16 %v3557
        %v3654 = vunpack.c.l.b16 %v3558
        %v3655 = vunpack.c.l.b16 %v3559
        %v3656 = vunpack.c.l.b16 %v3560
        %v3657 = vunpack.c.l.b16 %v3561
        %v3658 = vunpack.c.l.b16 %v3562
        %v3659 = vunpack.c.l.b16 %v3563
        %v3660 = vunpack.c.l.b16 %v3564
        %v3661 = vunpack.c.l.b16 %v3565
        %v3662 = vunpack.c.l.b16 %v3566
        %v3663 = vunpack.c.l.b16 %v3567
        %v3664 = vpack.c.b16 %v3617, %v3616
        %v3665 = vpack.c.b16 %v3619, %v3618
        %v3666 = vpack.c.b16 %v3621, %v3620
        %v3667 = vpack.c.b16 %v3623, %v3622
        %v3668 = vpack.c.b16 %v3625, %v3624
        %v3669 = vpack.c.b16 %v3627, %v3626
        %v3670 = vpack.c.b16 %v3629, %v3628
        %v3671 = vpack.c.b16 %v3631, %v3630
        %v3672 = vpack.c.b16 %v3633, %v3632
        %v3673 = vpack.c.b16 %v3635, %v3634
        %v3674 = vpack.c.b16 %v3637, %v3636
        %v3675 = vpack.c.b16 %v3639, %v3638
        %v3676 = vpack.c.b16 %v3641, %v3640
        %v3677 = vpack.c.b16 %v3643, %v3642
        %v3678 = vpack.c.b16 %v3645, %v3644
        %v3679 = vpack.c.b16 %v3647, %v3646
        %v3680 = vpack.c.b16 %v3649, %v3648
        %v3681 = vpack.c.b16 %v3651, %v3650
        %v3682 = vpack.c.b16 %v3653, %v3652
        %v3683 = vpack.c.b16 %v3655, %v3654
        %v3684 = vpack.c.b16 %v3657, %v3656
        %v3685 = vpack.c.b16 %v3659, %v3658
        %v3686 = vpack.c.b16 %v3661, %v3660
        %v3687 = vpack.c.b16 %v3663, %v3662
        %3712 = vmatpush.bf16.msra.mxu0 %v3671
        %3713 = vmatpush.bf16.msra.mxu0 %v3670
        %3714 = vmatpush.bf16.msra.mxu0 %v3669
        %3715 = vmatpush.bf16.msra.mxu0 %v3668
        %3716 = vmatpush.bf16.msra.mxu0 %v3667
        %3717 = vmatpush.bf16.msra.mxu0 %v3666
        %3718 = vmatpush.bf16.msra.mxu0 %v3665
        %3719 = vmatpush.bf16.msra.mxu0 %v3664
        %3720 = vmatmul.bf16.gmra.mxu0 %v3167
        %v3721 = vpop.f32.mrf.mxu0
        %v3722 = vadd.f32 0.0, %v3721
        %v3723 = vpop.f32.mrf.mxu0
        %v3724 = vadd.f32 0.0, %v3723
        %3725 = vmatmul.bf16.gmra.mxu0 %v3168
        %v3726 = vpop.f32.mrf.mxu0
        %v3727 = vadd.f32 0.0, %v3726
        %v3728 = vpop.f32.mrf.mxu0
        %v3729 = vadd.f32 0.0, %v3728
        %3730 = vmatmul.bf16.gmra.mxu0 %v3169
        %v3731 = vpop.f32.mrf.mxu0
        %v3732 = vadd.f32 0.0, %v3731
        %v3733 = vpop.f32.mrf.mxu0
        %v3734 = vadd.f32 0.0, %v3733
        %3735 = vmatmul.bf16.gmra.mxu0 %v3170
        %v3736 = vpop.f32.mrf.mxu0
        %v3737 = vadd.f32 0.0, %v3736
        %v3738 = vpop.f32.mrf.mxu0
        %v3739 = vadd.f32 0.0, %v3738
        %3740 = vmatmul.bf16.gmra.mxu0 %v3171
        %v3741 = vpop.f32.mrf.mxu0
        %v3742 = vadd.f32 0.0, %v3741
        %v3743 = vpop.f32.mrf.mxu0
        %v3744 = vadd.f32 0.0, %v3743
        %3745 = vmatmul.bf16.gmra.mxu0 %v3172
        %v3746 = vpop.f32.mrf.mxu0
        %v3747 = vadd.f32 0.0, %v3746
        %v3748 = vpop.f32.mrf.mxu0
        %v3749 = vadd.f32 0.0, %v3748
        %3750 = vmatmul.bf16.gmra.mxu0 %v3173
        %v3751 = vpop.f32.mrf.mxu0
        %v3752 = vadd.f32 0.0, %v3751
        %v3753 = vpop.f32.mrf.mxu0
        %v3754 = vadd.f32 0.0, %v3753
        %3755 = vmatmul.bf16.gmra.mxu0 %v3174
        %v3756 = vpop.f32.mrf.mxu0
        %v3757 = vadd.f32 0.0, %v3756
        %v3758 = vpop.f32.mrf.mxu0
        %v3759 = vadd.f32 0.0, %v3758
        %3760 = vmatmul.bf16.gmra.mxu0 %v3175
        %v3761 = vpop.f32.mrf.mxu0
        %v3762 = vadd.f32 0.0, %v3761
        %v3763 = vpop.f32.mrf.mxu0
        %v3764 = vadd.f32 0.0, %v3763
        %3765 = vmatmul.bf16.gmra.mxu0 %v3176
        %v3766 = vpop.f32.mrf.mxu0
        %v3767 = vadd.f32 0.0, %v3766
        %v3768 = vpop.f32.mrf.mxu0
        %v3769 = vadd.f32 0.0, %v3768
        %3770 = vmatmul.bf16.gmra.mxu0 %v3177
        %v3771 = vpop.f32.mrf.mxu0
        %v3772 = vadd.f32 0.0, %v3771
        %v3773 = vpop.f32.mrf.mxu0
        %v3774 = vadd.f32 0.0, %v3773
        %3775 = vmatmul.bf16.gmra.mxu0 %v3178
        %v3776 = vpop.f32.mrf.mxu0
        %v3777 = vadd.f32 0.0, %v3776
        %v3778 = vpop.f32.mrf.mxu0
        %v3779 = vadd.f32 0.0, %v3778
        %3780 = vmatmul.bf16.gmra.mxu0 %v3179
        %v3781 = vpop.f32.mrf.mxu0
        %v3782 = vadd.f32 0.0, %v3781
        %v3783 = vpop.f32.mrf.mxu0
        %v3784 = vadd.f32 0.0, %v3783
        %3785 = vmatmul.bf16.gmra.mxu0 %v3180
        %v3786 = vpop.f32.mrf.mxu0
        %v3787 = vadd.f32 0.0, %v3786
        %v3788 = vpop.f32.mrf.mxu0
        %v3789 = vadd.f32 0.0, %v3788
        %3790 = vmatmul.bf16.gmra.mxu0 %v3181
        %v3791 = vpop.f32.mrf.mxu0
        %v3792 = vadd.f32 0.0, %v3791
        %v3793 = vpop.f32.mrf.mxu0
        %v3794 = vadd.f32 0.0, %v3793
        %3795 = vmatmul.bf16.gmra.mxu0 %v3182
        %v3796 = vpop.f32.mrf.mxu0
        %v3797 = vadd.f32 0.0, %v3796
        %v3798 = vpop.f32.mrf.mxu0
        %v3799 = vadd.f32 0.0, %v3798
        %3800 = vdwg.mxu0
        %3801 = vmatpush.bf16.msra.mxu0 %v3679
        %3802 = vmatpush.bf16.msra.mxu0 %v3678
        %3803 = vmatpush.bf16.msra.mxu0 %v3677
        %3804 = vmatpush.bf16.msra.mxu0 %v3676
        %3805 = vmatpush.bf16.msra.mxu0 %v3675
        %3806 = vmatpush.bf16.msra.mxu0 %v3674
        %3807 = vmatpush.bf16.msra.mxu0 %v3673
        %3808 = vmatpush.bf16.msra.mxu0 %v3672
        %3809 = vmatmul.bf16.gmra.mxu0 %v3258
        %v3810 = vpop.f32.mrf.mxu0
        %v3811 = vadd.f32 %v3722, %v3810
        %v3812 = vpop.f32.mrf.mxu0
        %v3813 = vadd.f32 %v3724, %v3812
        %3814 = vmatmul.bf16.gmra.mxu0 %v3270
        %v3815 = vpop.f32.mrf.mxu0
        %v3816 = vadd.f32 %v3727, %v3815
        %v3817 = vpop.f32.mrf.mxu0
        %v3818 = vadd.f32 %v3729, %v3817
        %3819 = vmatmul.bf16.gmra.mxu0 %v3282
        %v3820 = vpop.f32.mrf.mxu0
        %v3821 = vadd.f32 %v3732, %v3820
        %v3822 = vpop.f32.mrf.mxu0
        %v3823 = vadd.f32 %v3734, %v3822
        %3824 = vmatmul.bf16.gmra.mxu0 %v3294
        %v3825 = vpop.f32.mrf.mxu0
        %v3826 = vadd.f32 %v3737, %v3825
        %v3827 = vpop.f32.mrf.mxu0
        %v3828 = vadd.f32 %v3739, %v3827
        %3829 = vmatmul.bf16.gmra.mxu0 %v3306
        %v3830 = vpop.f32.mrf.mxu0
        %v3831 = vadd.f32 %v3742, %v3830
        %v3832 = vpop.f32.mrf.mxu0
        %v3833 = vadd.f32 %v3744, %v3832
        %3834 = vmatmul.bf16.gmra.mxu0 %v3318
        %v3835 = vpop.f32.mrf.mxu0
        %v3836 = vadd.f32 %v3747, %v3835
        %v3837 = vpop.f32.mrf.mxu0
        %v3838 = vadd.f32 %v3749, %v3837
        %3839 = vmatmul.bf16.gmra.mxu0 %v3330
        %v3840 = vpop.f32.mrf.mxu0
        %v3841 = vadd.f32 %v3752, %v3840
        %v3842 = vpop.f32.mrf.mxu0
        %v3843 = vadd.f32 %v3754, %v3842
        %3844 = vmatmul.bf16.gmra.mxu0 %v3342
        %v3845 = vpop.f32.mrf.mxu0
        %v3846 = vadd.f32 %v3757, %v3845
        %v3847 = vpop.f32.mrf.mxu0
        %v3848 = vadd.f32 %v3759, %v3847
        %3849 = vmatmul.bf16.gmra.mxu0 %v3354
        %v3850 = vpop.f32.mrf.mxu0
        %v3851 = vadd.f32 %v3762, %v3850
        %v3852 = vpop.f32.mrf.mxu0
        %v3853 = vadd.f32 %v3764, %v3852
        %3854 = vmatmul.bf16.gmra.mxu0 %v3366
        %v3855 = vpop.f32.mrf.mxu0
        %v3856 = vadd.f32 %v3767, %v3855
        %v3857 = vpop.f32.mrf.mxu0
        %v3858 = vadd.f32 %v3769, %v3857
        %3859 = vmatmul.bf16.gmra.mxu0 %v3378
        %v3860 = vpop.f32.mrf.mxu0
        %v3861 = vadd.f32 %v3772, %v3860
        %v3862 = vpop.f32.mrf.mxu0
        %v3863 = vadd.f32 %v3774, %v3862
        %3864 = vmatmul.bf16.gmra.mxu0 %v3390
        %v3865 = vpop.f32.mrf.mxu0
        %v3866 = vadd.f32 %v3777, %v3865
        %v3867 = vpop.f32.mrf.mxu0
        %v3868 = vadd.f32 %v3779, %v3867
        %3869 = vmatmul.bf16.gmra.mxu0 %v3402
        %v3870 = vpop.f32.mrf.mxu0
        %v3871 = vadd.f32 %v3782, %v3870
        %v3872 = vpop.f32.mrf.mxu0
        %v3873 = vadd.f32 %v3784, %v3872
        %3874 = vmatmul.bf16.gmra.mxu0 %v3414
        %v3875 = vpop.f32.mrf.mxu0
        %v3876 = vadd.f32 %v3787, %v3875
        %v3877 = vpop.f32.mrf.mxu0
        %v3878 = vadd.f32 %v3789, %v3877
        %3879 = vmatmul.bf16.gmra.mxu0 %v3426
        %v3880 = vpop.f32.mrf.mxu0
        %v3881 = vadd.f32 %v3792, %v3880
        %v3882 = vpop.f32.mrf.mxu0
        %v3883 = vadd.f32 %v3794, %v3882
        %3884 = vmatmul.bf16.gmra.mxu0 %v3438
        %v3885 = vpop.f32.mrf.mxu0
        %v3886 = vadd.f32 %v3797, %v3885
        %v3887 = vpop.f32.mrf.mxu0
        %v3888 = vadd.f32 %v3799, %v3887
        %3889 = vdwg.mxu0
        %3890 = vmatpush.bf16.msra.mxu0 %v3687
        %3891 = vmatpush.bf16.msra.mxu0 %v3686
        %3892 = vmatpush.bf16.msra.mxu0 %v3685
        %3893 = vmatpush.bf16.msra.mxu0 %v3684
        %3894 = vmatpush.bf16.msra.mxu0 %v3683
        %3895 = vmatpush.bf16.msra.mxu0 %v3682
        %3896 = vmatpush.bf16.msra.mxu0 %v3681
        %3897 = vmatpush.bf16.msra.mxu0 %v3680
        %3898 = vmatmul.bf16.gmra.mxu0 %v3457
        %v3899 = vpop.f32.mrf.mxu0
        %v3900 = vadd.f32 %v3811, %v3899
        %v3901 = vpop.f32.mrf.mxu0
        %v3902 = vadd.f32 %v3813, %v3901
        %3903 = vmatmul.bf16.gmra.mxu0 %v3460
        %v3904 = vpop.f32.mrf.mxu0
        %v3905 = vadd.f32 %v3816, %v3904
        %v3906 = vpop.f32.mrf.mxu0
        %v3907 = vadd.f32 %v3818, %v3906
        %3908 = vmatmul.bf16.gmra.mxu0 %v3463
        %v3909 = vpop.f32.mrf.mxu0
        %v3910 = vadd.f32 %v3821, %v3909
        %v3911 = vpop.f32.mrf.mxu0
        %v3912 = vadd.f32 %v3823, %v3911
        %3913 = vmatmul.bf16.gmra.mxu0 %v3466
        %v3914 = vpop.f32.mrf.mxu0
        %v3915 = vadd.f32 %v3826, %v3914
        %v3916 = vpop.f32.mrf.mxu0
        %v3917 = vadd.f32 %v3828, %v3916
        %3918 = vmatmul.bf16.gmra.mxu0 %v3469
        %v3919 = vpop.f32.mrf.mxu0
        %v3920 = vadd.f32 %v3831, %v3919
        %v3921 = vpop.f32.mrf.mxu0
        %v3922 = vadd.f32 %v3833, %v3921
        %3923 = vmatmul.bf16.gmra.mxu0 %v3472
        %v3924 = vpop.f32.mrf.mxu0
        %v3925 = vadd.f32 %v3836, %v3924
        %v3926 = vpop.f32.mrf.mxu0
        %v3927 = vadd.f32 %v3838, %v3926
        %3928 = vmatmul.bf16.gmra.mxu0 %v3475
        %v3929 = vpop.f32.mrf.mxu0
        %v3930 = vadd.f32 %v3841, %v3929
        %v3931 = vpop.f32.mrf.mxu0
        %v3932 = vadd.f32 %v3843, %v3931
        %3933 = vmatmul.bf16.gmra.mxu0 %v3478
        %v3934 = vpop.f32.mrf.mxu0
        %v3935 = vadd.f32 %v3846, %v3934
        %v3936 = vpop.f32.mrf.mxu0
        %v3937 = vadd.f32 %v3848, %v3936
        %3938 = vmatmul.bf16.gmra.mxu0 %v3481
        %v3939 = vpop.f32.mrf.mxu0
        %v3940 = vadd.f32 %v3851, %v3939
        %v3941 = vpop.f32.mrf.mxu0
        %v3942 = vadd.f32 %v3853, %v3941
        %3943 = vmatmul.bf16.gmra.mxu0 %v3484
        %v3944 = vpop.f32.mrf.mxu0
        %v3945 = vadd.f32 %v3856, %v3944
        %v3946 = vpop.f32.mrf.mxu0
        %v3947 = vadd.f32 %v3858, %v3946
        %3948 = vmatmul.bf16.gmra.mxu0 %v3487
        %v3949 = vpop.f32.mrf.mxu0
        %v3950 = vadd.f32 %v3861, %v3949
        %v3951 = vpop.f32.mrf.mxu0
        %v3952 = vadd.f32 %v3863, %v3951
        %3953 = vmatmul.bf16.gmra.mxu0 %v3490
        %v3954 = vpop.f32.mrf.mxu0
        %v3955 = vadd.f32 %v3866, %v3954
        %v3956 = vpop.f32.mrf.mxu0
        %v3957 = vadd.f32 %v3868, %v3956
        %3958 = vmatmul.bf16.gmra.mxu0 %v3493
        %v3959 = vpop.f32.mrf.mxu0
        %v3960 = vadd.f32 %v3871, %v3959
        %v3961 = vpop.f32.mrf.mxu0
        %v3962 = vadd.f32 %v3873, %v3961
        %3963 = vmatmul.bf16.gmra.mxu0 %v3496
        %v3964 = vpop.f32.mrf.mxu0
        %v3965 = vadd.f32 %v3876, %v3964
        %v3966 = vpop.f32.mrf.mxu0
        %v3967 = vadd.f32 %v3878, %v3966
        %3968 = vmatmul.bf16.gmra.mxu0 %v3499
        %v3969 = vpop.f32.mrf.mxu0
        %v3970 = vadd.f32 %v3881, %v3969
        %v3971 = vpop.f32.mrf.mxu0
        %v3972 = vadd.f32 %v3883, %v3971
        %3973 = vmatmul.bf16.gmra.mxu0 %v3502
        %v3974 = vpop.f32.mrf.mxu0
        %v3975 = vadd.f32 %v3886, %v3974
        %v3976 = vpop.f32.mrf.mxu0
        %v3977 = vadd.f32 %v3888, %v3976
        %3978 = vdwg.mxu0
        %v3979 = vadd.f32 %v2975, %v3900
        %v3980 = vadd.f32 %v2977, %v3902
        %v3981 = vadd.f32 %v2980, %v3905
        %v3982 = vadd.f32 %v2982, %v3907
        %v3983 = vadd.f32 %v2985, %v3910
        %v3984 = vadd.f32 %v2987, %v3912
        %v3985 = vadd.f32 %v2990, %v3915
        %v3986 = vadd.f32 %v2992, %v3917
        %v3987 = vadd.f32 %v2995, %v3920
        %v3988 = vadd.f32 %v2997, %v3922
        %v3989 = vadd.f32 %v3000, %v3925
        %v3990 = vadd.f32 %v3002, %v3927
        %v3991 = vadd.f32 %v3005, %v3930
        %v3992 = vadd.f32 %v3007, %v3932
        %v3993 = vadd.f32 %v3010, %v3935
        %v3994 = vadd.f32 %v3012, %v3937
        %v3995 = vadd.f32 %v3015, %v3940
        %v3996 = vadd.f32 %v3017, %v3942
        %v3997 = vadd.f32 %v3020, %v3945
        %v3998 = vadd.f32 %v3022, %v3947
        %v3999 = vadd.f32 %v3025, %v3950
        %v4000 = vadd.f32 %v3027, %v3952
        %v4001 = vadd.f32 %v3030, %v3955
        %v4002 = vadd.f32 %v3032, %v3957
        %v4003 = vadd.f32 %v3035, %v3960
        %v4004 = vadd.f32 %v3037, %v3962
        %v4005 = vadd.f32 %v3040, %v3965
        %v4006 = vadd.f32 %v3042, %v3967
        %v4007 = vadd.f32 %v3045, %v3970
        %v4008 = vadd.f32 %v3047, %v3972
        %v4009 = vadd.f32 %v3050, %v3975
        %v4010 = vadd.f32 %v3052, %v3977
        %v4011 = vld [vmem:[%s2] sm:$0x1]
        %v4012 = vld [vmem:[%s3] sm:$0x1]
        %v4013 = vadd.f32 %v3979, %v3980
        %v4014 = vadd.f32 %v4013, %v3981
        %v4015 = vadd.f32 %v4014, %v3982
        %v4016 = vadd.f32 %v4015, %v3983
        %v4017 = vadd.f32 %v4016, %v3984
        %v4018 = vadd.f32 %v4017, %v3985
        %v4019 = vadd.f32 %v4018, %v3986
        %v4020 = vadd.f32 %v4019, %v3987
        %v4021 = vadd.f32 %v4020, %v3988
        %v4022 = vadd.f32 %v4021, %v3989
        %v4023 = vadd.f32 %v4022, %v3990
        %v4024 = vadd.f32 %v4023, %v3991
        %v4025 = vadd.f32 %v4024, %v3992
        %v4026 = vadd.f32 %v4025, %v3993
        %v4027 = vadd.f32 %v4026, %v3994
        %v4028 = vadd.f32 %v4027, %v3995
        %v4029 = vadd.f32 %v4028, %v3996
        %v4030 = vadd.f32 %v4029, %v3997
        %v4031 = vadd.f32 %v4030, %v3998
        %v4032 = vadd.f32 %v4031, %v3999
        %v4033 = vadd.f32 %v4032, %v4000
        %v4034 = vadd.f32 %v4033, %v4001
        %v4035 = vadd.f32 %v4034, %v4002
        %v4036 = vadd.f32 %v4035, %v4003
        %v4037 = vadd.f32 %v4036, %v4004
        %v4038 = vadd.f32 %v4037, %v4005
        %v4039 = vadd.f32 %v4038, %v4006
        %v4040 = vadd.f32 %v4039, %v4007
        %v4041 = vadd.f32 %v4040, %v4008
        %v4042 = vadd.f32 %v4041, %v4009
        %v4043 = vadd.f32 %v4042, %v4010
        %v4044 = vrot.slane %v4043, 4
        %v4045 = vadd.f32 %v4043, %v4044
        %v4046 = vrot.slane %v4045, 2
        %v4047 = vadd.f32 %v4045, %v4046
        %v4048 = vrot.slane %v4047, 1
        %v4049 = vadd.f32 %v4047, %v4048
        %v4050 = vmul.f32 %v4049, 0.00390625
        %v4051 = vsub.f32 %v3979, %v4050
        %v4052 = vsub.f32 %v3980, %v4050
        %v4053 = vsub.f32 %v3981, %v4050
        %v4054 = vsub.f32 %v3982, %v4050
        %v4055 = vsub.f32 %v3983, %v4050
        %v4056 = vsub.f32 %v3984, %v4050
        %v4057 = vsub.f32 %v3985, %v4050
        %v4058 = vsub.f32 %v3986, %v4050
        %v4059 = vsub.f32 %v3987, %v4050
        %v4060 = vsub.f32 %v3988, %v4050
        %v4061 = vsub.f32 %v3989, %v4050
        %v4062 = vsub.f32 %v3990, %v4050
        %v4063 = vsub.f32 %v3991, %v4050
        %v4064 = vsub.f32 %v3992, %v4050
        %v4065 = vsub.f32 %v3993, %v4050
        %v4066 = vsub.f32 %v3994, %v4050
        %v4067 = vsub.f32 %v3995, %v4050
        %v4068 = vsub.f32 %v3996, %v4050
        %v4069 = vsub.f32 %v3997, %v4050
        %v4070 = vsub.f32 %v3998, %v4050
        %v4071 = vsub.f32 %v3999, %v4050
        %v4072 = vsub.f32 %v4000, %v4050
        %v4073 = vsub.f32 %v4001, %v4050
        %v4074 = vsub.f32 %v4002, %v4050
        %v4075 = vsub.f32 %v4003, %v4050
        %v4076 = vsub.f32 %v4004, %v4050
        %v4077 = vsub.f32 %v4005, %v4050
        %v4078 = vsub.f32 %v4006, %v4050
        %v4079 = vsub.f32 %v4007, %v4050
        %v4080 = vsub.f32 %v4008, %v4050
        %v4081 = vsub.f32 %v4009, %v4050
        %v4082 = vsub.f32 %v4010, %v4050
        %v4083 = vmul.f32 %v4051, %v4051
        %v4084 = vmul.f32 %v4052, %v4052
        %v4085 = vmul.f32 %v4053, %v4053
        %v4086 = vmul.f32 %v4054, %v4054
        %v4087 = vmul.f32 %v4055, %v4055
        %v4088 = vmul.f32 %v4056, %v4056
        %v4089 = vmul.f32 %v4057, %v4057
        %v4090 = vmul.f32 %v4058, %v4058
        %v4091 = vmul.f32 %v4059, %v4059
        %v4092 = vmul.f32 %v4060, %v4060
        %v4093 = vmul.f32 %v4061, %v4061
        %v4094 = vmul.f32 %v4062, %v4062
        %v4095 = vmul.f32 %v4063, %v4063
        %v4096 = vmul.f32 %v4064, %v4064
        %v4097 = vmul.f32 %v4065, %v4065
        %v4098 = vmul.f32 %v4066, %v4066
        %v4099 = vmul.f32 %v4067, %v4067
        %v4100 = vmul.f32 %v4068, %v4068
        %v4101 = vmul.f32 %v4069, %v4069
        %v4102 = vmul.f32 %v4070, %v4070
        %v4103 = vmul.f32 %v4071, %v4071
        %v4104 = vmul.f32 %v4072, %v4072
        %v4105 = vmul.f32 %v4073, %v4073
        %v4106 = vmul.f32 %v4074, %v4074
        %v4107 = vmul.f32 %v4075, %v4075
        %v4108 = vmul.f32 %v4076, %v4076
        %v4109 = vmul.f32 %v4077, %v4077
        %v4110 = vmul.f32 %v4078, %v4078
        %v4111 = vmul.f32 %v4079, %v4079
        %v4112 = vmul.f32 %v4080, %v4080
        %v4113 = vmul.f32 %v4081, %v4081
        %v4114 = vmul.f32 %v4082, %v4082
        %v4115 = vadd.f32 %v4083, %v4084
        %v4116 = vadd.f32 %v4115, %v4085
        %v4117 = vadd.f32 %v4116, %v4086
        %v4118 = vadd.f32 %v4117, %v4087
        %v4119 = vadd.f32 %v4118, %v4088
        %v4120 = vadd.f32 %v4119, %v4089
        %v4121 = vadd.f32 %v4120, %v4090
        %v4122 = vadd.f32 %v4121, %v4091
        %v4123 = vadd.f32 %v4122, %v4092
        %v4124 = vadd.f32 %v4123, %v4093
        %v4125 = vadd.f32 %v4124, %v4094
        %v4126 = vadd.f32 %v4125, %v4095
        %v4127 = vadd.f32 %v4126, %v4096
        %v4128 = vadd.f32 %v4127, %v4097
        %v4129 = vadd.f32 %v4128, %v4098
        %v4130 = vadd.f32 %v4129, %v4099
        %v4131 = vadd.f32 %v4130, %v4100
        %v4132 = vadd.f32 %v4131, %v4101
        %v4133 = vadd.f32 %v4132, %v4102
        %v4134 = vadd.f32 %v4133, %v4103
        %v4135 = vadd.f32 %v4134, %v4104
        %v4136 = vadd.f32 %v4135, %v4105
        %v4137 = vadd.f32 %v4136, %v4106
        %v4138 = vadd.f32 %v4137, %v4107
        %v4139 = vadd.f32 %v4138, %v4108
        %v4140 = vadd.f32 %v4139, %v4109
        %v4141 = vadd.f32 %v4140, %v4110
        %v4142 = vadd.f32 %v4141, %v4111
        %v4143 = vadd.f32 %v4142, %v4112
        %v4144 = vadd.f32 %v4143, %v4113
        %v4145 = vadd.f32 %v4144, %v4114
        %v4146 = vrot.slane %v4145, 4
        %v4147 = vadd.f32 %v4145, %v4146
        %v4148 = vrot.slane %v4147, 2
        %v4149 = vadd.f32 %v4147, %v4148
        %v4150 = vrot.slane %v4149, 1
        %v4151 = vadd.f32 %v4149, %v4150
        %v4152 = vmul.f32 %v4151, 0.00390625
        %v4153 = vadd.f32 %v4152, 1e-05
        %v4154 = vrsqrt.pop %v4153
        %v4155 = vmul.f32 %v4154, %v4153
        %v4156 = vmul.f32 %v4155, %v4154
        %v4157 = vmul.f32 0.5, %v4156
        %v4158 = vsub.f32 1.5, %v4157
        %v4159 = vmul.f32 %v4154, %v4158
        %vm4160 = vweird.f32 %v4153
        %vm4161 = vweird.f32 %v4154
        %vm4162 = vmor %vm4160, %vm4161
        %v4163 = vsel %vm4162, %v4154, %v4159
        %v4164 = vmul.f32 %v4163, %v4011
        %v4165 = vperm.slane %v4164, 0
        %v4166 = vmul.f32 %v4051, %v4165
        %v4167 = vmul.f32 %v4052, %v4165
        %v4168 = vmul.f32 %v4053, %v4165
        %v4169 = vmul.f32 %v4054, %v4165
        %v4170 = vmul.f32 %v4055, %v4165
        %v4171 = vmul.f32 %v4056, %v4165
        %v4172 = vmul.f32 %v4057, %v4165
        %v4173 = vmul.f32 %v4058, %v4165
        %v4174 = vmul.f32 %v4059, %v4165
        %v4175 = vmul.f32 %v4060, %v4165
        %v4176 = vmul.f32 %v4061, %v4165
        %v4177 = vmul.f32 %v4062, %v4165
        %v4178 = vmul.f32 %v4063, %v4165
        %v4179 = vmul.f32 %v4064, %v4165
        %v4180 = vmul.f32 %v4065, %v4165
        %v4181 = vmul.f32 %v4066, %v4165
        %v4182 = vmul.f32 %v4067, %v4165
        %v4183 = vmul.f32 %v4068, %v4165
        %v4184 = vmul.f32 %v4069, %v4165
        %v4185 = vmul.f32 %v4070, %v4165
        %v4186 = vmul.f32 %v4071, %v4165
        %v4187 = vmul.f32 %v4072, %v4165
        %v4188 = vmul.f32 %v4073, %v4165
        %v4189 = vmul.f32 %v4074, %v4165
        %v4190 = vmul.f32 %v4075, %v4165
        %v4191 = vmul.f32 %v4076, %v4165
        %v4192 = vmul.f32 %v4077, %v4165
        %v4193 = vmul.f32 %v4078, %v4165
        %v4194 = vmul.f32 %v4079, %v4165
        %v4195 = vmul.f32 %v4080, %v4165
        %v4196 = vmul.f32 %v4081, %v4165
        %v4197 = vmul.f32 %v4082, %v4165
        %v4199 = vperm.slane %v4012, 0
        %v4201 = vadd.f32 %v4166, %v4199
        %v4202 = vadd.f32 %v4167, %v4199
        %v4203 = vadd.f32 %v4168, %v4199
        %v4204 = vadd.f32 %v4169, %v4199
        %v4205 = vadd.f32 %v4170, %v4199
        %v4206 = vadd.f32 %v4171, %v4199
        %v4207 = vadd.f32 %v4172, %v4199
        %v4208 = vadd.f32 %v4173, %v4199
        %v4209 = vadd.f32 %v4174, %v4199
        %v4210 = vadd.f32 %v4175, %v4199
        %v4211 = vadd.f32 %v4176, %v4199
        %v4212 = vadd.f32 %v4177, %v4199
        %v4213 = vadd.f32 %v4178, %v4199
        %v4214 = vadd.f32 %v4179, %v4199
        %v4215 = vadd.f32 %v4180, %v4199
        %v4216 = vadd.f32 %v4181, %v4199
        %v4217 = vadd.f32 %v4182, %v4199
        %v4218 = vadd.f32 %v4183, %v4199
        %v4219 = vadd.f32 %v4184, %v4199
        %v4220 = vadd.f32 %v4185, %v4199
        %v4221 = vadd.f32 %v4186, %v4199
        %v4222 = vadd.f32 %v4187, %v4199
        %v4223 = vadd.f32 %v4188, %v4199
        %v4224 = vadd.f32 %v4189, %v4199
        %v4225 = vadd.f32 %v4190, %v4199
        %v4226 = vadd.f32 %v4191, %v4199
        %v4227 = vadd.f32 %v4192, %v4199
        %v4228 = vadd.f32 %v4193, %v4199
        %v4229 = vadd.f32 %v4194, %v4199
        %v4230 = vadd.f32 %v4195, %v4199
        %v4231 = vadd.f32 %v4196, %v4199
        %v4232 = vadd.f32 %v4197, %v4199
        %v4233 = vmax.f32 %v4201, 0.0
        %v4234 = vmax.f32 %v4202, 0.0
        %v4235 = vmax.f32 %v4203, 0.0
        %v4236 = vmax.f32 %v4204, 0.0
        %v4237 = vmax.f32 %v4205, 0.0
        %v4238 = vmax.f32 %v4206, 0.0
        %v4239 = vmax.f32 %v4207, 0.0
        %v4240 = vmax.f32 %v4208, 0.0
        %v4241 = vmax.f32 %v4209, 0.0
        %v4242 = vmax.f32 %v4210, 0.0
        %v4243 = vmax.f32 %v4211, 0.0
        %v4244 = vmax.f32 %v4212, 0.0
        %v4245 = vmax.f32 %v4213, 0.0
        %v4246 = vmax.f32 %v4214, 0.0
        %v4247 = vmax.f32 %v4215, 0.0
        %v4248 = vmax.f32 %v4216, 0.0
        %v4249 = vmax.f32 %v4217, 0.0
        %v4250 = vmax.f32 %v4218, 0.0
        %v4251 = vmax.f32 %v4219, 0.0
        %v4252 = vmax.f32 %v4220, 0.0
        %v4253 = vmax.f32 %v4221, 0.0
        %v4254 = vmax.f32 %v4222, 0.0
        %v4255 = vmax.f32 %v4223, 0.0
        %v4256 = vmax.f32 %v4224, 0.0
        %v4257 = vmax.f32 %v4225, 0.0
        %v4258 = vmax.f32 %v4226, 0.0
        %v4259 = vmax.f32 %v4227, 0.0
        %v4260 = vmax.f32 %v4228, 0.0
        %v4261 = vmax.f32 %v4229, 0.0
        %v4262 = vmax.f32 %v4230, 0.0
        %v4263 = vmax.f32 %v4231, 0.0
        %v4264 = vmax.f32 %v4232, 0.0
        %v4265 = vpack.c.bf16 %v4233, %v4233
        %v4266 = vpack.c.bf16 %v4234, %v4234
        %v4267 = vpack.c.bf16 %v4235, %v4235
        %v4268 = vpack.c.bf16 %v4236, %v4236
        %v4269 = vpack.c.bf16 %v4237, %v4237
        %v4270 = vpack.c.bf16 %v4238, %v4238
        %v4271 = vpack.c.bf16 %v4239, %v4239
        %v4272 = vpack.c.bf16 %v4240, %v4240
        %v4273 = vpack.c.bf16 %v4241, %v4241
        %v4274 = vpack.c.bf16 %v4242, %v4242
        %v4275 = vpack.c.bf16 %v4243, %v4243
        %v4276 = vpack.c.bf16 %v4244, %v4244
        %v4277 = vpack.c.bf16 %v4245, %v4245
        %v4278 = vpack.c.bf16 %v4246, %v4246
        %v4279 = vpack.c.bf16 %v4247, %v4247
        %v4280 = vpack.c.bf16 %v4248, %v4248
        %v4281 = vpack.c.bf16 %v4249, %v4249
        %v4282 = vpack.c.bf16 %v4250, %v4250
        %v4283 = vpack.c.bf16 %v4251, %v4251
        %v4284 = vpack.c.bf16 %v4252, %v4252
        %v4285 = vpack.c.bf16 %v4253, %v4253
        %v4286 = vpack.c.bf16 %v4254, %v4254
        %v4287 = vpack.c.bf16 %v4255, %v4255
        %v4288 = vpack.c.bf16 %v4256, %v4256
        %v4289 = vpack.c.bf16 %v4257, %v4257
        %v4290 = vpack.c.bf16 %v4258, %v4258
        %v4291 = vpack.c.bf16 %v4259, %v4259
        %v4292 = vpack.c.bf16 %v4260, %v4260
        %v4293 = vpack.c.bf16 %v4261, %v4261
        %v4294 = vpack.c.bf16 %v4262, %v4262
        %v4295 = vpack.c.bf16 %v4263, %v4263
        %v4296 = vpack.c.bf16 %v4264, %v4264
        %4297 = vst [vmem:[#allocation2] sm:$0xf] 0
        %4298 = vst [vmem:[#allocation2 + $0x4] sm:$0xf] 0
        %4299 = vst [vmem:[#allocation2 + $0x8] sm:$0x3] 0
        %s4300 = scalar_lea.vmem [#allocation2], 204
        %4301 = vst [vmem:[%s4300] sm:$0xf] 0
        %4302 = vst [vmem:[%s4300 + $0x4] sm:$0xf] 0
        %4303 = vst [vmem:[%s4300 + $0x8] sm:$0x3] 0
        %4304 = vst [vmem:[#allocation2] sm:$0x1] 0
        %4305 = vst [vmem:[#allocation2 + $0xc] sm:$0x1] 0
        %4306 = vst [vmem:[#allocation2 + $0x18] sm:$0x1] 0
        %4307 = vst [vmem:[#allocation2 + $0x24] sm:$0x1] 0
        %4308 = vst [vmem:[#allocation2 + $0x30] sm:$0x1] 0
        %4309 = vst [vmem:[#allocation2 + $0x3c] sm:$0x1] 0
        %4310 = vst [vmem:[#allocation2 + $0x48] sm:$0x1] 0
        %4311 = vst [vmem:[#allocation2 + $0x54] sm:$0x1] 0
        %4312 = vst [vmem:[#allocation2 + $0x60] sm:$0x1] 0
        %4313 = vst [vmem:[#allocation2 + $0x6c] sm:$0x1] 0
        %4314 = vst [vmem:[#allocation2 + $0x78] sm:$0x1] 0
        %4315 = vst [vmem:[#allocation2 + $0x84] sm:$0x1] 0
        %4316 = vst [vmem:[#allocation2 + $0x90] sm:$0x1] 0
        %4317 = vst [vmem:[#allocation2 + $0x9c] sm:$0x1] 0
        %4318 = vst [vmem:[#allocation2 + $0xa8] sm:$0x1] 0
        %4319 = vst [vmem:[#allocation2 + $0xb4] sm:$0x1] 0
        %4320 = vst [vmem:[#allocation2 + $0xc0] sm:$0x1] 0
        %4321 = vst [vmem:[#allocation2 + $0xcc] sm:$0x1] 0
        %4322 = vst [vmem:[#allocation2 + $0x8] sm:$0x2] 0
        %4323 = vst [vmem:[#allocation2 + $0x14] sm:$0x2] 0
        %4324 = vst [vmem:[#allocation2 + $0x20] sm:$0x2] 0
        %4325 = vst [vmem:[#allocation2 + $0x2c] sm:$0x2] 0
        %4326 = vst [vmem:[#allocation2 + $0x38] sm:$0x2] 0
        %4327 = vst [vmem:[#allocation2 + $0x44] sm:$0x2] 0
        %4328 = vst [vmem:[#allocation2 + $0x50] sm:$0x2] 0
        %4329 = vst [vmem:[#allocation2 + $0x5c] sm:$0x2] 0
        %4330 = vst [vmem:[#allocation2 + $0x68] sm:$0x2] 0
        %4331 = vst [vmem:[#allocation2 + $0x74] sm:$0x2] 0
        %4332 = vst [vmem:[#allocation2 + $0x80] sm:$0x2] 0
        %4333 = vst [vmem:[#allocation2 + $0x8c] sm:$0x2] 0
        %4334 = vst [vmem:[#allocation2 + $0x98] sm:$0x2] 0
        %4335 = vst [vmem:[#allocation2 + $0xa4] sm:$0x2] 0
        %4336 = vst [vmem:[#allocation2 + $0xb0] sm:$0x2] 0
        %4337 = vst [vmem:[#allocation2 + $0xbc] sm:$0x2] 0
        %4338 = vst [vmem:[#allocation2 + $0xc8] sm:$0x2] 0
        %4339 = vst [vmem:[#allocation2 + $0xd4] sm:$0x2] 0
        %vm4372 = vcmask 1040384
        %vm4373 = vcmask 1044484
        %vm4374 = vmor %vm4372, %vm4373
        %v4375 = vrot.slane %v4265, 7
        %v4376 = vrot.slane %v4375, 4
        %v4377 = vrot.slane %v4266, 7
        %v4378 = vsel %vm4374, %v4376, %v4377
        %v4379 = vrot.slane %v4377, 4
        %v4380 = vrot.slane %v4267, 7
        %v4381 = vrot.slane %v4380, 4
        %v4382 = vrot.slane %v4268, 7
        %v4383 = vsel %vm4374, %v4381, %v4382
        %v4384 = vrot.slane %v4382, 4
        %v4385 = vrot.slane %v4269, 7
        %v4386 = vrot.slane %v4385, 4
        %v4387 = vrot.slane %v4270, 7
        %v4388 = vsel %vm4374, %v4386, %v4387
        %v4389 = vrot.slane %v4387, 4
        %v4390 = vrot.slane %v4271, 7
        %v4391 = vrot.slane %v4390, 4
        %v4392 = vrot.slane %v4272, 7
        %v4393 = vsel %vm4374, %v4391, %v4392
        %v4394 = vrot.slane %v4392, 4
        %v4395 = vrot.slane %v4273, 7
        %v4396 = vrot.slane %v4395, 4
        %v4397 = vrot.slane %v4274, 7
        %v4398 = vsel %vm4374, %v4396, %v4397
        %v4399 = vrot.slane %v4397, 4
        %v4400 = vrot.slane %v4275, 7
        %v4401 = vrot.slane %v4400, 4
        %v4402 = vrot.slane %v4276, 7
        %v4403 = vsel %vm4374, %v4401, %v4402
        %v4404 = vrot.slane %v4402, 4
        %v4405 = vrot.slane %v4277, 7
        %v4406 = vrot.slane %v4405, 4
        %v4407 = vrot.slane %v4278, 7
        %v4408 = vsel %vm4374, %v4406, %v4407
        %v4409 = vrot.slane %v4407, 4
        %v4410 = vrot.slane %v4279, 7
        %v4411 = vrot.slane %v4410, 4
        %v4412 = vrot.slane %v4280, 7
        %v4413 = vsel %vm4374, %v4411, %v4412
        %v4414 = vrot.slane %v4412, 4
        %v4415 = vrot.slane %v4281, 7
        %v4416 = vrot.slane %v4415, 4
        %v4417 = vrot.slane %v4282, 7
        %v4418 = vsel %vm4374, %v4416, %v4417
        %v4419 = vrot.slane %v4417, 4
        %v4420 = vrot.slane %v4283, 7
        %v4421 = vrot.slane %v4420, 4
        %v4422 = vrot.slane %v4284, 7
        %v4423 = vsel %vm4374, %v4421, %v4422
        %v4424 = vrot.slane %v4422, 4
        %v4425 = vrot.slane %v4285, 7
        %v4426 = vrot.slane %v4425, 4
        %v4427 = vrot.slane %v4286, 7
        %v4428 = vsel %vm4374, %v4426, %v4427
        %v4429 = vrot.slane %v4427, 4
        %v4430 = vrot.slane %v4287, 7
        %v4431 = vrot.slane %v4430, 4
        %v4432 = vrot.slane %v4288, 7
        %v4433 = vsel %vm4374, %v4431, %v4432
        %v4434 = vrot.slane %v4432, 4
        %v4435 = vrot.slane %v4289, 7
        %v4436 = vrot.slane %v4435, 4
        %v4437 = vrot.slane %v4290, 7
        %v4438 = vsel %vm4374, %v4436, %v4437
        %v4439 = vrot.slane %v4437, 4
        %v4440 = vrot.slane %v4291, 7
        %v4441 = vrot.slane %v4440, 4
        %v4442 = vrot.slane %v4292, 7
        %v4443 = vsel %vm4374, %v4441, %v4442
        %v4444 = vrot.slane %v4442, 4
        %v4445 = vrot.slane %v4293, 7
        %v4446 = vrot.slane %v4445, 4
        %v4447 = vrot.slane %v4294, 7
        %v4448 = vsel %vm4374, %v4446, %v4447
        %v4449 = vrot.slane %v4447, 4
        %v4450 = vrot.slane %v4295, 7
        %v4451 = vrot.slane %v4450, 4
        %v4452 = vrot.slane %v4296, 7
        %v4453 = vsel %vm4374, %v4451, %v4452
        %v4454 = vrot.slane %v4452, 4
        %s4503 = scalar_lea.vmem [#allocation2], 12
        %4504 = vst [vmem:[%s4503] sm:$0xe] %v4375
        %4505 = vst [vmem:[%s4503 + $0x4] sm:$0xf] %v4378
        %4506 = vst [vmem:[%s4503 + $0x8] sm:$0x1] %v4379
        %4507 = vst [vmem:[%s4503 + $0xc] sm:$0xe] %v4380
        %4508 = vst [vmem:[%s4503 + $0x10] sm:$0xf] %v4383
        %4509 = vst [vmem:[%s4503 + $0x14] sm:$0x1] %v4384
        %4510 = vst [vmem:[%s4503 + $0x18] sm:$0xe] %v4385
        %4511 = vst [vmem:[%s4503 + $0x1c] sm:$0xf] %v4388
        %4512 = vst [vmem:[%s4503 + $0x20] sm:$0x1] %v4389
        %4513 = vst [vmem:[%s4503 + $0x24] sm:$0xe] %v4390
        %4514 = vst [vmem:[%s4503 + $0x28] sm:$0xf] %v4393
        %4515 = vst [vmem:[%s4503 + $0x2c] sm:$0x1] %v4394
        %4516 = vst [vmem:[%s4503 + $0x30] sm:$0xe] %v4395
        %4517 = vst [vmem:[%s4503 + $0x34] sm:$0xf] %v4398
        %4518 = vst [vmem:[%s4503 + $0x38] sm:$0x1] %v4399
        %4519 = vst [vmem:[%s4503 + $0x3c] sm:$0xe] %v4400
        %4520 = vst [vmem:[%s4503 + $0x40] sm:$0xf] %v4403
        %4521 = vst [vmem:[%s4503 + $0x44] sm:$0x1] %v4404
        %4522 = vst [vmem:[%s4503 + $0x48] sm:$0xe] %v4405
        %4523 = vst [vmem:[%s4503 + $0x4c] sm:$0xf] %v4408
        %4524 = vst [vmem:[%s4503 + $0x50] sm:$0x1] %v4409
        %4525 = vst [vmem:[%s4503 + $0x54] sm:$0xe] %v4410
        %4526 = vst [vmem:[%s4503 + $0x58] sm:$0xf] %v4413
        %4527 = vst [vmem:[%s4503 + $0x5c] sm:$0x1] %v4414
        %4528 = vst [vmem:[%s4503 + $0x60] sm:$0xe] %v4415
        %4529 = vst [vmem:[%s4503 + $0x64] sm:$0xf] %v4418
        %4530 = vst [vmem:[%s4503 + $0x68] sm:$0x1] %v4419
        %4531 = vst [vmem:[%s4503 + $0x6c] sm:$0xe] %v4420
        %4532 = vst [vmem:[%s4503 + $0x70] sm:$0xf] %v4423
        %4533 = vst [vmem:[%s4503 + $0x74] sm:$0x1] %v4424
        %4534 = vst [vmem:[%s4503 + $0x78] sm:$0xe] %v4425
        %4535 = vst [vmem:[%s4503 + $0x7c] sm:$0xf] %v4428
        %4536 = vst [vmem:[%s4503 + $0x80] sm:$0x1] %v4429
        %4537 = vst [vmem:[%s4503 + $0x84] sm:$0xe] %v4430
        %4538 = vst [vmem:[%s4503 + $0x88] sm:$0xf] %v4433
        %4539 = vst [vmem:[%s4503 + $0x8c] sm:$0x1] %v4434
        %4540 = vst [vmem:[%s4503 + $0x90] sm:$0xe] %v4435
        %4541 = vst [vmem:[%s4503 + $0x94] sm:$0xf] %v4438
        %4542 = vst [vmem:[%s4503 + $0x98] sm:$0x1] %v4439
        %4543 = vst [vmem:[%s4503 + $0x9c] sm:$0xe] %v4440
        %4544 = vst [vmem:[%s4503 + $0xa0] sm:$0xf] %v4443
        %4545 = vst [vmem:[%s4503 + $0xa4] sm:$0x1] %v4444
        %4546 = vst [vmem:[%s4503 + $0xa8] sm:$0xe] %v4445
        %4547 = vst [vmem:[%s4503 + $0xac] sm:$0xf] %v4448
        %4548 = vst [vmem:[%s4503 + $0xb0] sm:$0x1] %v4449
        %4549 = vst [vmem:[%s4503 + $0xb4] sm:$0xe] %v4450
        %4550 = vst [vmem:[%s4503 + $0xb8] sm:$0xf] %v4453
        %4551 = vst [vmem:[%s4503 + $0xbc] sm:$0x1] %v4454
        %v4552 = vld [vmem:[#allocation2] sm:$0xf]
        %v4553 = vld [vmem:[#allocation2 + $0x4] sm:$0xf]
        %v4554 = vld [vmem:[#allocation2 + $0x8] sm:$0x3]
        %v4555 = vld [vmem:[#allocation2 + $0xc] sm:$0xf]
        %v4556 = vld [vmem:[#allocation2 + $0x10] sm:$0xf]
        %v4557 = vld [vmem:[#allocation2 + $0x14] sm:$0x3]
        %v4558 = vld [vmem:[#allocation2 + $0x18] sm:$0xf]
        %v4559 = vld [vmem:[#allocation2 + $0x1c] sm:$0xf]
        %v4560 = vld [vmem:[#allocation2 + $0x20] sm:$0x3]
        %v4561 = vld [vmem:[#allocation2 + $0x24] sm:$0xf]
        %v4562 = vld [vmem:[#allocation2 + $0x28] sm:$0xf]
        %v4563 = vld [vmem:[#allocation2 + $0x2c] sm:$0x3]
        %v4564 = vld [vmem:[#allocation2 + $0x30] sm:$0xf]
        %v4565 = vld [vmem:[#allocation2 + $0x34] sm:$0xf]
        %v4566 = vld [vmem:[#allocation2 + $0x38] sm:$0x3]
        %v4567 = vld [vmem:[#allocation2 + $0x3c] sm:$0xf]
        %v4568 = vld [vmem:[#allocation2 + $0x40] sm:$0xf]
        %v4569 = vld [vmem:[#allocation2 + $0x44] sm:$0x3]
        %v4570 = vld [vmem:[#allocation2 + $0x48] sm:$0xf]
        %v4571 = vld [vmem:[#allocation2 + $0x4c] sm:$0xf]
        %v4572 = vld [vmem:[#allocation2 + $0x50] sm:$0x3]
        %v4573 = vld [vmem:[#allocation2 + $0x54] sm:$0xf]
        %v4574 = vld [vmem:[#allocation2 + $0x58] sm:$0xf]
        %v4575 = vld [vmem:[#allocation2 + $0x5c] sm:$0x3]
        %v4576 = vld [vmem:[#allocation2 + $0x60] sm:$0xf]
        %v4577 = vld [vmem:[#allocation2 + $0x64] sm:$0xf]
        %v4578 = vld [vmem:[#allocation2 + $0x68] sm:$0x3]
        %v4579 = vld [vmem:[#allocation2 + $0x6c] sm:$0xf]
        %v4580 = vld [vmem:[#allocation2 + $0x70] sm:$0xf]
        %v4581 = vld [vmem:[#allocation2 + $0x74] sm:$0x3]
        %v4582 = vld [vmem:[#allocation2 + $0x78] sm:$0xf]
        %v4583 = vld [vmem:[#allocation2 + $0x7c] sm:$0xf]
        %v4584 = vld [vmem:[#allocation2 + $0x80] sm:$0x3]
        %v4585 = vld [vmem:[#allocation2 + $0x84] sm:$0xf]
        %v4586 = vld [vmem:[#allocation2 + $0x88] sm:$0xf]
        %v4587 = vld [vmem:[#allocation2 + $0x8c] sm:$0x3]
        %v4588 = vld [vmem:[#allocation2 + $0x90] sm:$0xf]
        %v4589 = vld [vmem:[#allocation2 + $0x94] sm:$0xf]
        %v4590 = vld [vmem:[#allocation2 + $0x98] sm:$0x3]
        %v4591 = vld [vmem:[#allocation2 + $0x9c] sm:$0xf]
        %v4592 = vld [vmem:[#allocation2 + $0xa0] sm:$0xf]
        %v4593 = vld [vmem:[#allocation2 + $0xa4] sm:$0x3]
        %v4594 = vld [vmem:[#allocation2 + $0xa8] sm:$0xf]
        %v4595 = vld [vmem:[#allocation2 + $0xac] sm:$0xf]
        %v4596 = vld [vmem:[#allocation2 + $0xb0] sm:$0x3]
        %v4597 = vld [vmem:[#allocation2 + $0xb4] sm:$0xf]
        %v4598 = vld [vmem:[#allocation2 + $0xb8] sm:$0xf]
        %v4599 = vld [vmem:[#allocation2 + $0xbc] sm:$0x3]
        %v4648 = vunpack.c.l.b16 %v4552
        %v4649 = vunpack.c.l.b16 %v4553
        %v4650 = vunpack.c.l.b16 %v4554
        %v4651 = vunpack.c.l.b16 %v4555
        %v4652 = vunpack.c.l.b16 %v4556
        %v4653 = vunpack.c.l.b16 %v4557
        %v4654 = vunpack.c.l.b16 %v4558
        %v4655 = vunpack.c.l.b16 %v4559
        %v4656 = vunpack.c.l.b16 %v4560
        %v4657 = vunpack.c.l.b16 %v4561
        %v4658 = vunpack.c.l.b16 %v4562
        %v4659 = vunpack.c.l.b16 %v4563
        %v4660 = vunpack.c.l.b16 %v4564
        %v4661 = vunpack.c.l.b16 %v4565
        %v4662 = vunpack.c.l.b16 %v4566
        %v4663 = vunpack.c.l.b16 %v4567
        %v4664 = vunpack.c.l.b16 %v4568
        %v4665 = vunpack.c.l.b16 %v4569
        %v4666 = vunpack.c.l.b16 %v4570
        %v4667 = vunpack.c.l.b16 %v4571
        %v4668 = vunpack.c.l.b16 %v4572
        %v4669 = vunpack.c.l.b16 %v4573
        %v4670 = vunpack.c.l.b16 %v4574
        %v4671 = vunpack.c.l.b16 %v4575
        %v4672 = vunpack.c.l.b16 %v4576
        %v4673 = vunpack.c.l.b16 %v4577
        %v4674 = vunpack.c.l.b16 %v4578
        %v4675 = vunpack.c.l.b16 %v4579
        %v4676 = vunpack.c.l.b16 %v4580
        %v4677 = vunpack.c.l.b16 %v4581
        %v4678 = vunpack.c.l.b16 %v4582
        %v4679 = vunpack.c.l.b16 %v4583
        %v4680 = vunpack.c.l.b16 %v4584
        %v4681 = vunpack.c.l.b16 %v4585
        %v4682 = vunpack.c.l.b16 %v4586
        %v4683 = vunpack.c.l.b16 %v4587
        %v4684 = vunpack.c.l.b16 %v4588
        %v4685 = vunpack.c.l.b16 %v4589
        %v4686 = vunpack.c.l.b16 %v4590
        %v4687 = vunpack.c.l.b16 %v4591
        %v4688 = vunpack.c.l.b16 %v4592
        %v4689 = vunpack.c.l.b16 %v4593
        %v4690 = vunpack.c.l.b16 %v4594
        %v4691 = vunpack.c.l.b16 %v4595
        %v4692 = vunpack.c.l.b16 %v4596
        %v4693 = vunpack.c.l.b16 %v4597
        %v4694 = vunpack.c.l.b16 %v4598
        %v4695 = vunpack.c.l.b16 %v4599
        %v4696 = vpack.c.b16 %v4649, %v4648
        %v4697 = vpack.c.b16 %v4650, %v4650
        %v4698 = vpack.c.b16 %v4652, %v4651
        %v4699 = vpack.c.b16 %v4653, %v4653
        %v4700 = vpack.c.b16 %v4655, %v4654
        %v4701 = vpack.c.b16 %v4656, %v4656
        %v4702 = vpack.c.b16 %v4658, %v4657
        %v4703 = vpack.c.b16 %v4659, %v4659
        %v4704 = vpack.c.b16 %v4661, %v4660
        %v4705 = vpack.c.b16 %v4662, %v4662
        %v4706 = vpack.c.b16 %v4664, %v4663
        %v4707 = vpack.c.b16 %v4665, %v4665
        %v4708 = vpack.c.b16 %v4667, %v4666
        %v4709 = vpack.c.b16 %v4668, %v4668
        %v4710 = vpack.c.b16 %v4670, %v4669
        %v4711 = vpack.c.b16 %v4671, %v4671
        %v4712 = vpack.c.b16 %v4673, %v4672
        %v4713 = vpack.c.b16 %v4674, %v4674
        %v4714 = vpack.c.b16 %v4676, %v4675
        %v4715 = vpack.c.b16 %v4677, %v4677
        %v4716 = vpack.c.b16 %v4679, %v4678
        %v4717 = vpack.c.b16 %v4680, %v4680
        %v4718 = vpack.c.b16 %v4682, %v4681
        %v4719 = vpack.c.b16 %v4683, %v4683
        %v4720 = vpack.c.b16 %v4685, %v4684
        %v4721 = vpack.c.b16 %v4686, %v4686
        %v4722 = vpack.c.b16 %v4688, %v4687
        %v4723 = vpack.c.b16 %v4689, %v4689
        %v4724 = vpack.c.b16 %v4691, %v4690
        %v4725 = vpack.c.b16 %v4692, %v4692
        %v4726 = vpack.c.b16 %v4694, %v4693
        %v4727 = vpack.c.b16 %v4695, %v4695
        %v4729 = vshrl.u32 %v4696, 16
        %v4731 = vshll.u32 %v4696, 16
        %v4733 = vrot.slane %v4731, 1
        %v4734 = vor.u32 %v4729, %v4733
        %v4736 = vshll.u32 %v4697, 16
        %v4738 = vrot.slane %v4736, 1
        %v4739 = vsel %vm1445, %v4734, %v4738
        %v4740 = vshrl.u32 %v4697, 16
        %v4743 = vshrl.u32 %v4698, 16
        %v4745 = vshll.u32 %v4698, 16
        %v4747 = vrot.slane %v4745, 1
        %v4748 = vor.u32 %v4743, %v4747
        %v4750 = vshll.u32 %v4699, 16
        %v4752 = vrot.slane %v4750, 1
        %v4753 = vsel %vm1445, %v4748, %v4752
        %v4754 = vshrl.u32 %v4699, 16
        %v4757 = vshrl.u32 %v4700, 16
        %v4759 = vshll.u32 %v4700, 16
        %v4761 = vrot.slane %v4759, 1
        %v4762 = vor.u32 %v4757, %v4761
        %v4764 = vshll.u32 %v4701, 16
        %v4766 = vrot.slane %v4764, 1
        %v4767 = vsel %vm1445, %v4762, %v4766
        %v4768 = vshrl.u32 %v4701, 16
        %v4771 = vshrl.u32 %v4702, 16
        %v4773 = vshll.u32 %v4702, 16
        %v4775 = vrot.slane %v4773, 1
        %v4776 = vor.u32 %v4771, %v4775
        %v4778 = vshll.u32 %v4703, 16
        %v4780 = vrot.slane %v4778, 1
        %v4781 = vsel %vm1445, %v4776, %v4780
        %v4782 = vshrl.u32 %v4703, 16
        %v4785 = vshrl.u32 %v4704, 16
        %v4787 = vshll.u32 %v4704, 16
        %v4789 = vrot.slane %v4787, 1
        %v4790 = vor.u32 %v4785, %v4789
        %v4792 = vshll.u32 %v4705, 16
        %v4794 = vrot.slane %v4792, 1
        %v4795 = vsel %vm1445, %v4790, %v4794
        %v4796 = vshrl.u32 %v4705, 16
        %v4799 = vshrl.u32 %v4706, 16
        %v4801 = vshll.u32 %v4706, 16
        %v4803 = vrot.slane %v4801, 1
        %v4804 = vor.u32 %v4799, %v4803
        %v4806 = vshll.u32 %v4707, 16
        %v4808 = vrot.slane %v4806, 1
        %v4809 = vsel %vm1445, %v4804, %v4808
        %v4810 = vshrl.u32 %v4707, 16
        %v4813 = vshrl.u32 %v4708, 16
        %v4815 = vshll.u32 %v4708, 16
        %v4817 = vrot.slane %v4815, 1
        %v4818 = vor.u32 %v4813, %v4817
        %v4820 = vshll.u32 %v4709, 16
        %v4822 = vrot.slane %v4820, 1
        %v4823 = vsel %vm1445, %v4818, %v4822
        %v4824 = vshrl.u32 %v4709, 16
        %v4827 = vshrl.u32 %v4710, 16
        %v4829 = vshll.u32 %v4710, 16
        %v4831 = vrot.slane %v4829, 1
        %v4832 = vor.u32 %v4827, %v4831
        %v4834 = vshll.u32 %v4711, 16
        %v4836 = vrot.slane %v4834, 1
        %v4837 = vsel %vm1445, %v4832, %v4836
        %v4838 = vshrl.u32 %v4711, 16
        %v4841 = vshrl.u32 %v4712, 16
        %v4843 = vshll.u32 %v4712, 16
        %v4845 = vrot.slane %v4843, 1
        %v4846 = vor.u32 %v4841, %v4845
        %v4848 = vshll.u32 %v4713, 16
        %v4850 = vrot.slane %v4848, 1
        %v4851 = vsel %vm1445, %v4846, %v4850
        %v4852 = vshrl.u32 %v4713, 16
        %v4855 = vshrl.u32 %v4714, 16
        %v4857 = vshll.u32 %v4714, 16
        %v4859 = vrot.slane %v4857, 1
        %v4860 = vor.u32 %v4855, %v4859
        %v4862 = vshll.u32 %v4715, 16
        %v4864 = vrot.slane %v4862, 1
        %v4865 = vsel %vm1445, %v4860, %v4864
        %v4866 = vshrl.u32 %v4715, 16
        %v4869 = vshrl.u32 %v4716, 16
        %v4871 = vshll.u32 %v4716, 16
        %v4873 = vrot.slane %v4871, 1
        %v4874 = vor.u32 %v4869, %v4873
        %v4876 = vshll.u32 %v4717, 16
        %v4878 = vrot.slane %v4876, 1
        %v4879 = vsel %vm1445, %v4874, %v4878
        %v4880 = vshrl.u32 %v4717, 16
        %v4883 = vshrl.u32 %v4718, 16
        %v4885 = vshll.u32 %v4718, 16
        %v4887 = vrot.slane %v4885, 1
        %v4888 = vor.u32 %v4883, %v4887
        %v4890 = vshll.u32 %v4719, 16
        %v4892 = vrot.slane %v4890, 1
        %v4893 = vsel %vm1445, %v4888, %v4892
        %v4894 = vshrl.u32 %v4719, 16
        %v4897 = vshrl.u32 %v4720, 16
        %v4899 = vshll.u32 %v4720, 16
        %v4901 = vrot.slane %v4899, 1
        %v4902 = vor.u32 %v4897, %v4901
        %v4904 = vshll.u32 %v4721, 16
        %v4906 = vrot.slane %v4904, 1
        %v4907 = vsel %vm1445, %v4902, %v4906
        %v4908 = vshrl.u32 %v4721, 16
        %v4911 = vshrl.u32 %v4722, 16
        %v4913 = vshll.u32 %v4722, 16
        %v4915 = vrot.slane %v4913, 1
        %v4916 = vor.u32 %v4911, %v4915
        %v4918 = vshll.u32 %v4723, 16
        %v4920 = vrot.slane %v4918, 1
        %v4921 = vsel %vm1445, %v4916, %v4920
        %v4922 = vshrl.u32 %v4723, 16
        %v4925 = vshrl.u32 %v4724, 16
        %v4927 = vshll.u32 %v4724, 16
        %v4929 = vrot.slane %v4927, 1
        %v4930 = vor.u32 %v4925, %v4929
        %v4932 = vshll.u32 %v4725, 16
        %v4934 = vrot.slane %v4932, 1
        %v4935 = vsel %vm1445, %v4930, %v4934
        %v4936 = vshrl.u32 %v4725, 16
        %v4939 = vshrl.u32 %v4726, 16
        %v4941 = vshll.u32 %v4726, 16
        %v4943 = vrot.slane %v4941, 1
        %v4944 = vor.u32 %v4939, %v4943
        %v4946 = vshll.u32 %v4727, 16
        %v4948 = vrot.slane %v4946, 1
        %v4949 = vsel %vm1445, %v4944, %v4948
        %v4950 = vshrl.u32 %v4727, 16
        %v4952 = vrot.slane %v4696, 1
        %v4953 = vrot.slane %v4697, 1
        %v4954 = vsel %vm1654, %v4952, %v4953
        %v4955 = vrot.slane %v4698, 1
        %v4956 = vrot.slane %v4699, 1
        %v4957 = vsel %vm1654, %v4955, %v4956
        %v4958 = vrot.slane %v4700, 1
        %v4959 = vrot.slane %v4701, 1
        %v4960 = vsel %vm1654, %v4958, %v4959
        %v4961 = vrot.slane %v4702, 1
        %v4962 = vrot.slane %v4703, 1
        %v4963 = vsel %vm1654, %v4961, %v4962
        %v4964 = vrot.slane %v4704, 1
        %v4965 = vrot.slane %v4705, 1
        %v4966 = vsel %vm1654, %v4964, %v4965
        %v4967 = vrot.slane %v4706, 1
        %v4968 = vrot.slane %v4707, 1
        %v4969 = vsel %vm1654, %v4967, %v4968
        %v4970 = vrot.slane %v4708, 1
        %v4971 = vrot.slane %v4709, 1
        %v4972 = vsel %vm1654, %v4970, %v4971
        %v4973 = vrot.slane %v4710, 1
        %v4974 = vrot.slane %v4711, 1
        %v4975 = vsel %vm1654, %v4973, %v4974
        %v4976 = vrot.slane %v4712, 1
        %v4977 = vrot.slane %v4713, 1
        %v4978 = vsel %vm1654, %v4976, %v4977
        %v4979 = vrot.slane %v4714, 1
        %v4980 = vrot.slane %v4715, 1
        %v4981 = vsel %vm1654, %v4979, %v4980
        %v4982 = vrot.slane %v4716, 1
        %v4983 = vrot.slane %v4717, 1
        %v4984 = vsel %vm1654, %v4982, %v4983
        %v4985 = vrot.slane %v4718, 1
        %v4986 = vrot.slane %v4719, 1
        %v4987 = vsel %vm1654, %v4985, %v4986
        %v4988 = vrot.slane %v4720, 1
        %v4989 = vrot.slane %v4721, 1
        %v4990 = vsel %vm1654, %v4988, %v4989
        %v4991 = vrot.slane %v4722, 1
        %v4992 = vrot.slane %v4723, 1
        %v4993 = vsel %vm1654, %v4991, %v4992
        %v4994 = vrot.slane %v4724, 1
        %v4995 = vrot.slane %v4725, 1
        %v4996 = vsel %vm1654, %v4994, %v4995
        %v4997 = vrot.slane %v4726, 1
        %v4998 = vrot.slane %v4727, 1
        %v4999 = vsel %vm1654, %v4997, %v4998
        %v5001 = vshrl.u32 %v4739, 16
        %v5003 = vshll.u32 %v4739, 16
        %v5005 = vrot.slane %v5003, 1
        %v5006 = vor.u32 %v5001, %v5005
        %v5008 = vshll.u32 %v4740, 16
        %v5010 = vrot.slane %v5008, 1
        %v5011 = vsel %vm1445, %v5006, %v5010
        %v5013 = vshrl.u32 %v4954, 16
        %v5015 = vshll.u32 %v4954, 16
        %v5017 = vrot.slane %v5015, 1
        %v5018 = vor.u32 %v5013, %v5017
        %v5020 = vshll.u32 %v4953, 16
        %v5022 = vrot.slane %v5020, 1
        %v5023 = vsel %vm1445, %v5018, %v5022
        %v5025 = vshrl.u32 %v4753, 16
        %v5027 = vshll.u32 %v4753, 16
        %v5029 = vrot.slane %v5027, 1
        %v5030 = vor.u32 %v5025, %v5029
        %v5032 = vshll.u32 %v4754, 16
        %v5034 = vrot.slane %v5032, 1
        %v5035 = vsel %vm1445, %v5030, %v5034
        %v5037 = vshrl.u32 %v4957, 16
        %v5039 = vshll.u32 %v4957, 16
        %v5041 = vrot.slane %v5039, 1
        %v5042 = vor.u32 %v5037, %v5041
        %v5044 = vshll.u32 %v4956, 16
        %v5046 = vrot.slane %v5044, 1
        %v5047 = vsel %vm1445, %v5042, %v5046
        %v5049 = vshrl.u32 %v4767, 16
        %v5051 = vshll.u32 %v4767, 16
        %v5053 = vrot.slane %v5051, 1
        %v5054 = vor.u32 %v5049, %v5053
        %v5056 = vshll.u32 %v4768, 16
        %v5058 = vrot.slane %v5056, 1
        %v5059 = vsel %vm1445, %v5054, %v5058
        %v5061 = vshrl.u32 %v4960, 16
        %v5063 = vshll.u32 %v4960, 16
        %v5065 = vrot.slane %v5063, 1
        %v5066 = vor.u32 %v5061, %v5065
        %v5068 = vshll.u32 %v4959, 16
        %v5070 = vrot.slane %v5068, 1
        %v5071 = vsel %vm1445, %v5066, %v5070
        %v5073 = vshrl.u32 %v4781, 16
        %v5075 = vshll.u32 %v4781, 16
        %v5077 = vrot.slane %v5075, 1
        %v5078 = vor.u32 %v5073, %v5077
        %v5080 = vshll.u32 %v4782, 16
        %v5082 = vrot.slane %v5080, 1
        %v5083 = vsel %vm1445, %v5078, %v5082
        %v5085 = vshrl.u32 %v4963, 16
        %v5087 = vshll.u32 %v4963, 16
        %v5089 = vrot.slane %v5087, 1
        %v5090 = vor.u32 %v5085, %v5089
        %v5092 = vshll.u32 %v4962, 16
        %v5094 = vrot.slane %v5092, 1
        %v5095 = vsel %vm1445, %v5090, %v5094
        %v5097 = vshrl.u32 %v4795, 16
        %v5099 = vshll.u32 %v4795, 16
        %v5101 = vrot.slane %v5099, 1
        %v5102 = vor.u32 %v5097, %v5101
        %v5104 = vshll.u32 %v4796, 16
        %v5106 = vrot.slane %v5104, 1
        %v5107 = vsel %vm1445, %v5102, %v5106
        %v5109 = vshrl.u32 %v4966, 16
        %v5111 = vshll.u32 %v4966, 16
        %v5113 = vrot.slane %v5111, 1
        %v5114 = vor.u32 %v5109, %v5113
        %v5116 = vshll.u32 %v4965, 16
        %v5118 = vrot.slane %v5116, 1
        %v5119 = vsel %vm1445, %v5114, %v5118
        %v5121 = vshrl.u32 %v4809, 16
        %v5123 = vshll.u32 %v4809, 16
        %v5125 = vrot.slane %v5123, 1
        %v5126 = vor.u32 %v5121, %v5125
        %v5128 = vshll.u32 %v4810, 16
        %v5130 = vrot.slane %v5128, 1
        %v5131 = vsel %vm1445, %v5126, %v5130
        %v5133 = vshrl.u32 %v4969, 16
        %v5135 = vshll.u32 %v4969, 16
        %v5137 = vrot.slane %v5135, 1
        %v5138 = vor.u32 %v5133, %v5137
        %v5140 = vshll.u32 %v4968, 16
        %v5142 = vrot.slane %v5140, 1
        %v5143 = vsel %vm1445, %v5138, %v5142
        %v5145 = vshrl.u32 %v4823, 16
        %v5147 = vshll.u32 %v4823, 16
        %v5149 = vrot.slane %v5147, 1
        %v5150 = vor.u32 %v5145, %v5149
        %v5152 = vshll.u32 %v4824, 16
        %v5154 = vrot.slane %v5152, 1
        %v5155 = vsel %vm1445, %v5150, %v5154
        %v5157 = vshrl.u32 %v4972, 16
        %v5159 = vshll.u32 %v4972, 16
        %v5161 = vrot.slane %v5159, 1
        %v5162 = vor.u32 %v5157, %v5161
        %v5164 = vshll.u32 %v4971, 16
        %v5166 = vrot.slane %v5164, 1
        %v5167 = vsel %vm1445, %v5162, %v5166
        %v5169 = vshrl.u32 %v4837, 16
        %v5171 = vshll.u32 %v4837, 16
        %v5173 = vrot.slane %v5171, 1
        %v5174 = vor.u32 %v5169, %v5173
        %v5176 = vshll.u32 %v4838, 16
        %v5178 = vrot.slane %v5176, 1
        %v5179 = vsel %vm1445, %v5174, %v5178
        %v5181 = vshrl.u32 %v4975, 16
        %v5183 = vshll.u32 %v4975, 16
        %v5185 = vrot.slane %v5183, 1
        %v5186 = vor.u32 %v5181, %v5185
        %v5188 = vshll.u32 %v4974, 16
        %v5190 = vrot.slane %v5188, 1
        %v5191 = vsel %vm1445, %v5186, %v5190
        %v5193 = vshrl.u32 %v4851, 16
        %v5195 = vshll.u32 %v4851, 16
        %v5197 = vrot.slane %v5195, 1
        %v5198 = vor.u32 %v5193, %v5197
        %v5200 = vshll.u32 %v4852, 16
        %v5202 = vrot.slane %v5200, 1
        %v5203 = vsel %vm1445, %v5198, %v5202
        %v5205 = vshrl.u32 %v4978, 16
        %v5207 = vshll.u32 %v4978, 16
        %v5209 = vrot.slane %v5207, 1
        %v5210 = vor.u32 %v5205, %v5209
        %v5212 = vshll.u32 %v4977, 16
        %v5214 = vrot.slane %v5212, 1
        %v5215 = vsel %vm1445, %v5210, %v5214
        %v5217 = vshrl.u32 %v4865, 16
        %v5219 = vshll.u32 %v4865, 16
        %v5221 = vrot.slane %v5219, 1
        %v5222 = vor.u32 %v5217, %v5221
        %v5224 = vshll.u32 %v4866, 16
        %v5226 = vrot.slane %v5224, 1
        %v5227 = vsel %vm1445, %v5222, %v5226
        %v5229 = vshrl.u32 %v4981, 16
        %v5231 = vshll.u32 %v4981, 16
        %v5233 = vrot.slane %v5231, 1
        %v5234 = vor.u32 %v5229, %v5233
        %v5236 = vshll.u32 %v4980, 16
        %v5238 = vrot.slane %v5236, 1
        %v5239 = vsel %vm1445, %v5234, %v5238
        %v5241 = vshrl.u32 %v4879, 16
        %v5243 = vshll.u32 %v4879, 16
        %v5245 = vrot.slane %v5243, 1
        %v5246 = vor.u32 %v5241, %v5245
        %v5248 = vshll.u32 %v4880, 16
        %v5250 = vrot.slane %v5248, 1
        %v5251 = vsel %vm1445, %v5246, %v5250
        %v5253 = vshrl.u32 %v4984, 16
        %v5255 = vshll.u32 %v4984, 16
        %v5257 = vrot.slane %v5255, 1
        %v5258 = vor.u32 %v5253, %v5257
        %v5260 = vshll.u32 %v4983, 16
        %v5262 = vrot.slane %v5260, 1
        %v5263 = vsel %vm1445, %v5258, %v5262
        %v5265 = vshrl.u32 %v4893, 16
        %v5267 = vshll.u32 %v4893, 16
        %v5269 = vrot.slane %v5267, 1
        %v5270 = vor.u32 %v5265, %v5269
        %v5272 = vshll.u32 %v4894, 16
        %v5274 = vrot.slane %v5272, 1
        %v5275 = vsel %vm1445, %v5270, %v5274
        %v5277 = vshrl.u32 %v4987, 16
        %v5279 = vshll.u32 %v4987, 16
        %v5281 = vrot.slane %v5279, 1
        %v5282 = vor.u32 %v5277, %v5281
        %v5284 = vshll.u32 %v4986, 16
        %v5286 = vrot.slane %v5284, 1
        %v5287 = vsel %vm1445, %v5282, %v5286
        %v5289 = vshrl.u32 %v4907, 16
        %v5291 = vshll.u32 %v4907, 16
        %v5293 = vrot.slane %v5291, 1
        %v5294 = vor.u32 %v5289, %v5293
        %v5296 = vshll.u32 %v4908, 16
        %v5298 = vrot.slane %v5296, 1
        %v5299 = vsel %vm1445, %v5294, %v5298
        %v5301 = vshrl.u32 %v4990, 16
        %v5303 = vshll.u32 %v4990, 16
        %v5305 = vrot.slane %v5303, 1
        %v5306 = vor.u32 %v5301, %v5305
        %v5308 = vshll.u32 %v4989, 16
        %v5310 = vrot.slane %v5308, 1
        %v5311 = vsel %vm1445, %v5306, %v5310
        %v5313 = vshrl.u32 %v4921, 16
        %v5315 = vshll.u32 %v4921, 16
        %v5317 = vrot.slane %v5315, 1
        %v5318 = vor.u32 %v5313, %v5317
        %v5320 = vshll.u32 %v4922, 16
        %v5322 = vrot.slane %v5320, 1
        %v5323 = vsel %vm1445, %v5318, %v5322
        %v5325 = vshrl.u32 %v4993, 16
        %v5327 = vshll.u32 %v4993, 16
        %v5329 = vrot.slane %v5327, 1
        %v5330 = vor.u32 %v5325, %v5329
        %v5332 = vshll.u32 %v4992, 16
        %v5334 = vrot.slane %v5332, 1
        %v5335 = vsel %vm1445, %v5330, %v5334
        %v5337 = vshrl.u32 %v4935, 16
        %v5339 = vshll.u32 %v4935, 16
        %v5341 = vrot.slane %v5339, 1
        %v5342 = vor.u32 %v5337, %v5341
        %v5344 = vshll.u32 %v4936, 16
        %v5346 = vrot.slane %v5344, 1
        %v5347 = vsel %vm1445, %v5342, %v5346
        %v5349 = vshrl.u32 %v4996, 16
        %v5351 = vshll.u32 %v4996, 16
        %v5353 = vrot.slane %v5351, 1
        %v5354 = vor.u32 %v5349, %v5353
        %v5356 = vshll.u32 %v4995, 16
        %v5358 = vrot.slane %v5356, 1
        %v5359 = vsel %vm1445, %v5354, %v5358
        %v5361 = vshrl.u32 %v4949, 16
        %v5363 = vshll.u32 %v4949, 16
        %v5365 = vrot.slane %v5363, 1
        %v5366 = vor.u32 %v5361, %v5365
        %v5368 = vshll.u32 %v4950, 16
        %v5370 = vrot.slane %v5368, 1
        %v5371 = vsel %vm1445, %v5366, %v5370
        %v5373 = vshrl.u32 %v4999, 16
        %v5375 = vshll.u32 %v4999, 16
        %v5377 = vrot.slane %v5375, 1
        %v5378 = vor.u32 %v5373, %v5377
        %v5380 = vshll.u32 %v4998, 16
        %v5382 = vrot.slane %v5380, 1
        %v5383 = vsel %vm1445, %v5378, %v5382
        %v5432 = vld [vmem:[%s4] sm:$0xf]
        %v5433 = vld [vmem:[%s4 + $0x4] sm:$0xf]
        %v5434 = vld [vmem:[%s4 + $0x8] sm:$0xf]
        %v5435 = vld [vmem:[%s4 + $0xc] sm:$0xf]
        %v5436 = vld [vmem:[%s4 + $0x10] sm:$0xf]
        %v5437 = vld [vmem:[%s4 + $0x14] sm:$0xf]
        %v5438 = vld [vmem:[%s4 + $0x18] sm:$0xf]
        %v5439 = vld [vmem:[%s4 + $0x1c] sm:$0xf]
        %v5440 = vld [vmem:[%s4 + $0x20] sm:$0xf]
        %v5441 = vld [vmem:[%s4 + $0x24] sm:$0xf]
        %v5442 = vld [vmem:[%s4 + $0x28] sm:$0xf]
        %v5443 = vld [vmem:[%s4 + $0x2c] sm:$0xf]
        %v5444 = vld [vmem:[%s4 + $0x30] sm:$0xf]
        %v5445 = vld [vmem:[%s4 + $0x34] sm:$0xf]
        %v5446 = vld [vmem:[%s4 + $0x38] sm:$0xf]
        %v5447 = vld [vmem:[%s4 + $0x3c] sm:$0xf]
        %v5448 = vld [vmem:[%s4 + $0x40] sm:$0xf]
        %v5449 = vld [vmem:[%s4 + $0x44] sm:$0xf]
        %v5450 = vld [vmem:[%s4 + $0x48] sm:$0xf]
        %v5451 = vld [vmem:[%s4 + $0x4c] sm:$0xf]
        %v5452 = vld [vmem:[%s4 + $0x50] sm:$0xf]
        %v5453 = vld [vmem:[%s4 + $0x54] sm:$0xf]
        %v5454 = vld [vmem:[%s4 + $0x58] sm:$0xf]
        %v5455 = vld [vmem:[%s4 + $0x5c] sm:$0xf]
        %v5456 = vld [vmem:[%s4 + $0x60] sm:$0xf]
        %v5457 = vld [vmem:[%s4 + $0x64] sm:$0xf]
        %v5458 = vld [vmem:[%s4 + $0x68] sm:$0xf]
        %v5459 = vld [vmem:[%s4 + $0x6c] sm:$0xf]
        %v5460 = vld [vmem:[%s4 + $0x70] sm:$0xf]
        %v5461 = vld [vmem:[%s4 + $0x74] sm:$0xf]
        %v5462 = vld [vmem:[%s4 + $0x78] sm:$0xf]
        %v5463 = vld [vmem:[%s4 + $0x7c] sm:$0xf]
        %v5464 = vld [vmem:[%s4 + $0x80] sm:$0xf]
        %v5465 = vld [vmem:[%s4 + $0x84] sm:$0xf]
        %v5466 = vld [vmem:[%s4 + $0x88] sm:$0xf]
        %v5467 = vld [vmem:[%s4 + $0x8c] sm:$0xf]
        %v5468 = vld [vmem:[%s4 + $0x90] sm:$0xf]
        %v5469 = vld [vmem:[%s4 + $0x94] sm:$0xf]
        %v5470 = vld [vmem:[%s4 + $0x98] sm:$0xf]
        %v5471 = vld [vmem:[%s4 + $0x9c] sm:$0xf]
        %v5472 = vld [vmem:[%s4 + $0xa0] sm:$0xf]
        %v5473 = vld [vmem:[%s4 + $0xa4] sm:$0xf]
        %v5474 = vld [vmem:[%s4 + $0xa8] sm:$0xf]
        %v5475 = vld [vmem:[%s4 + $0xac] sm:$0xf]
        %v5476 = vld [vmem:[%s4 + $0xb0] sm:$0xf]
        %v5477 = vld [vmem:[%s4 + $0xb4] sm:$0xf]
        %v5478 = vld [vmem:[%s4 + $0xb8] sm:$0xf]
        %v5479 = vld [vmem:[%s4 + $0xbc] sm:$0xf]
        %v5480 = vld [vmem:[%s4503] sm:$0xf]
        %v5481 = vld [vmem:[%s4503 + $0x4] sm:$0xf]
        %v5482 = vld [vmem:[%s4503 + $0x8] sm:$0x3]
        %v5483 = vld [vmem:[%s4503 + $0xc] sm:$0xf]
        %v5484 = vld [vmem:[%s4503 + $0x10] sm:$0xf]
        %v5485 = vld [vmem:[%s4503 + $0x14] sm:$0x3]
        %v5486 = vld [vmem:[%s4503 + $0x18] sm:$0xf]
        %v5487 = vld [vmem:[%s4503 + $0x1c] sm:$0xf]
        %v5488 = vld [vmem:[%s4503 + $0x20] sm:$0x3]
        %v5489 = vld [vmem:[%s4503 + $0x24] sm:$0xf]
        %v5490 = vld [vmem:[%s4503 + $0x28] sm:$0xf]
        %v5491 = vld [vmem:[%s4503 + $0x2c] sm:$0x3]
        %v5492 = vld [vmem:[%s4503 + $0x30] sm:$0xf]
        %v5493 = vld [vmem:[%s4503 + $0x34] sm:$0xf]
        %v5494 = vld [vmem:[%s4503 + $0x38] sm:$0x3]
        %v5495 = vld [vmem:[%s4503 + $0x3c] sm:$0xf]
        %v5496 = vld [vmem:[%s4503 + $0x40] sm:$0xf]
        %v5497 = vld [vmem:[%s4503 + $0x44] sm:$0x3]
        %v5498 = vld [vmem:[%s4503 + $0x48] sm:$0xf]
        %v5499 = vld [vmem:[%s4503 + $0x4c] sm:$0xf]
        %v5500 = vld [vmem:[%s4503 + $0x50] sm:$0x3]
        %v5501 = vld [vmem:[%s4503 + $0x54] sm:$0xf]
        %v5502 = vld [vmem:[%s4503 + $0x58] sm:$0xf]
        %v5503 = vld [vmem:[%s4503 + $0x5c] sm:$0x3]
        %v5504 = vld [vmem:[%s4503 + $0x60] sm:$0xf]
        %v5505 = vld [vmem:[%s4503 + $0x64] sm:$0xf]
        %v5506 = vld [vmem:[%s4503 + $0x68] sm:$0x3]
        %v5507 = vld [vmem:[%s4503 + $0x6c] sm:$0xf]
        %v5508 = vld [vmem:[%s4503 + $0x70] sm:$0xf]
        %v5509 = vld [vmem:[%s4503 + $0x74] sm:$0x3]
        %v5510 = vld [vmem:[%s4503 + $0x78] sm:$0xf]
        %v5511 = vld [vmem:[%s4503 + $0x7c] sm:$0xf]
        %v5512 = vld [vmem:[%s4503 + $0x80] sm:$0x3]
        %v5513 = vld [vmem:[%s4503 + $0x84] sm:$0xf]
        %v5514 = vld [vmem:[%s4503 + $0x88] sm:$0xf]
        %v5515 = vld [vmem:[%s4503 + $0x8c] sm:$0x3]
        %v5516 = vld [vmem:[%s4503 + $0x90] sm:$0xf]
        %v5517 = vld [vmem:[%s4503 + $0x94] sm:$0xf]
        %v5518 = vld [vmem:[%s4503 + $0x98] sm:$0x3]
        %v5519 = vld [vmem:[%s4503 + $0x9c] sm:$0xf]
        %v5520 = vld [vmem:[%s4503 + $0xa0] sm:$0xf]
        %v5521 = vld [vmem:[%s4503 + $0xa4] sm:$0x3]
        %v5522 = vld [vmem:[%s4503 + $0xa8] sm:$0xf]
        %v5523 = vld [vmem:[%s4503 + $0xac] sm:$0xf]
        %v5524 = vld [vmem:[%s4503 + $0xb0] sm:$0x3]
        %v5525 = vld [vmem:[%s4503 + $0xb4] sm:$0xf]
        %v5526 = vld [vmem:[%s4503 + $0xb8] sm:$0xf]
        %v5527 = vld [vmem:[%s4503 + $0xbc] sm:$0x3]
        %v5576 = vunpack.c.l.b16 %v5480
        %v5577 = vunpack.c.l.b16 %v5481
        %v5578 = vunpack.c.l.b16 %v5482
        %v5579 = vunpack.c.l.b16 %v5483
        %v5580 = vunpack.c.l.b16 %v5484
        %v5581 = vunpack.c.l.b16 %v5485
        %v5582 = vunpack.c.l.b16 %v5486
        %v5583 = vunpack.c.l.b16 %v5487
        %v5584 = vunpack.c.l.b16 %v5488
        %v5585 = vunpack.c.l.b16 %v5489
        %v5586 = vunpack.c.l.b16 %v5490
        %v5587 = vunpack.c.l.b16 %v5491
        %v5588 = vunpack.c.l.b16 %v5492
        %v5589 = vunpack.c.l.b16 %v5493
        %v5590 = vunpack.c.l.b16 %v5494
        %v5591 = vunpack.c.l.b16 %v5495
        %v5592 = vunpack.c.l.b16 %v5496
        %v5593 = vunpack.c.l.b16 %v5497
        %v5594 = vunpack.c.l.b16 %v5498
        %v5595 = vunpack.c.l.b16 %v5499
        %v5596 = vunpack.c.l.b16 %v5500
        %v5597 = vunpack.c.l.b16 %v5501
        %v5598 = vunpack.c.l.b16 %v5502
        %v5599 = vunpack.c.l.b16 %v5503
        %v5600 = vunpack.c.l.b16 %v5504
        %v5601 = vunpack.c.l.b16 %v5505
        %v5602 = vunpack.c.l.b16 %v5506
        %v5603 = vunpack.c.l.b16 %v5507
        %v5604 = vunpack.c.l.b16 %v5508
        %v5605 = vunpack.c.l.b16 %v5509
        %v5606 = vunpack.c.l.b16 %v5510
        %v5607 = vunpack.c.l.b16 %v5511
        %v5608 = vunpack.c.l.b16 %v5512
        %v5609 = vunpack.c.l.b16 %v5513
        %v5610 = vunpack.c.l.b16 %v5514
        %v5611 = vunpack.c.l.b16 %v5515
        %v5612 = vunpack.c.l.b16 %v5516
        %v5613 = vunpack.c.l.b16 %v5517
        %v5614 = vunpack.c.l.b16 %v5518
        %v5615 = vunpack.c.l.b16 %v5519
        %v5616 = vunpack.c.l.b16 %v5520
        %v5617 = vunpack.c.l.b16 %v5521
        %v5618 = vunpack.c.l.b16 %v5522
        %v5619 = vunpack.c.l.b16 %v5523
        %v5620 = vunpack.c.l.b16 %v5524
        %v5621 = vunpack.c.l.b16 %v5525
        %v5622 = vunpack.c.l.b16 %v5526
        %v5623 = vunpack.c.l.b16 %v5527
        %v5624 = vpack.c.b16 %v5577, %v5576
        %v5625 = vpack.c.b16 %v5578, %v5578
        %v5626 = vpack.c.b16 %v5580, %v5579
        %v5627 = vpack.c.b16 %v5581, %v5581
        %v5628 = vpack.c.b16 %v5583, %v5582
        %v5629 = vpack.c.b16 %v5584, %v5584
        %v5630 = vpack.c.b16 %v5586, %v5585
        %v5631 = vpack.c.b16 %v5587, %v5587
        %v5632 = vpack.c.b16 %v5589, %v5588
        %v5633 = vpack.c.b16 %v5590, %v5590
        %v5634 = vpack.c.b16 %v5592, %v5591
        %v5635 = vpack.c.b16 %v5593, %v5593
        %v5636 = vpack.c.b16 %v5595, %v5594
        %v5637 = vpack.c.b16 %v5596, %v5596
        %v5638 = vpack.c.b16 %v5598, %v5597
        %v5639 = vpack.c.b16 %v5599, %v5599
        %v5640 = vpack.c.b16 %v5601, %v5600
        %v5641 = vpack.c.b16 %v5602, %v5602
        %v5642 = vpack.c.b16 %v5604, %v5603
        %v5643 = vpack.c.b16 %v5605, %v5605
        %v5644 = vpack.c.b16 %v5607, %v5606
        %v5645 = vpack.c.b16 %v5608, %v5608
        %v5646 = vpack.c.b16 %v5610, %v5609
        %v5647 = vpack.c.b16 %v5611, %v5611
        %v5648 = vpack.c.b16 %v5613, %v5612
        %v5649 = vpack.c.b16 %v5614, %v5614
        %v5650 = vpack.c.b16 %v5616, %v5615
        %v5651 = vpack.c.b16 %v5617, %v5617
        %v5652 = vpack.c.b16 %v5619, %v5618
        %v5653 = vpack.c.b16 %v5620, %v5620
        %v5654 = vpack.c.b16 %v5622, %v5621
        %v5655 = vpack.c.b16 %v5623, %v5623
        %v5657 = vshrl.u32 %v5624, 16
        %v5659 = vshll.u32 %v5624, 16
        %v5661 = vrot.slane %v5659, 1
        %v5662 = vor.u32 %v5657, %v5661
        %v5664 = vshll.u32 %v5625, 16
        %v5666 = vrot.slane %v5664, 1
        %v5667 = vsel %vm1445, %v5662, %v5666
        %v5668 = vshrl.u32 %v5625, 16
        %v5671 = vshrl.u32 %v5626, 16
        %v5673 = vshll.u32 %v5626, 16
        %v5675 = vrot.slane %v5673, 1
        %v5676 = vor.u32 %v5671, %v5675
        %v5678 = vshll.u32 %v5627, 16
        %v5680 = vrot.slane %v5678, 1
        %v5681 = vsel %vm1445, %v5676, %v5680
        %v5682 = vshrl.u32 %v5627, 16
        %v5685 = vshrl.u32 %v5628, 16
        %v5687 = vshll.u32 %v5628, 16
        %v5689 = vrot.slane %v5687, 1
        %v5690 = vor.u32 %v5685, %v5689
        %v5692 = vshll.u32 %v5629, 16
        %v5694 = vrot.slane %v5692, 1
        %v5695 = vsel %vm1445, %v5690, %v5694
        %v5696 = vshrl.u32 %v5629, 16
        %v5699 = vshrl.u32 %v5630, 16
        %v5701 = vshll.u32 %v5630, 16
        %v5703 = vrot.slane %v5701, 1
        %v5704 = vor.u32 %v5699, %v5703
        %v5706 = vshll.u32 %v5631, 16
        %v5708 = vrot.slane %v5706, 1
        %v5709 = vsel %vm1445, %v5704, %v5708
        %v5710 = vshrl.u32 %v5631, 16
        %v5713 = vshrl.u32 %v5632, 16
        %v5715 = vshll.u32 %v5632, 16
        %v5717 = vrot.slane %v5715, 1
        %v5718 = vor.u32 %v5713, %v5717
        %v5720 = vshll.u32 %v5633, 16
        %v5722 = vrot.slane %v5720, 1
        %v5723 = vsel %vm1445, %v5718, %v5722
        %v5724 = vshrl.u32 %v5633, 16
        %v5727 = vshrl.u32 %v5634, 16
        %v5729 = vshll.u32 %v5634, 16
        %v5731 = vrot.slane %v5729, 1
        %v5732 = vor.u32 %v5727, %v5731
        %v5734 = vshll.u32 %v5635, 16
        %v5736 = vrot.slane %v5734, 1
        %v5737 = vsel %vm1445, %v5732, %v5736
        %v5738 = vshrl.u32 %v5635, 16
        %v5741 = vshrl.u32 %v5636, 16
        %v5743 = vshll.u32 %v5636, 16
        %v5745 = vrot.slane %v5743, 1
        %v5746 = vor.u32 %v5741, %v5745
        %v5748 = vshll.u32 %v5637, 16
        %v5750 = vrot.slane %v5748, 1
        %v5751 = vsel %vm1445, %v5746, %v5750
        %v5752 = vshrl.u32 %v5637, 16
        %v5755 = vshrl.u32 %v5638, 16
        %v5757 = vshll.u32 %v5638, 16
        %v5759 = vrot.slane %v5757, 1
        %v5760 = vor.u32 %v5755, %v5759
        %v5762 = vshll.u32 %v5639, 16
        %v5764 = vrot.slane %v5762, 1
        %v5765 = vsel %vm1445, %v5760, %v5764
        %v5766 = vshrl.u32 %v5639, 16
        %v5769 = vshrl.u32 %v5640, 16
        %v5771 = vshll.u32 %v5640, 16
        %v5773 = vrot.slane %v5771, 1
        %v5774 = vor.u32 %v5769, %v5773
        %v5776 = vshll.u32 %v5641, 16
        %v5778 = vrot.slane %v5776, 1
        %v5779 = vsel %vm1445, %v5774, %v5778
        %v5780 = vshrl.u32 %v5641, 16
        %v5783 = vshrl.u32 %v5642, 16
        %v5785 = vshll.u32 %v5642, 16
        %v5787 = vrot.slane %v5785, 1
        %v5788 = vor.u32 %v5783, %v5787
        %v5790 = vshll.u32 %v5643, 16
        %v5792 = vrot.slane %v5790, 1
        %v5793 = vsel %vm1445, %v5788, %v5792
        %v5794 = vshrl.u32 %v5643, 16
        %v5797 = vshrl.u32 %v5644, 16
        %v5799 = vshll.u32 %v5644, 16
        %v5801 = vrot.slane %v5799, 1
        %v5802 = vor.u32 %v5797, %v5801
        %v5804 = vshll.u32 %v5645, 16
        %v5806 = vrot.slane %v5804, 1
        %v5807 = vsel %vm1445, %v5802, %v5806
        %v5808 = vshrl.u32 %v5645, 16
        %v5811 = vshrl.u32 %v5646, 16
        %v5813 = vshll.u32 %v5646, 16
        %v5815 = vrot.slane %v5813, 1
        %v5816 = vor.u32 %v5811, %v5815
        %v5818 = vshll.u32 %v5647, 16
        %v5820 = vrot.slane %v5818, 1
        %v5821 = vsel %vm1445, %v5816, %v5820
        %v5822 = vshrl.u32 %v5647, 16
        %v5825 = vshrl.u32 %v5648, 16
        %v5827 = vshll.u32 %v5648, 16
        %v5829 = vrot.slane %v5827, 1
        %v5830 = vor.u32 %v5825, %v5829
        %v5832 = vshll.u32 %v5649, 16
        %v5834 = vrot.slane %v5832, 1
        %v5835 = vsel %vm1445, %v5830, %v5834
        %v5836 = vshrl.u32 %v5649, 16
        %v5839 = vshrl.u32 %v5650, 16
        %v5841 = vshll.u32 %v5650, 16
        %v5843 = vrot.slane %v5841, 1
        %v5844 = vor.u32 %v5839, %v5843
        %v5846 = vshll.u32 %v5651, 16
        %v5848 = vrot.slane %v5846, 1
        %v5849 = vsel %vm1445, %v5844, %v5848
        %v5850 = vshrl.u32 %v5651, 16
        %v5853 = vshrl.u32 %v5652, 16
        %v5855 = vshll.u32 %v5652, 16
        %v5857 = vrot.slane %v5855, 1
        %v5858 = vor.u32 %v5853, %v5857
        %v5860 = vshll.u32 %v5653, 16
        %v5862 = vrot.slane %v5860, 1
        %v5863 = vsel %vm1445, %v5858, %v5862
        %v5864 = vshrl.u32 %v5653, 16
        %v5867 = vshrl.u32 %v5654, 16
        %v5869 = vshll.u32 %v5654, 16
        %v5871 = vrot.slane %v5869, 1
        %v5872 = vor.u32 %v5867, %v5871
        %v5874 = vshll.u32 %v5655, 16
        %v5876 = vrot.slane %v5874, 1
        %v5877 = vsel %vm1445, %v5872, %v5876
        %v5878 = vshrl.u32 %v5655, 16
        %v5880 = vrot.slane %v5624, 1
        %v5881 = vrot.slane %v5625, 1
        %v5882 = vsel %vm1654, %v5880, %v5881
        %v5883 = vrot.slane %v5626, 1
        %v5884 = vrot.slane %v5627, 1
        %v5885 = vsel %vm1654, %v5883, %v5884
        %v5886 = vrot.slane %v5628, 1
        %v5887 = vrot.slane %v5629, 1
        %v5888 = vsel %vm1654, %v5886, %v5887
        %v5889 = vrot.slane %v5630, 1
        %v5890 = vrot.slane %v5631, 1
        %v5891 = vsel %vm1654, %v5889, %v5890
        %v5892 = vrot.slane %v5632, 1
        %v5893 = vrot.slane %v5633, 1
        %v5894 = vsel %vm1654, %v5892, %v5893
        %v5895 = vrot.slane %v5634, 1
        %v5896 = vrot.slane %v5635, 1
        %v5897 = vsel %vm1654, %v5895, %v5896
        %v5898 = vrot.slane %v5636, 1
        %v5899 = vrot.slane %v5637, 1
        %v5900 = vsel %vm1654, %v5898, %v5899
        %v5901 = vrot.slane %v5638, 1
        %v5902 = vrot.slane %v5639, 1
        %v5903 = vsel %vm1654, %v5901, %v5902
        %v5904 = vrot.slane %v5640, 1
        %v5905 = vrot.slane %v5641, 1
        %v5906 = vsel %vm1654, %v5904, %v5905
        %v5907 = vrot.slane %v5642, 1
        %v5908 = vrot.slane %v5643, 1
        %v5909 = vsel %vm1654, %v5907, %v5908
        %v5910 = vrot.slane %v5644, 1
        %v5911 = vrot.slane %v5645, 1
        %v5912 = vsel %vm1654, %v5910, %v5911
        %v5913 = vrot.slane %v5646, 1
        %v5914 = vrot.slane %v5647, 1
        %v5915 = vsel %vm1654, %v5913, %v5914
        %v5916 = vrot.slane %v5648, 1
        %v5917 = vrot.slane %v5649, 1
        %v5918 = vsel %vm1654, %v5916, %v5917
        %v5919 = vrot.slane %v5650, 1
        %v5920 = vrot.slane %v5651, 1
        %v5921 = vsel %vm1654, %v5919, %v5920
        %v5922 = vrot.slane %v5652, 1
        %v5923 = vrot.slane %v5653, 1
        %v5924 = vsel %vm1654, %v5922, %v5923
        %v5925 = vrot.slane %v5654, 1
        %v5926 = vrot.slane %v5655, 1
        %v5927 = vsel %vm1654, %v5925, %v5926
        %v5929 = vshrl.u32 %v5667, 16
        %v5931 = vshll.u32 %v5667, 16
        %v5933 = vrot.slane %v5931, 1
        %v5934 = vor.u32 %v5929, %v5933
        %v5936 = vshll.u32 %v5668, 16
        %v5938 = vrot.slane %v5936, 1
        %v5939 = vsel %vm1445, %v5934, %v5938
        %v5941 = vshrl.u32 %v5882, 16
        %v5943 = vshll.u32 %v5882, 16
        %v5945 = vrot.slane %v5943, 1
        %v5946 = vor.u32 %v5941, %v5945
        %v5948 = vshll.u32 %v5881, 16
        %v5950 = vrot.slane %v5948, 1
        %v5951 = vsel %vm1445, %v5946, %v5950
        %v5953 = vshrl.u32 %v5681, 16
        %v5955 = vshll.u32 %v5681, 16
        %v5957 = vrot.slane %v5955, 1
        %v5958 = vor.u32 %v5953, %v5957
        %v5960 = vshll.u32 %v5682, 16
        %v5962 = vrot.slane %v5960, 1
        %v5963 = vsel %vm1445, %v5958, %v5962
        %v5965 = vshrl.u32 %v5885, 16
        %v5967 = vshll.u32 %v5885, 16
        %v5969 = vrot.slane %v5967, 1
        %v5970 = vor.u32 %v5965, %v5969
        %v5972 = vshll.u32 %v5884, 16
        %v5974 = vrot.slane %v5972, 1
        %v5975 = vsel %vm1445, %v5970, %v5974
        %v5977 = vshrl.u32 %v5695, 16
        %v5979 = vshll.u32 %v5695, 16
        %v5981 = vrot.slane %v5979, 1
        %v5982 = vor.u32 %v5977, %v5981
        %v5984 = vshll.u32 %v5696, 16
        %v5986 = vrot.slane %v5984, 1
        %v5987 = vsel %vm1445, %v5982, %v5986
        %v5989 = vshrl.u32 %v5888, 16
        %v5991 = vshll.u32 %v5888, 16
        %v5993 = vrot.slane %v5991, 1
        %v5994 = vor.u32 %v5989, %v5993
        %v5996 = vshll.u32 %v5887, 16
        %v5998 = vrot.slane %v5996, 1
        %v5999 = vsel %vm1445, %v5994, %v5998
        %v6001 = vshrl.u32 %v5709, 16
        %v6003 = vshll.u32 %v5709, 16
        %v6005 = vrot.slane %v6003, 1
        %v6006 = vor.u32 %v6001, %v6005
        %v6008 = vshll.u32 %v5710, 16
        %v6010 = vrot.slane %v6008, 1
        %v6011 = vsel %vm1445, %v6006, %v6010
        %v6013 = vshrl.u32 %v5891, 16
        %v6015 = vshll.u32 %v5891, 16
        %v6017 = vrot.slane %v6015, 1
        %v6018 = vor.u32 %v6013, %v6017
        %v6020 = vshll.u32 %v5890, 16
        %v6022 = vrot.slane %v6020, 1
        %v6023 = vsel %vm1445, %v6018, %v6022
        %v6025 = vshrl.u32 %v5723, 16
        %v6027 = vshll.u32 %v5723, 16
        %v6029 = vrot.slane %v6027, 1
        %v6030 = vor.u32 %v6025, %v6029
        %v6032 = vshll.u32 %v5724, 16
        %v6034 = vrot.slane %v6032, 1
        %v6035 = vsel %vm1445, %v6030, %v6034
        %v6037 = vshrl.u32 %v5894, 16
        %v6039 = vshll.u32 %v5894, 16
        %v6041 = vrot.slane %v6039, 1
        %v6042 = vor.u32 %v6037, %v6041
        %v6044 = vshll.u32 %v5893, 16
        %v6046 = vrot.slane %v6044, 1
        %v6047 = vsel %vm1445, %v6042, %v6046
        %v6049 = vshrl.u32 %v5737, 16
        %v6051 = vshll.u32 %v5737, 16
        %v6053 = vrot.slane %v6051, 1
        %v6054 = vor.u32 %v6049, %v6053
        %v6056 = vshll.u32 %v5738, 16
        %v6058 = vrot.slane %v6056, 1
        %v6059 = vsel %vm1445, %v6054, %v6058
        %v6061 = vshrl.u32 %v5897, 16
        %v6063 = vshll.u32 %v5897, 16
        %v6065 = vrot.slane %v6063, 1
        %v6066 = vor.u32 %v6061, %v6065
        %v6068 = vshll.u32 %v5896, 16
        %v6070 = vrot.slane %v6068, 1
        %v6071 = vsel %vm1445, %v6066, %v6070
        %v6073 = vshrl.u32 %v5751, 16
        %v6075 = vshll.u32 %v5751, 16
        %v6077 = vrot.slane %v6075, 1
        %v6078 = vor.u32 %v6073, %v6077
        %v6080 = vshll.u32 %v5752, 16
        %v6082 = vrot.slane %v6080, 1
        %v6083 = vsel %vm1445, %v6078, %v6082
        %v6085 = vshrl.u32 %v5900, 16
        %v6087 = vshll.u32 %v5900, 16
        %v6089 = vrot.slane %v6087, 1
        %v6090 = vor.u32 %v6085, %v6089
        %v6092 = vshll.u32 %v5899, 16
        %v6094 = vrot.slane %v6092, 1
        %v6095 = vsel %vm1445, %v6090, %v6094
        %v6097 = vshrl.u32 %v5765, 16
        %v6099 = vshll.u32 %v5765, 16
        %v6101 = vrot.slane %v6099, 1
        %v6102 = vor.u32 %v6097, %v6101
        %v6104 = vshll.u32 %v5766, 16
        %v6106 = vrot.slane %v6104, 1
        %v6107 = vsel %vm1445, %v6102, %v6106
        %v6109 = vshrl.u32 %v5903, 16
        %v6111 = vshll.u32 %v5903, 16
        %v6113 = vrot.slane %v6111, 1
        %v6114 = vor.u32 %v6109, %v6113
        %v6116 = vshll.u32 %v5902, 16
        %v6118 = vrot.slane %v6116, 1
        %v6119 = vsel %vm1445, %v6114, %v6118
        %v6121 = vshrl.u32 %v5779, 16
        %v6123 = vshll.u32 %v5779, 16
        %v6125 = vrot.slane %v6123, 1
        %v6126 = vor.u32 %v6121, %v6125
        %v6128 = vshll.u32 %v5780, 16
        %v6130 = vrot.slane %v6128, 1
        %v6131 = vsel %vm1445, %v6126, %v6130
        %v6133 = vshrl.u32 %v5906, 16
        %v6135 = vshll.u32 %v5906, 16
        %v6137 = vrot.slane %v6135, 1
        %v6138 = vor.u32 %v6133, %v6137
        %v6140 = vshll.u32 %v5905, 16
        %v6142 = vrot.slane %v6140, 1
        %v6143 = vsel %vm1445, %v6138, %v6142
        %v6145 = vshrl.u32 %v5793, 16
        %v6147 = vshll.u32 %v5793, 16
        %v6149 = vrot.slane %v6147, 1
        %v6150 = vor.u32 %v6145, %v6149
        %v6152 = vshll.u32 %v5794, 16
        %v6154 = vrot.slane %v6152, 1
        %v6155 = vsel %vm1445, %v6150, %v6154
        %v6157 = vshrl.u32 %v5909, 16
        %v6159 = vshll.u32 %v5909, 16
        %v6161 = vrot.slane %v6159, 1
        %v6162 = vor.u32 %v6157, %v6161
        %v6164 = vshll.u32 %v5908, 16
        %v6166 = vrot.slane %v6164, 1
        %v6167 = vsel %vm1445, %v6162, %v6166
        %v6169 = vshrl.u32 %v5807, 16
        %v6171 = vshll.u32 %v5807, 16
        %v6173 = vrot.slane %v6171, 1
        %v6174 = vor.u32 %v6169, %v6173
        %v6176 = vshll.u32 %v5808, 16
        %v6178 = vrot.slane %v6176, 1
        %v6179 = vsel %vm1445, %v6174, %v6178
        %v6181 = vshrl.u32 %v5912, 16
        %v6183 = vshll.u32 %v5912, 16
        %v6185 = vrot.slane %v6183, 1
        %v6186 = vor.u32 %v6181, %v6185
        %v6188 = vshll.u32 %v5911, 16
        %v6190 = vrot.slane %v6188, 1
        %v6191 = vsel %vm1445, %v6186, %v6190
        %v6193 = vshrl.u32 %v5821, 16
        %v6195 = vshll.u32 %v5821, 16
        %v6197 = vrot.slane %v6195, 1
        %v6198 = vor.u32 %v6193, %v6197
        %v6200 = vshll.u32 %v5822, 16
        %v6202 = vrot.slane %v6200, 1
        %v6203 = vsel %vm1445, %v6198, %v6202
        %v6205 = vshrl.u32 %v5915, 16
        %v6207 = vshll.u32 %v5915, 16
        %v6209 = vrot.slane %v6207, 1
        %v6210 = vor.u32 %v6205, %v6209
        %v6212 = vshll.u32 %v5914, 16
        %v6214 = vrot.slane %v6212, 1
        %v6215 = vsel %vm1445, %v6210, %v6214
        %v6217 = vshrl.u32 %v5835, 16
        %v6219 = vshll.u32 %v5835, 16
        %v6221 = vrot.slane %v6219, 1
        %v6222 = vor.u32 %v6217, %v6221
        %v6224 = vshll.u32 %v5836, 16
        %v6226 = vrot.slane %v6224, 1
        %v6227 = vsel %vm1445, %v6222, %v6226
        %v6229 = vshrl.u32 %v5918, 16
        %v6231 = vshll.u32 %v5918, 16
        %v6233 = vrot.slane %v6231, 1
        %v6234 = vor.u32 %v6229, %v6233
        %v6236 = vshll.u32 %v5917, 16
        %v6238 = vrot.slane %v6236, 1
        %v6239 = vsel %vm1445, %v6234, %v6238
        %v6241 = vshrl.u32 %v5849, 16
        %v6243 = vshll.u32 %v5849, 16
        %v6245 = vrot.slane %v6243, 1
        %v6246 = vor.u32 %v6241, %v6245
        %v6248 = vshll.u32 %v5850, 16
        %v6250 = vrot.slane %v6248, 1
        %v6251 = vsel %vm1445, %v6246, %v6250
        %v6253 = vshrl.u32 %v5921, 16
        %v6255 = vshll.u32 %v5921, 16
        %v6257 = vrot.slane %v6255, 1
        %v6258 = vor.u32 %v6253, %v6257
        %v6260 = vshll.u32 %v5920, 16
        %v6262 = vrot.slane %v6260, 1
        %v6263 = vsel %vm1445, %v6258, %v6262
        %v6265 = vshrl.u32 %v5863, 16
        %v6267 = vshll.u32 %v5863, 16
        %v6269 = vrot.slane %v6267, 1
        %v6270 = vor.u32 %v6265, %v6269
        %v6272 = vshll.u32 %v5864, 16
        %v6274 = vrot.slane %v6272, 1
        %v6275 = vsel %vm1445, %v6270, %v6274
        %v6277 = vshrl.u32 %v5924, 16
        %v6279 = vshll.u32 %v5924, 16
        %v6281 = vrot.slane %v6279, 1
        %v6282 = vor.u32 %v6277, %v6281
        %v6284 = vshll.u32 %v5923, 16
        %v6286 = vrot.slane %v6284, 1
        %v6287 = vsel %vm1445, %v6282, %v6286
        %v6289 = vshrl.u32 %v5877, 16
        %v6291 = vshll.u32 %v5877, 16
        %v6293 = vrot.slane %v6291, 1
        %v6294 = vor.u32 %v6289, %v6293
        %v6296 = vshll.u32 %v5878, 16
        %v6298 = vrot.slane %v6296, 1
        %v6299 = vsel %vm1445, %v6294, %v6298
        %v6301 = vshrl.u32 %v5927, 16
        %v6303 = vshll.u32 %v5927, 16
        %v6305 = vrot.slane %v6303, 1
        %v6306 = vor.u32 %v6301, %v6305
        %v6308 = vshll.u32 %v5926, 16
        %v6310 = vrot.slane %v6308, 1
        %v6311 = vsel %vm1445, %v6306, %v6310
        %s6360 = scalar_lea.vmem %s4, 192
        %v6361 = vld [vmem:[%s6360] sm:$0xf]
        %v6362 = vld [vmem:[%s6360 + $0x4] sm:$0xf]
        %v6363 = vld [vmem:[%s6360 + $0x8] sm:$0xf]
        %v6364 = vld [vmem:[%s6360 + $0xc] sm:$0xf]
        %v6365 = vld [vmem:[%s6360 + $0x10] sm:$0xf]
        %v6366 = vld [vmem:[%s6360 + $0x14] sm:$0xf]
        %v6367 = vld [vmem:[%s6360 + $0x18] sm:$0xf]
        %v6368 = vld [vmem:[%s6360 + $0x1c] sm:$0xf]
        %v6369 = vld [vmem:[%s6360 + $0x20] sm:$0xf]
        %v6370 = vld [vmem:[%s6360 + $0x24] sm:$0xf]
        %v6371 = vld [vmem:[%s6360 + $0x28] sm:$0xf]
        %v6372 = vld [vmem:[%s6360 + $0x2c] sm:$0xf]
        %v6373 = vld [vmem:[%s6360 + $0x30] sm:$0xf]
        %v6374 = vld [vmem:[%s6360 + $0x34] sm:$0xf]
        %v6375 = vld [vmem:[%s6360 + $0x38] sm:$0xf]
        %v6376 = vld [vmem:[%s6360 + $0x3c] sm:$0xf]
        %v6377 = vld [vmem:[%s6360 + $0x40] sm:$0xf]
        %v6378 = vld [vmem:[%s6360 + $0x44] sm:$0xf]
        %v6379 = vld [vmem:[%s6360 + $0x48] sm:$0xf]
        %v6380 = vld [vmem:[%s6360 + $0x4c] sm:$0xf]
        %v6381 = vld [vmem:[%s6360 + $0x50] sm:$0xf]
        %v6382 = vld [vmem:[%s6360 + $0x54] sm:$0xf]
        %v6383 = vld [vmem:[%s6360 + $0x58] sm:$0xf]
        %v6384 = vld [vmem:[%s6360 + $0x5c] sm:$0xf]
        %v6385 = vld [vmem:[%s6360 + $0x60] sm:$0xf]
        %v6386 = vld [vmem:[%s6360 + $0x64] sm:$0xf]
        %v6387 = vld [vmem:[%s6360 + $0x68] sm:$0xf]
        %v6388 = vld [vmem:[%s6360 + $0x6c] sm:$0xf]
        %v6389 = vld [vmem:[%s6360 + $0x70] sm:$0xf]
        %v6390 = vld [vmem:[%s6360 + $0x74] sm:$0xf]
        %v6391 = vld [vmem:[%s6360 + $0x78] sm:$0xf]
        %v6392 = vld [vmem:[%s6360 + $0x7c] sm:$0xf]
        %v6393 = vld [vmem:[%s6360 + $0x80] sm:$0xf]
        %v6394 = vld [vmem:[%s6360 + $0x84] sm:$0xf]
        %v6395 = vld [vmem:[%s6360 + $0x88] sm:$0xf]
        %v6396 = vld [vmem:[%s6360 + $0x8c] sm:$0xf]
        %v6397 = vld [vmem:[%s6360 + $0x90] sm:$0xf]
        %v6398 = vld [vmem:[%s6360 + $0x94] sm:$0xf]
        %v6399 = vld [vmem:[%s6360 + $0x98] sm:$0xf]
        %v6400 = vld [vmem:[%s6360 + $0x9c] sm:$0xf]
        %v6401 = vld [vmem:[%s6360 + $0xa0] sm:$0xf]
        %v6402 = vld [vmem:[%s6360 + $0xa4] sm:$0xf]
        %v6403 = vld [vmem:[%s6360 + $0xa8] sm:$0xf]
        %v6404 = vld [vmem:[%s6360 + $0xac] sm:$0xf]
        %v6405 = vld [vmem:[%s6360 + $0xb0] sm:$0xf]
        %v6406 = vld [vmem:[%s6360 + $0xb4] sm:$0xf]
        %v6407 = vld [vmem:[%s6360 + $0xb8] sm:$0xf]
        %v6408 = vld [vmem:[%s6360 + $0xbc] sm:$0xf]
        %v6457 = vunpack.c.l.b16 %v6361
        %v6458 = vunpack.c.l.b16 %v6362
        %v6459 = vunpack.c.l.b16 %v6363
        %v6460 = vunpack.c.l.b16 %v6364
        %v6461 = vunpack.c.l.b16 %v6365
        %v6462 = vunpack.c.l.b16 %v6366
        %v6463 = vunpack.c.l.b16 %v6367
        %v6464 = vunpack.c.l.b16 %v6368
        %v6465 = vunpack.c.l.b16 %v6369
        %v6466 = vunpack.c.l.b16 %v6370
        %v6467 = vunpack.c.l.b16 %v6371
        %v6468 = vunpack.c.l.b16 %v6372
        %v6469 = vunpack.c.l.b16 %v6373
        %v6470 = vunpack.c.l.b16 %v6374
        %v6471 = vunpack.c.l.b16 %v6375
        %v6472 = vunpack.c.l.b16 %v6376
        %v6473 = vunpack.c.l.b16 %v6377
        %v6474 = vunpack.c.l.b16 %v6378
        %v6475 = vunpack.c.l.b16 %v6379
        %v6476 = vunpack.c.l.b16 %v6380
        %v6477 = vunpack.c.l.b16 %v6381
        %v6478 = vunpack.c.l.b16 %v6382
        %v6479 = vunpack.c.l.b16 %v6383
        %v6480 = vunpack.c.l.b16 %v6384
        %v6481 = vunpack.c.l.b16 %v6385
        %v6482 = vunpack.c.l.b16 %v6386
        %v6483 = vunpack.c.l.b16 %v6387
        %v6484 = vunpack.c.l.b16 %v6388
        %v6485 = vunpack.c.l.b16 %v6389
        %v6486 = vunpack.c.l.b16 %v6390
        %v6487 = vunpack.c.l.b16 %v6391
        %v6488 = vunpack.c.l.b16 %v6392
        %v6489 = vunpack.c.l.b16 %v6393
        %v6490 = vunpack.c.l.b16 %v6394
        %v6491 = vunpack.c.l.b16 %v6395
        %v6492 = vunpack.c.l.b16 %v6396
        %v6493 = vunpack.c.l.b16 %v6397
        %v6494 = vunpack.c.l.b16 %v6398
        %v6495 = vunpack.c.l.b16 %v6399
        %v6496 = vunpack.c.l.b16 %v6400
        %v6497 = vunpack.c.l.b16 %v6401
        %v6498 = vunpack.c.l.b16 %v6402
        %v6499 = vunpack.c.l.b16 %v6403
        %v6500 = vunpack.c.l.b16 %v6404
        %v6501 = vunpack.c.l.b16 %v6405
        %v6502 = vunpack.c.l.b16 %v6406
        %v6503 = vunpack.c.l.b16 %v6407
        %v6504 = vunpack.c.l.b16 %v6408
        %v6505 = vpack.c.b16 %v6458, %v6457
        %v6506 = vpack.c.b16 %v6460, %v6459
        %v6507 = vpack.c.b16 %v6462, %v6461
        %v6508 = vpack.c.b16 %v6464, %v6463
        %v6509 = vpack.c.b16 %v6466, %v6465
        %v6510 = vpack.c.b16 %v6468, %v6467
        %v6511 = vpack.c.b16 %v6470, %v6469
        %v6512 = vpack.c.b16 %v6472, %v6471
        %v6513 = vpack.c.b16 %v6474, %v6473
        %v6514 = vpack.c.b16 %v6476, %v6475
        %v6515 = vpack.c.b16 %v6478, %v6477
        %v6516 = vpack.c.b16 %v6480, %v6479
        %v6517 = vpack.c.b16 %v6482, %v6481
        %v6518 = vpack.c.b16 %v6484, %v6483
        %v6519 = vpack.c.b16 %v6486, %v6485
        %v6520 = vpack.c.b16 %v6488, %v6487
        %v6521 = vpack.c.b16 %v6490, %v6489
        %v6522 = vpack.c.b16 %v6492, %v6491
        %v6523 = vpack.c.b16 %v6494, %v6493
        %v6524 = vpack.c.b16 %v6496, %v6495
        %v6525 = vpack.c.b16 %v6498, %v6497
        %v6526 = vpack.c.b16 %v6500, %v6499
        %v6527 = vpack.c.b16 %v6502, %v6501
        %v6528 = vpack.c.b16 %v6504, %v6503
        %6553 = vmatpush.bf16.msra.mxu0 %v6512
        %6554 = vmatpush.bf16.msra.mxu0 %v6511
        %6555 = vmatpush.bf16.msra.mxu0 %v6510
        %6556 = vmatpush.bf16.msra.mxu0 %v6509
        %6557 = vmatpush.bf16.msra.mxu0 %v6508
        %6558 = vmatpush.bf16.msra.mxu0 %v6507
        %6559 = vmatpush.bf16.msra.mxu0 %v6506
        %6560 = vmatpush.bf16.msra.mxu0 %v6505
        %6561 = vmatmul.bf16.gmra.mxu0 %v5667
        %v6562 = vpop.f32.mrf.mxu0
        %v6563 = vadd.f32 0.0, %v6562
        %v6564 = vpop.f32.mrf.mxu0
        %v6565 = vadd.f32 0.0, %v6564
        %6566 = vmatmul.bf16.gmra.mxu0 %v5681
        %v6567 = vpop.f32.mrf.mxu0
        %v6568 = vadd.f32 0.0, %v6567
        %v6569 = vpop.f32.mrf.mxu0
        %v6570 = vadd.f32 0.0, %v6569
        %6571 = vmatmul.bf16.gmra.mxu0 %v5695
        %v6572 = vpop.f32.mrf.mxu0
        %v6573 = vadd.f32 0.0, %v6572
        %v6574 = vpop.f32.mrf.mxu0
        %v6575 = vadd.f32 0.0, %v6574
        %6576 = vmatmul.bf16.gmra.mxu0 %v5709
        %v6577 = vpop.f32.mrf.mxu0
        %v6578 = vadd.f32 0.0, %v6577
        %v6579 = vpop.f32.mrf.mxu0
        %v6580 = vadd.f32 0.0, %v6579
        %6581 = vmatmul.bf16.gmra.mxu0 %v5723
        %v6582 = vpop.f32.mrf.mxu0
        %v6583 = vadd.f32 0.0, %v6582
        %v6584 = vpop.f32.mrf.mxu0
        %v6585 = vadd.f32 0.0, %v6584
        %6586 = vmatmul.bf16.gmra.mxu0 %v5737
        %v6587 = vpop.f32.mrf.mxu0
        %v6588 = vadd.f32 0.0, %v6587
        %v6589 = vpop.f32.mrf.mxu0
        %v6590 = vadd.f32 0.0, %v6589
        %6591 = vmatmul.bf16.gmra.mxu0 %v5751
        %v6592 = vpop.f32.mrf.mxu0
        %v6593 = vadd.f32 0.0, %v6592
        %v6594 = vpop.f32.mrf.mxu0
        %v6595 = vadd.f32 0.0, %v6594
        %6596 = vmatmul.bf16.gmra.mxu0 %v5765
        %v6597 = vpop.f32.mrf.mxu0
        %v6598 = vadd.f32 0.0, %v6597
        %v6599 = vpop.f32.mrf.mxu0
        %v6600 = vadd.f32 0.0, %v6599
        %6601 = vmatmul.bf16.gmra.mxu0 %v5779
        %v6602 = vpop.f32.mrf.mxu0
        %v6603 = vadd.f32 0.0, %v6602
        %v6604 = vpop.f32.mrf.mxu0
        %v6605 = vadd.f32 0.0, %v6604
        %6606 = vmatmul.bf16.gmra.mxu0 %v5793
        %v6607 = vpop.f32.mrf.mxu0
        %v6608 = vadd.f32 0.0, %v6607
        %v6609 = vpop.f32.mrf.mxu0
        %v6610 = vadd.f32 0.0, %v6609
        %6611 = vmatmul.bf16.gmra.mxu0 %v5807
        %v6612 = vpop.f32.mrf.mxu0
        %v6613 = vadd.f32 0.0, %v6612
        %v6614 = vpop.f32.mrf.mxu0
        %v6615 = vadd.f32 0.0, %v6614
        %6616 = vmatmul.bf16.gmra.mxu0 %v5821
        %v6617 = vpop.f32.mrf.mxu0
        %v6618 = vadd.f32 0.0, %v6617
        %v6619 = vpop.f32.mrf.mxu0
        %v6620 = vadd.f32 0.0, %v6619
        %6621 = vmatmul.bf16.gmra.mxu0 %v5835
        %v6622 = vpop.f32.mrf.mxu0
        %v6623 = vadd.f32 0.0, %v6622
        %v6624 = vpop.f32.mrf.mxu0
        %v6625 = vadd.f32 0.0, %v6624
        %6626 = vmatmul.bf16.gmra.mxu0 %v5849
        %v6627 = vpop.f32.mrf.mxu0
        %v6628 = vadd.f32 0.0, %v6627
        %v6629 = vpop.f32.mrf.mxu0
        %v6630 = vadd.f32 0.0, %v6629
        %6631 = vmatmul.bf16.gmra.mxu0 %v5863
        %v6632 = vpop.f32.mrf.mxu0
        %v6633 = vadd.f32 0.0, %v6632
        %v6634 = vpop.f32.mrf.mxu0
        %v6635 = vadd.f32 0.0, %v6634
        %6636 = vmatmul.bf16.gmra.mxu0 %v5877
        %v6637 = vpop.f32.mrf.mxu0
        %v6638 = vadd.f32 0.0, %v6637
        %v6639 = vpop.f32.mrf.mxu0
        %v6640 = vadd.f32 0.0, %v6639
        %6641 = vdwg.mxu0
        %6642 = vmatpush.bf16.msra.mxu0 %v6520
        %6643 = vmatpush.bf16.msra.mxu0 %v6519
        %6644 = vmatpush.bf16.msra.mxu0 %v6518
        %6645 = vmatpush.bf16.msra.mxu0 %v6517
        %6646 = vmatpush.bf16.msra.mxu0 %v6516
        %6647 = vmatpush.bf16.msra.mxu0 %v6515
        %6648 = vmatpush.bf16.msra.mxu0 %v6514
        %6649 = vmatpush.bf16.msra.mxu0 %v6513
        %6650 = vmatmul.bf16.gmra.mxu0 %v5939
        %v6651 = vpop.f32.mrf.mxu0
        %v6652 = vadd.f32 %v6563, %v6651
        %v6653 = vpop.f32.mrf.mxu0
        %v6654 = vadd.f32 %v6565, %v6653
        %6655 = vmatmul.bf16.gmra.mxu0 %v5963
        %v6656 = vpop.f32.mrf.mxu0
        %v6657 = vadd.f32 %v6568, %v6656
        %v6658 = vpop.f32.mrf.mxu0
        %v6659 = vadd.f32 %v6570, %v6658
        %6660 = vmatmul.bf16.gmra.mxu0 %v5987
        %v6661 = vpop.f32.mrf.mxu0
        %v6662 = vadd.f32 %v6573, %v6661
        %v6663 = vpop.f32.mrf.mxu0
        %v6664 = vadd.f32 %v6575, %v6663
        %6665 = vmatmul.bf16.gmra.mxu0 %v6011
        %v6666 = vpop.f32.mrf.mxu0
        %v6667 = vadd.f32 %v6578, %v6666
        %v6668 = vpop.f32.mrf.mxu0
        %v6669 = vadd.f32 %v6580, %v6668
        %6670 = vmatmul.bf16.gmra.mxu0 %v6035
        %v6671 = vpop.f32.mrf.mxu0
        %v6672 = vadd.f32 %v6583, %v6671
        %v6673 = vpop.f32.mrf.mxu0
        %v6674 = vadd.f32 %v6585, %v6673
        %6675 = vmatmul.bf16.gmra.mxu0 %v6059
        %v6676 = vpop.f32.mrf.mxu0
        %v6677 = vadd.f32 %v6588, %v6676
        %v6678 = vpop.f32.mrf.mxu0
        %v6679 = vadd.f32 %v6590, %v6678
        %6680 = vmatmul.bf16.gmra.mxu0 %v6083
        %v6681 = vpop.f32.mrf.mxu0
        %v6682 = vadd.f32 %v6593, %v6681
        %v6683 = vpop.f32.mrf.mxu0
        %v6684 = vadd.f32 %v6595, %v6683
        %6685 = vmatmul.bf16.gmra.mxu0 %v6107
        %v6686 = vpop.f32.mrf.mxu0
        %v6687 = vadd.f32 %v6598, %v6686
        %v6688 = vpop.f32.mrf.mxu0
        %v6689 = vadd.f32 %v6600, %v6688
        %6690 = vmatmul.bf16.gmra.mxu0 %v6131
        %v6691 = vpop.f32.mrf.mxu0
        %v6692 = vadd.f32 %v6603, %v6691
        %v6693 = vpop.f32.mrf.mxu0
        %v6694 = vadd.f32 %v6605, %v6693
        %6695 = vmatmul.bf16.gmra.mxu0 %v6155
        %v6696 = vpop.f32.mrf.mxu0
        %v6697 = vadd.f32 %v6608, %v6696
        %v6698 = vpop.f32.mrf.mxu0
        %v6699 = vadd.f32 %v6610, %v6698
        %6700 = vmatmul.bf16.gmra.mxu0 %v6179
        %v6701 = vpop.f32.mrf.mxu0
        %v6702 = vadd.f32 %v6613, %v6701
        %v6703 = vpop.f32.mrf.mxu0
        %v6704 = vadd.f32 %v6615, %v6703
        %6705 = vmatmul.bf16.gmra.mxu0 %v6203
        %v6706 = vpop.f32.mrf.mxu0
        %v6707 = vadd.f32 %v6618, %v6706
        %v6708 = vpop.f32.mrf.mxu0
        %v6709 = vadd.f32 %v6620, %v6708
        %6710 = vmatmul.bf16.gmra.mxu0 %v6227
        %v6711 = vpop.f32.mrf.mxu0
        %v6712 = vadd.f32 %v6623, %v6711
        %v6713 = vpop.f32.mrf.mxu0
        %v6714 = vadd.f32 %v6625, %v6713
        %6715 = vmatmul.bf16.gmra.mxu0 %v6251
        %v6716 = vpop.f32.mrf.mxu0
        %v6717 = vadd.f32 %v6628, %v6716
        %v6718 = vpop.f32.mrf.mxu0
        %v6719 = vadd.f32 %v6630, %v6718
        %6720 = vmatmul.bf16.gmra.mxu0 %v6275
        %v6721 = vpop.f32.mrf.mxu0
        %v6722 = vadd.f32 %v6633, %v6721
        %v6723 = vpop.f32.mrf.mxu0
        %v6724 = vadd.f32 %v6635, %v6723
        %6725 = vmatmul.bf16.gmra.mxu0 %v6299
        %v6726 = vpop.f32.mrf.mxu0
        %v6727 = vadd.f32 %v6638, %v6726
        %v6728 = vpop.f32.mrf.mxu0
        %v6729 = vadd.f32 %v6640, %v6728
        %6730 = vdwg.mxu0
        %6731 = vmatpush.bf16.msra.mxu0 %v6528
        %6732 = vmatpush.bf16.msra.mxu0 %v6527
        %6733 = vmatpush.bf16.msra.mxu0 %v6526
        %6734 = vmatpush.bf16.msra.mxu0 %v6525
        %6735 = vmatpush.bf16.msra.mxu0 %v6524
        %6736 = vmatpush.bf16.msra.mxu0 %v6523
        %6737 = vmatpush.bf16.msra.mxu0 %v6522
        %6738 = vmatpush.bf16.msra.mxu0 %v6521
        %6739 = vmatmul.bf16.gmra.mxu0 %v5951
        %v6740 = vpop.f32.mrf.mxu0
        %v6741 = vadd.f32 %v6652, %v6740
        %v6742 = vpop.f32.mrf.mxu0
        %v6743 = vadd.f32 %v6654, %v6742
        %6744 = vmatmul.bf16.gmra.mxu0 %v5975
        %v6745 = vpop.f32.mrf.mxu0
        %v6746 = vadd.f32 %v6657, %v6745
        %v6747 = vpop.f32.mrf.mxu0
        %v6748 = vadd.f32 %v6659, %v6747
        %6749 = vmatmul.bf16.gmra.mxu0 %v5999
        %v6750 = vpop.f32.mrf.mxu0
        %v6751 = vadd.f32 %v6662, %v6750
        %v6752 = vpop.f32.mrf.mxu0
        %v6753 = vadd.f32 %v6664, %v6752
        %6754 = vmatmul.bf16.gmra.mxu0 %v6023
        %v6755 = vpop.f32.mrf.mxu0
        %v6756 = vadd.f32 %v6667, %v6755
        %v6757 = vpop.f32.mrf.mxu0
        %v6758 = vadd.f32 %v6669, %v6757
        %6759 = vmatmul.bf16.gmra.mxu0 %v6047
        %v6760 = vpop.f32.mrf.mxu0
        %v6761 = vadd.f32 %v6672, %v6760
        %v6762 = vpop.f32.mrf.mxu0
        %v6763 = vadd.f32 %v6674, %v6762
        %6764 = vmatmul.bf16.gmra.mxu0 %v6071
        %v6765 = vpop.f32.mrf.mxu0
        %v6766 = vadd.f32 %v6677, %v6765
        %v6767 = vpop.f32.mrf.mxu0
        %v6768 = vadd.f32 %v6679, %v6767
        %6769 = vmatmul.bf16.gmra.mxu0 %v6095
        %v6770 = vpop.f32.mrf.mxu0
        %v6771 = vadd.f32 %v6682, %v6770
        %v6772 = vpop.f32.mrf.mxu0
        %v6773 = vadd.f32 %v6684, %v6772
        %6774 = vmatmul.bf16.gmra.mxu0 %v6119
        %v6775 = vpop.f32.mrf.mxu0
        %v6776 = vadd.f32 %v6687, %v6775
        %v6777 = vpop.f32.mrf.mxu0
        %v6778 = vadd.f32 %v6689, %v6777
        %6779 = vmatmul.bf16.gmra.mxu0 %v6143
        %v6780 = vpop.f32.mrf.mxu0
        %v6781 = vadd.f32 %v6692, %v6780
        %v6782 = vpop.f32.mrf.mxu0
        %v6783 = vadd.f32 %v6694, %v6782
        %6784 = vmatmul.bf16.gmra.mxu0 %v6167
        %v6785 = vpop.f32.mrf.mxu0
        %v6786 = vadd.f32 %v6697, %v6785
        %v6787 = vpop.f32.mrf.mxu0
        %v6788 = vadd.f32 %v6699, %v6787
        %6789 = vmatmul.bf16.gmra.mxu0 %v6191
        %v6790 = vpop.f32.mrf.mxu0
        %v6791 = vadd.f32 %v6702, %v6790
        %v6792 = vpop.f32.mrf.mxu0
        %v6793 = vadd.f32 %v6704, %v6792
        %6794 = vmatmul.bf16.gmra.mxu0 %v6215
        %v6795 = vpop.f32.mrf.mxu0
        %v6796 = vadd.f32 %v6707, %v6795
        %v6797 = vpop.f32.mrf.mxu0
        %v6798 = vadd.f32 %v6709, %v6797
        %6799 = vmatmul.bf16.gmra.mxu0 %v6239
        %v6800 = vpop.f32.mrf.mxu0
        %v6801 = vadd.f32 %v6712, %v6800
        %v6802 = vpop.f32.mrf.mxu0
        %v6803 = vadd.f32 %v6714, %v6802
        %6804 = vmatmul.bf16.gmra.mxu0 %v6263
        %v6805 = vpop.f32.mrf.mxu0
        %v6806 = vadd.f32 %v6717, %v6805
        %v6807 = vpop.f32.mrf.mxu0
        %v6808 = vadd.f32 %v6719, %v6807
        %6809 = vmatmul.bf16.gmra.mxu0 %v6287
        %v6810 = vpop.f32.mrf.mxu0
        %v6811 = vadd.f32 %v6722, %v6810
        %v6812 = vpop.f32.mrf.mxu0
        %v6813 = vadd.f32 %v6724, %v6812
        %6814 = vmatmul.bf16.gmra.mxu0 %v6311
        %v6815 = vpop.f32.mrf.mxu0
        %v6816 = vadd.f32 %v6727, %v6815
        %v6817 = vpop.f32.mrf.mxu0
        %v6818 = vadd.f32 %v6729, %v6817
        %6819 = vdwg.mxu0
        %v6868 = vunpack.c.l.b16 %v5432
        %v6869 = vunpack.c.l.b16 %v5433
        %v6870 = vunpack.c.l.b16 %v5434
        %v6871 = vunpack.c.l.b16 %v5435
        %v6872 = vunpack.c.l.b16 %v5436
        %v6873 = vunpack.c.l.b16 %v5437
        %v6874 = vunpack.c.l.b16 %v5438
        %v6875 = vunpack.c.l.b16 %v5439
        %v6876 = vunpack.c.l.b16 %v5440
        %v6877 = vunpack.c.l.b16 %v5441
        %v6878 = vunpack.c.l.b16 %v5442
        %v6879 = vunpack.c.l.b16 %v5443
        %v6880 = vunpack.c.l.b16 %v5444
        %v6881 = vunpack.c.l.b16 %v5445
        %v6882 = vunpack.c.l.b16 %v5446
        %v6883 = vunpack.c.l.b16 %v5447
        %v6884 = vunpack.c.l.b16 %v5448
        %v6885 = vunpack.c.l.b16 %v5449
        %v6886 = vunpack.c.l.b16 %v5450
        %v6887 = vunpack.c.l.b16 %v5451
        %v6888 = vunpack.c.l.b16 %v5452
        %v6889 = vunpack.c.l.b16 %v5453
        %v6890 = vunpack.c.l.b16 %v5454
        %v6891 = vunpack.c.l.b16 %v5455
        %v6892 = vunpack.c.l.b16 %v5456
        %v6893 = vunpack.c.l.b16 %v5457
        %v6894 = vunpack.c.l.b16 %v5458
        %v6895 = vunpack.c.l.b16 %v5459
        %v6896 = vunpack.c.l.b16 %v5460
        %v6897 = vunpack.c.l.b16 %v5461
        %v6898 = vunpack.c.l.b16 %v5462
        %v6899 = vunpack.c.l.b16 %v5463
        %v6900 = vunpack.c.l.b16 %v5464
        %v6901 = vunpack.c.l.b16 %v5465
        %v6902 = vunpack.c.l.b16 %v5466
        %v6903 = vunpack.c.l.b16 %v5467
        %v6904 = vunpack.c.l.b16 %v5468
        %v6905 = vunpack.c.l.b16 %v5469
        %v6906 = vunpack.c.l.b16 %v5470
        %v6907 = vunpack.c.l.b16 %v5471
        %v6908 = vunpack.c.l.b16 %v5472
        %v6909 = vunpack.c.l.b16 %v5473
        %v6910 = vunpack.c.l.b16 %v5474
        %v6911 = vunpack.c.l.b16 %v5475
        %v6912 = vunpack.c.l.b16 %v5476
        %v6913 = vunpack.c.l.b16 %v5477
        %v6914 = vunpack.c.l.b16 %v5478
        %v6915 = vunpack.c.l.b16 %v5479
        %v6916 = vpack.c.b16 %v6869, %v6868
        %v6917 = vpack.c.b16 %v6871, %v6870
        %v6918 = vpack.c.b16 %v6873, %v6872
        %v6919 = vpack.c.b16 %v6875, %v6874
        %v6920 = vpack.c.b16 %v6877, %v6876
        %v6921 = vpack.c.b16 %v6879, %v6878
        %v6922 = vpack.c.b16 %v6881, %v6880
        %v6923 = vpack.c.b16 %v6883, %v6882
        %v6924 = vpack.c.b16 %v6885, %v6884
        %v6925 = vpack.c.b16 %v6887, %v6886
        %v6926 = vpack.c.b16 %v6889, %v6888
        %v6927 = vpack.c.b16 %v6891, %v6890
        %v6928 = vpack.c.b16 %v6893, %v6892
        %v6929 = vpack.c.b16 %v6895, %v6894
        %v6930 = vpack.c.b16 %v6897, %v6896
        %v6931 = vpack.c.b16 %v6899, %v6898
        %v6932 = vpack.c.b16 %v6901, %v6900
        %v6933 = vpack.c.b16 %v6903, %v6902
        %v6934 = vpack.c.b16 %v6905, %v6904
        %v6935 = vpack.c.b16 %v6907, %v6906
        %v6936 = vpack.c.b16 %v6909, %v6908
        %v6937 = vpack.c.b16 %v6911, %v6910
        %v6938 = vpack.c.b16 %v6913, %v6912
        %v6939 = vpack.c.b16 %v6915, %v6914
        %6964 = vmatpush.bf16.msra.mxu0 %v6923
        %6965 = vmatpush.bf16.msra.mxu0 %v6922
        %6966 = vmatpush.bf16.msra.mxu0 %v6921
        %6967 = vmatpush.bf16.msra.mxu0 %v6920
        %6968 = vmatpush.bf16.msra.mxu0 %v6919
        %6969 = vmatpush.bf16.msra.mxu0 %v6918
        %6970 = vmatpush.bf16.msra.mxu0 %v6917
        %6971 = vmatpush.bf16.msra.mxu0 %v6916
        %6972 = vmatmul.bf16.gmra.mxu0 %v4739
        %v6973 = vpop.f32.mrf.mxu0
        %v6974 = vadd.f32 %v6741, %v6973
        %v6975 = vpop.f32.mrf.mxu0
        %v6976 = vadd.f32 %v6743, %v6975
        %6977 = vmatmul.bf16.gmra.mxu0 %v4753
        %v6978 = vpop.f32.mrf.mxu0
        %v6979 = vadd.f32 %v6746, %v6978
        %v6980 = vpop.f32.mrf.mxu0
        %v6981 = vadd.f32 %v6748, %v6980
        %6982 = vmatmul.bf16.gmra.mxu0 %v4767
        %v6983 = vpop.f32.mrf.mxu0
        %v6984 = vadd.f32 %v6751, %v6983
        %v6985 = vpop.f32.mrf.mxu0
        %v6986 = vadd.f32 %v6753, %v6985
        %6987 = vmatmul.bf16.gmra.mxu0 %v4781
        %v6988 = vpop.f32.mrf.mxu0
        %v6989 = vadd.f32 %v6756, %v6988
        %v6990 = vpop.f32.mrf.mxu0
        %v6991 = vadd.f32 %v6758, %v6990
        %6992 = vmatmul.bf16.gmra.mxu0 %v4795
        %v6993 = vpop.f32.mrf.mxu0
        %v6994 = vadd.f32 %v6761, %v6993
        %v6995 = vpop.f32.mrf.mxu0
        %v6996 = vadd.f32 %v6763, %v6995
        %6997 = vmatmul.bf16.gmra.mxu0 %v4809
        %v6998 = vpop.f32.mrf.mxu0
        %v6999 = vadd.f32 %v6766, %v6998
        %v7000 = vpop.f32.mrf.mxu0
        %v7001 = vadd.f32 %v6768, %v7000
        %7002 = vmatmul.bf16.gmra.mxu0 %v4823
        %v7003 = vpop.f32.mrf.mxu0
        %v7004 = vadd.f32 %v6771, %v7003
        %v7005 = vpop.f32.mrf.mxu0
        %v7006 = vadd.f32 %v6773, %v7005
        %7007 = vmatmul.bf16.gmra.mxu0 %v4837
        %v7008 = vpop.f32.mrf.mxu0
        %v7009 = vadd.f32 %v6776, %v7008
        %v7010 = vpop.f32.mrf.mxu0
        %v7011 = vadd.f32 %v6778, %v7010
        %7012 = vmatmul.bf16.gmra.mxu0 %v4851
        %v7013 = vpop.f32.mrf.mxu0
        %v7014 = vadd.f32 %v6781, %v7013
        %v7015 = vpop.f32.mrf.mxu0
        %v7016 = vadd.f32 %v6783, %v7015
        %7017 = vmatmul.bf16.gmra.mxu0 %v4865
        %v7018 = vpop.f32.mrf.mxu0
        %v7019 = vadd.f32 %v6786, %v7018
        %v7020 = vpop.f32.mrf.mxu0
        %v7021 = vadd.f32 %v6788, %v7020
        %7022 = vmatmul.bf16.gmra.mxu0 %v4879
        %v7023 = vpop.f32.mrf.mxu0
        %v7024 = vadd.f32 %v6791, %v7023
        %v7025 = vpop.f32.mrf.mxu0
        %v7026 = vadd.f32 %v6793, %v7025
        %7027 = vmatmul.bf16.gmra.mxu0 %v4893
        %v7028 = vpop.f32.mrf.mxu0
        %v7029 = vadd.f32 %v6796, %v7028
        %v7030 = vpop.f32.mrf.mxu0
        %v7031 = vadd.f32 %v6798, %v7030
        %7032 = vmatmul.bf16.gmra.mxu0 %v4907
        %v7033 = vpop.f32.mrf.mxu0
        %v7034 = vadd.f32 %v6801, %v7033
        %v7035 = vpop.f32.mrf.mxu0
        %v7036 = vadd.f32 %v6803, %v7035
        %7037 = vmatmul.bf16.gmra.mxu0 %v4921
        %v7038 = vpop.f32.mrf.mxu0
        %v7039 = vadd.f32 %v6806, %v7038
        %v7040 = vpop.f32.mrf.mxu0
        %v7041 = vadd.f32 %v6808, %v7040
        %7042 = vmatmul.bf16.gmra.mxu0 %v4935
        %v7043 = vpop.f32.mrf.mxu0
        %v7044 = vadd.f32 %v6811, %v7043
        %v7045 = vpop.f32.mrf.mxu0
        %v7046 = vadd.f32 %v6813, %v7045
        %7047 = vmatmul.bf16.gmra.mxu0 %v4949
        %v7048 = vpop.f32.mrf.mxu0
        %v7049 = vadd.f32 %v6816, %v7048
        %v7050 = vpop.f32.mrf.mxu0
        %v7051 = vadd.f32 %v6818, %v7050
        %7052 = vdwg.mxu0
        %7053 = vmatpush.bf16.msra.mxu0 %v6931
        %7054 = vmatpush.bf16.msra.mxu0 %v6930
        %7055 = vmatpush.bf16.msra.mxu0 %v6929
        %7056 = vmatpush.bf16.msra.mxu0 %v6928
        %7057 = vmatpush.bf16.msra.mxu0 %v6927
        %7058 = vmatpush.bf16.msra.mxu0 %v6926
        %7059 = vmatpush.bf16.msra.mxu0 %v6925
        %7060 = vmatpush.bf16.msra.mxu0 %v6924
        %7061 = vmatmul.bf16.gmra.mxu0 %v5011
        %v7062 = vpop.f32.mrf.mxu0
        %v7063 = vadd.f32 %v6974, %v7062
        %v7064 = vpop.f32.mrf.mxu0
        %v7065 = vadd.f32 %v6976, %v7064
        %7066 = vmatmul.bf16.gmra.mxu0 %v5035
        %v7067 = vpop.f32.mrf.mxu0
        %v7068 = vadd.f32 %v6979, %v7067
        %v7069 = vpop.f32.mrf.mxu0
        %v7070 = vadd.f32 %v6981, %v7069
        %7071 = vmatmul.bf16.gmra.mxu0 %v5059
        %v7072 = vpop.f32.mrf.mxu0
        %v7073 = vadd.f32 %v6984, %v7072
        %v7074 = vpop.f32.mrf.mxu0
        %v7075 = vadd.f32 %v6986, %v7074
        %7076 = vmatmul.bf16.gmra.mxu0 %v5083
        %v7077 = vpop.f32.mrf.mxu0
        %v7078 = vadd.f32 %v6989, %v7077
        %v7079 = vpop.f32.mrf.mxu0
        %v7080 = vadd.f32 %v6991, %v7079
        %7081 = vmatmul.bf16.gmra.mxu0 %v5107
        %v7082 = vpop.f32.mrf.mxu0
        %v7083 = vadd.f32 %v6994, %v7082
        %v7084 = vpop.f32.mrf.mxu0
        %v7085 = vadd.f32 %v6996, %v7084
        %7086 = vmatmul.bf16.gmra.mxu0 %v5131
        %v7087 = vpop.f32.mrf.mxu0
        %v7088 = vadd.f32 %v6999, %v7087
        %v7089 = vpop.f32.mrf.mxu0
        %v7090 = vadd.f32 %v7001, %v7089
        %7091 = vmatmul.bf16.gmra.mxu0 %v5155
        %v7092 = vpop.f32.mrf.mxu0
        %v7093 = vadd.f32 %v7004, %v7092
        %v7094 = vpop.f32.mrf.mxu0
        %v7095 = vadd.f32 %v7006, %v7094
        %7096 = vmatmul.bf16.gmra.mxu0 %v5179
        %v7097 = vpop.f32.mrf.mxu0
        %v7098 = vadd.f32 %v7009, %v7097
        %v7099 = vpop.f32.mrf.mxu0
        %v7100 = vadd.f32 %v7011, %v7099
        %7101 = vmatmul.bf16.gmra.mxu0 %v5203
        %v7102 = vpop.f32.mrf.mxu0
        %v7103 = vadd.f32 %v7014, %v7102
        %v7104 = vpop.f32.mrf.mxu0
        %v7105 = vadd.f32 %v7016, %v7104
        %7106 = vmatmul.bf16.gmra.mxu0 %v5227
        %v7107 = vpop.f32.mrf.mxu0
        %v7108 = vadd.f32 %v7019, %v7107
        %v7109 = vpop.f32.mrf.mxu0
        %v7110 = vadd.f32 %v7021, %v7109
        %7111 = vmatmul.bf16.gmra.mxu0 %v5251
        %v7112 = vpop.f32.mrf.mxu0
        %v7113 = vadd.f32 %v7024, %v7112
        %v7114 = vpop.f32.mrf.mxu0
        %v7115 = vadd.f32 %v7026, %v7114
        %7116 = vmatmul.bf16.gmra.mxu0 %v5275
        %v7117 = vpop.f32.mrf.mxu0
        %v7118 = vadd.f32 %v7029, %v7117
        %v7119 = vpop.f32.mrf.mxu0
        %v7120 = vadd.f32 %v7031, %v7119
        %7121 = vmatmul.bf16.gmra.mxu0 %v5299
        %v7122 = vpop.f32.mrf.mxu0
        %v7123 = vadd.f32 %v7034, %v7122
        %v7124 = vpop.f32.mrf.mxu0
        %v7125 = vadd.f32 %v7036, %v7124
        %7126 = vmatmul.bf16.gmra.mxu0 %v5323
        %v7127 = vpop.f32.mrf.mxu0
        %v7128 = vadd.f32 %v7039, %v7127
        %v7129 = vpop.f32.mrf.mxu0
        %v7130 = vadd.f32 %v7041, %v7129
        %7131 = vmatmul.bf16.gmra.mxu0 %v5347
        %v7132 = vpop.f32.mrf.mxu0
        %v7133 = vadd.f32 %v7044, %v7132
        %v7134 = vpop.f32.mrf.mxu0
        %v7135 = vadd.f32 %v7046, %v7134
        %7136 = vmatmul.bf16.gmra.mxu0 %v5371
        %v7137 = vpop.f32.mrf.mxu0
        %v7138 = vadd.f32 %v7049, %v7137
        %v7139 = vpop.f32.mrf.mxu0
        %v7140 = vadd.f32 %v7051, %v7139
        %7141 = vdwg.mxu0
        %7142 = vmatpush.bf16.msra.mxu0 %v6939
        %7143 = vmatpush.bf16.msra.mxu0 %v6938
        %7144 = vmatpush.bf16.msra.mxu0 %v6937
        %7145 = vmatpush.bf16.msra.mxu0 %v6936
        %7146 = vmatpush.bf16.msra.mxu0 %v6935
        %7147 = vmatpush.bf16.msra.mxu0 %v6934
        %7148 = vmatpush.bf16.msra.mxu0 %v6933
        %7149 = vmatpush.bf16.msra.mxu0 %v6932
        %7150 = vmatmul.bf16.gmra.mxu0 %v5023
        %v7151 = vpop.f32.mrf.mxu0
        %v7152 = vadd.f32 %v7063, %v7151
        %v7153 = vpop.f32.mrf.mxu0
        %v7154 = vadd.f32 %v7065, %v7153
        %7155 = vmatmul.bf16.gmra.mxu0 %v5047
        %v7156 = vpop.f32.mrf.mxu0
        %v7157 = vadd.f32 %v7068, %v7156
        %v7158 = vpop.f32.mrf.mxu0
        %v7159 = vadd.f32 %v7070, %v7158
        %7160 = vmatmul.bf16.gmra.mxu0 %v5071
        %v7161 = vpop.f32.mrf.mxu0
        %v7162 = vadd.f32 %v7073, %v7161
        %v7163 = vpop.f32.mrf.mxu0
        %v7164 = vadd.f32 %v7075, %v7163
        %7165 = vmatmul.bf16.gmra.mxu0 %v5095
        %v7166 = vpop.f32.mrf.mxu0
        %v7167 = vadd.f32 %v7078, %v7166
        %v7168 = vpop.f32.mrf.mxu0
        %v7169 = vadd.f32 %v7080, %v7168
        %7170 = vmatmul.bf16.gmra.mxu0 %v5119
        %v7171 = vpop.f32.mrf.mxu0
        %v7172 = vadd.f32 %v7083, %v7171
        %v7173 = vpop.f32.mrf.mxu0
        %v7174 = vadd.f32 %v7085, %v7173
        %7175 = vmatmul.bf16.gmra.mxu0 %v5143
        %v7176 = vpop.f32.mrf.mxu0
        %v7177 = vadd.f32 %v7088, %v7176
        %v7178 = vpop.f32.mrf.mxu0
        %v7179 = vadd.f32 %v7090, %v7178
        %7180 = vmatmul.bf16.gmra.mxu0 %v5167
        %v7181 = vpop.f32.mrf.mxu0
        %v7182 = vadd.f32 %v7093, %v7181
        %v7183 = vpop.f32.mrf.mxu0
        %v7184 = vadd.f32 %v7095, %v7183
        %7185 = vmatmul.bf16.gmra.mxu0 %v5191
        %v7186 = vpop.f32.mrf.mxu0
        %v7187 = vadd.f32 %v7098, %v7186
        %v7188 = vpop.f32.mrf.mxu0
        %v7189 = vadd.f32 %v7100, %v7188
        %7190 = vmatmul.bf16.gmra.mxu0 %v5215
        %v7191 = vpop.f32.mrf.mxu0
        %v7192 = vadd.f32 %v7103, %v7191
        %v7193 = vpop.f32.mrf.mxu0
        %v7194 = vadd.f32 %v7105, %v7193
        %7195 = vmatmul.bf16.gmra.mxu0 %v5239
        %v7196 = vpop.f32.mrf.mxu0
        %v7197 = vadd.f32 %v7108, %v7196
        %v7198 = vpop.f32.mrf.mxu0
        %v7199 = vadd.f32 %v7110, %v7198
        %7200 = vmatmul.bf16.gmra.mxu0 %v5263
        %v7201 = vpop.f32.mrf.mxu0
        %v7202 = vadd.f32 %v7113, %v7201
        %v7203 = vpop.f32.mrf.mxu0
        %v7204 = vadd.f32 %v7115, %v7203
        %7205 = vmatmul.bf16.gmra.mxu0 %v5287
        %v7206 = vpop.f32.mrf.mxu0
        %v7207 = vadd.f32 %v7118, %v7206
        %v7208 = vpop.f32.mrf.mxu0
        %v7209 = vadd.f32 %v7120, %v7208
        %7210 = vmatmul.bf16.gmra.mxu0 %v5311
        %v7211 = vpop.f32.mrf.mxu0
        %v7212 = vadd.f32 %v7123, %v7211
        %v7213 = vpop.f32.mrf.mxu0
        %v7214 = vadd.f32 %v7125, %v7213
        %7215 = vmatmul.bf16.gmra.mxu0 %v5335
        %v7216 = vpop.f32.mrf.mxu0
        %v7217 = vadd.f32 %v7128, %v7216
        %v7218 = vpop.f32.mrf.mxu0
        %v7219 = vadd.f32 %v7130, %v7218
        %7220 = vmatmul.bf16.gmra.mxu0 %v5359
        %v7221 = vpop.f32.mrf.mxu0
        %v7222 = vadd.f32 %v7133, %v7221
        %v7223 = vpop.f32.mrf.mxu0
        %v7224 = vadd.f32 %v7135, %v7223
        %7225 = vmatmul.bf16.gmra.mxu0 %v5383
        %v7226 = vpop.f32.mrf.mxu0
        %v7227 = vadd.f32 %v7138, %v7226
        %v7228 = vpop.f32.mrf.mxu0
        %v7229 = vadd.f32 %v7140, %v7228
        %7230 = vdwg.mxu0
        %s7231 = scalar_lea.vmem [#allocation2], 24
        %v7232 = vld [vmem:[%s7231] sm:$0xf]
        %v7233 = vld [vmem:[%s7231 + $0x4] sm:$0xf]
        %v7234 = vld [vmem:[%s7231 + $0x8] sm:$0x3]
        %v7235 = vld [vmem:[%s7231 + $0xc] sm:$0xf]
        %v7236 = vld [vmem:[%s7231 + $0x10] sm:$0xf]
        %v7237 = vld [vmem:[%s7231 + $0x14] sm:$0x3]
        %v7238 = vld [vmem:[%s7231 + $0x18] sm:$0xf]
        %v7239 = vld [vmem:[%s7231 + $0x1c] sm:$0xf]
        %v7240 = vld [vmem:[%s7231 + $0x20] sm:$0x3]
        %v7241 = vld [vmem:[%s7231 + $0x24] sm:$0xf]
        %v7242 = vld [vmem:[%s7231 + $0x28] sm:$0xf]
        %v7243 = vld [vmem:[%s7231 + $0x2c] sm:$0x3]
        %v7244 = vld [vmem:[%s7231 + $0x30] sm:$0xf]
        %v7245 = vld [vmem:[%s7231 + $0x34] sm:$0xf]
        %v7246 = vld [vmem:[%s7231 + $0x38] sm:$0x3]
        %v7247 = vld [vmem:[%s7231 + $0x3c] sm:$0xf]
        %v7248 = vld [vmem:[%s7231 + $0x40] sm:$0xf]
        %v7249 = vld [vmem:[%s7231 + $0x44] sm:$0x3]
        %v7250 = vld [vmem:[%s7231 + $0x48] sm:$0xf]
        %v7251 = vld [vmem:[%s7231 + $0x4c] sm:$0xf]
        %v7252 = vld [vmem:[%s7231 + $0x50] sm:$0x3]
        %v7253 = vld [vmem:[%s7231 + $0x54] sm:$0xf]
        %v7254 = vld [vmem:[%s7231 + $0x58] sm:$0xf]
        %v7255 = vld [vmem:[%s7231 + $0x5c] sm:$0x3]
        %v7256 = vld [vmem:[%s7231 + $0x60] sm:$0xf]
        %v7257 = vld [vmem:[%s7231 + $0x64] sm:$0xf]
        %v7258 = vld [vmem:[%s7231 + $0x68] sm:$0x3]
        %v7259 = vld [vmem:[%s7231 + $0x6c] sm:$0xf]
        %v7260 = vld [vmem:[%s7231 + $0x70] sm:$0xf]
        %v7261 = vld [vmem:[%s7231 + $0x74] sm:$0x3]
        %v7262 = vld [vmem:[%s7231 + $0x78] sm:$0xf]
        %v7263 = vld [vmem:[%s7231 + $0x7c] sm:$0xf]
        %v7264 = vld [vmem:[%s7231 + $0x80] sm:$0x3]
        %v7265 = vld [vmem:[%s7231 + $0x84] sm:$0xf]
        %v7266 = vld [vmem:[%s7231 + $0x88] sm:$0xf]
        %v7267 = vld [vmem:[%s7231 + $0x8c] sm:$0x3]
        %v7268 = vld [vmem:[%s7231 + $0x90] sm:$0xf]
        %v7269 = vld [vmem:[%s7231 + $0x94] sm:$0xf]
        %v7270 = vld [vmem:[%s7231 + $0x98] sm:$0x3]
        %v7271 = vld [vmem:[%s7231 + $0x9c] sm:$0xf]
        %v7272 = vld [vmem:[%s7231 + $0xa0] sm:$0xf]
        %v7273 = vld [vmem:[%s7231 + $0xa4] sm:$0x3]
        %v7274 = vld [vmem:[%s7231 + $0xa8] sm:$0xf]
        %v7275 = vld [vmem:[%s7231 + $0xac] sm:$0xf]
        %v7276 = vld [vmem:[%s7231 + $0xb0] sm:$0x3]
        %v7277 = vld [vmem:[%s7231 + $0xb4] sm:$0xf]
        %v7278 = vld [vmem:[%s7231 + $0xb8] sm:$0xf]
        %v7279 = vld [vmem:[%s7231 + $0xbc] sm:$0x3]
        %v7328 = vunpack.c.l.b16 %v7232
        %v7329 = vunpack.c.l.b16 %v7233
        %v7330 = vunpack.c.l.b16 %v7234
        %v7331 = vunpack.c.l.b16 %v7235
        %v7332 = vunpack.c.l.b16 %v7236
        %v7333 = vunpack.c.l.b16 %v7237
        %v7334 = vunpack.c.l.b16 %v7238
        %v7335 = vunpack.c.l.b16 %v7239
        %v7336 = vunpack.c.l.b16 %v7240
        %v7337 = vunpack.c.l.b16 %v7241
        %v7338 = vunpack.c.l.b16 %v7242
        %v7339 = vunpack.c.l.b16 %v7243
        %v7340 = vunpack.c.l.b16 %v7244
        %v7341 = vunpack.c.l.b16 %v7245
        %v7342 = vunpack.c.l.b16 %v7246
        %v7343 = vunpack.c.l.b16 %v7247
        %v7344 = vunpack.c.l.b16 %v7248
        %v7345 = vunpack.c.l.b16 %v7249
        %v7346 = vunpack.c.l.b16 %v7250
        %v7347 = vunpack.c.l.b16 %v7251
        %v7348 = vunpack.c.l.b16 %v7252
        %v7349 = vunpack.c.l.b16 %v7253
        %v7350 = vunpack.c.l.b16 %v7254
        %v7351 = vunpack.c.l.b16 %v7255
        %v7352 = vunpack.c.l.b16 %v7256
        %v7353 = vunpack.c.l.b16 %v7257
        %v7354 = vunpack.c.l.b16 %v7258
        %v7355 = vunpack.c.l.b16 %v7259
        %v7356 = vunpack.c.l.b16 %v7260
        %v7357 = vunpack.c.l.b16 %v7261
        %v7358 = vunpack.c.l.b16 %v7262
        %v7359 = vunpack.c.l.b16 %v7263
        %v7360 = vunpack.c.l.b16 %v7264
        %v7361 = vunpack.c.l.b16 %v7265
        %v7362 = vunpack.c.l.b16 %v7266
        %v7363 = vunpack.c.l.b16 %v7267
        %v7364 = vunpack.c.l.b16 %v7268
        %v7365 = vunpack.c.l.b16 %v7269
        %v7366 = vunpack.c.l.b16 %v7270
        %v7367 = vunpack.c.l.b16 %v7271
        %v7368 = vunpack.c.l.b16 %v7272
        %v7369 = vunpack.c.l.b16 %v7273
        %v7370 = vunpack.c.l.b16 %v7274
        %v7371 = vunpack.c.l.b16 %v7275
        %v7372 = vunpack.c.l.b16 %v7276
        %v7373 = vunpack.c.l.b16 %v7277
        %v7374 = vunpack.c.l.b16 %v7278
        %v7375 = vunpack.c.l.b16 %v7279
        %v7376 = vpack.c.b16 %v7329, %v7328
        %v7377 = vpack.c.b16 %v7330, %v7330
        %v7378 = vpack.c.b16 %v7332, %v7331
        %v7379 = vpack.c.b16 %v7333, %v7333
        %v7380 = vpack.c.b16 %v7335, %v7334
        %v7381 = vpack.c.b16 %v7336, %v7336
        %v7382 = vpack.c.b16 %v7338, %v7337
        %v7383 = vpack.c.b16 %v7339, %v7339
        %v7384 = vpack.c.b16 %v7341, %v7340
        %v7385 = vpack.c.b16 %v7342, %v7342
        %v7386 = vpack.c.b16 %v7344, %v7343
        %v7387 = vpack.c.b16 %v7345, %v7345
        %v7388 = vpack.c.b16 %v7347, %v7346
        %v7389 = vpack.c.b16 %v7348, %v7348
        %v7390 = vpack.c.b16 %v7350, %v7349
        %v7391 = vpack.c.b16 %v7351, %v7351
        %v7392 = vpack.c.b16 %v7353, %v7352
        %v7393 = vpack.c.b16 %v7354, %v7354
        %v7394 = vpack.c.b16 %v7356, %v7355
        %v7395 = vpack.c.b16 %v7357, %v7357
        %v7396 = vpack.c.b16 %v7359, %v7358
        %v7397 = vpack.c.b16 %v7360, %v7360
        %v7398 = vpack.c.b16 %v7362, %v7361
        %v7399 = vpack.c.b16 %v7363, %v7363
        %v7400 = vpack.c.b16 %v7365, %v7364
        %v7401 = vpack.c.b16 %v7366, %v7366
        %v7402 = vpack.c.b16 %v7368, %v7367
        %v7403 = vpack.c.b16 %v7369, %v7369
        %v7404 = vpack.c.b16 %v7371, %v7370
        %v7405 = vpack.c.b16 %v7372, %v7372
        %v7406 = vpack.c.b16 %v7374, %v7373
        %v7407 = vpack.c.b16 %v7375, %v7375
        %v7409 = vshrl.u32 %v7376, 16
        %v7411 = vshll.u32 %v7376, 16
        %v7413 = vrot.slane %v7411, 1
        %v7414 = vor.u32 %v7409, %v7413
        %v7416 = vshll.u32 %v7377, 16
        %v7418 = vrot.slane %v7416, 1
        %v7419 = vsel %vm1445, %v7414, %v7418
        %v7420 = vshrl.u32 %v7377, 16
        %v7423 = vshrl.u32 %v7378, 16
        %v7425 = vshll.u32 %v7378, 16
        %v7427 = vrot.slane %v7425, 1
        %v7428 = vor.u32 %v7423, %v7427
        %v7430 = vshll.u32 %v7379, 16
        %v7432 = vrot.slane %v7430, 1
        %v7433 = vsel %vm1445, %v7428, %v7432
        %v7434 = vshrl.u32 %v7379, 16
        %v7437 = vshrl.u32 %v7380, 16
        %v7439 = vshll.u32 %v7380, 16
        %v7441 = vrot.slane %v7439, 1
        %v7442 = vor.u32 %v7437, %v7441
        %v7444 = vshll.u32 %v7381, 16
        %v7446 = vrot.slane %v7444, 1
        %v7447 = vsel %vm1445, %v7442, %v7446
        %v7448 = vshrl.u32 %v7381, 16
        %v7451 = vshrl.u32 %v7382, 16
        %v7453 = vshll.u32 %v7382, 16
        %v7455 = vrot.slane %v7453, 1
        %v7456 = vor.u32 %v7451, %v7455
        %v7458 = vshll.u32 %v7383, 16
        %v7460 = vrot.slane %v7458, 1
        %v7461 = vsel %vm1445, %v7456, %v7460
        %v7462 = vshrl.u32 %v7383, 16
        %v7465 = vshrl.u32 %v7384, 16
        %v7467 = vshll.u32 %v7384, 16
        %v7469 = vrot.slane %v7467, 1
        %v7470 = vor.u32 %v7465, %v7469
        %v7472 = vshll.u32 %v7385, 16
        %v7474 = vrot.slane %v7472, 1
        %v7475 = vsel %vm1445, %v7470, %v7474
        %v7476 = vshrl.u32 %v7385, 16
        %v7479 = vshrl.u32 %v7386, 16
        %v7481 = vshll.u32 %v7386, 16
        %v7483 = vrot.slane %v7481, 1
        %v7484 = vor.u32 %v7479, %v7483
        %v7486 = vshll.u32 %v7387, 16
        %v7488 = vrot.slane %v7486, 1
        %v7489 = vsel %vm1445, %v7484, %v7488
        %v7490 = vshrl.u32 %v7387, 16
        %v7493 = vshrl.u32 %v7388, 16
        %v7495 = vshll.u32 %v7388, 16
        %v7497 = vrot.slane %v7495, 1
        %v7498 = vor.u32 %v7493, %v7497
        %v7500 = vshll.u32 %v7389, 16
        %v7502 = vrot.slane %v7500, 1
        %v7503 = vsel %vm1445, %v7498, %v7502
        %v7504 = vshrl.u32 %v7389, 16
        %v7507 = vshrl.u32 %v7390, 16
        %v7509 = vshll.u32 %v7390, 16
        %v7511 = vrot.slane %v7509, 1
        %v7512 = vor.u32 %v7507, %v7511
        %v7514 = vshll.u32 %v7391, 16
        %v7516 = vrot.slane %v7514, 1
        %v7517 = vsel %vm1445, %v7512, %v7516
        %v7518 = vshrl.u32 %v7391, 16
        %v7521 = vshrl.u32 %v7392, 16
        %v7523 = vshll.u32 %v7392, 16
        %v7525 = vrot.slane %v7523, 1
        %v7526 = vor.u32 %v7521, %v7525
        %v7528 = vshll.u32 %v7393, 16
        %v7530 = vrot.slane %v7528, 1
        %v7531 = vsel %vm1445, %v7526, %v7530
        %v7532 = vshrl.u32 %v7393, 16
        %v7535 = vshrl.u32 %v7394, 16
        %v7537 = vshll.u32 %v7394, 16
        %v7539 = vrot.slane %v7537, 1
        %v7540 = vor.u32 %v7535, %v7539
        %v7542 = vshll.u32 %v7395, 16
        %v7544 = vrot.slane %v7542, 1
        %v7545 = vsel %vm1445, %v7540, %v7544
        %v7546 = vshrl.u32 %v7395, 16
        %v7549 = vshrl.u32 %v7396, 16
        %v7551 = vshll.u32 %v7396, 16
        %v7553 = vrot.slane %v7551, 1
        %v7554 = vor.u32 %v7549, %v7553
        %v7556 = vshll.u32 %v7397, 16
        %v7558 = vrot.slane %v7556, 1
        %v7559 = vsel %vm1445, %v7554, %v7558
        %v7560 = vshrl.u32 %v7397, 16
        %v7563 = vshrl.u32 %v7398, 16
        %v7565 = vshll.u32 %v7398, 16
        %v7567 = vrot.slane %v7565, 1
        %v7568 = vor.u32 %v7563, %v7567
        %v7570 = vshll.u32 %v7399, 16
        %v7572 = vrot.slane %v7570, 1
        %v7573 = vsel %vm1445, %v7568, %v7572
        %v7574 = vshrl.u32 %v7399, 16
        %v7577 = vshrl.u32 %v7400, 16
        %v7579 = vshll.u32 %v7400, 16
        %v7581 = vrot.slane %v7579, 1
        %v7582 = vor.u32 %v7577, %v7581
        %v7584 = vshll.u32 %v7401, 16
        %v7586 = vrot.slane %v7584, 1
        %v7587 = vsel %vm1445, %v7582, %v7586
        %v7588 = vshrl.u32 %v7401, 16
        %v7591 = vshrl.u32 %v7402, 16
        %v7593 = vshll.u32 %v7402, 16
        %v7595 = vrot.slane %v7593, 1
        %v7596 = vor.u32 %v7591, %v7595
        %v7598 = vshll.u32 %v7403, 16
        %v7600 = vrot.slane %v7598, 1
        %v7601 = vsel %vm1445, %v7596, %v7600
        %v7602 = vshrl.u32 %v7403, 16
        %v7605 = vshrl.u32 %v7404, 16
        %v7607 = vshll.u32 %v7404, 16
        %v7609 = vrot.slane %v7607, 1
        %v7610 = vor.u32 %v7605, %v7609
        %v7612 = vshll.u32 %v7405, 16
        %v7614 = vrot.slane %v7612, 1
        %v7615 = vsel %vm1445, %v7610, %v7614
        %v7616 = vshrl.u32 %v7405, 16
        %v7619 = vshrl.u32 %v7406, 16
        %v7621 = vshll.u32 %v7406, 16
        %v7623 = vrot.slane %v7621, 1
        %v7624 = vor.u32 %v7619, %v7623
        %v7626 = vshll.u32 %v7407, 16
        %v7628 = vrot.slane %v7626, 1
        %v7629 = vsel %vm1445, %v7624, %v7628
        %v7630 = vshrl.u32 %v7407, 16
        %v7632 = vrot.slane %v7376, 1
        %v7633 = vrot.slane %v7377, 1
        %v7634 = vsel %vm1654, %v7632, %v7633
        %v7635 = vrot.slane %v7378, 1
        %v7636 = vrot.slane %v7379, 1
        %v7637 = vsel %vm1654, %v7635, %v7636
        %v7638 = vrot.slane %v7380, 1
        %v7639 = vrot.slane %v7381, 1
        %v7640 = vsel %vm1654, %v7638, %v7639
        %v7641 = vrot.slane %v7382, 1
        %v7642 = vrot.slane %v7383, 1
        %v7643 = vsel %vm1654, %v7641, %v7642
        %v7644 = vrot.slane %v7384, 1
        %v7645 = vrot.slane %v7385, 1
        %v7646 = vsel %vm1654, %v7644, %v7645
        %v7647 = vrot.slane %v7386, 1
        %v7648 = vrot.slane %v7387, 1
        %v7649 = vsel %vm1654, %v7647, %v7648
        %v7650 = vrot.slane %v7388, 1
        %v7651 = vrot.slane %v7389, 1
        %v7652 = vsel %vm1654, %v7650, %v7651
        %v7653 = vrot.slane %v7390, 1
        %v7654 = vrot.slane %v7391, 1
        %v7655 = vsel %vm1654, %v7653, %v7654
        %v7656 = vrot.slane %v7392, 1
        %v7657 = vrot.slane %v7393, 1
        %v7658 = vsel %vm1654, %v7656, %v7657
        %v7659 = vrot.slane %v7394, 1
        %v7660 = vrot.slane %v7395, 1
        %v7661 = vsel %vm1654, %v7659, %v7660
        %v7662 = vrot.slane %v7396, 1
        %v7663 = vrot.slane %v7397, 1
        %v7664 = vsel %vm1654, %v7662, %v7663
        %v7665 = vrot.slane %v7398, 1
        %v7666 = vrot.slane %v7399, 1
        %v7667 = vsel %vm1654, %v7665, %v7666
        %v7668 = vrot.slane %v7400, 1
        %v7669 = vrot.slane %v7401, 1
        %v7670 = vsel %vm1654, %v7668, %v7669
        %v7671 = vrot.slane %v7402, 1
        %v7672 = vrot.slane %v7403, 1
        %v7673 = vsel %vm1654, %v7671, %v7672
        %v7674 = vrot.slane %v7404, 1
        %v7675 = vrot.slane %v7405, 1
        %v7676 = vsel %vm1654, %v7674, %v7675
        %v7677 = vrot.slane %v7406, 1
        %v7678 = vrot.slane %v7407, 1
        %v7679 = vsel %vm1654, %v7677, %v7678
        %v7681 = vshrl.u32 %v7419, 16
        %v7683 = vshll.u32 %v7419, 16
        %v7685 = vrot.slane %v7683, 1
        %v7686 = vor.u32 %v7681, %v7685
        %v7688 = vshll.u32 %v7420, 16
        %v7690 = vrot.slane %v7688, 1
        %v7691 = vsel %vm1445, %v7686, %v7690
        %v7693 = vshrl.u32 %v7634, 16
        %v7695 = vshll.u32 %v7634, 16
        %v7697 = vrot.slane %v7695, 1
        %v7698 = vor.u32 %v7693, %v7697
        %v7700 = vshll.u32 %v7633, 16
        %v7702 = vrot.slane %v7700, 1
        %v7703 = vsel %vm1445, %v7698, %v7702
        %v7705 = vshrl.u32 %v7433, 16
        %v7707 = vshll.u32 %v7433, 16
        %v7709 = vrot.slane %v7707, 1
        %v7710 = vor.u32 %v7705, %v7709
        %v7712 = vshll.u32 %v7434, 16
        %v7714 = vrot.slane %v7712, 1
        %v7715 = vsel %vm1445, %v7710, %v7714
        %v7717 = vshrl.u32 %v7637, 16
        %v7719 = vshll.u32 %v7637, 16
        %v7721 = vrot.slane %v7719, 1
        %v7722 = vor.u32 %v7717, %v7721
        %v7724 = vshll.u32 %v7636, 16
        %v7726 = vrot.slane %v7724, 1
        %v7727 = vsel %vm1445, %v7722, %v7726
        %v7729 = vshrl.u32 %v7447, 16
        %v7731 = vshll.u32 %v7447, 16
        %v7733 = vrot.slane %v7731, 1
        %v7734 = vor.u32 %v7729, %v7733
        %v7736 = vshll.u32 %v7448, 16
        %v7738 = vrot.slane %v7736, 1
        %v7739 = vsel %vm1445, %v7734, %v7738
        %v7741 = vshrl.u32 %v7640, 16
        %v7743 = vshll.u32 %v7640, 16
        %v7745 = vrot.slane %v7743, 1
        %v7746 = vor.u32 %v7741, %v7745
        %v7748 = vshll.u32 %v7639, 16
        %v7750 = vrot.slane %v7748, 1
        %v7751 = vsel %vm1445, %v7746, %v7750
        %v7753 = vshrl.u32 %v7461, 16
        %v7755 = vshll.u32 %v7461, 16
        %v7757 = vrot.slane %v7755, 1
        %v7758 = vor.u32 %v7753, %v7757
        %v7760 = vshll.u32 %v7462, 16
        %v7762 = vrot.slane %v7760, 1
        %v7763 = vsel %vm1445, %v7758, %v7762
        %v7765 = vshrl.u32 %v7643, 16
        %v7767 = vshll.u32 %v7643, 16
        %v7769 = vrot.slane %v7767, 1
        %v7770 = vor.u32 %v7765, %v7769
        %v7772 = vshll.u32 %v7642, 16
        %v7774 = vrot.slane %v7772, 1
        %v7775 = vsel %vm1445, %v7770, %v7774
        %v7777 = vshrl.u32 %v7475, 16
        %v7779 = vshll.u32 %v7475, 16
        %v7781 = vrot.slane %v7779, 1
        %v7782 = vor.u32 %v7777, %v7781
        %v7784 = vshll.u32 %v7476, 16
        %v7786 = vrot.slane %v7784, 1
        %v7787 = vsel %vm1445, %v7782, %v7786
        %v7789 = vshrl.u32 %v7646, 16
        %v7791 = vshll.u32 %v7646, 16
        %v7793 = vrot.slane %v7791, 1
        %v7794 = vor.u32 %v7789, %v7793
        %v7796 = vshll.u32 %v7645, 16
        %v7798 = vrot.slane %v7796, 1
        %v7799 = vsel %vm1445, %v7794, %v7798
        %v7801 = vshrl.u32 %v7489, 16
        %v7803 = vshll.u32 %v7489, 16
        %v7805 = vrot.slane %v7803, 1
        %v7806 = vor.u32 %v7801, %v7805
        %v7808 = vshll.u32 %v7490, 16
        %v7810 = vrot.slane %v7808, 1
        %v7811 = vsel %vm1445, %v7806, %v7810
        %v7813 = vshrl.u32 %v7649, 16
        %v7815 = vshll.u32 %v7649, 16
        %v7817 = vrot.slane %v7815, 1
        %v7818 = vor.u32 %v7813, %v7817
        %v7820 = vshll.u32 %v7648, 16
        %v7822 = vrot.slane %v7820, 1
        %v7823 = vsel %vm1445, %v7818, %v7822
        %v7825 = vshrl.u32 %v7503, 16
        %v7827 = vshll.u32 %v7503, 16
        %v7829 = vrot.slane %v7827, 1
        %v7830 = vor.u32 %v7825, %v7829
        %v7832 = vshll.u32 %v7504, 16
        %v7834 = vrot.slane %v7832, 1
        %v7835 = vsel %vm1445, %v7830, %v7834
        %v7837 = vshrl.u32 %v7652, 16
        %v7839 = vshll.u32 %v7652, 16
        %v7841 = vrot.slane %v7839, 1
        %v7842 = vor.u32 %v7837, %v7841
        %v7844 = vshll.u32 %v7651, 16
        %v7846 = vrot.slane %v7844, 1
        %v7847 = vsel %vm1445, %v7842, %v7846
        %v7849 = vshrl.u32 %v7517, 16
        %v7851 = vshll.u32 %v7517, 16
        %v7853 = vrot.slane %v7851, 1
        %v7854 = vor.u32 %v7849, %v7853
        %v7856 = vshll.u32 %v7518, 16
        %v7858 = vrot.slane %v7856, 1
        %v7859 = vsel %vm1445, %v7854, %v7858
        %v7861 = vshrl.u32 %v7655, 16
        %v7863 = vshll.u32 %v7655, 16
        %v7865 = vrot.slane %v7863, 1
        %v7866 = vor.u32 %v7861, %v7865
        %v7868 = vshll.u32 %v7654, 16
        %v7870 = vrot.slane %v7868, 1
        %v7871 = vsel %vm1445, %v7866, %v7870
        %v7873 = vshrl.u32 %v7531, 16
        %v7875 = vshll.u32 %v7531, 16
        %v7877 = vrot.slane %v7875, 1
        %v7878 = vor.u32 %v7873, %v7877
        %v7880 = vshll.u32 %v7532, 16
        %v7882 = vrot.slane %v7880, 1
        %v7883 = vsel %vm1445, %v7878, %v7882
        %v7885 = vshrl.u32 %v7658, 16
        %v7887 = vshll.u32 %v7658, 16
        %v7889 = vrot.slane %v7887, 1
        %v7890 = vor.u32 %v7885, %v7889
        %v7892 = vshll.u32 %v7657, 16
        %v7894 = vrot.slane %v7892, 1
        %v7895 = vsel %vm1445, %v7890, %v7894
        %v7897 = vshrl.u32 %v7545, 16
        %v7899 = vshll.u32 %v7545, 16
        %v7901 = vrot.slane %v7899, 1
        %v7902 = vor.u32 %v7897, %v7901
        %v7904 = vshll.u32 %v7546, 16
        %v7906 = vrot.slane %v7904, 1
        %v7907 = vsel %vm1445, %v7902, %v7906
        %v7909 = vshrl.u32 %v7661, 16
        %v7911 = vshll.u32 %v7661, 16
        %v7913 = vrot.slane %v7911, 1
        %v7914 = vor.u32 %v7909, %v7913
        %v7916 = vshll.u32 %v7660, 16
        %v7918 = vrot.slane %v7916, 1
        %v7919 = vsel %vm1445, %v7914, %v7918
        %v7921 = vshrl.u32 %v7559, 16
        %v7923 = vshll.u32 %v7559, 16
        %v7925 = vrot.slane %v7923, 1
        %v7926 = vor.u32 %v7921, %v7925
        %v7928 = vshll.u32 %v7560, 16
        %v7930 = vrot.slane %v7928, 1
        %v7931 = vsel %vm1445, %v7926, %v7930
        %v7933 = vshrl.u32 %v7664, 16
        %v7935 = vshll.u32 %v7664, 16
        %v7937 = vrot.slane %v7935, 1
        %v7938 = vor.u32 %v7933, %v7937
        %v7940 = vshll.u32 %v7663, 16
        %v7942 = vrot.slane %v7940, 1
        %v7943 = vsel %vm1445, %v7938, %v7942
        %v7945 = vshrl.u32 %v7573, 16
        %v7947 = vshll.u32 %v7573, 16
        %v7949 = vrot.slane %v7947, 1
        %v7950 = vor.u32 %v7945, %v7949
        %v7952 = vshll.u32 %v7574, 16
        %v7954 = vrot.slane %v7952, 1
        %v7955 = vsel %vm1445, %v7950, %v7954
        %v7957 = vshrl.u32 %v7667, 16
        %v7959 = vshll.u32 %v7667, 16
        %v7961 = vrot.slane %v7959, 1
        %v7962 = vor.u32 %v7957, %v7961
        %v7964 = vshll.u32 %v7666, 16
        %v7966 = vrot.slane %v7964, 1
        %v7967 = vsel %vm1445, %v7962, %v7966
        %v7969 = vshrl.u32 %v7587, 16
        %v7971 = vshll.u32 %v7587, 16
        %v7973 = vrot.slane %v7971, 1
        %v7974 = vor.u32 %v7969, %v7973
        %v7976 = vshll.u32 %v7588, 16
        %v7978 = vrot.slane %v7976, 1
        %v7979 = vsel %vm1445, %v7974, %v7978
        %v7981 = vshrl.u32 %v7670, 16
        %v7983 = vshll.u32 %v7670, 16
        %v7985 = vrot.slane %v7983, 1
        %v7986 = vor.u32 %v7981, %v7985
        %v7988 = vshll.u32 %v7669, 16
        %v7990 = vrot.slane %v7988, 1
        %v7991 = vsel %vm1445, %v7986, %v7990
        %v7993 = vshrl.u32 %v7601, 16
        %v7995 = vshll.u32 %v7601, 16
        %v7997 = vrot.slane %v7995, 1
        %v7998 = vor.u32 %v7993, %v7997
        %v8000 = vshll.u32 %v7602, 16
        %v8002 = vrot.slane %v8000, 1
        %v8003 = vsel %vm1445, %v7998, %v8002
        %v8005 = vshrl.u32 %v7673, 16
        %v8007 = vshll.u32 %v7673, 16
        %v8009 = vrot.slane %v8007, 1
        %v8010 = vor.u32 %v8005, %v8009
        %v8012 = vshll.u32 %v7672, 16
        %v8014 = vrot.slane %v8012, 1
        %v8015 = vsel %vm1445, %v8010, %v8014
        %v8017 = vshrl.u32 %v7615, 16
        %v8019 = vshll.u32 %v7615, 16
        %v8021 = vrot.slane %v8019, 1
        %v8022 = vor.u32 %v8017, %v8021
        %v8024 = vshll.u32 %v7616, 16
        %v8026 = vrot.slane %v8024, 1
        %v8027 = vsel %vm1445, %v8022, %v8026
        %v8029 = vshrl.u32 %v7676, 16
        %v8031 = vshll.u32 %v7676, 16
        %v8033 = vrot.slane %v8031, 1
        %v8034 = vor.u32 %v8029, %v8033
        %v8036 = vshll.u32 %v7675, 16
        %v8038 = vrot.slane %v8036, 1
        %v8039 = vsel %vm1445, %v8034, %v8038
        %v8041 = vshrl.u32 %v7629, 16
        %v8043 = vshll.u32 %v7629, 16
        %v8045 = vrot.slane %v8043, 1
        %v8046 = vor.u32 %v8041, %v8045
        %v8048 = vshll.u32 %v7630, 16
        %v8050 = vrot.slane %v8048, 1
        %v8051 = vsel %vm1445, %v8046, %v8050
        %v8053 = vshrl.u32 %v7679, 16
        %v8055 = vshll.u32 %v7679, 16
        %v8057 = vrot.slane %v8055, 1
        %v8058 = vor.u32 %v8053, %v8057
        %v8060 = vshll.u32 %v7678, 16
        %v8062 = vrot.slane %v8060, 1
        %v8063 = vsel %vm1445, %v8058, %v8062
        %s8112 = scalar_lea.vmem %s4, 384
        %v8113 = vld [vmem:[%s8112] sm:$0xf]
        %v8114 = vld [vmem:[%s8112 + $0x4] sm:$0xf]
        %v8115 = vld [vmem:[%s8112 + $0x8] sm:$0xf]
        %v8116 = vld [vmem:[%s8112 + $0xc] sm:$0xf]
        %v8117 = vld [vmem:[%s8112 + $0x10] sm:$0xf]
        %v8118 = vld [vmem:[%s8112 + $0x14] sm:$0xf]
        %v8119 = vld [vmem:[%s8112 + $0x18] sm:$0xf]
        %v8120 = vld [vmem:[%s8112 + $0x1c] sm:$0xf]
        %v8121 = vld [vmem:[%s8112 + $0x20] sm:$0xf]
        %v8122 = vld [vmem:[%s8112 + $0x24] sm:$0xf]
        %v8123 = vld [vmem:[%s8112 + $0x28] sm:$0xf]
        %v8124 = vld [vmem:[%s8112 + $0x2c] sm:$0xf]
        %v8125 = vld [vmem:[%s8112 + $0x30] sm:$0xf]
        %v8126 = vld [vmem:[%s8112 + $0x34] sm:$0xf]
        %v8127 = vld [vmem:[%s8112 + $0x38] sm:$0xf]
        %v8128 = vld [vmem:[%s8112 + $0x3c] sm:$0xf]
        %v8129 = vld [vmem:[%s8112 + $0x40] sm:$0xf]
        %v8130 = vld [vmem:[%s8112 + $0x44] sm:$0xf]
        %v8131 = vld [vmem:[%s8112 + $0x48] sm:$0xf]
        %v8132 = vld [vmem:[%s8112 + $0x4c] sm:$0xf]
        %v8133 = vld [vmem:[%s8112 + $0x50] sm:$0xf]
        %v8134 = vld [vmem:[%s8112 + $0x54] sm:$0xf]
        %v8135 = vld [vmem:[%s8112 + $0x58] sm:$0xf]
        %v8136 = vld [vmem:[%s8112 + $0x5c] sm:$0xf]
        %v8137 = vld [vmem:[%s8112 + $0x60] sm:$0xf]
        %v8138 = vld [vmem:[%s8112 + $0x64] sm:$0xf]
        %v8139 = vld [vmem:[%s8112 + $0x68] sm:$0xf]
        %v8140 = vld [vmem:[%s8112 + $0x6c] sm:$0xf]
        %v8141 = vld [vmem:[%s8112 + $0x70] sm:$0xf]
        %v8142 = vld [vmem:[%s8112 + $0x74] sm:$0xf]
        %v8143 = vld [vmem:[%s8112 + $0x78] sm:$0xf]
        %v8144 = vld [vmem:[%s8112 + $0x7c] sm:$0xf]
        %v8145 = vld [vmem:[%s8112 + $0x80] sm:$0xf]
        %v8146 = vld [vmem:[%s8112 + $0x84] sm:$0xf]
        %v8147 = vld [vmem:[%s8112 + $0x88] sm:$0xf]
        %v8148 = vld [vmem:[%s8112 + $0x8c] sm:$0xf]
        %v8149 = vld [vmem:[%s8112 + $0x90] sm:$0xf]
        %v8150 = vld [vmem:[%s8112 + $0x94] sm:$0xf]
        %v8151 = vld [vmem:[%s8112 + $0x98] sm:$0xf]
        %v8152 = vld [vmem:[%s8112 + $0x9c] sm:$0xf]
        %v8153 = vld [vmem:[%s8112 + $0xa0] sm:$0xf]
        %v8154 = vld [vmem:[%s8112 + $0xa4] sm:$0xf]
        %v8155 = vld [vmem:[%s8112 + $0xa8] sm:$0xf]
        %v8156 = vld [vmem:[%s8112 + $0xac] sm:$0xf]
        %v8157 = vld [vmem:[%s8112 + $0xb0] sm:$0xf]
        %v8158 = vld [vmem:[%s8112 + $0xb4] sm:$0xf]
        %v8159 = vld [vmem:[%s8112 + $0xb8] sm:$0xf]
        %v8160 = vld [vmem:[%s8112 + $0xbc] sm:$0xf]
        %v8209 = vunpack.c.l.b16 %v8113
        %v8210 = vunpack.c.l.b16 %v8114
        %v8211 = vunpack.c.l.b16 %v8115
        %v8212 = vunpack.c.l.b16 %v8116
        %v8213 = vunpack.c.l.b16 %v8117
        %v8214 = vunpack.c.l.b16 %v8118
        %v8215 = vunpack.c.l.b16 %v8119
        %v8216 = vunpack.c.l.b16 %v8120
        %v8217 = vunpack.c.l.b16 %v8121
        %v8218 = vunpack.c.l.b16 %v8122
        %v8219 = vunpack.c.l.b16 %v8123
        %v8220 = vunpack.c.l.b16 %v8124
        %v8221 = vunpack.c.l.b16 %v8125
        %v8222 = vunpack.c.l.b16 %v8126
        %v8223 = vunpack.c.l.b16 %v8127
        %v8224 = vunpack.c.l.b16 %v8128
        %v8225 = vunpack.c.l.b16 %v8129
        %v8226 = vunpack.c.l.b16 %v8130
        %v8227 = vunpack.c.l.b16 %v8131
        %v8228 = vunpack.c.l.b16 %v8132
        %v8229 = vunpack.c.l.b16 %v8133
        %v8230 = vunpack.c.l.b16 %v8134
        %v8231 = vunpack.c.l.b16 %v8135
        %v8232 = vunpack.c.l.b16 %v8136
        %v8233 = vunpack.c.l.b16 %v8137
        %v8234 = vunpack.c.l.b16 %v8138
        %v8235 = vunpack.c.l.b16 %v8139
        %v8236 = vunpack.c.l.b16 %v8140
        %v8237 = vunpack.c.l.b16 %v8141
        %v8238 = vunpack.c.l.b16 %v8142
        %v8239 = vunpack.c.l.b16 %v8143
        %v8240 = vunpack.c.l.b16 %v8144
        %v8241 = vunpack.c.l.b16 %v8145
        %v8242 = vunpack.c.l.b16 %v8146
        %v8243 = vunpack.c.l.b16 %v8147
        %v8244 = vunpack.c.l.b16 %v8148
        %v8245 = vunpack.c.l.b16 %v8149
        %v8246 = vunpack.c.l.b16 %v8150
        %v8247 = vunpack.c.l.b16 %v8151
        %v8248 = vunpack.c.l.b16 %v8152
        %v8249 = vunpack.c.l.b16 %v8153
        %v8250 = vunpack.c.l.b16 %v8154
        %v8251 = vunpack.c.l.b16 %v8155
        %v8252 = vunpack.c.l.b16 %v8156
        %v8253 = vunpack.c.l.b16 %v8157
        %v8254 = vunpack.c.l.b16 %v8158
        %v8255 = vunpack.c.l.b16 %v8159
        %v8256 = vunpack.c.l.b16 %v8160
        %v8257 = vpack.c.b16 %v8210, %v8209
        %v8258 = vpack.c.b16 %v8212, %v8211
        %v8259 = vpack.c.b16 %v8214, %v8213
        %v8260 = vpack.c.b16 %v8216, %v8215
        %v8261 = vpack.c.b16 %v8218, %v8217
        %v8262 = vpack.c.b16 %v8220, %v8219
        %v8263 = vpack.c.b16 %v8222, %v8221
        %v8264 = vpack.c.b16 %v8224, %v8223
        %v8265 = vpack.c.b16 %v8226, %v8225
        %v8266 = vpack.c.b16 %v8228, %v8227
        %v8267 = vpack.c.b16 %v8230, %v8229
        %v8268 = vpack.c.b16 %v8232, %v8231
        %v8269 = vpack.c.b16 %v8234, %v8233
        %v8270 = vpack.c.b16 %v8236, %v8235
        %v8271 = vpack.c.b16 %v8238, %v8237
        %v8272 = vpack.c.b16 %v8240, %v8239
        %v8273 = vpack.c.b16 %v8242, %v8241
        %v8274 = vpack.c.b16 %v8244, %v8243
        %v8275 = vpack.c.b16 %v8246, %v8245
        %v8276 = vpack.c.b16 %v8248, %v8247
        %v8277 = vpack.c.b16 %v8250, %v8249
        %v8278 = vpack.c.b16 %v8252, %v8251
        %v8279 = vpack.c.b16 %v8254, %v8253
        %v8280 = vpack.c.b16 %v8256, %v8255
        %8305 = vmatpush.bf16.msra.mxu0 %v8264
        %8306 = vmatpush.bf16.msra.mxu0 %v8263
        %8307 = vmatpush.bf16.msra.mxu0 %v8262
        %8308 = vmatpush.bf16.msra.mxu0 %v8261
        %8309 = vmatpush.bf16.msra.mxu0 %v8260
        %8310 = vmatpush.bf16.msra.mxu0 %v8259
        %8311 = vmatpush.bf16.msra.mxu0 %v8258
        %8312 = vmatpush.bf16.msra.mxu0 %v8257
        %8313 = vmatmul.bf16.gmra.mxu0 %v7419
        %v8314 = vpop.f32.mrf.mxu0
        %v8315 = vadd.f32 0.0, %v8314
        %v8316 = vpop.f32.mrf.mxu0
        %v8317 = vadd.f32 0.0, %v8316
        %8318 = vmatmul.bf16.gmra.mxu0 %v7433
        %v8319 = vpop.f32.mrf.mxu0
        %v8320 = vadd.f32 0.0, %v8319
        %v8321 = vpop.f32.mrf.mxu0
        %v8322 = vadd.f32 0.0, %v8321
        %8323 = vmatmul.bf16.gmra.mxu0 %v7447
        %v8324 = vpop.f32.mrf.mxu0
        %v8325 = vadd.f32 0.0, %v8324
        %v8326 = vpop.f32.mrf.mxu0
        %v8327 = vadd.f32 0.0, %v8326
        %8328 = vmatmul.bf16.gmra.mxu0 %v7461
        %v8329 = vpop.f32.mrf.mxu0
        %v8330 = vadd.f32 0.0, %v8329
        %v8331 = vpop.f32.mrf.mxu0
        %v8332 = vadd.f32 0.0, %v8331
        %8333 = vmatmul.bf16.gmra.mxu0 %v7475
        %v8334 = vpop.f32.mrf.mxu0
        %v8335 = vadd.f32 0.0, %v8334
        %v8336 = vpop.f32.mrf.mxu0
        %v8337 = vadd.f32 0.0, %v8336
        %8338 = vmatmul.bf16.gmra.mxu0 %v7489
        %v8339 = vpop.f32.mrf.mxu0
        %v8340 = vadd.f32 0.0, %v8339
        %v8341 = vpop.f32.mrf.mxu0
        %v8342 = vadd.f32 0.0, %v8341
        %8343 = vmatmul.bf16.gmra.mxu0 %v7503
        %v8344 = vpop.f32.mrf.mxu0
        %v8345 = vadd.f32 0.0, %v8344
        %v8346 = vpop.f32.mrf.mxu0
        %v8347 = vadd.f32 0.0, %v8346
        %8348 = vmatmul.bf16.gmra.mxu0 %v7517
        %v8349 = vpop.f32.mrf.mxu0
        %v8350 = vadd.f32 0.0, %v8349
        %v8351 = vpop.f32.mrf.mxu0
        %v8352 = vadd.f32 0.0, %v8351
        %8353 = vmatmul.bf16.gmra.mxu0 %v7531
        %v8354 = vpop.f32.mrf.mxu0
        %v8355 = vadd.f32 0.0, %v8354
        %v8356 = vpop.f32.mrf.mxu0
        %v8357 = vadd.f32 0.0, %v8356
        %8358 = vmatmul.bf16.gmra.mxu0 %v7545
        %v8359 = vpop.f32.mrf.mxu0
        %v8360 = vadd.f32 0.0, %v8359
        %v8361 = vpop.f32.mrf.mxu0
        %v8362 = vadd.f32 0.0, %v8361
        %8363 = vmatmul.bf16.gmra.mxu0 %v7559
        %v8364 = vpop.f32.mrf.mxu0
        %v8365 = vadd.f32 0.0, %v8364
        %v8366 = vpop.f32.mrf.mxu0
        %v8367 = vadd.f32 0.0, %v8366
        %8368 = vmatmul.bf16.gmra.mxu0 %v7573
        %v8369 = vpop.f32.mrf.mxu0
        %v8370 = vadd.f32 0.0, %v8369
        %v8371 = vpop.f32.mrf.mxu0
        %v8372 = vadd.f32 0.0, %v8371
        %8373 = vmatmul.bf16.gmra.mxu0 %v7587
        %v8374 = vpop.f32.mrf.mxu0
        %v8375 = vadd.f32 0.0, %v8374
        %v8376 = vpop.f32.mrf.mxu0
        %v8377 = vadd.f32 0.0, %v8376
        %8378 = vmatmul.bf16.gmra.mxu0 %v7601
        %v8379 = vpop.f32.mrf.mxu0
        %v8380 = vadd.f32 0.0, %v8379
        %v8381 = vpop.f32.mrf.mxu0
        %v8382 = vadd.f32 0.0, %v8381
        %8383 = vmatmul.bf16.gmra.mxu0 %v7615
        %v8384 = vpop.f32.mrf.mxu0
        %v8385 = vadd.f32 0.0, %v8384
        %v8386 = vpop.f32.mrf.mxu0
        %v8387 = vadd.f32 0.0, %v8386
        %8388 = vmatmul.bf16.gmra.mxu0 %v7629
        %v8389 = vpop.f32.mrf.mxu0
        %v8390 = vadd.f32 0.0, %v8389
        %v8391 = vpop.f32.mrf.mxu0
        %v8392 = vadd.f32 0.0, %v8391
        %8393 = vdwg.mxu0
        %8394 = vmatpush.bf16.msra.mxu0 %v8272
        %8395 = vmatpush.bf16.msra.mxu0 %v8271
        %8396 = vmatpush.bf16.msra.mxu0 %v8270
        %8397 = vmatpush.bf16.msra.mxu0 %v8269
        %8398 = vmatpush.bf16.msra.mxu0 %v8268
        %8399 = vmatpush.bf16.msra.mxu0 %v8267
        %8400 = vmatpush.bf16.msra.mxu0 %v8266
        %8401 = vmatpush.bf16.msra.mxu0 %v8265
        %8402 = vmatmul.bf16.gmra.mxu0 %v7691
        %v8403 = vpop.f32.mrf.mxu0
        %v8404 = vadd.f32 %v8315, %v8403
        %v8405 = vpop.f32.mrf.mxu0
        %v8406 = vadd.f32 %v8317, %v8405
        %8407 = vmatmul.bf16.gmra.mxu0 %v7715
        %v8408 = vpop.f32.mrf.mxu0
        %v8409 = vadd.f32 %v8320, %v8408
        %v8410 = vpop.f32.mrf.mxu0
        %v8411 = vadd.f32 %v8322, %v8410
        %8412 = vmatmul.bf16.gmra.mxu0 %v7739
        %v8413 = vpop.f32.mrf.mxu0
        %v8414 = vadd.f32 %v8325, %v8413
        %v8415 = vpop.f32.mrf.mxu0
        %v8416 = vadd.f32 %v8327, %v8415
        %8417 = vmatmul.bf16.gmra.mxu0 %v7763
        %v8418 = vpop.f32.mrf.mxu0
        %v8419 = vadd.f32 %v8330, %v8418
        %v8420 = vpop.f32.mrf.mxu0
        %v8421 = vadd.f32 %v8332, %v8420
        %8422 = vmatmul.bf16.gmra.mxu0 %v7787
        %v8423 = vpop.f32.mrf.mxu0
        %v8424 = vadd.f32 %v8335, %v8423
        %v8425 = vpop.f32.mrf.mxu0
        %v8426 = vadd.f32 %v8337, %v8425
        %8427 = vmatmul.bf16.gmra.mxu0 %v7811
        %v8428 = vpop.f32.mrf.mxu0
        %v8429 = vadd.f32 %v8340, %v8428
        %v8430 = vpop.f32.mrf.mxu0
        %v8431 = vadd.f32 %v8342, %v8430
        %8432 = vmatmul.bf16.gmra.mxu0 %v7835
        %v8433 = vpop.f32.mrf.mxu0
        %v8434 = vadd.f32 %v8345, %v8433
        %v8435 = vpop.f32.mrf.mxu0
        %v8436 = vadd.f32 %v8347, %v8435
        %8437 = vmatmul.bf16.gmra.mxu0 %v7859
        %v8438 = vpop.f32.mrf.mxu0
        %v8439 = vadd.f32 %v8350, %v8438
        %v8440 = vpop.f32.mrf.mxu0
        %v8441 = vadd.f32 %v8352, %v8440
        %8442 = vmatmul.bf16.gmra.mxu0 %v7883
        %v8443 = vpop.f32.mrf.mxu0
        %v8444 = vadd.f32 %v8355, %v8443
        %v8445 = vpop.f32.mrf.mxu0
        %v8446 = vadd.f32 %v8357, %v8445
        %8447 = vmatmul.bf16.gmra.mxu0 %v7907
        %v8448 = vpop.f32.mrf.mxu0
        %v8449 = vadd.f32 %v8360, %v8448
        %v8450 = vpop.f32.mrf.mxu0
        %v8451 = vadd.f32 %v8362, %v8450
        %8452 = vmatmul.bf16.gmra.mxu0 %v7931
        %v8453 = vpop.f32.mrf.mxu0
        %v8454 = vadd.f32 %v8365, %v8453
        %v8455 = vpop.f32.mrf.mxu0
        %v8456 = vadd.f32 %v8367, %v8455
        %8457 = vmatmul.bf16.gmra.mxu0 %v7955
        %v8458 = vpop.f32.mrf.mxu0
        %v8459 = vadd.f32 %v8370, %v8458
        %v8460 = vpop.f32.mrf.mxu0
        %v8461 = vadd.f32 %v8372, %v8460
        %8462 = vmatmul.bf16.gmra.mxu0 %v7979
        %v8463 = vpop.f32.mrf.mxu0
        %v8464 = vadd.f32 %v8375, %v8463
        %v8465 = vpop.f32.mrf.mxu0
        %v8466 = vadd.f32 %v8377, %v8465
        %8467 = vmatmul.bf16.gmra.mxu0 %v8003
        %v8468 = vpop.f32.mrf.mxu0
        %v8469 = vadd.f32 %v8380, %v8468
        %v8470 = vpop.f32.mrf.mxu0
        %v8471 = vadd.f32 %v8382, %v8470
        %8472 = vmatmul.bf16.gmra.mxu0 %v8027
        %v8473 = vpop.f32.mrf.mxu0
        %v8474 = vadd.f32 %v8385, %v8473
        %v8475 = vpop.f32.mrf.mxu0
        %v8476 = vadd.f32 %v8387, %v8475
        %8477 = vmatmul.bf16.gmra.mxu0 %v8051
        %v8478 = vpop.f32.mrf.mxu0
        %v8479 = vadd.f32 %v8390, %v8478
        %v8480 = vpop.f32.mrf.mxu0
        %v8481 = vadd.f32 %v8392, %v8480
        %8482 = vdwg.mxu0
        %8483 = vmatpush.bf16.msra.mxu0 %v8280
        %8484 = vmatpush.bf16.msra.mxu0 %v8279
        %8485 = vmatpush.bf16.msra.mxu0 %v8278
        %8486 = vmatpush.bf16.msra.mxu0 %v8277
        %8487 = vmatpush.bf16.msra.mxu0 %v8276
        %8488 = vmatpush.bf16.msra.mxu0 %v8275
        %8489 = vmatpush.bf16.msra.mxu0 %v8274
        %8490 = vmatpush.bf16.msra.mxu0 %v8273
        %8491 = vmatmul.bf16.gmra.mxu0 %v7703
        %v8492 = vpop.f32.mrf.mxu0
        %v8493 = vadd.f32 %v8404, %v8492
        %v8494 = vpop.f32.mrf.mxu0
        %v8495 = vadd.f32 %v8406, %v8494
        %8496 = vmatmul.bf16.gmra.mxu0 %v7727
        %v8497 = vpop.f32.mrf.mxu0
        %v8498 = vadd.f32 %v8409, %v8497
        %v8499 = vpop.f32.mrf.mxu0
        %v8500 = vadd.f32 %v8411, %v8499
        %8501 = vmatmul.bf16.gmra.mxu0 %v7751
        %v8502 = vpop.f32.mrf.mxu0
        %v8503 = vadd.f32 %v8414, %v8502
        %v8504 = vpop.f32.mrf.mxu0
        %v8505 = vadd.f32 %v8416, %v8504
        %8506 = vmatmul.bf16.gmra.mxu0 %v7775
        %v8507 = vpop.f32.mrf.mxu0
        %v8508 = vadd.f32 %v8419, %v8507
        %v8509 = vpop.f32.mrf.mxu0
        %v8510 = vadd.f32 %v8421, %v8509
        %8511 = vmatmul.bf16.gmra.mxu0 %v7799
        %v8512 = vpop.f32.mrf.mxu0
        %v8513 = vadd.f32 %v8424, %v8512
        %v8514 = vpop.f32.mrf.mxu0
        %v8515 = vadd.f32 %v8426, %v8514
        %8516 = vmatmul.bf16.gmra.mxu0 %v7823
        %v8517 = vpop.f32.mrf.mxu0
        %v8518 = vadd.f32 %v8429, %v8517
        %v8519 = vpop.f32.mrf.mxu0
        %v8520 = vadd.f32 %v8431, %v8519
        %8521 = vmatmul.bf16.gmra.mxu0 %v7847
        %v8522 = vpop.f32.mrf.mxu0
        %v8523 = vadd.f32 %v8434, %v8522
        %v8524 = vpop.f32.mrf.mxu0
        %v8525 = vadd.f32 %v8436, %v8524
        %8526 = vmatmul.bf16.gmra.mxu0 %v7871
        %v8527 = vpop.f32.mrf.mxu0
        %v8528 = vadd.f32 %v8439, %v8527
        %v8529 = vpop.f32.mrf.mxu0
        %v8530 = vadd.f32 %v8441, %v8529
        %8531 = vmatmul.bf16.gmra.mxu0 %v7895
        %v8532 = vpop.f32.mrf.mxu0
        %v8533 = vadd.f32 %v8444, %v8532
        %v8534 = vpop.f32.mrf.mxu0
        %v8535 = vadd.f32 %v8446, %v8534
        %8536 = vmatmul.bf16.gmra.mxu0 %v7919
        %v8537 = vpop.f32.mrf.mxu0
        %v8538 = vadd.f32 %v8449, %v8537
        %v8539 = vpop.f32.mrf.mxu0
        %v8540 = vadd.f32 %v8451, %v8539
        %8541 = vmatmul.bf16.gmra.mxu0 %v7943
        %v8542 = vpop.f32.mrf.mxu0
        %v8543 = vadd.f32 %v8454, %v8542
        %v8544 = vpop.f32.mrf.mxu0
        %v8545 = vadd.f32 %v8456, %v8544
        %8546 = vmatmul.bf16.gmra.mxu0 %v7967
        %v8547 = vpop.f32.mrf.mxu0
        %v8548 = vadd.f32 %v8459, %v8547
        %v8549 = vpop.f32.mrf.mxu0
        %v8550 = vadd.f32 %v8461, %v8549
        %8551 = vmatmul.bf16.gmra.mxu0 %v7991
        %v8552 = vpop.f32.mrf.mxu0
        %v8553 = vadd.f32 %v8464, %v8552
        %v8554 = vpop.f32.mrf.mxu0
        %v8555 = vadd.f32 %v8466, %v8554
        %8556 = vmatmul.bf16.gmra.mxu0 %v8015
        %v8557 = vpop.f32.mrf.mxu0
        %v8558 = vadd.f32 %v8469, %v8557
        %v8559 = vpop.f32.mrf.mxu0
        %v8560 = vadd.f32 %v8471, %v8559
        %8561 = vmatmul.bf16.gmra.mxu0 %v8039
        %v8562 = vpop.f32.mrf.mxu0
        %v8563 = vadd.f32 %v8474, %v8562
        %v8564 = vpop.f32.mrf.mxu0
        %v8565 = vadd.f32 %v8476, %v8564
        %8566 = vmatmul.bf16.gmra.mxu0 %v8063
        %v8567 = vpop.f32.mrf.mxu0
        %v8568 = vadd.f32 %v8479, %v8567
        %v8569 = vpop.f32.mrf.mxu0
        %v8570 = vadd.f32 %v8481, %v8569
        %8571 = vdwg.mxu0
        %v8572 = vadd.f32 %v7152, %v8493
        %v8573 = vadd.f32 %v7154, %v8495
        %v8574 = vadd.f32 %v7157, %v8498
        %v8575 = vadd.f32 %v7159, %v8500
        %v8576 = vadd.f32 %v7162, %v8503
        %v8577 = vadd.f32 %v7164, %v8505
        %v8578 = vadd.f32 %v7167, %v8508
        %v8579 = vadd.f32 %v7169, %v8510
        %v8580 = vadd.f32 %v7172, %v8513
        %v8581 = vadd.f32 %v7174, %v8515
        %v8582 = vadd.f32 %v7177, %v8518
        %v8583 = vadd.f32 %v7179, %v8520
        %v8584 = vadd.f32 %v7182, %v8523
        %v8585 = vadd.f32 %v7184, %v8525
        %v8586 = vadd.f32 %v7187, %v8528
        %v8587 = vadd.f32 %v7189, %v8530
        %v8588 = vadd.f32 %v7192, %v8533
        %v8589 = vadd.f32 %v7194, %v8535
        %v8590 = vadd.f32 %v7197, %v8538
        %v8591 = vadd.f32 %v7199, %v8540
        %v8592 = vadd.f32 %v7202, %v8543
        %v8593 = vadd.f32 %v7204, %v8545
        %v8594 = vadd.f32 %v7207, %v8548
        %v8595 = vadd.f32 %v7209, %v8550
        %v8596 = vadd.f32 %v7212, %v8553
        %v8597 = vadd.f32 %v7214, %v8555
        %v8598 = vadd.f32 %v7217, %v8558
        %v8599 = vadd.f32 %v7219, %v8560
        %v8600 = vadd.f32 %v7222, %v8563
        %v8601 = vadd.f32 %v7224, %v8565
        %v8602 = vadd.f32 %v7227, %v8568
        %v8603 = vadd.f32 %v7229, %v8570
        %v8604 = vld [vmem:[%s5] sm:$0x1]
        %v8605 = vld [vmem:[%s6] sm:$0x1]
        %v8606 = vadd.f32 %v8572, %v8573
        %v8607 = vadd.f32 %v8606, %v8574
        %v8608 = vadd.f32 %v8607, %v8575
        %v8609 = vadd.f32 %v8608, %v8576
        %v8610 = vadd.f32 %v8609, %v8577
        %v8611 = vadd.f32 %v8610, %v8578
        %v8612 = vadd.f32 %v8611, %v8579
        %v8613 = vadd.f32 %v8612, %v8580
        %v8614 = vadd.f32 %v8613, %v8581
        %v8615 = vadd.f32 %v8614, %v8582
        %v8616 = vadd.f32 %v8615, %v8583
        %v8617 = vadd.f32 %v8616, %v8584
        %v8618 = vadd.f32 %v8617, %v8585
        %v8619 = vadd.f32 %v8618, %v8586
        %v8620 = vadd.f32 %v8619, %v8587
        %v8621 = vadd.f32 %v8620, %v8588
        %v8622 = vadd.f32 %v8621, %v8589
        %v8623 = vadd.f32 %v8622, %v8590
        %v8624 = vadd.f32 %v8623, %v8591
        %v8625 = vadd.f32 %v8624, %v8592
        %v8626 = vadd.f32 %v8625, %v8593
        %v8627 = vadd.f32 %v8626, %v8594
        %v8628 = vadd.f32 %v8627, %v8595
        %v8629 = vadd.f32 %v8628, %v8596
        %v8630 = vadd.f32 %v8629, %v8597
        %v8631 = vadd.f32 %v8630, %v8598
        %v8632 = vadd.f32 %v8631, %v8599
        %v8633 = vadd.f32 %v8632, %v8600
        %v8634 = vadd.f32 %v8633, %v8601
        %v8635 = vadd.f32 %v8634, %v8602
        %v8636 = vadd.f32 %v8635, %v8603
        %v8637 = vrot.slane %v8636, 4
        %v8638 = vadd.f32 %v8636, %v8637
        %v8639 = vrot.slane %v8638, 2
        %v8640 = vadd.f32 %v8638, %v8639
        %v8641 = vrot.slane %v8640, 1
        %v8642 = vadd.f32 %v8640, %v8641
        %v8643 = vmul.f32 %v8642, 0.00390625
        %v8644 = vsub.f32 %v8572, %v8643
        %v8645 = vsub.f32 %v8573, %v8643
        %v8646 = vsub.f32 %v8574, %v8643
        %v8647 = vsub.f32 %v8575, %v8643
        %v8648 = vsub.f32 %v8576, %v8643
        %v8649 = vsub.f32 %v8577, %v8643
        %v8650 = vsub.f32 %v8578, %v8643
        %v8651 = vsub.f32 %v8579, %v8643
        %v8652 = vsub.f32 %v8580, %v8643
        %v8653 = vsub.f32 %v8581, %v8643
        %v8654 = vsub.f32 %v8582, %v8643
        %v8655 = vsub.f32 %v8583, %v8643
        %v8656 = vsub.f32 %v8584, %v8643
        %v8657 = vsub.f32 %v8585, %v8643
        %v8658 = vsub.f32 %v8586, %v8643
        %v8659 = vsub.f32 %v8587, %v8643
        %v8660 = vsub.f32 %v8588, %v8643
        %v8661 = vsub.f32 %v8589, %v8643
        %v8662 = vsub.f32 %v8590, %v8643
        %v8663 = vsub.f32 %v8591, %v8643
        %v8664 = vsub.f32 %v8592, %v8643
        %v8665 = vsub.f32 %v8593, %v8643
        %v8666 = vsub.f32 %v8594, %v8643
        %v8667 = vsub.f32 %v8595, %v8643
        %v8668 = vsub.f32 %v8596, %v8643
        %v8669 = vsub.f32 %v8597, %v8643
        %v8670 = vsub.f32 %v8598, %v8643
        %v8671 = vsub.f32 %v8599, %v8643
        %v8672 = vsub.f32 %v8600, %v8643
        %v8673 = vsub.f32 %v8601, %v8643
        %v8674 = vsub.f32 %v8602, %v8643
        %v8675 = vsub.f32 %v8603, %v8643
        %v8676 = vmul.f32 %v8644, %v8644
        %v8677 = vmul.f32 %v8645, %v8645
        %v8678 = vmul.f32 %v8646, %v8646
        %v8679 = vmul.f32 %v8647, %v8647
        %v8680 = vmul.f32 %v8648, %v8648
        %v8681 = vmul.f32 %v8649, %v8649
        %v8682 = vmul.f32 %v8650, %v8650
        %v8683 = vmul.f32 %v8651, %v8651
        %v8684 = vmul.f32 %v8652, %v8652
        %v8685 = vmul.f32 %v8653, %v8653
        %v8686 = vmul.f32 %v8654, %v8654
        %v8687 = vmul.f32 %v8655, %v8655
        %v8688 = vmul.f32 %v8656, %v8656
        %v8689 = vmul.f32 %v8657, %v8657
        %v8690 = vmul.f32 %v8658, %v8658
        %v8691 = vmul.f32 %v8659, %v8659
        %v8692 = vmul.f32 %v8660, %v8660
        %v8693 = vmul.f32 %v8661, %v8661
        %v8694 = vmul.f32 %v8662, %v8662
        %v8695 = vmul.f32 %v8663, %v8663
        %v8696 = vmul.f32 %v8664, %v8664
        %v8697 = vmul.f32 %v8665, %v8665
        %v8698 = vmul.f32 %v8666, %v8666
        %v8699 = vmul.f32 %v8667, %v8667
        %v8700 = vmul.f32 %v8668, %v8668
        %v8701 = vmul.f32 %v8669, %v8669
        %v8702 = vmul.f32 %v8670, %v8670
        %v8703 = vmul.f32 %v8671, %v8671
        %v8704 = vmul.f32 %v8672, %v8672
        %v8705 = vmul.f32 %v8673, %v8673
        %v8706 = vmul.f32 %v8674, %v8674
        %v8707 = vmul.f32 %v8675, %v8675
        %v8708 = vadd.f32 %v8676, %v8677
        %v8709 = vadd.f32 %v8708, %v8678
        %v8710 = vadd.f32 %v8709, %v8679
        %v8711 = vadd.f32 %v8710, %v8680
        %v8712 = vadd.f32 %v8711, %v8681
        %v8713 = vadd.f32 %v8712, %v8682
        %v8714 = vadd.f32 %v8713, %v8683
        %v8715 = vadd.f32 %v8714, %v8684
        %v8716 = vadd.f32 %v8715, %v8685
        %v8717 = vadd.f32 %v8716, %v8686
        %v8718 = vadd.f32 %v8717, %v8687
        %v8719 = vadd.f32 %v8718, %v8688
        %v8720 = vadd.f32 %v8719, %v8689
        %v8721 = vadd.f32 %v8720, %v8690
        %v8722 = vadd.f32 %v8721, %v8691
        %v8723 = vadd.f32 %v8722, %v8692
        %v8724 = vadd.f32 %v8723, %v8693
        %v8725 = vadd.f32 %v8724, %v8694
        %v8726 = vadd.f32 %v8725, %v8695
        %v8727 = vadd.f32 %v8726, %v8696
        %v8728 = vadd.f32 %v8727, %v8697
        %v8729 = vadd.f32 %v8728, %v8698
        %v8730 = vadd.f32 %v8729, %v8699
        %v8731 = vadd.f32 %v8730, %v8700
        %v8732 = vadd.f32 %v8731, %v8701
        %v8733 = vadd.f32 %v8732, %v8702
        %v8734 = vadd.f32 %v8733, %v8703
        %v8735 = vadd.f32 %v8734, %v8704
        %v8736 = vadd.f32 %v8735, %v8705
        %v8737 = vadd.f32 %v8736, %v8706
        %v8738 = vadd.f32 %v8737, %v8707
        %v8739 = vrot.slane %v8738, 4
        %v8740 = vadd.f32 %v8738, %v8739
        %v8741 = vrot.slane %v8740, 2
        %v8742 = vadd.f32 %v8740, %v8741
        %v8743 = vrot.slane %v8742, 1
        %v8744 = vadd.f32 %v8742, %v8743
        %v8745 = vmul.f32 %v8744, 0.00390625
        %v8746 = vadd.f32 %v8745, 1e-05
        %v8747 = vrsqrt.pop %v8746
        %v8748 = vmul.f32 %v8747, %v8746
        %v8749 = vmul.f32 %v8748, %v8747
        %v8750 = vmul.f32 0.5, %v8749
        %v8751 = vsub.f32 1.5, %v8750
        %v8752 = vmul.f32 %v8747, %v8751
        %vm8753 = vweird.f32 %v8746
        %vm8754 = vweird.f32 %v8747
        %vm8755 = vmor %vm8753, %vm8754
        %v8756 = vsel %vm8755, %v8747, %v8752
        %v8757 = vmul.f32 %v8756, %v8604
        %v8758 = vperm.slane %v8757, 0
        %v8759 = vmul.f32 %v8644, %v8758
        %v8760 = vmul.f32 %v8645, %v8758
        %v8761 = vmul.f32 %v8646, %v8758
        %v8762 = vmul.f32 %v8647, %v8758
        %v8763 = vmul.f32 %v8648, %v8758
        %v8764 = vmul.f32 %v8649, %v8758
        %v8765 = vmul.f32 %v8650, %v8758
        %v8766 = vmul.f32 %v8651, %v8758
        %v8767 = vmul.f32 %v8652, %v8758
        %v8768 = vmul.f32 %v8653, %v8758
        %v8769 = vmul.f32 %v8654, %v8758
        %v8770 = vmul.f32 %v8655, %v8758
        %v8771 = vmul.f32 %v8656, %v8758
        %v8772 = vmul.f32 %v8657, %v8758
        %v8773 = vmul.f32 %v8658, %v8758
        %v8774 = vmul.f32 %v8659, %v8758
        %v8775 = vmul.f32 %v8660, %v8758
        %v8776 = vmul.f32 %v8661, %v8758
        %v8777 = vmul.f32 %v8662, %v8758
        %v8778 = vmul.f32 %v8663, %v8758
        %v8779 = vmul.f32 %v8664, %v8758
        %v8780 = vmul.f32 %v8665, %v8758
        %v8781 = vmul.f32 %v8666, %v8758
        %v8782 = vmul.f32 %v8667, %v8758
        %v8783 = vmul.f32 %v8668, %v8758
        %v8784 = vmul.f32 %v8669, %v8758
        %v8785 = vmul.f32 %v8670, %v8758
        %v8786 = vmul.f32 %v8671, %v8758
        %v8787 = vmul.f32 %v8672, %v8758
        %v8788 = vmul.f32 %v8673, %v8758
        %v8789 = vmul.f32 %v8674, %v8758
        %v8790 = vmul.f32 %v8675, %v8758
        %v8792 = vperm.slane %v8605, 0
        %v8794 = vadd.f32 %v8759, %v8792
        %v8795 = vadd.f32 %v8760, %v8792
        %v8796 = vadd.f32 %v8761, %v8792
        %v8797 = vadd.f32 %v8762, %v8792
        %v8798 = vadd.f32 %v8763, %v8792
        %v8799 = vadd.f32 %v8764, %v8792
        %v8800 = vadd.f32 %v8765, %v8792
        %v8801 = vadd.f32 %v8766, %v8792
        %v8802 = vadd.f32 %v8767, %v8792
        %v8803 = vadd.f32 %v8768, %v8792
        %v8804 = vadd.f32 %v8769, %v8792
        %v8805 = vadd.f32 %v8770, %v8792
        %v8806 = vadd.f32 %v8771, %v8792
        %v8807 = vadd.f32 %v8772, %v8792
        %v8808 = vadd.f32 %v8773, %v8792
        %v8809 = vadd.f32 %v8774, %v8792
        %v8810 = vadd.f32 %v8775, %v8792
        %v8811 = vadd.f32 %v8776, %v8792
        %v8812 = vadd.f32 %v8777, %v8792
        %v8813 = vadd.f32 %v8778, %v8792
        %v8814 = vadd.f32 %v8779, %v8792
        %v8815 = vadd.f32 %v8780, %v8792
        %v8816 = vadd.f32 %v8781, %v8792
        %v8817 = vadd.f32 %v8782, %v8792
        %v8818 = vadd.f32 %v8783, %v8792
        %v8819 = vadd.f32 %v8784, %v8792
        %v8820 = vadd.f32 %v8785, %v8792
        %v8821 = vadd.f32 %v8786, %v8792
        %v8822 = vadd.f32 %v8787, %v8792
        %v8823 = vadd.f32 %v8788, %v8792
        %v8824 = vadd.f32 %v8789, %v8792
        %v8825 = vadd.f32 %v8790, %v8792
        %v8826 = vadd.f32 %v8794, %v1221
        %v8827 = vadd.f32 %v8795, %v1222
        %v8828 = vadd.f32 %v8796, %v1223
        %v8829 = vadd.f32 %v8797, %v1224
        %v8830 = vadd.f32 %v8798, %v1225
        %v8831 = vadd.f32 %v8799, %v1226
        %v8832 = vadd.f32 %v8800, %v1227
        %v8833 = vadd.f32 %v8801, %v1228
        %v8834 = vadd.f32 %v8802, %v1229
        %v8835 = vadd.f32 %v8803, %v1230
        %v8836 = vadd.f32 %v8804, %v1231
        %v8837 = vadd.f32 %v8805, %v1232
        %v8838 = vadd.f32 %v8806, %v1233
        %v8839 = vadd.f32 %v8807, %v1234
        %v8840 = vadd.f32 %v8808, %v1235
        %v8841 = vadd.f32 %v8809, %v1236
        %v8842 = vadd.f32 %v8810, %v1237
        %v8843 = vadd.f32 %v8811, %v1238
        %v8844 = vadd.f32 %v8812, %v1239
        %v8845 = vadd.f32 %v8813, %v1240
        %v8846 = vadd.f32 %v8814, %v1241
        %v8847 = vadd.f32 %v8815, %v1242
        %v8848 = vadd.f32 %v8816, %v1243
        %v8849 = vadd.f32 %v8817, %v1244
        %v8850 = vadd.f32 %v8818, %v1245
        %v8851 = vadd.f32 %v8819, %v1246
        %v8852 = vadd.f32 %v8820, %v1247
        %v8853 = vadd.f32 %v8821, %v1248
        %v8854 = vadd.f32 %v8822, %v1249
        %v8855 = vadd.f32 %v8823, %v1250
        %v8856 = vadd.f32 %v8824, %v1251
        %v8857 = vadd.f32 %v8825, %v1252
        %v8858 = vmax.f32 %v8826, 0.0
        %v8859 = vmax.f32 %v8827, 0.0
        %v8860 = vmax.f32 %v8828, 0.0
        %v8861 = vmax.f32 %v8829, 0.0
        %v8862 = vmax.f32 %v8830, 0.0
        %v8863 = vmax.f32 %v8831, 0.0
        %v8864 = vmax.f32 %v8832, 0.0
        %v8865 = vmax.f32 %v8833, 0.0
        %v8866 = vmax.f32 %v8834, 0.0
        %v8867 = vmax.f32 %v8835, 0.0
        %v8868 = vmax.f32 %v8836, 0.0
        %v8869 = vmax.f32 %v8837, 0.0
        %v8870 = vmax.f32 %v8838, 0.0
        %v8871 = vmax.f32 %v8839, 0.0
        %v8872 = vmax.f32 %v8840, 0.0
        %v8873 = vmax.f32 %v8841, 0.0
        %v8874 = vmax.f32 %v8842, 0.0
        %v8875 = vmax.f32 %v8843, 0.0
        %v8876 = vmax.f32 %v8844, 0.0
        %v8877 = vmax.f32 %v8845, 0.0
        %v8878 = vmax.f32 %v8846, 0.0
        %v8879 = vmax.f32 %v8847, 0.0
        %v8880 = vmax.f32 %v8848, 0.0
        %v8881 = vmax.f32 %v8849, 0.0
        %v8882 = vmax.f32 %v8850, 0.0
        %v8883 = vmax.f32 %v8851, 0.0
        %v8884 = vmax.f32 %v8852, 0.0
        %v8885 = vmax.f32 %v8853, 0.0
        %v8886 = vmax.f32 %v8854, 0.0
        %v8887 = vmax.f32 %v8855, 0.0
        %v8888 = vmax.f32 %v8856, 0.0
        %v8889 = vmax.f32 %v8857, 0.0
        %v8890 = vpack.c.bf16 %v8858, %v8858
        %v8891 = vpack.c.bf16 %v8859, %v8859
        %v8892 = vpack.c.bf16 %v8860, %v8860
        %v8893 = vpack.c.bf16 %v8861, %v8861
        %v8894 = vpack.c.bf16 %v8862, %v8862
        %v8895 = vpack.c.bf16 %v8863, %v8863
        %v8896 = vpack.c.bf16 %v8864, %v8864
        %v8897 = vpack.c.bf16 %v8865, %v8865
        %v8898 = vpack.c.bf16 %v8866, %v8866
        %v8899 = vpack.c.bf16 %v8867, %v8867
        %v8900 = vpack.c.bf16 %v8868, %v8868
        %v8901 = vpack.c.bf16 %v8869, %v8869
        %v8902 = vpack.c.bf16 %v8870, %v8870
        %v8903 = vpack.c.bf16 %v8871, %v8871
        %v8904 = vpack.c.bf16 %v8872, %v8872
        %v8905 = vpack.c.bf16 %v8873, %v8873
        %v8906 = vpack.c.bf16 %v8874, %v8874
        %v8907 = vpack.c.bf16 %v8875, %v8875
        %v8908 = vpack.c.bf16 %v8876, %v8876
        %v8909 = vpack.c.bf16 %v8877, %v8877
        %v8910 = vpack.c.bf16 %v8878, %v8878
        %v8911 = vpack.c.bf16 %v8879, %v8879
        %v8912 = vpack.c.bf16 %v8880, %v8880
        %v8913 = vpack.c.bf16 %v8881, %v8881
        %v8914 = vpack.c.bf16 %v8882, %v8882
        %v8915 = vpack.c.bf16 %v8883, %v8883
        %v8916 = vpack.c.bf16 %v8884, %v8884
        %v8917 = vpack.c.bf16 %v8885, %v8885
        %v8918 = vpack.c.bf16 %v8886, %v8886
        %v8919 = vpack.c.bf16 %v8887, %v8887
        %v8920 = vpack.c.bf16 %v8888, %v8888
        %v8921 = vpack.c.bf16 %v8889, %v8889
        %8922 = vst [vmem:[%s376] sm:$0xf] %v8890
        %8923 = vst [vmem:[%s376 + $0x4] sm:$0xf] %v8891
        %8924 = vst [vmem:[%s376 + $0x8] sm:$0xf] %v8892
        %8925 = vst [vmem:[%s376 + $0xc] sm:$0xf] %v8893
        %8926 = vst [vmem:[%s376 + $0x10] sm:$0xf] %v8894
        %8927 = vst [vmem:[%s376 + $0x14] sm:$0xf] %v8895
        %8928 = vst [vmem:[%s376 + $0x18] sm:$0xf] %v8896
        %8929 = vst [vmem:[%s376 + $0x1c] sm:$0xf] %v8897
        %8930 = vst [vmem:[%s376 + $0x20] sm:$0xf] %v8898
        %8931 = vst [vmem:[%s376 + $0x24] sm:$0xf] %v8899
        %8932 = vst [vmem:[%s376 + $0x28] sm:$0xf] %v8900
        %8933 = vst [vmem:[%s376 + $0x2c] sm:$0xf] %v8901
        %8934 = vst [vmem:[%s376 + $0x30] sm:$0xf] %v8902
        %8935 = vst [vmem:[%s376 + $0x34] sm:$0xf] %v8903
        %8936 = vst [vmem:[%s376 + $0x38] sm:$0xf] %v8904
        %8937 = vst [vmem:[%s376 + $0x3c] sm:$0xf] %v8905
        %8938 = vst [vmem:[%s376 + $0x40] sm:$0xf] %v8906
        %8939 = vst [vmem:[%s376 + $0x44] sm:$0xf] %v8907
        %8940 = vst [vmem:[%s376 + $0x48] sm:$0xf] %v8908
        %8941 = vst [vmem:[%s376 + $0x4c] sm:$0xf] %v8909
        %8942 = vst [vmem:[%s376 + $0x50] sm:$0xf] %v8910
        %8943 = vst [vmem:[%s376 + $0x54] sm:$0xf] %v8911
        %8944 = vst [vmem:[%s376 + $0x58] sm:$0xf] %v8912
        %8945 = vst [vmem:[%s376 + $0x5c] sm:$0xf] %v8913
        %8946 = vst [vmem:[%s376 + $0x60] sm:$0xf] %v8914
        %8947 = vst [vmem:[%s376 + $0x64] sm:$0xf] %v8915
        %8948 = vst [vmem:[%s376 + $0x68] sm:$0xf] %v8916
        %8949 = vst [vmem:[%s376 + $0x6c] sm:$0xf] %v8917
        %8950 = vst [vmem:[%s376 + $0x70] sm:$0xf] %v8918
        %8951 = vst [vmem:[%s376 + $0x74] sm:$0xf] %v8919
        %8952 = vst [vmem:[%s376 + $0x78] sm:$0xf] %v8920
        %8953 = vst [vmem:[%s376 + $0x7c] sm:$0xf] %v8921
        %p8954 = scmp.lt.s32.totalorder %s22, 1
        %s8955 = scalar_select %p8954, %s22, 1
        %s8956 = smul.addr %s8955, 32
        %s8957 = smul.addr %s8956, 4
        %s8958 = scalar_lea.vmem %s10, %s8957
        // Predicated region
        $region65: #{basic_block_forward.1} parent=59 // pred_check
          %p8959 = pneg %p255
        $region66: #{basic_block_forward.1} parent=59 // pred_check_branch
          %8961 = sbr.rel (%p8959) target = $region68
        $region67: #{basic_block_forward.1} parent=59 // pred_region
          _
        $region68: #{basic_block_forward.1} parent=59 // pred_fallthru
          _
      $region60: #{basic_block_forward.1} parent=5 // pred_fallthru
        _
      %p8962 = scmp.le.s32.totalorder 2, %s17
      // Predicated region
      $region69: #{basic_block_forward.1} parent=5 // pred_check
        %p8963 = pneg %p8962
      $region70: #{basic_block_forward.1} parent=5 // pred_check_branch
        %8965 = sbr.rel (%p8963) target = $region72
      $region71: #{basic_block_forward.1} parent=5 // pred_region
        %s8966 = ssub.s32 %s17, 2
        // Predicated region
        $region73: #{basic_block_forward.1} parent=71 // pred_check
          %p8967 = pneg %p261
        $region74: #{basic_block_forward.1} parent=71 // pred_check_branch
          %8969 = sbr.rel (%p8967) target = $region76
        $region75: #{basic_block_forward.1} parent=71 // pred_region
          %p8970 = scmp.lt.s32.totalorder %s23, 1
          %s8971 = scalar_select %p8970, %s23, 1
          %s8972 = smul.addr %s8971, 32
          %s8973 = smul.addr %s8972, 4
          %s8974 = scalar_lea.vmem %s10, %s8973
        $region76: #{basic_block_forward.1} parent=71 // pred_fallthru
          _
      $region72: #{basic_block_forward.1} parent=5 // pred_fallthru
        _
    $region6: #{basic_block_forward.1} parent=1 // loop_footer
      %s21 = sadd.s32 1, %s17
    $region7: #{basic_block_forward.1} parent=1 // loop_footer_branch
      %16 = sbr.rel target = $region3
    $region8: #{basic_block_forward.1} parent=1 // loop_exit
      _
    %8975 = vsyncpa [#allocation4], 1
    %s8976 = scalar_lea.sflag [#allocation4], 1
    %8977 = vsyncpa %s8976, 1

</llo_original>
